<compile_context>
chip_gen: v6e
topology: v6e:2x2x1
jax: 0.10.0
libtpu: 0.0.40
codegen_flags: <defaults>
</compile_context>

<pallas_src>
import functools

import jax
import jax.numpy as jnp
from jax.experimental import pallas as pl
from jax.experimental.pallas import tpu as pltpu

MXU_DTYPE = jnp.bfloat16            # matmul operand dtype (accumulation is f32)
VMEM_LIMIT = 32 * 1024 * 1024       # explicit budget, fits v5e/v6e/v7x


# --------------------------------------------------------------------------
# Kernel 1: fused conv stack  (Conv1d same-pad + BN + ReLU + MaxPool) x 3
# --------------------------------------------------------------------------
def _conv_block(x, w_flat, scale, shift, *, K, pad, pool):
    """One Conv1d(K, 'same') + folded-BN + ReLU + MaxPool(pool) stage.

    x:      (B, T, Cin)  f32 activations (time on sublanes, channels on lanes)
    w_flat: (K*Cin, Cout) MXU_DTYPE, row index = k*Cin + cin
    scale:  (1, Cout) f32 folded BN scale
    shift:  (1, Cout) f32 folded BN shift (includes conv bias)
    returns (B, T//pool, Cout) f32
    """
    B, T, Cin = x.shape
    Cout = w_flat.shape[-1]
    # 'same' padding built in VMEM -- no extra HBM pad pass.
    zpad = jnp.zeros((B, pad, Cin), x.dtype)
    xp = jnp.concatenate([zpad, x, zpad], axis=1)              # (B, T+2p, Cin)
    # im2col: K static time-shifts stacked on the lane axis -> ONE matmul with
    # contraction K*Cin instead of K matmuls with contraction Cin.
    cols = jnp.concatenate([xp[:, k:k + T, :] for k in range(K)], axis=2)
    cols = cols.reshape(B * T, K * Cin).astype(w_flat.dtype)   # (B*T, K*Cin)
    acc = jnp.dot(cols, w_flat, preferred_element_type=jnp.float32)
    z = jnp.maximum(acc * scale + shift, 0.0)                  # BN + ReLU (f32)
    # MaxPool1d(pool): T % pool == 0, so B*T chunks never cross sample bounds.
    z = jnp.max(z.reshape(B * T // pool, pool, Cout), axis=1)
    return z.reshape(B, T // pool, Cout)


def _conv_stack_kernel(x_ref,
                       w1_ref, s1_ref, h1_ref,
                       w2_ref, s2_ref, h2_ref,
                       w3_ref, s3_ref, h3_ref,
                       o_ref, *, cfgs):
    x = x_ref[...]                                             # (B, T, C0) f32
    stages = ((w1_ref, s1_ref, h1_ref),
              (w2_ref, s2_ref, h2_ref),
              (w3_ref, s3_ref, h3_ref))
    for (w_ref, sc_ref, sh_ref), (K, pad, pool) in zip(stages, cfgs):
        x = _conv_block(x, w_ref[...], sc_ref[...], sh_ref[...],
                        K=K, pad=pad, pool=pool)
    o_ref[...] = x                                             # (B, T//32, 128)


def conv_stack(x_btc, params):
    """(B, T, n_channels) f32 -> (B, T//32, 128) f32, single pallas_call."""
    B, T, _ = x_btc.shape
    kernel = functools.partial(_conv_stack_kernel,
                               cfgs=((5, 2, 4), (5, 2, 4), (3, 1, 2)))
    return pl.pallas_call(
        kernel,
        out_shape=jax.ShapeDtypeStruct((B, T // 32, 128), jnp.float32),
        compiler_params=pltpu.CompilerParams(vmem_limit_bytes=VMEM_LIMIT),
    )(x_btc,
      params['conv1_w'], params['bn1_scale'], params['bn1_shift'],
      params['conv2_w'], params['bn2_scale'], params['bn2_shift'],
      params['conv3_w'], params['bn3_scale'], params['bn3_shift'])


# --------------------------------------------------------------------------
# Kernel 2: one bidirectional LSTM layer (time-major), h0 = c0 = 0
# --------------------------------------------------------------------------
def _bilstm_kernel(x_ref,
                   wih_f_ref, whh_f_ref, b_f_ref,
                   wih_r_ref, whh_r_ref, b_r_ref,
                   o_ref, xpf_ref, xpr_ref):
    # x_ref:   (T, B, Din) f32        time-major input
    # wih_*:   (Din, 4H)  MXU_DTYPE   (= W_ih^T)
    # whh_*:   (H, 4H)    MXU_DTYPE   (= W_hh^T)
    # b_*:     (1, 4H)    f32         (= b_ih + b_hh)
    # o_ref:   (T, B, 2H) f32         [..., :H] forward, [..., H:] reverse
    # xp*_ref: (T, B, 4H) f32         VMEM scratch: hoisted input projections
    T, B, Din = x_ref.shape
    H = whh_f_ref.shape[0]

    # Hoist the input projection out of the recurrence: one big MXU-friendly
    # matmul per direction instead of T matmuls with M=B.
    x2 = x_ref[...].reshape(T * B, Din).astype(wih_f_ref.dtype)
    xpf_ref[...] = (jnp.dot(x2, wih_f_ref[...],
                            preferred_element_type=jnp.float32)
                    + b_f_ref[...]).reshape(T, B, 4 * H)
    xpr_ref[...] = (jnp.dot(x2, wih_r_ref[...],
                            preferred_element_type=jnp.float32)
                    + b_r_ref[...]).reshape(T, B, 4 * H)

    def cell(pre, h, c, whh_ref):
        gates = pre + jnp.dot(h.astype(whh_ref.dtype), whh_ref[...],
                              preferred_element_type=jnp.float32)   # (B, 4H)
        i = jax.nn.sigmoid(gates[:, 0 * H:1 * H])
        f = jax.nn.sigmoid(gates[:, 1 * H:2 * H])
        g = jnp.tanh(gates[:, 2 * H:3 * H])
        o = jax.nn.sigmoid(gates[:, 3 * H:4 * H])
        c_new = f * c + i * g
        h_new = o * jnp.tanh(c_new)
        return h_new, c_new

    def step(t, carry):
        hf, cf, hr, cr = carry
        hf, cf = cell(xpf_ref[t], hf, cf, whh_f_ref)             # forward dir
        hr, cr = cell(xpr_ref[T - 1 - t], hr, cr, whh_r_ref)     # reverse dir
        o_ref[t, :, 0:H] = hf
        o_ref[T - 1 - t, :, H:2 * H] = hr
        return hf, cf, hr, cr

    z = jnp.zeros((B, H), jnp.float32)
    jax.lax.fori_loop(0, T, step, (z, z, z, z))


def bilstm_layer(x_tbd, layer_params):
    (wih_f, whh_f, b_f), (wih_r, whh_r, b_r) = layer_params
    T, B, _ = x_tbd.shape
    H = whh_f.shape[0]
    return pl.pallas_call(
        _bilstm_kernel,
        out_shape=jax.ShapeDtypeStruct((T, B, 2 * H), jnp.float32),
        scratch_shapes=[pltpu.VMEM((T, B, 4 * H), jnp.float32),
                        pltpu.VMEM((T, B, 4 * H), jnp.float32)],
        compiler_params=pltpu.CompilerParams(vmem_limit_bytes=VMEM_LIMIT),
    )(x_tbd, wih_f, whh_f, b_f, wih_r, whh_r, b_r)


# --------------------------------------------------------------------------
# Kernel 3: classifier MLP  Linear-ReLU-Linear-ReLU-Linear (dropout = id)
# --------------------------------------------------------------------------
def _mlp_kernel(x_ref, w1_ref, b1_ref, w2_ref, b2_ref, w3_ref, b3_ref, o_ref):
    h = jnp.maximum(
        jnp.dot(x_ref[...].astype(w1_ref.dtype), w1_ref[...],
                preferred_element_type=jnp.float32) + b1_ref[...], 0.0)
    h = jnp.maximum(
        jnp.dot(h.astype(w2_ref.dtype), w2_ref[...],
                preferred_element_type=jnp.float32) + b2_ref[...], 0.0)
    o_ref[...] = (jnp.dot(h.astype(w3_ref.dtype), w3_ref[...],
                          preferred_element_type=jnp.float32) + b3_ref[...])


def classifier(x, w1, b1, w2, b2, w3, b3):
    B = x.shape[0]
    n_classes = w3.shape[1]
    return pl.pallas_call(
        _mlp_kernel,
        out_shape=jax.ShapeDtypeStruct((B, n_classes), jnp.float32),
        compiler_params=pltpu.CompilerParams(vmem_limit_bytes=VMEM_LIMIT),
    )(x, w1, b1, w2, b2, w3, b3)


# --------------------------------------------------------------------------
# Parameter construction (deterministic, matches the module's shapes)
# --------------------------------------------------------------------------
def init_params(key, n_channels=4, n_classes=8, time_points=64, hidden=256):
    ks = iter(jax.random.split(key, 32))
    params = {}

    def kaiming_conv(k, cout, cin, ksize):
        std = (2.0 / (cout * ksize)) ** 0.5                  # fan_out, relu
        w = std * jax.random.normal(k, (cout, cin, ksize), jnp.float32)
        # (Cout, Cin, K) -> (K, Cin, Cout) -> (K*Cin, Cout) for im2col matmul.
        return (jnp.transpose(w, (2, 1, 0))
                .reshape(ksize * cin, cout).astype(MXU_DTYPE))

    def bn_fold(cout, eps=1e-5):
        # eval-mode stats of a fresh model: gamma=1, beta=0, mean=0, var=1,
        # conv bias=0  ->  scale = 1/sqrt(1+eps), shift = 0.
        scale = jnp.full((1, cout), 1.0 / (1.0 + eps) ** 0.5, jnp.float32)
        shift = jnp.zeros((1, cout), jnp.float32)
        return scale, shift

    params['conv1_w'] = kaiming_conv(next(ks), 32, n_channels, 5)
    params['bn1_scale'], params['bn1_shift'] = bn_fold(32)
    params['conv2_w'] = kaiming_conv(next(ks), 64, 32, 5)
    params['bn2_scale'], params['bn2_shift'] = bn_fold(64)
    params['conv3_w'] = kaiming_conv(next(ks), 128, 64, 3)
    params['bn3_scale'], params['bn3_shift'] = bn_fold(128)

    # 2-layer bidirectional LSTM, PyTorch default uniform(-1/sqrt(H), 1/sqrt(H))
    bound = 1.0 / hidden ** 0.5
    lstm = []
    for layer in range(2):
        din = 128 if layer == 0 else 2 * hidden
        dirs = []
        for _ in range(2):                                   # forward, reverse
            wih = jax.random.uniform(next(ks), (4 * hidden, din),
                                     jnp.float32, -bound, bound)
            whh = jax.random.uniform(next(ks), (4 * hidden, hidden),
                                     jnp.float32, -bound, bound)
            bih = jax.random.uniform(next(ks), (4 * hidden,),
                                     jnp.float32, -bound, bound)
            bhh = jax.random.uniform(next(ks), (4 * hidden,),
                                     jnp.float32, -bound, bound)
            dirs.append((wih.T.astype(MXU_DTYPE),
                         whh.T.astype(MXU_DTYPE),
                         (bih + bhh).reshape(1, -1)))
        lstm.append(tuple(dirs))
    params['lstm'] = lstm

    # Classifier (xavier normal, zero bias); weights stored transposed (in, out)
    def xavier(k, fout, fin):
        std = (2.0 / (fin + fout)) ** 0.5
        w = std * jax.random.normal(k, (fout, fin), jnp.float32)
        return w.T.astype(MXU_DTYPE)

    conv_output_size = time_points // 32
    fc_in = 2 * hidden * conv_output_size
    params['fc1_w'] = xavier(next(ks), 512, fc_in)
    params['fc1_b'] = jnp.zeros((1, 512), jnp.float32)
    params['fc2_w'] = xavier(next(ks), 128, 512)
    params['fc2_b'] = jnp.zeros((1, 128), jnp.float32)
    params['fc3_w'] = xavier(next(ks), n_classes, 128)
    params['fc3_b'] = jnp.zeros((1, n_classes), jnp.float32)
    return params


# --------------------------------------------------------------------------
# Full forward pass (mirrors EEGSpeechClassifier.forward, inference mode)
# --------------------------------------------------------------------------
def eeg_speech_classifier_forward(x_nct, params):
    # x_nct: (B, n_channels, time_points) -- PyTorch NCW input convention.
    x = jnp.transpose(x_nct, (0, 2, 1)).astype(jnp.float32)   # (B, T, C)
    x = conv_stack(x, params)                                 # (B, T//32, 128)
    # Dropout(0.4): identity in inference.

    h = jnp.transpose(x, (1, 0, 2))                           # (T', B, 128)
    for layer_params in params['lstm']:
        h = bilstm_layer(h, layer_params)                     # (T', B, 2H)
        # inter-layer LSTM dropout(0.3): identity in inference.
    h = jnp.transpose(h, (1, 0, 2))                           # (B, T', 2H)
    flat = h.reshape(h.shape[0], -1)                          # (B, T'*2H)

    return classifier(flat, params['fc1_w'], params['fc1_b'],
                      params['fc2_w'], params['fc2_b'],
                      params['fc3_w'], params['fc3_b'])


# --------------------------------------------------------------------------
if __name__ == "__main__":
    # Small, module-consistent shapes: time_points must be divisible by 32.
    B, n_channels, n_classes, time_points = 2, 4, 8, 64

    key = jax.random.PRNGKey(0)
    k_x, k_p = jax.random.split(key)
    x = jax.random.normal(k_x, (B, n_channels, time_points), jnp.float32)
    params = init_params(k_p, n_channels, n_classes, time_points)

    fwd = jax.jit(lambda xx: eeg_speech_classifier_forward(xx, params))
    logits = fwd(x)
    jax.block_until_ready(logits)

    assert logits.shape == (B, n_classes), logits.shape
    assert bool(jnp.all(jnp.isfinite(logits)))
    print("KERNEL_OK")
</pallas_src>

<mosaic_0001>
module attributes {stable_mosaic.version = 11 : i64} {
  func.func @_bilstm_kernel(%arg0: memref<2x2x128xf32, #tpu.memory_space<vmem>>, %arg1: memref<128x1024xbf16, #tpu.memory_space<vmem>>, %arg2: memref<256x1024xbf16, #tpu.memory_space<vmem>>, %arg3: memref<1x1024xf32, #tpu.memory_space<vmem>>, %arg4: memref<128x1024xbf16, #tpu.memory_space<vmem>>, %arg5: memref<256x1024xbf16, #tpu.memory_space<vmem>>, %arg6: memref<1x1024xf32, #tpu.memory_space<vmem>>, %arg7: memref<2x2x512xf32, #tpu.memory_space<vmem>>, %arg8: memref<2x2x1024xf32, #tpu.memory_space<vmem>>, %arg9: memref<2x2x1024xf32, #tpu.memory_space<vmem>>) attributes {dimension_semantics = [], scalar_prefetch = 0 : i64, scratch_operands = 2 : i64, tpu.core_type = #tpu.core_type<tc>} {
    %c0 = arith.constant 0 : index
    %c0_0 = arith.constant 0 : index
    %c0_1 = arith.constant 0 : index
    %0 = vector.load %arg0[%c0, %c0_0, %c0_1] : memref<2x2x128xf32, #tpu.memory_space<vmem>>, vector<2x2x128xf32>
    %1 = vector.shape_cast %0 : vector<2x2x128xf32> to vector<4x128xf32>
    %2 = arith.truncf %1 : vector<4x128xf32> to vector<4x128xbf16>
    %c0_2 = arith.constant 0 : index
    %c0_3 = arith.constant 0 : index
    %3 = vector.load %arg1[%c0_2, %c0_3] : memref<128x1024xbf16, #tpu.memory_space<vmem>>, vector<128x1024xbf16>
    %cst = arith.constant dense<0.000000e+00> : vector<4x1024xf32>
    %4 = tpu.matmul %2, %3, %cst {dimension_numbers = #tpu.dot_dimension_numbers<[1], [0], [0], [1], [0, 0, 1, 1], [], []>} : vector<4x128xbf16>, vector<128x1024xbf16>, vector<4x1024xf32> -> vector<4x1024xf32>
    %c0_4 = arith.constant 0 : index
    %c0_5 = arith.constant 0 : index
    %5 = vector.load %arg3[%c0_4, %c0_5] : memref<1x1024xf32, #tpu.memory_space<vmem>>, vector<1x1024xf32>
    %6 = vector.broadcast %5 : vector<1x1024xf32> to vector<4x1024xf32>
    %7 = arith.addf %4, %6 : vector<4x1024xf32>
    %8 = vector.shape_cast %7 : vector<4x1024xf32> to vector<2x2x1024xf32>
    %c0_6 = arith.constant 0 : index
    %c0_7 = arith.constant 0 : index
    %c0_8 = arith.constant 0 : index
    %9 = vector.load %arg8[%c0_6, %c0_7, %c0_8] : memref<2x2x1024xf32, #tpu.memory_space<vmem>>, vector<2x2x1024xf32>
    tpu.vector_store %arg8[%c0_6, %c0_7, %c0_8], %8 {strides = array<i32>} : memref<2x2x1024xf32, #tpu.memory_space<vmem>>, vector<2x2x1024xf32>,
    %c0_9 = arith.constant 0 : index
    %c0_10 = arith.constant 0 : index
    %10 = vector.load %arg4[%c0_9, %c0_10] : memref<128x1024xbf16, #tpu.memory_space<vmem>>, vector<128x1024xbf16>
    %cst_11 = arith.constant dense<0.000000e+00> : vector<4x1024xf32>
    %11 = tpu.matmul %2, %10, %cst_11 {dimension_numbers = #tpu.dot_dimension_numbers<[1], [0], [0], [1], [0, 0, 1, 1], [], []>} : vector<4x128xbf16>, vector<128x1024xbf16>, vector<4x1024xf32> -> vector<4x1024xf32>
    %c0_12 = arith.constant 0 : index
    %c0_13 = arith.constant 0 : index
    %12 = vector.load %arg6[%c0_12, %c0_13] : memref<1x1024xf32, #tpu.memory_space<vmem>>, vector<1x1024xf32>
    %13 = vector.broadcast %12 : vector<1x1024xf32> to vector<4x1024xf32>
    %14 = arith.addf %11, %13 : vector<4x1024xf32>
    %15 = vector.shape_cast %14 : vector<4x1024xf32> to vector<2x2x1024xf32>
    %c0_14 = arith.constant 0 : index
    %c0_15 = arith.constant 0 : index
    %c0_16 = arith.constant 0 : index
    %16 = vector.load %arg9[%c0_14, %c0_15, %c0_16] : memref<2x2x1024xf32, #tpu.memory_space<vmem>>, vector<2x2x1024xf32>
    tpu.vector_store %arg9[%c0_14, %c0_15, %c0_16], %15 {strides = array<i32>} : memref<2x2x1024xf32, #tpu.memory_space<vmem>>, vector<2x2x1024xf32>,
    %cst_17 = arith.constant 0.000000e+00 : f32
    %17 = vector.broadcast %cst_17 : f32 to vector<2x256xf32>
    %c0_i32 = arith.constant 0 : i32
    %c2_i32 = arith.constant 2 : i32
    %18 = arith.addi %c0_i32, %c2_i32 : i32
    %c1_i32 = arith.constant 1 : i32
    %19:4 = scf.for %arg10 = %c0_i32 to %18 step %c1_i32 iter_args(%arg11 = %17, %arg12 = %17, %arg13 = %17, %arg14 = %17) -> (vector<2x256xf32>, vector<2x256xf32>, vector<2x256xf32>, vector<2x256xf32>)  : i32 {
      %20 = arith.index_cast %arg10 : i32 to index
      %c0_19 = arith.constant 0 : index
      %c0_20 = arith.constant 0 : index
      %21 = vector.load %arg8[%20, %c0_19, %c0_20] : memref<2x2x1024xf32, #tpu.memory_space<vmem>>, vector<1x2x1024xf32>
      %22 = vector.shape_cast %21 : vector<1x2x1024xf32> to vector<2x1024xf32>
      %23 = arith.truncf %arg11 : vector<2x256xf32> to vector<2x256xbf16>
      %c0_21 = arith.constant 0 : index
      %c0_22 = arith.constant 0 : index
      %24 = vector.load %arg2[%c0_21, %c0_22] : memref<256x1024xbf16, #tpu.memory_space<vmem>>, vector<256x1024xbf16>
      %cst_23 = arith.constant dense<0.000000e+00> : vector<2x1024xf32>
      %25 = tpu.matmul %23, %24, %cst_23 {dimension_numbers = #tpu.dot_dimension_numbers<[1], [0], [0], [1], [0, 0, 1, 1], [], []>} : vector<2x256xbf16>, vector<256x1024xbf16>, vector<2x1024xf32> -> vector<2x1024xf32>
      %26 = arith.addf %22, %25 : vector<2x1024xf32>
      %27 = vector.extract_strided_slice %26 {offsets = [0, 0], sizes = [2, 256], strides = [1, 1]} : vector<2x1024xf32> to vector<2x256xf32>
      %28 = arith.negf %27 : vector<2x256xf32>
      %29 = math.exp %28 : vector<2x256xf32>
      %cst_24 = arith.constant 1.000000e+00 : f32
      %30 = vector.broadcast %cst_24 : f32 to vector<2x256xf32>
      %31 = arith.addf %30, %29 : vector<2x256xf32>
      %32 = arith.divf %30, %31 : vector<2x256xf32>
      %33 = vector.extract_strided_slice %26 {offsets = [0, 256], sizes = [2, 256], strides = [1, 1]} : vector<2x1024xf32> to vector<2x256xf32>
      %34 = arith.negf %33 : vector<2x256xf32>
      %35 = math.exp %34 : vector<2x256xf32>
      %cst_25 = arith.constant 1.000000e+00 : f32
      %36 = vector.broadcast %cst_25 : f32 to vector<2x256xf32>
      %37 = arith.addf %36, %35 : vector<2x256xf32>
      %38 = arith.divf %36, %37 : vector<2x256xf32>
      %39 = vector.extract_strided_slice %26 {offsets = [0, 512], sizes = [2, 256], strides = [1, 1]} : vector<2x1024xf32> to vector<2x256xf32>
      %40 = math.tanh %39 : vector<2x256xf32>
      %41 = vector.extract_strided_slice %26 {offsets = [0, 768], sizes = [2, 256], strides = [1, 1]} : vector<2x1024xf32> to vector<2x256xf32>
      %42 = arith.negf %41 : vector<2x256xf32>
      %43 = math.exp %42 : vector<2x256xf32>
      %cst_26 = arith.constant 1.000000e+00 : f32
      %44 = vector.broadcast %cst_26 : f32 to vector<2x256xf32>
      %45 = arith.addf %44, %43 : vector<2x256xf32>
      %46 = arith.divf %44, %45 : vector<2x256xf32>
      %47 = arith.mulf %38, %arg12 : vector<2x256xf32>
      %48 = arith.mulf %32, %40 : vector<2x256xf32>
      %49 = arith.addf %47, %48 : vector<2x256xf32>
      %50 = math.tanh %49 : vector<2x256xf32>
      %51 = arith.mulf %46, %50 : vector<2x256xf32>
      %c1_i32_27 = arith.constant 1 : i32
      %52 = arith.subi %c1_i32_27, %arg10 : i32
      %53 = arith.index_cast %52 : i32 to index
      %c0_28 = arith.constant 0 : index
      %c0_29 = arith.constant 0 : index
      %54 = vector.load %arg9[%53, %c0_28, %c0_29] : memref<2x2x1024xf32, #tpu.memory_space<vmem>>, vector<1x2x1024xf32>
      %55 = vector.shape_cast %54 : vector<1x2x1024xf32> to vector<2x1024xf32>
      %56 = arith.truncf %arg13 : vector<2x256xf32> to vector<2x256xbf16>
      %c0_30 = arith.constant 0 : index
      %c0_31 = arith.constant 0 : index
      %57 = vector.load %arg5[%c0_30, %c0_31] : memref<256x1024xbf16, #tpu.memory_space<vmem>>, vector<256x1024xbf16>
      %cst_32 = arith.constant dense<0.000000e+00> : vector<2x1024xf32>
      %58 = tpu.matmul %56, %57, %cst_32 {dimension_numbers = #tpu.dot_dimension_numbers<[1], [0], [0], [1], [0, 0, 1, 1], [], []>} : vector<2x256xbf16>, vector<256x1024xbf16>, vector<2x1024xf32> -> vector<2x1024xf32>
      %59 = arith.addf %55, %58 : vector<2x1024xf32>
      %60 = vector.extract_strided_slice %59 {offsets = [0, 0], sizes = [2, 256], strides = [1, 1]} : vector<2x1024xf32> to vector<2x256xf32>
      %61 = arith.negf %60 : vector<2x256xf32>
      %62 = math.exp %61 : vector<2x256xf32>
      %cst_33 = arith.constant 1.000000e+00 : f32
      %63 = vector.broadcast %cst_33 : f32 to vector<2x256xf32>
      %64 = arith.addf %63, %62 : vector<2x256xf32>
      %65 = arith.divf %63, %64 : vector<2x256xf32>
      %66 = vector.extract_strided_slice %59 {offsets = [0, 256], sizes = [2, 256], strides = [1, 1]} : vector<2x1024xf32> to vector<2x256xf32>
      %67 = arith.negf %66 : vector<2x256xf32>
      %68 = math.exp %67 : vector<2x256xf32>
      %cst_34 = arith.constant 1.000000e+00 : f32
      %69 = vector.broadcast %cst_34 : f32 to vector<2x256xf32>
      %70 = arith.addf %69, %68 : vector<2x256xf32>
      %71 = arith.divf %69, %70 : vector<2x256xf32>
      %72 = vector.extract_strided_slice %59 {offsets = [0, 512], sizes = [2, 256], strides = [1, 1]} : vector<2x1024xf32> to vector<2x256xf32>
      %73 = math.tanh %72 : vector<2x256xf32>
      %74 = vector.extract_strided_slice %59 {offsets = [0, 768], sizes = [2, 256], strides = [1, 1]} : vector<2x1024xf32> to vector<2x256xf32>
      %75 = arith.negf %74 : vector<2x256xf32>
      %76 = math.exp %75 : vector<2x256xf32>
      %cst_35 = arith.constant 1.000000e+00 : f32
      %77 = vector.broadcast %cst_35 : f32 to vector<2x256xf32>
      %78 = arith.addf %77, %76 : vector<2x256xf32>
      %79 = arith.divf %77, %78 : vector<2x256xf32>
      %80 = arith.mulf %71, %arg14 : vector<2x256xf32>
      %81 = arith.mulf %65, %73 : vector<2x256xf32>
      %82 = arith.addf %80, %81 : vector<2x256xf32>
      %83 = math.tanh %82 : vector<2x256xf32>
      %84 = arith.mulf %79, %83 : vector<2x256xf32>
      %85 = arith.index_cast %arg10 : i32 to index
      %c0_36 = arith.constant 0 : index
      %c0_37 = arith.constant 0 : index
      %86 = vector.load %arg7[%85, %c0_36, %c0_37] : memref<2x2x512xf32, #tpu.memory_space<vmem>>, vector<1x2x256xf32>
      %87 = vector.shape_cast %86 : vector<1x2x256xf32> to vector<2x256xf32>
      %88 = vector.shape_cast %51 : vector<2x256xf32> to vector<1x2x256xf32>
      tpu.vector_store %arg7[%85, %c0_36, %c0_37], %88 {strides = array<i32>} : memref<2x2x512xf32, #tpu.memory_space<vmem>>, vector<1x2x256xf32>,
      %c1_i32_38 = arith.constant 1 : i32
      %89 = arith.subi %c1_i32_38, %arg10 : i32
      %90 = arith.index_cast %89 : i32 to index
      %c0_39 = arith.constant 0 : index
      %c256 = arith.constant 256 : index
      %91 = vector.load %arg7[%90, %c0_39, %c256] : memref<2x2x512xf32, #tpu.memory_space<vmem>>, vector<1x2x256xf32>
      %92 = vector.shape_cast %91 : vector<1x2x256xf32> to vector<2x256xf32>
      %93 = vector.shape_cast %84 : vector<2x256xf32> to vector<1x2x256xf32>
      tpu.vector_store %arg7[%90, %c0_39, %c256], %93 {strides = array<i32>} : memref<2x2x512xf32, #tpu.memory_space<vmem>>, vector<1x2x256xf32>,
      scf.yield %51, %49, %84, %82 : vector<2x256xf32>, vector<2x256xf32>, vector<2x256xf32>, vector<2x256xf32>
    }
    %c2_i32_18 = arith.constant 2 : i32
    return
  }
}

module attributes {stable_mosaic.version = 11 : i64} {
  func.func @_mlp_kernel(%arg0: memref<2x1024xf32, #tpu.memory_space<vmem>>, %arg1: memref<1024x512xbf16, #tpu.memory_space<vmem>>, %arg2: memref<1x512xf32, #tpu.memory_space<vmem>>, %arg3: memref<512x128xbf16, #tpu.memory_space<vmem>>, %arg4: memref<1x128xf32, #tpu.memory_space<vmem>>, %arg5: memref<128x8xbf16, #tpu.memory_space<vmem>>, %arg6: memref<1x8xf32, #tpu.memory_space<vmem>>, %arg7: memref<2x8xf32, #tpu.memory_space<vmem>>) attributes {dimension_semantics = [], scalar_prefetch = 0 : i64, scratch_operands = 0 : i64, tpu.core_type = #tpu.core_type<tc>} {
    %c0 = arith.constant 0 : index
    %c0_0 = arith.constant 0 : index
    %0 = vector.load %arg0[%c0, %c0_0] : memref<2x1024xf32, #tpu.memory_space<vmem>>, vector<2x1024xf32>
    %1 = arith.truncf %0 : vector<2x1024xf32> to vector<2x1024xbf16>
    %c0_1 = arith.constant 0 : index
    %c0_2 = arith.constant 0 : index
    %2 = vector.load %arg1[%c0_1, %c0_2] : memref<1024x512xbf16, #tpu.memory_space<vmem>>, vector<1024x512xbf16>
    %cst = arith.constant dense<0.000000e+00> : vector<2x512xf32>
    %3 = tpu.matmul %1, %2, %cst {dimension_numbers = #tpu.dot_dimension_numbers<[1], [0], [0], [1], [0, 0, 1, 1], [], []>} : vector<2x1024xbf16>, vector<1024x512xbf16>, vector<2x512xf32> -> vector<2x512xf32>
    %c0_3 = arith.constant 0 : index
    %c0_4 = arith.constant 0 : index
    %4 = vector.load %arg2[%c0_3, %c0_4] : memref<1x512xf32, #tpu.memory_space<vmem>>, vector<1x512xf32>
    %5 = vector.broadcast %4 : vector<1x512xf32> to vector<2x512xf32>
    %6 = arith.addf %3, %5 : vector<2x512xf32>
    %cst_5 = arith.constant 0.000000e+00 : f32
    %7 = vector.broadcast %cst_5 : f32 to vector<2x512xf32>
    %8 = arith.maximumf %6, %7 : vector<2x512xf32>
    %9 = arith.truncf %8 : vector<2x512xf32> to vector<2x512xbf16>
    %c0_6 = arith.constant 0 : index
    %c0_7 = arith.constant 0 : index
    %10 = vector.load %arg3[%c0_6, %c0_7] : memref<512x128xbf16, #tpu.memory_space<vmem>>, vector<512x128xbf16>
    %cst_8 = arith.constant dense<0.000000e+00> : vector<2x128xf32>
    %11 = tpu.matmul %9, %10, %cst_8 {dimension_numbers = #tpu.dot_dimension_numbers<[1], [0], [0], [1], [0, 0, 1, 1], [], []>} : vector<2x512xbf16>, vector<512x128xbf16>, vector<2x128xf32> -> vector<2x128xf32>
    %c0_9 = arith.constant 0 : index
    %c0_10 = arith.constant 0 : index
    %12 = vector.load %arg4[%c0_9, %c0_10] : memref<1x128xf32, #tpu.memory_space<vmem>>, vector<1x128xf32>
    %13 = vector.broadcast %12 : vector<1x128xf32> to vector<2x128xf32>
    %14 = arith.addf %11, %13 : vector<2x128xf32>
    %cst_11 = arith.constant 0.000000e+00 : f32
    %15 = vector.broadcast %cst_11 : f32 to vector<2x128xf32>
    %16 = arith.maximumf %14, %15 : vector<2x128xf32>
    %17 = arith.truncf %16 : vector<2x128xf32> to vector<2x128xbf16>
    %c0_12 = arith.constant 0 : index
    %c0_13 = arith.constant 0 : index
    %18 = vector.load %arg5[%c0_12, %c0_13] : memref<128x8xbf16, #tpu.memory_space<vmem>>, vector<128x8xbf16>
    %cst_14 = arith.constant dense<0.000000e+00> : vector<2x8xf32>
    %19 = tpu.matmul %17, %18, %cst_14 {dimension_numbers = #tpu.dot_dimension_numbers<[1], [0], [0], [1], [0, 0, 1, 1], [], []>} : vector<2x128xbf16>, vector<128x8xbf16>, vector<2x8xf32> -> vector<2x8xf32>
    %c0_15 = arith.constant 0 : index
    %c0_16 = arith.constant 0 : index
    %20 = vector.load %arg6[%c0_15, %c0_16] : memref<1x8xf32, #tpu.memory_space<vmem>>, vector<1x8xf32>
    %21 = vector.broadcast %20 : vector<1x8xf32> to vector<2x8xf32>
    %22 = arith.addf %19, %21 : vector<2x8xf32>
    %c0_17 = arith.constant 0 : index
    %c0_18 = arith.constant 0 : index
    %23 = vector.load %arg7[%c0_17, %c0_18] : memref<2x8xf32, #tpu.memory_space<vmem>>, vector<2x8xf32>
    tpu.vector_store %arg7[%c0_17, %c0_18], %22 {strides = array<i32>} : memref<2x8xf32, #tpu.memory_space<vmem>>, vector<2x8xf32>,
    return
  }
}

module attributes {stable_mosaic.version = 11 : i64} {
  func.func @_conv_stack_kernel(%arg0: memref<2x64x4xf32, #tpu.memory_space<vmem>>, %arg1: memref<20x32xbf16, #tpu.memory_space<vmem>>, %arg2: memref<1x32xf32, #tpu.memory_space<vmem>>, %arg3: memref<1x32xf32, #tpu.memory_space<vmem>>, %arg4: memref<160x64xbf16, #tpu.memory_space<vmem>>, %arg5: memref<1x64xf32, #tpu.memory_space<vmem>>, %arg6: memref<1x64xf32, #tpu.memory_space<vmem>>, %arg7: memref<192x128xbf16, #tpu.memory_space<vmem>>, %arg8: memref<1x128xf32, #tpu.memory_space<vmem>>, %arg9: memref<1x128xf32, #tpu.memory_space<vmem>>, %arg10: memref<2x2x128xf32, #tpu.memory_space<vmem>>) attributes {dimension_semantics = [], scalar_prefetch = 0 : i64, scratch_operands = 0 : i64, tpu.core_type = #tpu.core_type<tc>} {
    %c0 = arith.constant 0 : index
    %c0_0 = arith.constant 0 : index
    %c0_1 = arith.constant 0 : index
    %0 = vector.load %arg0[%c0, %c0_0, %c0_1] : memref<2x64x4xf32, #tpu.memory_space<vmem>>, vector<2x64x4xf32>
    %c0_2 = arith.constant 0 : index
    %c0_3 = arith.constant 0 : index
    %1 = vector.load %arg1[%c0_2, %c0_3] : memref<20x32xbf16, #tpu.memory_space<vmem>>, vector<20x32xbf16>
    %c0_4 = arith.constant 0 : index
    %c0_5 = arith.constant 0 : index
    %2 = vector.load %arg2[%c0_4, %c0_5] : memref<1x32xf32, #tpu.memory_space<vmem>>, vector<1x32xf32>
    %c0_6 = arith.constant 0 : index
    %c0_7 = arith.constant 0 : index
    %3 = vector.load %arg3[%c0_6, %c0_7] : memref<1x32xf32, #tpu.memory_space<vmem>>, vector<1x32xf32>
    %cst = arith.constant 0.000000e+00 : f32
    %4 = vector.broadcast %cst : f32 to vector<2x2x4xf32>
    %5 = tpu.concatenate %4, %0, %4 in 1 : vector<2x2x4xf32>, vector<2x64x4xf32>, vector<2x2x4xf32> -> vector<2x68x4xf32>
    %6 = vector.extract_strided_slice %5 {offsets = [0, 0, 0], sizes = [2, 64, 4], strides = [1, 1, 1]} : vector<2x68x4xf32> to vector<2x64x4xf32>
    %7 = vector.extract_strided_slice %5 {offsets = [0, 1, 0], sizes = [2, 64, 4], strides = [1, 1, 1]} : vector<2x68x4xf32> to vector<2x64x4xf32>
    %8 = vector.extract_strided_slice %5 {offsets = [0, 2, 0], sizes = [2, 64, 4], strides = [1, 1, 1]} : vector<2x68x4xf32> to vector<2x64x4xf32>
    %9 = vector.extract_strided_slice %5 {offsets = [0, 3, 0], sizes = [2, 64, 4], strides = [1, 1, 1]} : vector<2x68x4xf32> to vector<2x64x4xf32>
    %10 = vector.extract_strided_slice %5 {offsets = [0, 4, 0], sizes = [2, 64, 4], strides = [1, 1, 1]} : vector<2x68x4xf32> to vector<2x64x4xf32>
    %11 = tpu.concatenate %6, %7, %8, %9, %10 in 2 : vector<2x64x4xf32>, vector<2x64x4xf32>, vector<2x64x4xf32>, vector<2x64x4xf32>, vector<2x64x4xf32> -> vector<2x64x20xf32>
    %12 = vector.shape_cast %11 : vector<2x64x20xf32> to vector<128x20xf32>
    %13 = arith.truncf %12 : vector<128x20xf32> to vector<128x20xbf16>
    %cst_8 = arith.constant dense<0.000000e+00> : vector<128x32xf32>
    %14 = tpu.matmul %13, %1, %cst_8 {dimension_numbers = #tpu.dot_dimension_numbers<[1], [0], [0], [1], [0, 0, 1, 1], [], []>} : vector<128x20xbf16>, vector<20x32xbf16>, vector<128x32xf32> -> vector<128x32xf32>
    %15 = vector.broadcast %2 : vector<1x32xf32> to vector<128x32xf32>
    %16 = arith.mulf %14, %15 : vector<128x32xf32>
    %17 = vector.broadcast %3 : vector<1x32xf32> to vector<128x32xf32>
    %18 = arith.addf %16, %17 : vector<128x32xf32>
    %cst_9 = arith.constant 0.000000e+00 : f32
    %19 = vector.broadcast %cst_9 : f32 to vector<128x32xf32>
    %20 = arith.maximumf %18, %19 : vector<128x32xf32>
    %21 = vector.shape_cast %20 : vector<128x32xf32> to vector<32x4x32xf32>
    %cst_10 = arith.constant dense<0xFF800000> : vector<32x32xf32>
    %22 = vector.multi_reduction <maximumf>, %21, %cst_10 [1] : vector<32x4x32xf32> to vector<32x32xf32>
    %23 = vector.shape_cast %22 : vector<32x32xf32> to vector<2x16x32xf32>
    %c0_11 = arith.constant 0 : index
    %c0_12 = arith.constant 0 : index
    %24 = vector.load %arg4[%c0_11, %c0_12] : memref<160x64xbf16, #tpu.memory_space<vmem>>, vector<160x64xbf16>
    %c0_13 = arith.constant 0 : index
    %c0_14 = arith.constant 0 : index
    %25 = vector.load %arg5[%c0_13, %c0_14] : memref<1x64xf32, #tpu.memory_space<vmem>>, vector<1x64xf32>
    %c0_15 = arith.constant 0 : index
    %c0_16 = arith.constant 0 : index
    %26 = vector.load %arg6[%c0_15, %c0_16] : memref<1x64xf32, #tpu.memory_space<vmem>>, vector<1x64xf32>
    %cst_17 = arith.constant 0.000000e+00 : f32
    %27 = vector.broadcast %cst_17 : f32 to vector<2x2x32xf32>
    %28 = tpu.concatenate %27, %23, %27 in 1 : vector<2x2x32xf32>, vector<2x16x32xf32>, vector<2x2x32xf32> -> vector<2x20x32xf32>
    %29 = vector.extract_strided_slice %28 {offsets = [0, 0, 0], sizes = [2, 16, 32], strides = [1, 1, 1]} : vector<2x20x32xf32> to vector<2x16x32xf32>
    %30 = vector.extract_strided_slice %28 {offsets = [0, 1, 0], sizes = [2, 16, 32], strides = [1, 1, 1]} : vector<2x20x32xf32> to vector<2x16x32xf32>
    %31 = vector.extract_strided_slice %28 {offsets = [0, 2, 0], sizes = [2, 16, 32], strides = [1, 1, 1]} : vector<2x20x32xf32> to vector<2x16x32xf32>
    %32 = vector.extract_strided_slice %28 {offsets = [0, 3, 0], sizes = [2, 16, 32], strides = [1, 1, 1]} : vector<2x20x32xf32> to vector<2x16x32xf32>
    %33 = vector.extract_strided_slice %28 {offsets = [0, 4, 0], sizes = [2, 16, 32], strides = [1, 1, 1]} : vector<2x20x32xf32> to vector<2x16x32xf32>
    %34 = tpu.concatenate %29, %30, %31, %32, %33 in 2 : vector<2x16x32xf32>, vector<2x16x32xf32>, vector<2x16x32xf32>, vector<2x16x32xf32>, vector<2x16x32xf32> -> vector<2x16x160xf32>
    %35 = vector.shape_cast %34 : vector<2x16x160xf32> to vector<32x160xf32>
    %36 = arith.truncf %35 : vector<32x160xf32> to vector<32x160xbf16>
    %cst_18 = arith.constant dense<0.000000e+00> : vector<32x64xf32>
    %37 = tpu.matmul %36, %24, %cst_18 {dimension_numbers = #tpu.dot_dimension_numbers<[1], [0], [0], [1], [0, 0, 1, 1], [], []>} : vector<32x160xbf16>, vector<160x64xbf16>, vector<32x64xf32> -> vector<32x64xf32>
    %38 = vector.broadcast %25 : vector<1x64xf32> to vector<32x64xf32>
    %39 = arith.mulf %37, %38 : vector<32x64xf32>
    %40 = vector.broadcast %26 : vector<1x64xf32> to vector<32x64xf32>
    %41 = arith.addf %39, %40 : vector<32x64xf32>
    %cst_19 = arith.constant 0.000000e+00 : f32
    %42 = vector.broadcast %cst_19 : f32 to vector<32x64xf32>
    %43 = arith.maximumf %41, %42 : vector<32x64xf32>
    %44 = vector.shape_cast %43 : vector<32x64xf32> to vector<8x4x64xf32>
    %cst_20 = arith.constant dense<0xFF800000> : vector<8x64xf32>
    %45 = vector.multi_reduction <maximumf>, %44, %cst_20 [1] : vector<8x4x64xf32> to vector<8x64xf32>
    %46 = vector.shape_cast %45 : vector<8x64xf32> to vector<2x4x64xf32>
    %c0_21 = arith.constant 0 : index
    %c0_22 = arith.constant 0 : index
    %47 = vector.load %arg7[%c0_21, %c0_22] : memref<192x128xbf16, #tpu.memory_space<vmem>>, vector<192x128xbf16>
    %c0_23 = arith.constant 0 : index
    %c0_24 = arith.constant 0 : index
    %48 = vector.load %arg8[%c0_23, %c0_24] : memref<1x128xf32, #tpu.memory_space<vmem>>, vector<1x128xf32>
    %c0_25 = arith.constant 0 : index
    %c0_26 = arith.constant 0 : index
    %49 = vector.load %arg9[%c0_25, %c0_26] : memref<1x128xf32, #tpu.memory_space<vmem>>, vector<1x128xf32>
    %cst_27 = arith.constant 0.000000e+00 : f32
    %50 = vector.broadcast %cst_27 : f32 to vector<2x1x64xf32>
    %51 = tpu.concatenate %50, %46, %50 in 1 : vector<2x1x64xf32>, vector<2x4x64xf32>, vector<2x1x64xf32> -> vector<2x6x64xf32>
    %52 = vector.extract_strided_slice %51 {offsets = [0, 0, 0], sizes = [2, 4, 64], strides = [1, 1, 1]} : vector<2x6x64xf32> to vector<2x4x64xf32>
    %53 = vector.extract_strided_slice %51 {offsets = [0, 1, 0], sizes = [2, 4, 64], strides = [1, 1, 1]} : vector<2x6x64xf32> to vector<2x4x64xf32>
    %54 = vector.extract_strided_slice %51 {offsets = [0, 2, 0], sizes = [2, 4, 64], strides = [1, 1, 1]} : vector<2x6x64xf32> to vector<2x4x64xf32>
    %55 = tpu.concatenate %52, %53, %54 in 2 : vector<2x4x64xf32>, vector<2x4x64xf32>, vector<2x4x64xf32> -> vector<2x4x192xf32>
    %56 = vector.shape_cast %55 : vector<2x4x192xf32> to vector<8x192xf32>
    %57 = arith.truncf %56 : vector<8x192xf32> to vector<8x192xbf16>
    %cst_28 = arith.constant dense<0.000000e+00> : vector<8x128xf32>
    %58 = tpu.matmul %57, %47, %cst_28 {dimension_numbers = #tpu.dot_dimension_numbers<[1], [0], [0], [1], [0, 0, 1, 1], [], []>} : vector<8x192xbf16>, vector<192x128xbf16>, vector<8x128xf32> -> vector<8x128xf32>
    %59 = vector.broadcast %48 : vector<1x128xf32> to vector<8x128xf32>
    %60 = arith.mulf %58, %59 : vector<8x128xf32>
    %61 = vector.broadcast %49 : vector<1x128xf32> to vector<8x128xf32>
    %62 = arith.addf %60, %61 : vector<8x128xf32>
    %cst_29 = arith.constant 0.000000e+00 : f32
    %63 = vector.broadcast %cst_29 : f32 to vector<8x128xf32>
    %64 = arith.maximumf %62, %63 : vector<8x128xf32>
    %65 = vector.shape_cast %64 : vector<8x128xf32> to vector<4x2x128xf32>
    %cst_30 = arith.constant dense<0xFF800000> : vector<4x128xf32>
    %66 = vector.multi_reduction <maximumf>, %65, %cst_30 [1] : vector<4x2x128xf32> to vector<4x128xf32>
    %67 = vector.shape_cast %66 : vector<4x128xf32> to vector<2x2x128xf32>
    %c0_31 = arith.constant 0 : index
    %c0_32 = arith.constant 0 : index
    %c0_33 = arith.constant 0 : index
    %68 = vector.load %arg10[%c0_31, %c0_32, %c0_33] : memref<2x2x128xf32, #tpu.memory_space<vmem>>, vector<2x2x128xf32>
    tpu.vector_store %arg10[%c0_31, %c0_32, %c0_33], %67 {strides = array<i32>} : memref<2x2x128xf32, #tpu.memory_space<vmem>>, vector<2x2x128xf32>,
    return
  }
}

module attributes {stable_mosaic.version = 11 : i64} {
  func.func @_bilstm_kernel(%arg0: memref<2x2x512xf32, #tpu.memory_space<vmem>>, %arg1: memref<512x1024xbf16, #tpu.memory_space<vmem>>, %arg2: memref<256x1024xbf16, #tpu.memory_space<vmem>>, %arg3: memref<1x1024xf32, #tpu.memory_space<vmem>>, %arg4: memref<512x1024xbf16, #tpu.memory_space<vmem>>, %arg5: memref<256x1024xbf16, #tpu.memory_space<vmem>>, %arg6: memref<1x1024xf32, #tpu.memory_space<vmem>>, %arg7: memref<2x2x512xf32, #tpu.memory_space<vmem>>, %arg8: memref<2x2x1024xf32, #tpu.memory_space<vmem>>, %arg9: memref<2x2x1024xf32, #tpu.memory_space<vmem>>) attributes {dimension_semantics = [], scalar_prefetch = 0 : i64, scratch_operands = 2 : i64, tpu.core_type = #tpu.core_type<tc>} {
    %c0 = arith.constant 0 : index
    %c0_0 = arith.constant 0 : index
    %c0_1 = arith.constant 0 : index
    %0 = vector.load %arg0[%c0, %c0_0, %c0_1] : memref<2x2x512xf32, #tpu.memory_space<vmem>>, vector<2x2x512xf32>
    %1 = vector.shape_cast %0 : vector<2x2x512xf32> to vector<4x512xf32>
    %2 = arith.truncf %1 : vector<4x512xf32> to vector<4x512xbf16>
    %c0_2 = arith.constant 0 : index
    %c0_3 = arith.constant 0 : index
    %3 = vector.load %arg1[%c0_2, %c0_3] : memref<512x1024xbf16, #tpu.memory_space<vmem>>, vector<512x1024xbf16>
    %cst = arith.constant dense<0.000000e+00> : vector<4x1024xf32>
    %4 = tpu.matmul %2, %3, %cst {dimension_numbers = #tpu.dot_dimension_numbers<[1], [0], [0], [1], [0, 0, 1, 1], [], []>} : vector<4x512xbf16>, vector<512x1024xbf16>, vector<4x1024xf32> -> vector<4x1024xf32>
    %c0_4 = arith.constant 0 : index
    %c0_5 = arith.constant 0 : index
    %5 = vector.load %arg3[%c0_4, %c0_5] : memref<1x1024xf32, #tpu.memory_space<vmem>>, vector<1x1024xf32>
    %6 = vector.broadcast %5 : vector<1x1024xf32> to vector<4x1024xf32>
    %7 = arith.addf %4, %6 : vector<4x1024xf32>
    %8 = vector.shape_cast %7 : vector<4x1024xf32> to vector<2x2x1024xf32>
    %c0_6 = arith.constant 0 : index
    %c0_7 = arith.constant 0 : index
    %c0_8 = arith.constant 0 : index
    %9 = vector.load %arg8[%c0_6, %c0_7, %c0_8] : memref<2x2x1024xf32, #tpu.memory_space<vmem>>, vector<2x2x1024xf32>
    tpu.vector_store %arg8[%c0_6, %c0_7, %c0_8], %8 {strides = array<i32>} : memref<2x2x1024xf32, #tpu.memory_space<vmem>>, vector<2x2x1024xf32>,
    %c0_9 = arith.constant 0 : index
    %c0_10 = arith.constant 0 : index
    %10 = vector.load %arg4[%c0_9, %c0_10] : memref<512x1024xbf16, #tpu.memory_space<vmem>>, vector<512x1024xbf16>
    %cst_11 = arith.constant dense<0.000000e+00> : vector<4x1024xf32>
    %11 = tpu.matmul %2, %10, %cst_11 {dimension_numbers = #tpu.dot_dimension_numbers<[1], [0], [0], [1], [0, 0, 1, 1], [], []>} : vector<4x512xbf16>, vector<512x1024xbf16>, vector<4x1024xf32> -> vector<4x1024xf32>
    %c0_12 = arith.constant 0 : index
    %c0_13 = arith.constant 0 : index
    %12 = vector.load %arg6[%c0_12, %c0_13] : memref<1x1024xf32, #tpu.memory_space<vmem>>, vector<1x1024xf32>
    %13 = vector.broadcast %12 : vector<1x1024xf32> to vector<4x1024xf32>
    %14 = arith.addf %11, %13 : vector<4x1024xf32>
    %15 = vector.shape_cast %14 : vector<4x1024xf32> to vector<2x2x1024xf32>
    %c0_14 = arith.constant 0 : index
    %c0_15 = arith.constant 0 : index
    %c0_16 = arith.constant 0 : index
    %16 = vector.load %arg9[%c0_14, %c0_15, %c0_16] : memref<2x2x1024xf32, #tpu.memory_space<vmem>>, vector<2x2x1024xf32>
    tpu.vector_store %arg9[%c0_14, %c0_15, %c0_16], %15 {strides = array<i32>} : memref<2x2x1024xf32, #tpu.memory_space<vmem>>, vector<2x2x1024xf32>,
    %cst_17 = arith.constant 0.000000e+00 : f32
    %17 = vector.broadcast %cst_17 : f32 to vector<2x256xf32>
    %c0_i32 = arith.constant 0 : i32
    %c2_i32 = arith.constant 2 : i32
    %18 = arith.addi %c0_i32, %c2_i32 : i32
    %c1_i32 = arith.constant 1 : i32
    %19:4 = scf.for %arg10 = %c0_i32 to %18 step %c1_i32 iter_args(%arg11 = %17, %arg12 = %17, %arg13 = %17, %arg14 = %17) -> (vector<2x256xf32>, vector<2x256xf32>, vector<2x256xf32>, vector<2x256xf32>)  : i32 {
      %20 = arith.index_cast %arg10 : i32 to index
      %c0_19 = arith.constant 0 : index
      %c0_20 = arith.constant 0 : index
      %21 = vector.load %arg8[%20, %c0_19, %c0_20] : memref<2x2x1024xf32, #tpu.memory_space<vmem>>, vector<1x2x1024xf32>
      %22 = vector.shape_cast %21 : vector<1x2x1024xf32> to vector<2x1024xf32>
      %23 = arith.truncf %arg11 : vector<2x256xf32> to vector<2x256xbf16>
      %c0_21 = arith.constant 0 : index
      %c0_22 = arith.constant 0 : index
      %24 = vector.load %arg2[%c0_21, %c0_22] : memref<256x1024xbf16, #tpu.memory_space<vmem>>, vector<256x1024xbf16>
      %cst_23 = arith.constant dense<0.000000e+00> : vector<2x1024xf32>
      %25 = tpu.matmul %23, %24, %cst_23 {dimension_numbers = #tpu.dot_dimension_numbers<[1], [0], [0], [1], [0, 0, 1, 1], [], []>} : vector<2x256xbf16>, vector<256x1024xbf16>, vector<2x1024xf32> -> vector<2x1024xf32>
      %26 = arith.addf %22, %25 : vector<2x1024xf32>
      %27 = vector.extract_strided_slice %26 {offsets = [0, 0], sizes = [2, 256], strides = [1, 1]} : vector<2x1024xf32> to vector<2x256xf32>
      %28 = arith.negf %27 : vector<2x256xf32>
      %29 = math.exp %28 : vector<2x256xf32>
      %cst_24 = arith.constant 1.000000e+00 : f32
      %30 = vector.broadcast %cst_24 : f32 to vector<2x256xf32>
      %31 = arith.addf %30, %29 : vector<2x256xf32>
      %32 = arith.divf %30, %31 : vector<2x256xf32>
      %33 = vector.extract_strided_slice %26 {offsets = [0, 256], sizes = [2, 256], strides = [1, 1]} : vector<2x1024xf32> to vector<2x256xf32>
      %34 = arith.negf %33 : vector<2x256xf32>
      %35 = math.exp %34 : vector<2x256xf32>
      %cst_25 = arith.constant 1.000000e+00 : f32
      %36 = vector.broadcast %cst_25 : f32 to vector<2x256xf32>
      %37 = arith.addf %36, %35 : vector<2x256xf32>
      %38 = arith.divf %36, %37 : vector<2x256xf32>
      %39 = vector.extract_strided_slice %26 {offsets = [0, 512], sizes = [2, 256], strides = [1, 1]} : vector<2x1024xf32> to vector<2x256xf32>
      %40 = math.tanh %39 : vector<2x256xf32>
      %41 = vector.extract_strided_slice %26 {offsets = [0, 768], sizes = [2, 256], strides = [1, 1]} : vector<2x1024xf32> to vector<2x256xf32>
      %42 = arith.negf %41 : vector<2x256xf32>
      %43 = math.exp %42 : vector<2x256xf32>
      %cst_26 = arith.constant 1.000000e+00 : f32
      %44 = vector.broadcast %cst_26 : f32 to vector<2x256xf32>
      %45 = arith.addf %44, %43 : vector<2x256xf32>
      %46 = arith.divf %44, %45 : vector<2x256xf32>
      %47 = arith.mulf %38, %arg12 : vector<2x256xf32>
      %48 = arith.mulf %32, %40 : vector<2x256xf32>
      %49 = arith.addf %47, %48 : vector<2x256xf32>
      %50 = math.tanh %49 : vector<2x256xf32>
      %51 = arith.mulf %46, %50 : vector<2x256xf32>
      %c1_i32_27 = arith.constant 1 : i32
      %52 = arith.subi %c1_i32_27, %arg10 : i32
      %53 = arith.index_cast %52 : i32 to index
      %c0_28 = arith.constant 0 : index
      %c0_29 = arith.constant 0 : index
      %54 = vector.load %arg9[%53, %c0_28, %c0_29] : memref<2x2x1024xf32, #tpu.memory_space<vmem>>, vector<1x2x1024xf32>
      %55 = vector.shape_cast %54 : vector<1x2x1024xf32> to vector<2x1024xf32>
      %56 = arith.truncf %arg13 : vector<2x256xf32> to vector<2x256xbf16>
      %c0_30 = arith.constant 0 : index
      %c0_31 = arith.constant 0 : index
      %57 = vector.load %arg5[%c0_30, %c0_31] : memref<256x1024xbf16, #tpu.memory_space<vmem>>, vector<256x1024xbf16>
      %cst_32 = arith.constant dense<0.000000e+00> : vector<2x1024xf32>
      %58 = tpu.matmul %56, %57, %cst_32 {dimension_numbers = #tpu.dot_dimension_numbers<[1], [0], [0], [1], [0, 0, 1, 1], [], []>} : vector<2x256xbf16>, vector<256x1024xbf16>, vector<2x1024xf32> -> vector<2x1024xf32>
      %59 = arith.addf %55, %58 : vector<2x1024xf32>
      %60 = vector.extract_strided_slice %59 {offsets = [0, 0], sizes = [2, 256], strides = [1, 1]} : vector<2x1024xf32> to vector<2x256xf32>
      %61 = arith.negf %60 : vector<2x256xf32>
      %62 = math.exp %61 : vector<2x256xf32>
      %cst_33 = arith.constant 1.000000e+00 : f32
      %63 = vector.broadcast %cst_33 : f32 to vector<2x256xf32>
      %64 = arith.addf %63, %62 : vector<2x256xf32>
      %65 = arith.divf %63, %64 : vector<2x256xf32>
      %66 = vector.extract_strided_slice %59 {offsets = [0, 256], sizes = [2, 256], strides = [1, 1]} : vector<2x1024xf32> to vector<2x256xf32>
      %67 = arith.negf %66 : vector<2x256xf32>
      %68 = math.exp %67 : vector<2x256xf32>
      %cst_34 = arith.constant 1.000000e+00 : f32
      %69 = vector.broadcast %cst_34 : f32 to vector<2x256xf32>
      %70 = arith.addf %69, %68 : vector<2x256xf32>
      %71 = arith.divf %69, %70 : vector<2x256xf32>
      %72 = vector.extract_strided_slice %59 {offsets = [0, 512], sizes = [2, 256], strides = [1, 1]} : vector<2x1024xf32> to vector<2x256xf32>
      %73 = math.tanh %72 : vector<2x256xf32>
      %74 = vector.extract_strided_slice %59 {offsets = [0, 768], sizes = [2, 256], strides = [1, 1]} : vector<2x1024xf32> to vector<2x256xf32>
      %75 = arith.negf %74 : vector<2x256xf32>
      %76 = math.exp %75 : vector<2x256xf32>
      %cst_35 = arith.constant 1.000000e+00 : f32
      %77 = vector.broadcast %cst_35 : f32 to vector<2x256xf32>
      %78 = arith.addf %77, %76 : vector<2x256xf32>
      %79 = arith.divf %77, %78 : vector<2x256xf32>
      %80 = arith.mulf %71, %arg14 : vector<2x256xf32>
      %81 = arith.mulf %65, %73 : vector<2x256xf32>
      %82 = arith.addf %80, %81 : vector<2x256xf32>
      %83 = math.tanh %82 : vector<2x256xf32>
      %84 = arith.mulf %79, %83 : vector<2x256xf32>
      %85 = arith.index_cast %arg10 : i32 to index
      %c0_36 = arith.constant 0 : index
      %c0_37 = arith.constant 0 : index
      %86 = vector.load %arg7[%85, %c0_36, %c0_37] : memref<2x2x512xf32, #tpu.memory_space<vmem>>, vector<1x2x256xf32>
      %87 = vector.shape_cast %86 : vector<1x2x256xf32> to vector<2x256xf32>
      %88 = vector.shape_cast %51 : vector<2x256xf32> to vector<1x2x256xf32>
      tpu.vector_store %arg7[%85, %c0_36, %c0_37], %88 {strides = array<i32>} : memref<2x2x512xf32, #tpu.memory_space<vmem>>, vector<1x2x256xf32>,
      %c1_i32_38 = arith.constant 1 : i32
      %89 = arith.subi %c1_i32_38, %arg10 : i32
      %90 = arith.index_cast %89 : i32 to index
      %c0_39 = arith.constant 0 : index
      %c256 = arith.constant 256 : index
      %91 = vector.load %arg7[%90, %c0_39, %c256] : memref<2x2x512xf32, #tpu.memory_space<vmem>>, vector<1x2x256xf32>
      %92 = vector.shape_cast %91 : vector<1x2x256xf32> to vector<2x256xf32>
      %93 = vector.shape_cast %84 : vector<2x256xf32> to vector<1x2x256xf32>
      tpu.vector_store %arg7[%90, %c0_39, %c256], %93 {strides = array<i32>} : memref<2x2x512xf32, #tpu.memory_space<vmem>>, vector<1x2x256xf32>,
      scf.yield %51, %49, %84, %82 : vector<2x256xf32>, vector<2x256xf32>, vector<2x256xf32>, vector<2x256xf32>
    }
    %c2_i32_18 = arith.constant 2 : i32
    return
  }
}

</mosaic_0001>

<llo_original>
// kernel: _lambda_.4
$region0: #{_lambda_.4}
  #allocation0 [shape = 'u32[]', space=smem, size = 0x4, offset = 0x4, fixed_abs, tag = 'smem constant byte address 0x4 - core index']
  #allocation1 [shape = 'u32[144,128]{1,0:T(1,128)}', space=vmem, size = 0x12000, scoped, tag = 'internal scratch']
  %s0 = inlined_call_operand.vmem [shape: f32[2,64,4], index: 0, kind: input, shape index: {}]
  %s1 = inlined_call_operand.hbm [shape: bf16[20,32], index: 1, kind: input, shape index: {}]
  %s2 = inlined_call_operand.vmem [shape: f32[1,32], index: 2, kind: input, shape index: {}]
  %s3 = inlined_call_operand.vmem [shape: f32[1,32], index: 3, kind: input, shape index: {}]
  %s4 = inlined_call_operand.vmem [shape: bf16[160,64], index: 4, kind: input, shape index: {}]
  %s5 = inlined_call_operand.vmem [shape: f32[1,64], index: 5, kind: input, shape index: {}]
  %s6 = inlined_call_operand.vmem [shape: f32[1,64], index: 6, kind: input, shape index: {}]
  %s7 = inlined_call_operand.vmem [shape: bf16[192,128], index: 7, kind: input, shape index: {}]
  %s8 = inlined_call_operand.vmem [shape: f32[1,128], index: 8, kind: input, shape index: {}]
  %s9 = inlined_call_operand.vmem [shape: f32[1,128], index: 9, kind: input, shape index: {}]
  %s10 = inlined_call_operand.vmem [shape: f32[2,2,128], index: 10, kind: output, shape index: {}]
  %s11 = sld [smem:[#allocation0]]
  $region54: #{_lambda_.4} parent=0
    _
  %s13 = ssub.s32 1, %s11
  %s14 = scalar_select 0, %s13, %s11
  $region1: #{_lambda_.4} parent=0
    #allocation2 [shape = 'u8[6144]{0}', space=vmem, size = 0x1800, scoped, tag = 'input window, operand 1, single buffered']
    #allocation3 [shape = 's32[1]{0}', space=sflag, size = 0x4, scoped, tag = 'scoped memory for _lambda_.4']
    %15 = vsyncpa [#allocation3], 0
    // Predicated region
    $region2: #{_lambda_.4} parent=1 // pred_check
      _
    $region3: #{_lambda_.4} parent=1 // pred_check_branch
      %17 = sbr.rel (0) target = $region5
    $region4: #{_lambda_.4} parent=1 // pred_region
      _
    $region5: #{_lambda_.4} parent=1 // pred_fallthru
      _
    // Predicated region
    $region6: #{_lambda_.4} parent=1 // pred_check
      _
    $region7: #{_lambda_.4} parent=1 // pred_check_branch
      %19 = sbr.rel (0) target = $region9
    $region8: #{_lambda_.4} parent=1 // pred_region
      %s21 = ssub.s32 192, 192
      %22 = vsyncadd [#allocation3], %s21
      %s23 = sshll.u32 [#allocation2], 4
      %s24 = int_to_ptr.vmem [resolvable:$true] %s23
      %29 = dma.hbm_to_vmem [thread:$0]  %s1, 192, %s24, [#allocation3], 64, 64, 4
    $region9: #{_lambda_.4} parent=1 // pred_fallthru
      _
    // Predicated region
    $region10: #{_lambda_.4} parent=1 // pred_check
      _
    $region11: #{_lambda_.4} parent=1 // pred_check_branch
      %31 = sbr.rel (0) target = $region13
    $region12: #{_lambda_.4} parent=1 // pred_region
      _
    $region13: #{_lambda_.4} parent=1 // pred_fallthru
      _
    // Predicated region
    $region14: #{_lambda_.4} parent=1 // pred_check
      _
    $region15: #{_lambda_.4} parent=1 // pred_check_branch
      %33 = sbr.rel (0) target = $region17
    $region16: #{_lambda_.4} parent=1 // pred_region
      _
    $region17: #{_lambda_.4} parent=1 // pred_fallthru
      _
    // Predicated region
    $region18: #{_lambda_.4} parent=1 // pred_check
      _
    $region19: #{_lambda_.4} parent=1 // pred_check_branch
      %35 = sbr.rel (0) target = $region21
    $region20: #{_lambda_.4} parent=1 // pred_region
      _
    $region21: #{_lambda_.4} parent=1 // pred_fallthru
      _
    // Predicated region
    $region22: #{_lambda_.4} parent=1 // pred_check
      _
    $region23: #{_lambda_.4} parent=1 // pred_check_branch
      %37 = sbr.rel (0) target = $region25
    $region24: #{_lambda_.4} parent=1 // pred_region
      _
    $region25: #{_lambda_.4} parent=1 // pred_fallthru
      _
    // Predicated region
    $region26: #{_lambda_.4} parent=1 // pred_check
      _
    $region27: #{_lambda_.4} parent=1 // pred_check_branch
      %39 = sbr.rel (0) target = $region29
    $region28: #{_lambda_.4} parent=1 // pred_region
      _
    $region29: #{_lambda_.4} parent=1 // pred_fallthru
      _
    // Predicated region
    $region30: #{_lambda_.4} parent=1 // pred_check
      _
    $region31: #{_lambda_.4} parent=1 // pred_check_branch
      %41 = sbr.rel (0) target = $region33
    $region32: #{_lambda_.4} parent=1 // pred_region
      _
    $region33: #{_lambda_.4} parent=1 // pred_fallthru
      _
    // Predicated region
    $region34: #{_lambda_.4} parent=1 // pred_check
      _
    $region35: #{_lambda_.4} parent=1 // pred_check_branch
      %43 = sbr.rel (0) target = $region37
    $region36: #{_lambda_.4} parent=1 // pred_region
      _
    $region37: #{_lambda_.4} parent=1 // pred_fallthru
      _
    // Predicated region
    $region38: #{_lambda_.4} parent=1 // pred_check
      _
    $region39: #{_lambda_.4} parent=1 // pred_check_branch
      %45 = sbr.rel (0) target = $region41
    $region40: #{_lambda_.4} parent=1 // pred_region
      _
    $region41: #{_lambda_.4} parent=1 // pred_fallthru
      _
    // Predicated region
    $region42: #{_lambda_.4} parent=1 // pred_check
      _
    $region43: #{_lambda_.4} parent=1 // pred_check_branch
      %47 = sbr.rel (0) target = $region45
    $region44: #{_lambda_.4} parent=1 // pred_region
      %48 = dma.done [#allocation3], 192
    $region45: #{_lambda_.4} parent=1 // pred_fallthru
      _
    %v50 = vld [vmem:[%s0] sm:$0xff]
    %v51 = vld [vmem:[%s0 + $0x8] sm:$0xff]
    %v52 = vld [vmem:[%s0 + $0x10] sm:$0xff]
    %v53 = vld [vmem:[%s0 + $0x18] sm:$0xff]
    %v54 = vld [vmem:[%s0 + $0x20] sm:$0xff]
    %v55 = vld [vmem:[%s0 + $0x28] sm:$0xff]
    %v56 = vld [vmem:[%s0 + $0x30] sm:$0xff]
    %v57 = vld [vmem:[%s0 + $0x38] sm:$0xff]
    %v58 = vld [vmem:[%s0 + $0x40] sm:$0xff]
    %v59 = vld [vmem:[%s0 + $0x48] sm:$0xff]
    %v60 = vld [vmem:[%s0 + $0x50] sm:$0xff]
    %v61 = vld [vmem:[%s0 + $0x58] sm:$0xff]
    %v62 = vld [vmem:[%s0 + $0x60] sm:$0xff]
    %v63 = vld [vmem:[%s0 + $0x68] sm:$0xff]
    %v64 = vld [vmem:[%s0 + $0x70] sm:$0xff]
    %v65 = vld [vmem:[%s0 + $0x78] sm:$0xff]
    %v66 = vld [vmem:[#allocation2] sm:$0xf]
    %v67 = vld [vmem:[#allocation2 + $0x4] sm:$0xf]
    %v68 = vld [vmem:[#allocation2 + $0x8] sm:$0x3]
    %v69 = vld [vmem:[%s2] sm:$0x1]
    %v70 = vld [vmem:[%s3] sm:$0x1]
    %vm87 = vcmask 1041408
    %v88 = vrot.slane %v50, 6
    %v89 = vrot.slane %v51, 6
    %v90 = vsel %vm87, %v88, %v89
    %v91 = vrot.slane %v52, 6
    %v92 = vsel %vm87, %v89, %v91
    %v93 = vrot.slane %v53, 6
    %v94 = vsel %vm87, %v91, %v93
    %v95 = vrot.slane %v54, 6
    %v96 = vsel %vm87, %v93, %v95
    %v97 = vrot.slane %v55, 6
    %v98 = vsel %vm87, %v95, %v97
    %v99 = vrot.slane %v56, 6
    %v100 = vsel %vm87, %v97, %v99
    %v101 = vrot.slane %v57, 6
    %v102 = vsel %vm87, %v99, %v101
    %v103 = vrot.slane %v58, 6
    %v104 = vrot.slane %v59, 6
    %v105 = vsel %vm87, %v103, %v104
    %v106 = vrot.slane %v60, 6
    %v107 = vsel %vm87, %v104, %v106
    %v108 = vrot.slane %v61, 6
    %v109 = vsel %vm87, %v106, %v108
    %v110 = vrot.slane %v62, 6
    %v111 = vsel %vm87, %v108, %v110
    %v112 = vrot.slane %v63, 6
    %v113 = vsel %vm87, %v110, %v112
    %v114 = vrot.slane %v64, 6
    %v115 = vsel %vm87, %v112, %v114
    %v116 = vrot.slane %v65, 6
    %v117 = vsel %vm87, %v114, %v116
    %v136 = vsel %vm87, 0.0, %v88
    %v137 = vsel %vm87, 0.0, %v103
    %v138 = vsel %vm87, %v101, 0.0
    %v139 = vsel %vm87, %v116, 0.0
    %vm144 = vcmask 1046528
    %v145 = vrot.slane %v136, 1
    %v146 = vrot.slane %v90, 1
    %v147 = vsel %vm144, %v145, %v146
    %v148 = vrot.slane %v92, 1
    %v149 = vsel %vm144, %v146, %v148
    %v150 = vrot.slane %v94, 1
    %v151 = vsel %vm144, %v148, %v150
    %v152 = vrot.slane %v96, 1
    %v153 = vsel %vm144, %v150, %v152
    %v154 = vrot.slane %v98, 1
    %v155 = vsel %vm144, %v152, %v154
    %v156 = vrot.slane %v100, 1
    %v157 = vsel %vm144, %v154, %v156
    %v158 = vrot.slane %v102, 1
    %v159 = vsel %vm144, %v156, %v158
    %v160 = vrot.slane %v138, 1
    %v161 = vsel %vm144, %v158, %v160
    %v162 = vrot.slane %v137, 1
    %v163 = vrot.slane %v105, 1
    %v164 = vsel %vm144, %v162, %v163
    %v165 = vrot.slane %v107, 1
    %v166 = vsel %vm144, %v163, %v165
    %v167 = vrot.slane %v109, 1
    %v168 = vsel %vm144, %v165, %v167
    %v169 = vrot.slane %v111, 1
    %v170 = vsel %vm144, %v167, %v169
    %v171 = vrot.slane %v113, 1
    %v172 = vsel %vm144, %v169, %v171
    %v173 = vrot.slane %v115, 1
    %v174 = vsel %vm144, %v171, %v173
    %v175 = vrot.slane %v117, 1
    %v176 = vsel %vm144, %v173, %v175
    %v177 = vrot.slane %v139, 1
    %v178 = vsel %vm144, %v175, %v177
    %179 = vrot.lane.b32.xlu0 %v147, 4
    %v180 = vpop.permute.xlu0 %179
    %181 = vrot.lane.b32.xlu0 %v149, 4
    %v182 = vpop.permute.xlu0 %181
    %183 = vrot.lane.b32.xlu0 %v151, 4
    %v184 = vpop.permute.xlu0 %183
    %185 = vrot.lane.b32.xlu0 %v153, 4
    %v186 = vpop.permute.xlu0 %185
    %187 = vrot.lane.b32.xlu0 %v155, 4
    %v188 = vpop.permute.xlu0 %187
    %189 = vrot.lane.b32.xlu0 %v157, 4
    %v190 = vpop.permute.xlu0 %189
    %191 = vrot.lane.b32.xlu0 %v159, 4
    %v192 = vpop.permute.xlu0 %191
    %193 = vrot.lane.b32.xlu0 %v161, 4
    %v194 = vpop.permute.xlu0 %193
    %195 = vrot.lane.b32.xlu0 %v164, 4
    %v196 = vpop.permute.xlu0 %195
    %197 = vrot.lane.b32.xlu0 %v166, 4
    %v198 = vpop.permute.xlu0 %197
    %199 = vrot.lane.b32.xlu0 %v168, 4
    %v200 = vpop.permute.xlu0 %199
    %201 = vrot.lane.b32.xlu0 %v170, 4
    %v202 = vpop.permute.xlu0 %201
    %203 = vrot.lane.b32.xlu0 %v172, 4
    %v204 = vpop.permute.xlu0 %203
    %205 = vrot.lane.b32.xlu0 %v174, 4
    %v206 = vpop.permute.xlu0 %205
    %207 = vrot.lane.b32.xlu0 %v176, 4
    %v208 = vpop.permute.xlu0 %207
    %209 = vrot.lane.b32.xlu0 %v178, 4
    %v210 = vpop.permute.xlu0 %209
    %vm227 = vcmask 1045504
    %v228 = vrot.slane %v136, 2
    %v229 = vrot.slane %v90, 2
    %v230 = vsel %vm227, %v228, %v229
    %v231 = vrot.slane %v92, 2
    %v232 = vsel %vm227, %v229, %v231
    %v233 = vrot.slane %v94, 2
    %v234 = vsel %vm227, %v231, %v233
    %v235 = vrot.slane %v96, 2
    %v236 = vsel %vm227, %v233, %v235
    %v237 = vrot.slane %v98, 2
    %v238 = vsel %vm227, %v235, %v237
    %v239 = vrot.slane %v100, 2
    %v240 = vsel %vm227, %v237, %v239
    %v241 = vrot.slane %v102, 2
    %v242 = vsel %vm227, %v239, %v241
    %v243 = vrot.slane %v138, 2
    %v244 = vsel %vm227, %v241, %v243
    %v245 = vrot.slane %v137, 2
    %v246 = vrot.slane %v105, 2
    %v247 = vsel %vm227, %v245, %v246
    %v248 = vrot.slane %v107, 2
    %v249 = vsel %vm227, %v246, %v248
    %v250 = vrot.slane %v109, 2
    %v251 = vsel %vm227, %v248, %v250
    %v252 = vrot.slane %v111, 2
    %v253 = vsel %vm227, %v250, %v252
    %v254 = vrot.slane %v113, 2
    %v255 = vsel %vm227, %v252, %v254
    %v256 = vrot.slane %v115, 2
    %v257 = vsel %vm227, %v254, %v256
    %v258 = vrot.slane %v117, 2
    %v259 = vsel %vm227, %v256, %v258
    %v260 = vrot.slane %v139, 2
    %v261 = vsel %vm227, %v258, %v260
    %262 = vrot.lane.b32.xlu0 %v230, 8
    %v263 = vpop.permute.xlu0 %262
    %264 = vrot.lane.b32.xlu0 %v232, 8
    %v265 = vpop.permute.xlu0 %264
    %266 = vrot.lane.b32.xlu0 %v234, 8
    %v267 = vpop.permute.xlu0 %266
    %268 = vrot.lane.b32.xlu0 %v236, 8
    %v269 = vpop.permute.xlu0 %268
    %270 = vrot.lane.b32.xlu0 %v238, 8
    %v271 = vpop.permute.xlu0 %270
    %272 = vrot.lane.b32.xlu0 %v240, 8
    %v273 = vpop.permute.xlu0 %272
    %274 = vrot.lane.b32.xlu0 %v242, 8
    %v275 = vpop.permute.xlu0 %274
    %276 = vrot.lane.b32.xlu0 %v244, 8
    %v277 = vpop.permute.xlu0 %276
    %278 = vrot.lane.b32.xlu0 %v247, 8
    %v279 = vpop.permute.xlu0 %278
    %280 = vrot.lane.b32.xlu0 %v249, 8
    %v281 = vpop.permute.xlu0 %280
    %282 = vrot.lane.b32.xlu0 %v251, 8
    %v283 = vpop.permute.xlu0 %282
    %284 = vrot.lane.b32.xlu0 %v253, 8
    %v285 = vpop.permute.xlu0 %284
    %286 = vrot.lane.b32.xlu0 %v255, 8
    %v287 = vpop.permute.xlu0 %286
    %288 = vrot.lane.b32.xlu0 %v257, 8
    %v289 = vpop.permute.xlu0 %288
    %290 = vrot.lane.b32.xlu0 %v259, 8
    %v291 = vpop.permute.xlu0 %290
    %292 = vrot.lane.b32.xlu0 %v261, 8
    %v293 = vpop.permute.xlu0 %292
    %vm310 = vcmask 1044480
    %v311 = vrot.slane %v136, 3
    %v312 = vrot.slane %v90, 3
    %v313 = vsel %vm310, %v311, %v312
    %v314 = vrot.slane %v92, 3
    %v315 = vsel %vm310, %v312, %v314
    %v316 = vrot.slane %v94, 3
    %v317 = vsel %vm310, %v314, %v316
    %v318 = vrot.slane %v96, 3
    %v319 = vsel %vm310, %v316, %v318
    %v320 = vrot.slane %v98, 3
    %v321 = vsel %vm310, %v318, %v320
    %v322 = vrot.slane %v100, 3
    %v323 = vsel %vm310, %v320, %v322
    %v324 = vrot.slane %v102, 3
    %v325 = vsel %vm310, %v322, %v324
    %v326 = vrot.slane %v138, 3
    %v327 = vsel %vm310, %v324, %v326
    %v328 = vrot.slane %v137, 3
    %v329 = vrot.slane %v105, 3
    %v330 = vsel %vm310, %v328, %v329
    %v331 = vrot.slane %v107, 3
    %v332 = vsel %vm310, %v329, %v331
    %v333 = vrot.slane %v109, 3
    %v334 = vsel %vm310, %v331, %v333
    %v335 = vrot.slane %v111, 3
    %v336 = vsel %vm310, %v333, %v335
    %v337 = vrot.slane %v113, 3
    %v338 = vsel %vm310, %v335, %v337
    %v339 = vrot.slane %v115, 3
    %v340 = vsel %vm310, %v337, %v339
    %v341 = vrot.slane %v117, 3
    %v342 = vsel %vm310, %v339, %v341
    %v343 = vrot.slane %v139, 3
    %v344 = vsel %vm310, %v341, %v343
    %345 = vrot.lane.b32.xlu0 %v313, 12
    %v346 = vpop.permute.xlu0 %345
    %347 = vrot.lane.b32.xlu0 %v315, 12
    %v348 = vpop.permute.xlu0 %347
    %349 = vrot.lane.b32.xlu0 %v317, 12
    %v350 = vpop.permute.xlu0 %349
    %351 = vrot.lane.b32.xlu0 %v319, 12
    %v352 = vpop.permute.xlu0 %351
    %353 = vrot.lane.b32.xlu0 %v321, 12
    %v354 = vpop.permute.xlu0 %353
    %355 = vrot.lane.b32.xlu0 %v323, 12
    %v356 = vpop.permute.xlu0 %355
    %357 = vrot.lane.b32.xlu0 %v325, 12
    %v358 = vpop.permute.xlu0 %357
    %359 = vrot.lane.b32.xlu0 %v327, 12
    %v360 = vpop.permute.xlu0 %359
    %361 = vrot.lane.b32.xlu0 %v330, 12
    %v362 = vpop.permute.xlu0 %361
    %363 = vrot.lane.b32.xlu0 %v332, 12
    %v364 = vpop.permute.xlu0 %363
    %365 = vrot.lane.b32.xlu0 %v334, 12
    %v366 = vpop.permute.xlu0 %365
    %367 = vrot.lane.b32.xlu0 %v336, 12
    %v368 = vpop.permute.xlu0 %367
    %369 = vrot.lane.b32.xlu0 %v338, 12
    %v370 = vpop.permute.xlu0 %369
    %371 = vrot.lane.b32.xlu0 %v340, 12
    %v372 = vpop.permute.xlu0 %371
    %373 = vrot.lane.b32.xlu0 %v342, 12
    %v374 = vpop.permute.xlu0 %373
    %375 = vrot.lane.b32.xlu0 %v344, 12
    %v376 = vpop.permute.xlu0 %375
    %vm393 = vcmask 1043456
    %v394 = vrot.slane %v136, 4
    %v395 = vrot.slane %v90, 4
    %v396 = vsel %vm393, %v394, %v395
    %v397 = vrot.slane %v92, 4
    %v398 = vsel %vm393, %v395, %v397
    %v399 = vrot.slane %v94, 4
    %v400 = vsel %vm393, %v397, %v399
    %v401 = vrot.slane %v96, 4
    %v402 = vsel %vm393, %v399, %v401
    %v403 = vrot.slane %v98, 4
    %v404 = vsel %vm393, %v401, %v403
    %v405 = vrot.slane %v100, 4
    %v406 = vsel %vm393, %v403, %v405
    %v407 = vrot.slane %v102, 4
    %v408 = vsel %vm393, %v405, %v407
    %v409 = vrot.slane %v138, 4
    %v410 = vsel %vm393, %v407, %v409
    %v411 = vrot.slane %v137, 4
    %v412 = vrot.slane %v105, 4
    %v413 = vsel %vm393, %v411, %v412
    %v414 = vrot.slane %v107, 4
    %v415 = vsel %vm393, %v412, %v414
    %v416 = vrot.slane %v109, 4
    %v417 = vsel %vm393, %v414, %v416
    %v418 = vrot.slane %v111, 4
    %v419 = vsel %vm393, %v416, %v418
    %v420 = vrot.slane %v113, 4
    %v421 = vsel %vm393, %v418, %v420
    %v422 = vrot.slane %v115, 4
    %v423 = vsel %vm393, %v420, %v422
    %v424 = vrot.slane %v117, 4
    %v425 = vsel %vm393, %v422, %v424
    %v426 = vrot.slane %v139, 4
    %v427 = vsel %vm393, %v424, %v426
    %428 = vrot.lane.b32.xlu0 %v396, 16
    %v429 = vpop.permute.xlu0 %428
    %430 = vrot.lane.b32.xlu0 %v398, 16
    %v431 = vpop.permute.xlu0 %430
    %432 = vrot.lane.b32.xlu0 %v400, 16
    %v433 = vpop.permute.xlu0 %432
    %434 = vrot.lane.b32.xlu0 %v402, 16
    %v435 = vpop.permute.xlu0 %434
    %436 = vrot.lane.b32.xlu0 %v404, 16
    %v437 = vpop.permute.xlu0 %436
    %438 = vrot.lane.b32.xlu0 %v406, 16
    %v439 = vpop.permute.xlu0 %438
    %440 = vrot.lane.b32.xlu0 %v408, 16
    %v441 = vpop.permute.xlu0 %440
    %442 = vrot.lane.b32.xlu0 %v410, 16
    %v443 = vpop.permute.xlu0 %442
    %444 = vrot.lane.b32.xlu0 %v413, 16
    %v445 = vpop.permute.xlu0 %444
    %446 = vrot.lane.b32.xlu0 %v415, 16
    %v447 = vpop.permute.xlu0 %446
    %448 = vrot.lane.b32.xlu0 %v417, 16
    %v449 = vpop.permute.xlu0 %448
    %450 = vrot.lane.b32.xlu0 %v419, 16
    %v451 = vpop.permute.xlu0 %450
    %452 = vrot.lane.b32.xlu0 %v421, 16
    %v453 = vpop.permute.xlu0 %452
    %454 = vrot.lane.b32.xlu0 %v423, 16
    %v455 = vpop.permute.xlu0 %454
    %456 = vrot.lane.b32.xlu0 %v425, 16
    %v457 = vpop.permute.xlu0 %456
    %458 = vrot.lane.b32.xlu0 %v427, 16
    %v459 = vpop.permute.xlu0 %458
    %vm476 = vcmask 31744
    %v477 = vsel %vm476, %v136, %v180
    %v478 = vsel %vm476, %v90, %v182
    %v479 = vsel %vm476, %v92, %v184
    %v480 = vsel %vm476, %v94, %v186
    %v481 = vsel %vm476, %v96, %v188
    %v482 = vsel %vm476, %v98, %v190
    %v483 = vsel %vm476, %v100, %v192
    %v484 = vsel %vm476, %v102, %v194
    %v485 = vsel %vm476, %v137, %v196
    %v486 = vsel %vm476, %v105, %v198
    %v487 = vsel %vm476, %v107, %v200
    %v488 = vsel %vm476, %v109, %v202
    %v489 = vsel %vm476, %v111, %v204
    %v490 = vsel %vm476, %v113, %v206
    %v491 = vsel %vm476, %v115, %v208
    %v492 = vsel %vm476, %v117, %v210
    %vm493 = vcmask 64512
    %v494 = vsel %vm493, %v477, %v263
    %v495 = vsel %vm493, %v478, %v265
    %v496 = vsel %vm493, %v479, %v267
    %v497 = vsel %vm493, %v480, %v269
    %v498 = vsel %vm493, %v481, %v271
    %v499 = vsel %vm493, %v482, %v273
    %v500 = vsel %vm493, %v483, %v275
    %v501 = vsel %vm493, %v484, %v277
    %v502 = vsel %vm493, %v485, %v279
    %v503 = vsel %vm493, %v486, %v281
    %v504 = vsel %vm493, %v487, %v283
    %v505 = vsel %vm493, %v488, %v285
    %v506 = vsel %vm493, %v489, %v287
    %v507 = vsel %vm493, %v490, %v289
    %v508 = vsel %vm493, %v491, %v291
    %v509 = vsel %vm493, %v492, %v293
    %vm510 = vcmask 97280
    %v511 = vsel %vm510, %v494, %v346
    %v512 = vsel %vm510, %v495, %v348
    %v513 = vsel %vm510, %v496, %v350
    %v514 = vsel %vm510, %v497, %v352
    %v515 = vsel %vm510, %v498, %v354
    %v516 = vsel %vm510, %v499, %v356
    %v517 = vsel %vm510, %v500, %v358
    %v518 = vsel %vm510, %v501, %v360
    %v519 = vsel %vm510, %v502, %v362
    %v520 = vsel %vm510, %v503, %v364
    %v521 = vsel %vm510, %v504, %v366
    %v522 = vsel %vm510, %v505, %v368
    %v523 = vsel %vm510, %v506, %v370
    %v524 = vsel %vm510, %v507, %v372
    %v525 = vsel %vm510, %v508, %v374
    %v526 = vsel %vm510, %v509, %v376
    %vm527 = vcmask 130048
    %v528 = vsel %vm527, %v511, %v429
    %v529 = vsel %vm527, %v512, %v431
    %v530 = vsel %vm527, %v513, %v433
    %v531 = vsel %vm527, %v514, %v435
    %v532 = vsel %vm527, %v515, %v437
    %v533 = vsel %vm527, %v516, %v439
    %v534 = vsel %vm527, %v517, %v441
    %v535 = vsel %vm527, %v518, %v443
    %v536 = vsel %vm527, %v519, %v445
    %v537 = vsel %vm527, %v520, %v447
    %v538 = vsel %vm527, %v521, %v449
    %v539 = vsel %vm527, %v522, %v451
    %v540 = vsel %vm527, %v523, %v453
    %v541 = vsel %vm527, %v524, %v455
    %v542 = vsel %vm527, %v525, %v457
    %v543 = vsel %vm527, %v526, %v459
    %v544 = vpack.c.bf16 %v529, %v528
    %v545 = vpack.c.bf16 %v531, %v530
    %v546 = vpack.c.bf16 %v533, %v532
    %v547 = vpack.c.bf16 %v535, %v534
    %v548 = vpack.c.bf16 %v537, %v536
    %v549 = vpack.c.bf16 %v539, %v538
    %v550 = vpack.c.bf16 %v541, %v540
    %v551 = vpack.c.bf16 %v543, %v542
    %v555 = vunpack.c.l.b16 %v66
    %v556 = vunpack.c.l.b16 %v67
    %v557 = vunpack.c.l.b16 %v68
    %v558 = vpack.c.b16 %v556, %v555
    %v559 = vpack.c.b16 %v557, %v557
    %vm561 = vcmask 162816
    %v563 = vsel %vm561, %v544, 0
    %v566 = vsel %vm561, %v545, 0
    %v569 = vsel %vm561, %v546, 0
    %v572 = vsel %vm561, %v547, 0
    %v575 = vsel %vm561, %v548, 0
    %v578 = vsel %vm561, %v549, 0
    %v581 = vsel %vm561, %v550, 0
    %v584 = vsel %vm561, %v551, 0
    %v587 = vsel %vm87, %v559, 0
    %589 = vmatprep.subr.bf16.mxu0 0
    %590 = vmatpush1.bf16.msra.mxu0 0
    %591 = vmatprep.subr.bf16.mxu0 0
    %592 = vmatpush1.bf16.msra.mxu0 0
    %593 = vmatprep.subr.bf16.mxu0 0
    %594 = vmatpush1.bf16.msra.mxu0 0
    %595 = vmatprep.subr.bf16.mxu0 0
    %596 = vmatpush1.bf16.msra.mxu0 0
    %597 = vmatprep.subr.bf16.mxu0 0
    %598 = vmatpush1.bf16.msra.mxu0 0
    %599 = vmatprep.subr.bf16.mxu0 0
    %600 = vmatpush1.bf16.msra.mxu0 0
    %601 = vmatprep.subr.bf16.mxu0 0
    %602 = vmatpush1.bf16.msra.mxu0 %v587
    %603 = vmatprep.subr.bf16.mxu0 0
    %604 = vmatpush1.bf16.msra.mxu0 %v558
    %605 = vmatprep.subr.bf16.mxu0 0
    %606 = vmatpush2.bf16.msra.mxu0 0
    %607 = vmatprep.subr.bf16.mxu0 0
    %608 = vmatpush2.bf16.msra.mxu0 0
    %609 = vmatprep.subr.bf16.mxu0 0
    %610 = vmatpush2.bf16.msra.mxu0 0
    %611 = vmatprep.subr.bf16.mxu0 0
    %612 = vmatpush2.bf16.msra.mxu0 0
    %613 = vmatprep.subr.bf16.mxu0 0
    %614 = vmatpush2.bf16.msra.mxu0 0
    %615 = vmatprep.subr.bf16.mxu0 0
    %616 = vmatpush2.bf16.msra.mxu0 0
    %617 = vmatprep.subr.bf16.mxu0 0
    %618 = vmatpush2.bf16.msra.mxu0 0
    %619 = vmatprep.subr.bf16.mxu0 0
    %620 = vmatpush2.bf16.msra.mxu0 0
    %621 = vmatprep.mubr.bf16.mxu0 0
    %622 = vmatmul.mubr.bf16.gmra.mxu0 %v563
    %v623 = vpop.f32.mrf.mxu0
    %v624 = vadd.f32 0.0, %v623
    %v625 = vpop.f32.mrf.mxu0
    %v626 = vpop.f32.mrf.mxu0
    %v627 = vadd.f32 0.0, %v626
    %v628 = vpop.f32.mrf.mxu0
    %629 = vmatprep.mubr.bf16.mxu0 0
    %630 = vmatmul.mubr.bf16.gmra.mxu0 %v566
    %v631 = vpop.f32.mrf.mxu0
    %v632 = vadd.f32 0.0, %v631
    %v633 = vpop.f32.mrf.mxu0
    %v634 = vpop.f32.mrf.mxu0
    %v635 = vadd.f32 0.0, %v634
    %v636 = vpop.f32.mrf.mxu0
    %637 = vmatprep.mubr.bf16.mxu0 0
    %638 = vmatmul.mubr.bf16.gmra.mxu0 %v569
    %v639 = vpop.f32.mrf.mxu0
    %v640 = vadd.f32 0.0, %v639
    %v641 = vpop.f32.mrf.mxu0
    %v642 = vpop.f32.mrf.mxu0
    %v643 = vadd.f32 0.0, %v642
    %v644 = vpop.f32.mrf.mxu0
    %645 = vmatprep.mubr.bf16.mxu0 0
    %646 = vmatmul.mubr.bf16.gmra.mxu0 %v572
    %v647 = vpop.f32.mrf.mxu0
    %v648 = vadd.f32 0.0, %v647
    %v649 = vpop.f32.mrf.mxu0
    %v650 = vpop.f32.mrf.mxu0
    %v651 = vadd.f32 0.0, %v650
    %v652 = vpop.f32.mrf.mxu0
    %653 = vmatprep.mubr.bf16.mxu0 0
    %654 = vmatmul.mubr.bf16.gmra.mxu0 %v575
    %v655 = vpop.f32.mrf.mxu0
    %v656 = vadd.f32 0.0, %v655
    %v657 = vpop.f32.mrf.mxu0
    %v658 = vpop.f32.mrf.mxu0
    %v659 = vadd.f32 0.0, %v658
    %v660 = vpop.f32.mrf.mxu0
    %661 = vmatprep.mubr.bf16.mxu0 0
    %662 = vmatmul.mubr.bf16.gmra.mxu0 %v578
    %v663 = vpop.f32.mrf.mxu0
    %v664 = vadd.f32 0.0, %v663
    %v665 = vpop.f32.mrf.mxu0
    %v666 = vpop.f32.mrf.mxu0
    %v667 = vadd.f32 0.0, %v666
    %v668 = vpop.f32.mrf.mxu0
    %669 = vmatprep.mubr.bf16.mxu0 0
    %670 = vmatmul.mubr.bf16.gmra.mxu0 %v581
    %v671 = vpop.f32.mrf.mxu0
    %v672 = vadd.f32 0.0, %v671
    %v673 = vpop.f32.mrf.mxu0
    %v674 = vpop.f32.mrf.mxu0
    %v675 = vadd.f32 0.0, %v674
    %v676 = vpop.f32.mrf.mxu0
    %677 = vmatprep.mubr.bf16.mxu0 0
    %678 = vmatmul.mubr.bf16.gmra.mxu0 %v584
    %v679 = vpop.f32.mrf.mxu0
    %v680 = vadd.f32 0.0, %v679
    %v681 = vpop.f32.mrf.mxu0
    %v682 = vpop.f32.mrf.mxu0
    %v683 = vadd.f32 0.0, %v682
    %v684 = vpop.f32.mrf.mxu0
    %685 = vdwg.mxu0
    %v687 = vlaneseq
    %v688 = vshrl.u32 %v687, 7
    %v689 = vsub.s32 0, %v688
    %v690 = vrot.slane %v69, %v689
    %v692 = vmul.f32 %v624, %v690
    %v693 = vmul.f32 %v627, %v690
    %v694 = vmul.f32 %v632, %v690
    %v695 = vmul.f32 %v635, %v690
    %v696 = vmul.f32 %v640, %v690
    %v697 = vmul.f32 %v643, %v690
    %v698 = vmul.f32 %v648, %v690
    %v699 = vmul.f32 %v651, %v690
    %v700 = vmul.f32 %v656, %v690
    %v701 = vmul.f32 %v659, %v690
    %v702 = vmul.f32 %v664, %v690
    %v703 = vmul.f32 %v667, %v690
    %v704 = vmul.f32 %v672, %v690
    %v705 = vmul.f32 %v675, %v690
    %v706 = vmul.f32 %v680, %v690
    %v707 = vmul.f32 %v683, %v690
    %v709 = vlaneseq
    %v710 = vshrl.u32 %v709, 7
    %v711 = vsub.s32 0, %v710
    %v712 = vrot.slane %v70, %v711
    %v714 = vadd.f32 %v692, %v712
    %v715 = vadd.f32 %v693, %v712
    %v716 = vadd.f32 %v694, %v712
    %v717 = vadd.f32 %v695, %v712
    %v718 = vadd.f32 %v696, %v712
    %v719 = vadd.f32 %v697, %v712
    %v720 = vadd.f32 %v698, %v712
    %v721 = vadd.f32 %v699, %v712
    %v722 = vadd.f32 %v700, %v712
    %v723 = vadd.f32 %v701, %v712
    %v724 = vadd.f32 %v702, %v712
    %v725 = vadd.f32 %v703, %v712
    %v726 = vadd.f32 %v704, %v712
    %v727 = vadd.f32 %v705, %v712
    %v728 = vadd.f32 %v706, %v712
    %v729 = vadd.f32 %v707, %v712
    %v730 = vmax.f32 %v714, 0.0
    %v731 = vmax.f32 %v715, 0.0
    %v732 = vmax.f32 %v716, 0.0
    %v733 = vmax.f32 %v717, 0.0
    %v734 = vmax.f32 %v718, 0.0
    %v735 = vmax.f32 %v719, 0.0
    %v736 = vmax.f32 %v720, 0.0
    %v737 = vmax.f32 %v721, 0.0
    %v738 = vmax.f32 %v722, 0.0
    %v739 = vmax.f32 %v723, 0.0
    %v740 = vmax.f32 %v724, 0.0
    %v741 = vmax.f32 %v725, 0.0
    %v742 = vmax.f32 %v726, 0.0
    %v743 = vmax.f32 %v727, 0.0
    %v744 = vmax.f32 %v728, 0.0
    %v745 = vmax.f32 %v729, 0.0
    %v762 = vcombine.high %v730, %v730
    %v763 = vcombine.high %v731, %v731
    %v764 = vcombine.high %v732, %v732
    %v765 = vcombine.high %v733, %v733
    %v766 = vcombine.high %v734, %v734
    %v767 = vcombine.high %v735, %v735
    %v768 = vcombine.high %v736, %v736
    %v769 = vcombine.high %v737, %v737
    %v770 = vcombine.high %v738, %v738
    %v771 = vcombine.high %v739, %v739
    %v772 = vcombine.high %v740, %v740
    %v773 = vcombine.high %v741, %v741
    %v774 = vcombine.high %v742, %v742
    %v775 = vcombine.high %v743, %v743
    %v776 = vcombine.high %v744, %v744
    %v777 = vcombine.high %v745, %v745
    %vm794 = vcmask 257024
    %v795 = vsel %vm794, %v730, -inf
    %v796 = vrot.slane %v795, 4
    %v797 = vmax.f32 %v795, %v796
    %v798 = vrot.slane %v797, 2
    %v799 = vmax.f32 %v797, %v798
    %v800 = vrot.slane %v799, 1
    %v801 = vmax.f32 %v799, %v800
    %v802 = vsel %vm794, %v762, -inf
    %v803 = vrot.slane %v802, 4
    %v804 = vmax.f32 %v802, %v803
    %v805 = vrot.slane %v804, 2
    %v806 = vmax.f32 %v804, %v805
    %v807 = vrot.slane %v806, 1
    %v808 = vmax.f32 %v806, %v807
    %v809 = vsel %vm794, %v731, -inf
    %v810 = vrot.slane %v809, 4
    %v811 = vmax.f32 %v809, %v810
    %v812 = vrot.slane %v811, 2
    %v813 = vmax.f32 %v811, %v812
    %v814 = vrot.slane %v813, 1
    %v815 = vmax.f32 %v813, %v814
    %v816 = vsel %vm794, %v763, -inf
    %v817 = vrot.slane %v816, 4
    %v818 = vmax.f32 %v816, %v817
    %v819 = vrot.slane %v818, 2
    %v820 = vmax.f32 %v818, %v819
    %v821 = vrot.slane %v820, 1
    %v822 = vmax.f32 %v820, %v821
    %v823 = vsel %vm794, %v732, -inf
    %v824 = vrot.slane %v823, 4
    %v825 = vmax.f32 %v823, %v824
    %v826 = vrot.slane %v825, 2
    %v827 = vmax.f32 %v825, %v826
    %v828 = vrot.slane %v827, 1
    %v829 = vmax.f32 %v827, %v828
    %v830 = vsel %vm794, %v764, -inf
    %v831 = vrot.slane %v830, 4
    %v832 = vmax.f32 %v830, %v831
    %v833 = vrot.slane %v832, 2
    %v834 = vmax.f32 %v832, %v833
    %v835 = vrot.slane %v834, 1
    %v836 = vmax.f32 %v834, %v835
    %v837 = vsel %vm794, %v733, -inf
    %v838 = vrot.slane %v837, 4
    %v839 = vmax.f32 %v837, %v838
    %v840 = vrot.slane %v839, 2
    %v841 = vmax.f32 %v839, %v840
    %v842 = vrot.slane %v841, 1
    %v843 = vmax.f32 %v841, %v842
    %v844 = vsel %vm794, %v765, -inf
    %v845 = vrot.slane %v844, 4
    %v846 = vmax.f32 %v844, %v845
    %v847 = vrot.slane %v846, 2
    %v848 = vmax.f32 %v846, %v847
    %v849 = vrot.slane %v848, 1
    %v850 = vmax.f32 %v848, %v849
    %v851 = vsel %vm794, %v734, -inf
    %v852 = vrot.slane %v851, 4
    %v853 = vmax.f32 %v851, %v852
    %v854 = vrot.slane %v853, 2
    %v855 = vmax.f32 %v853, %v854
    %v856 = vrot.slane %v855, 1
    %v857 = vmax.f32 %v855, %v856
    %v858 = vsel %vm794, %v766, -inf
    %v859 = vrot.slane %v858, 4
    %v860 = vmax.f32 %v858, %v859
    %v861 = vrot.slane %v860, 2
    %v862 = vmax.f32 %v860, %v861
    %v863 = vrot.slane %v862, 1
    %v864 = vmax.f32 %v862, %v863
    %v865 = vsel %vm794, %v735, -inf
    %v866 = vrot.slane %v865, 4
    %v867 = vmax.f32 %v865, %v866
    %v868 = vrot.slane %v867, 2
    %v869 = vmax.f32 %v867, %v868
    %v870 = vrot.slane %v869, 1
    %v871 = vmax.f32 %v869, %v870
    %v872 = vsel %vm794, %v767, -inf
    %v873 = vrot.slane %v872, 4
    %v874 = vmax.f32 %v872, %v873
    %v875 = vrot.slane %v874, 2
    %v876 = vmax.f32 %v874, %v875
    %v877 = vrot.slane %v876, 1
    %v878 = vmax.f32 %v876, %v877
    %v879 = vsel %vm794, %v736, -inf
    %v880 = vrot.slane %v879, 4
    %v881 = vmax.f32 %v879, %v880
    %v882 = vrot.slane %v881, 2
    %v883 = vmax.f32 %v881, %v882
    %v884 = vrot.slane %v883, 1
    %v885 = vmax.f32 %v883, %v884
    %v886 = vsel %vm794, %v768, -inf
    %v887 = vrot.slane %v886, 4
    %v888 = vmax.f32 %v886, %v887
    %v889 = vrot.slane %v888, 2
    %v890 = vmax.f32 %v888, %v889
    %v891 = vrot.slane %v890, 1
    %v892 = vmax.f32 %v890, %v891
    %v893 = vsel %vm794, %v737, -inf
    %v894 = vrot.slane %v893, 4
    %v895 = vmax.f32 %v893, %v894
    %v896 = vrot.slane %v895, 2
    %v897 = vmax.f32 %v895, %v896
    %v898 = vrot.slane %v897, 1
    %v899 = vmax.f32 %v897, %v898
    %v900 = vsel %vm794, %v769, -inf
    %v901 = vrot.slane %v900, 4
    %v902 = vmax.f32 %v900, %v901
    %v903 = vrot.slane %v902, 2
    %v904 = vmax.f32 %v902, %v903
    %v905 = vrot.slane %v904, 1
    %v906 = vmax.f32 %v904, %v905
    %v907 = vsel %vm794, %v738, -inf
    %v908 = vrot.slane %v907, 4
    %v909 = vmax.f32 %v907, %v908
    %v910 = vrot.slane %v909, 2
    %v911 = vmax.f32 %v909, %v910
    %v912 = vrot.slane %v911, 1
    %v913 = vmax.f32 %v911, %v912
    %v914 = vsel %vm794, %v770, -inf
    %v915 = vrot.slane %v914, 4
    %v916 = vmax.f32 %v914, %v915
    %v917 = vrot.slane %v916, 2
    %v918 = vmax.f32 %v916, %v917
    %v919 = vrot.slane %v918, 1
    %v920 = vmax.f32 %v918, %v919
    %v921 = vsel %vm794, %v739, -inf
    %v922 = vrot.slane %v921, 4
    %v923 = vmax.f32 %v921, %v922
    %v924 = vrot.slane %v923, 2
    %v925 = vmax.f32 %v923, %v924
    %v926 = vrot.slane %v925, 1
    %v927 = vmax.f32 %v925, %v926
    %v928 = vsel %vm794, %v771, -inf
    %v929 = vrot.slane %v928, 4
    %v930 = vmax.f32 %v928, %v929
    %v931 = vrot.slane %v930, 2
    %v932 = vmax.f32 %v930, %v931
    %v933 = vrot.slane %v932, 1
    %v934 = vmax.f32 %v932, %v933
    %v935 = vsel %vm794, %v740, -inf
    %v936 = vrot.slane %v935, 4
    %v937 = vmax.f32 %v935, %v936
    %v938 = vrot.slane %v937, 2
    %v939 = vmax.f32 %v937, %v938
    %v940 = vrot.slane %v939, 1
    %v941 = vmax.f32 %v939, %v940
    %v942 = vsel %vm794, %v772, -inf
    %v943 = vrot.slane %v942, 4
    %v944 = vmax.f32 %v942, %v943
    %v945 = vrot.slane %v944, 2
    %v946 = vmax.f32 %v944, %v945
    %v947 = vrot.slane %v946, 1
    %v948 = vmax.f32 %v946, %v947
    %v949 = vsel %vm794, %v741, -inf
    %v950 = vrot.slane %v949, 4
    %v951 = vmax.f32 %v949, %v950
    %v952 = vrot.slane %v951, 2
    %v953 = vmax.f32 %v951, %v952
    %v954 = vrot.slane %v953, 1
    %v955 = vmax.f32 %v953, %v954
    %v956 = vsel %vm794, %v773, -inf
    %v957 = vrot.slane %v956, 4
    %v958 = vmax.f32 %v956, %v957
    %v959 = vrot.slane %v958, 2
    %v960 = vmax.f32 %v958, %v959
    %v961 = vrot.slane %v960, 1
    %v962 = vmax.f32 %v960, %v961
    %v963 = vsel %vm794, %v742, -inf
    %v964 = vrot.slane %v963, 4
    %v965 = vmax.f32 %v963, %v964
    %v966 = vrot.slane %v965, 2
    %v967 = vmax.f32 %v965, %v966
    %v968 = vrot.slane %v967, 1
    %v969 = vmax.f32 %v967, %v968
    %v970 = vsel %vm794, %v774, -inf
    %v971 = vrot.slane %v970, 4
    %v972 = vmax.f32 %v970, %v971
    %v973 = vrot.slane %v972, 2
    %v974 = vmax.f32 %v972, %v973
    %v975 = vrot.slane %v974, 1
    %v976 = vmax.f32 %v974, %v975
    %v977 = vsel %vm794, %v743, -inf
    %v978 = vrot.slane %v977, 4
    %v979 = vmax.f32 %v977, %v978
    %v980 = vrot.slane %v979, 2
    %v981 = vmax.f32 %v979, %v980
    %v982 = vrot.slane %v981, 1
    %v983 = vmax.f32 %v981, %v982
    %v984 = vsel %vm794, %v775, -inf
    %v985 = vrot.slane %v984, 4
    %v986 = vmax.f32 %v984, %v985
    %v987 = vrot.slane %v986, 2
    %v988 = vmax.f32 %v986, %v987
    %v989 = vrot.slane %v988, 1
    %v990 = vmax.f32 %v988, %v989
    %v991 = vsel %vm794, %v744, -inf
    %v992 = vrot.slane %v991, 4
    %v993 = vmax.f32 %v991, %v992
    %v994 = vrot.slane %v993, 2
    %v995 = vmax.f32 %v993, %v994
    %v996 = vrot.slane %v995, 1
    %v997 = vmax.f32 %v995, %v996
    %v998 = vsel %vm794, %v776, -inf
    %v999 = vrot.slane %v998, 4
    %v1000 = vmax.f32 %v998, %v999
    %v1001 = vrot.slane %v1000, 2
    %v1002 = vmax.f32 %v1000, %v1001
    %v1003 = vrot.slane %v1002, 1
    %v1004 = vmax.f32 %v1002, %v1003
    %v1005 = vsel %vm794, %v745, -inf
    %v1006 = vrot.slane %v1005, 4
    %v1007 = vmax.f32 %v1005, %v1006
    %v1008 = vrot.slane %v1007, 2
    %v1009 = vmax.f32 %v1007, %v1008
    %v1010 = vrot.slane %v1009, 1
    %v1011 = vmax.f32 %v1009, %v1010
    %v1012 = vsel %vm794, %v777, -inf
    %v1013 = vrot.slane %v1012, 4
    %v1014 = vmax.f32 %v1012, %v1013
    %v1015 = vrot.slane %v1014, 2
    %v1016 = vmax.f32 %v1014, %v1015
    %v1017 = vrot.slane %v1016, 1
    %v1018 = vmax.f32 %v1016, %v1017
    %v1019 = vld [vmem:[%s4] sm:$0xf]
    %v1020 = vld [vmem:[%s4 + $0x4] sm:$0xf]
    %v1021 = vld [vmem:[%s4 + $0x8] sm:$0xf]
    %v1022 = vld [vmem:[%s4 + $0xc] sm:$0xf]
    %v1023 = vld [vmem:[%s4 + $0x10] sm:$0xf]
    %v1024 = vld [vmem:[%s4 + $0x14] sm:$0xf]
    %v1025 = vld [vmem:[%s4 + $0x18] sm:$0xf]
    %v1026 = vld [vmem:[%s4 + $0x1c] sm:$0xf]
    %v1027 = vld [vmem:[%s4 + $0x20] sm:$0xf]
    %v1028 = vld [vmem:[%s4 + $0x24] sm:$0xf]
    %v1029 = vld [vmem:[%s4 + $0x28] sm:$0xf]
    %v1030 = vld [vmem:[%s4 + $0x2c] sm:$0xf]
    %v1031 = vld [vmem:[%s4 + $0x30] sm:$0xf]
    %v1032 = vld [vmem:[%s4 + $0x34] sm:$0xf]
    %v1033 = vld [vmem:[%s4 + $0x38] sm:$0xf]
    %v1034 = vld [vmem:[%s4 + $0x3c] sm:$0xf]
    %v1035 = vld [vmem:[%s4 + $0x40] sm:$0xf]
    %v1036 = vld [vmem:[%s4 + $0x44] sm:$0xf]
    %v1037 = vld [vmem:[%s4 + $0x48] sm:$0xf]
    %v1038 = vld [vmem:[%s4 + $0x4c] sm:$0xf]
    %v1039 = vld [vmem:[%s5] sm:$0x1]
    %v1040 = vld [vmem:[%s6] sm:$0x1]
    %vm1073 = vcmask 1043459
    %v1074 = vsel %vm1073, %v808, %v801
    %vm1075 = vcmask 1044484
    %v1076 = vsel %vm1075, %v815, %v1074
    %vm1077 = vcmask 1045509
    %v1078 = vsel %vm1077, %v822, %v1076
    %vm1079 = vcmask 1046534
    %v1080 = vsel %vm1079, %v829, %v1078
    %vm1081 = vcmask 1047559
    %v1082 = vsel %vm1081, %v836, %v1080
    %vm1083 = vcmask 1041409
    %v1084 = vsel %vm1083, %v850, %v843
    %vm1085 = vcmask 1042434
    %v1086 = vsel %vm1085, %v857, %v1084
    %v1087 = vsel %vm1073, %v864, %v1086
    %v1088 = vsel %vm1075, %v871, %v1087
    %v1089 = vsel %vm1077, %v878, %v1088
    %v1090 = vsel %vm1079, %v885, %v1089
    %v1091 = vsel %vm1081, %v892, %v1090
    %v1092 = vsel %vm1083, %v906, %v899
    %v1093 = vsel %vm1073, %v920, %v913
    %v1094 = vsel %vm1075, %v927, %v1093
    %v1095 = vsel %vm1077, %v934, %v1094
    %v1096 = vsel %vm1079, %v941, %v1095
    %v1097 = vsel %vm1081, %v948, %v1096
    %v1098 = vsel %vm1083, %v962, %v955
    %v1099 = vsel %vm1085, %v969, %v1098
    %v1100 = vsel %vm1073, %v976, %v1099
    %v1101 = vsel %vm1075, %v983, %v1100
    %v1102 = vsel %vm1077, %v990, %v1101
    %v1103 = vsel %vm1079, %v997, %v1102
    %v1104 = vsel %vm1081, %v1004, %v1103
    %v1105 = vsel %vm1083, %v1018, %v1011
    %v1112 = vsel %vm87, 0.0, %v1082
    %v1113 = vsel %vm87, 0.0, %v1097
    %v1114 = vsel %vm87, %v1092, 0.0
    %v1115 = vsel %vm87, %v1105, 0.0
    %v1120 = vrot.slane %v1112, 1
    %v1121 = vrot.slane %v1091, 1
    %v1122 = vsel %vm144, %v1120, %v1121
    %v1123 = vrot.slane %v1114, 1
    %v1124 = vsel %vm144, %v1121, %v1123
    %v1125 = vrot.slane %v1113, 1
    %v1126 = vrot.slane %v1104, 1
    %v1127 = vsel %vm144, %v1125, %v1126
    %v1128 = vrot.slane %v1115, 1
    %v1129 = vsel %vm144, %v1126, %v1128
    %1130 = vrot.lane.b32.xlu0 %v1122, 32
    %v1131 = vpop.permute.xlu0 %1130
    %1132 = vrot.lane.b32.xlu0 %v1124, 32
    %v1133 = vpop.permute.xlu0 %1132
    %1134 = vrot.lane.b32.xlu0 %v1127, 32
    %v1135 = vpop.permute.xlu0 %1134
    %1136 = vrot.lane.b32.xlu0 %v1129, 32
    %v1137 = vpop.permute.xlu0 %1136
    %v1142 = vrot.slane %v1112, 2
    %v1143 = vrot.slane %v1091, 2
    %v1144 = vsel %vm227, %v1142, %v1143
    %v1145 = vrot.slane %v1114, 2
    %v1146 = vsel %vm227, %v1143, %v1145
    %v1147 = vrot.slane %v1113, 2
    %v1148 = vrot.slane %v1104, 2
    %v1149 = vsel %vm227, %v1147, %v1148
    %v1150 = vrot.slane %v1115, 2
    %v1151 = vsel %vm227, %v1148, %v1150
    %1152 = vrot.lane.b32.xlu0 %v1144, 64
    %v1153 = vpop.permute.xlu0 %1152
    %1154 = vrot.lane.b32.xlu0 %v1146, 64
    %v1155 = vpop.permute.xlu0 %1154
    %1156 = vrot.lane.b32.xlu0 %v1149, 64
    %v1157 = vpop.permute.xlu0 %1156
    %1158 = vrot.lane.b32.xlu0 %v1151, 64
    %v1159 = vpop.permute.xlu0 %1158
    %v1164 = vrot.slane %v1112, 3
    %v1165 = vrot.slane %v1091, 3
    %v1166 = vsel %vm310, %v1164, %v1165
    %v1167 = vrot.slane %v1114, 3
    %v1168 = vsel %vm310, %v1165, %v1167
    %v1169 = vrot.slane %v1113, 3
    %v1170 = vrot.slane %v1104, 3
    %v1171 = vsel %vm310, %v1169, %v1170
    %v1172 = vrot.slane %v1115, 3
    %v1173 = vsel %vm310, %v1170, %v1172
    %1174 = vrot.lane.b32.xlu0 %v1166, 96
    %v1175 = vpop.permute.xlu0 %1174
    %1176 = vrot.lane.b32.xlu0 %v1168, 96
    %v1177 = vpop.permute.xlu0 %1176
    %1178 = vrot.lane.b32.xlu0 %v1171, 96
    %v1179 = vpop.permute.xlu0 %1178
    %1180 = vrot.lane.b32.xlu0 %v1173, 96
    %v1181 = vpop.permute.xlu0 %1180
    %v1186 = vrot.slane %v1112, 4
    %v1187 = vrot.slane %v1091, 4
    %v1188 = vsel %vm393, %v1186, %v1187
    %v1189 = vrot.slane %v1114, 4
    %v1190 = vsel %vm393, %v1187, %v1189
    %v1191 = vrot.slane %v1113, 4
    %v1192 = vrot.slane %v1104, 4
    %v1193 = vsel %vm393, %v1191, %v1192
    %v1194 = vrot.slane %v1115, 4
    %v1195 = vsel %vm393, %v1192, %v1194
    %vm1200 = vcmask 261120
    %v1201 = vsel %vm1200, %v1112, %v1131
    %v1202 = vsel %vm1200, %v1091, %v1133
    %v1203 = vsel %vm1200, %v1113, %v1135
    %v1204 = vsel %vm1200, %v1104, %v1137
    %vm1205 = vcmask 523264
    %v1206 = vsel %vm1205, %v1201, %v1153
    %v1207 = vsel %vm1205, %v1202, %v1155
    %v1208 = vsel %vm1205, %v1203, %v1157
    %v1209 = vsel %vm1205, %v1204, %v1159
    %vm1210 = vcmask 785408
    %v1211 = vsel %vm1210, %v1206, %v1175
    %v1212 = vsel %vm1210, %v1207, %v1177
    %v1213 = vsel %vm1210, %v1208, %v1179
    %v1214 = vsel %vm1210, %v1209, %v1181
    %v1215 = vpack.c.bf16 %v1212, %v1211
    %v1216 = vpack.c.bf16 %v1190, %v1188
    %v1217 = vpack.c.bf16 %v1214, %v1213
    %v1218 = vpack.c.bf16 %v1195, %v1193
    %v1239 = vunpack.c.l.b16 %v1019
    %v1240 = vunpack.c.l.b16 %v1020
    %v1241 = vunpack.c.l.b16 %v1021
    %v1242 = vunpack.c.l.b16 %v1022
    %v1243 = vunpack.c.l.b16 %v1023
    %v1244 = vunpack.c.l.b16 %v1024
    %v1245 = vunpack.c.l.b16 %v1025
    %v1246 = vunpack.c.l.b16 %v1026
    %v1247 = vunpack.c.l.b16 %v1027
    %v1248 = vunpack.c.l.b16 %v1028
    %v1249 = vunpack.c.l.b16 %v1029
    %v1250 = vunpack.c.l.b16 %v1030
    %v1251 = vunpack.c.l.b16 %v1031
    %v1252 = vunpack.c.l.b16 %v1032
    %v1253 = vunpack.c.l.b16 %v1033
    %v1254 = vunpack.c.l.b16 %v1034
    %v1255 = vunpack.c.l.b16 %v1035
    %v1256 = vunpack.c.l.b16 %v1036
    %v1257 = vunpack.c.l.b16 %v1037
    %v1258 = vunpack.c.l.b16 %v1038
    %v1259 = vpack.c.b16 %v1240, %v1239
    %v1260 = vpack.c.b16 %v1242, %v1241
    %v1261 = vpack.c.b16 %v1244, %v1243
    %v1262 = vpack.c.b16 %v1246, %v1245
    %v1263 = vpack.c.b16 %v1248, %v1247
    %v1264 = vpack.c.b16 %v1250, %v1249
    %v1265 = vpack.c.b16 %v1252, %v1251
    %v1266 = vpack.c.b16 %v1254, %v1253
    %v1267 = vpack.c.b16 %v1256, %v1255
    %v1268 = vpack.c.b16 %v1258, %v1257
    %v1280 = vsel %vm1200, %v1216, 0
    %v1283 = vsel %vm1200, %v1218, 0
    %1285 = vmatprep.subr.bf16.mxu0 0
    %1286 = vmatpush1.bf16.msra.mxu0 %v1266
    %1287 = vmatprep.subr.bf16.mxu0 0
    %1288 = vmatpush1.bf16.msra.mxu0 %v1265
    %1289 = vmatprep.subr.bf16.mxu0 0
    %1290 = vmatpush1.bf16.msra.mxu0 %v1264
    %1291 = vmatprep.subr.bf16.mxu0 0
    %1292 = vmatpush1.bf16.msra.mxu0 %v1263
    %1293 = vmatprep.subr.bf16.mxu0 0
    %1294 = vmatpush1.bf16.msra.mxu0 %v1262
    %1295 = vmatprep.subr.bf16.mxu0 0
    %1296 = vmatpush1.bf16.msra.mxu0 %v1261
    %1297 = vmatprep.subr.bf16.mxu0 0
    %1298 = vmatpush1.bf16.msra.mxu0 %v1260
    %1299 = vmatprep.subr.bf16.mxu0 0
    %1300 = vmatpush1.bf16.msra.mxu0 %v1259
    %1301 = vmatprep.subr.bf16.mxu0 0
    %1302 = vmatpush2.bf16.msra.mxu0 0
    %1303 = vmatprep.subr.bf16.mxu0 0
    %1304 = vmatpush2.bf16.msra.mxu0 0
    %1305 = vmatprep.subr.bf16.mxu0 0
    %1306 = vmatpush2.bf16.msra.mxu0 0
    %1307 = vmatprep.subr.bf16.mxu0 0
    %1308 = vmatpush2.bf16.msra.mxu0 0
    %1309 = vmatprep.subr.bf16.mxu0 0
    %1310 = vmatpush2.bf16.msra.mxu0 0
    %1311 = vmatprep.subr.bf16.mxu0 0
    %1312 = vmatpush2.bf16.msra.mxu0 0
    %1313 = vmatprep.subr.bf16.mxu0 0
    %1314 = vmatpush2.bf16.msra.mxu0 %v1268
    %1315 = vmatprep.subr.bf16.mxu0 0
    %1316 = vmatpush2.bf16.msra.mxu0 %v1267
    %1317 = vmatprep.mubr.bf16.mxu0 %v1280
    %1318 = vmatmul.mubr.bf16.gmra.mxu0 %v1215
    %v1319 = vpop.f32.mrf.mxu0
    %v1320 = vadd.f32 0.0, %v1319
    %v1321 = vpop.f32.mrf.mxu0
    %v1322 = vpop.f32.mrf.mxu0
    %v1323 = vadd.f32 0.0, %v1322
    %v1324 = vpop.f32.mrf.mxu0
    %1325 = vmatprep.mubr.bf16.mxu0 %v1283
    %1326 = vmatmul.mubr.bf16.gmra.mxu0 %v1217
    %v1327 = vpop.f32.mrf.mxu0
    %v1328 = vadd.f32 0.0, %v1327
    %v1329 = vpop.f32.mrf.mxu0
    %v1330 = vpop.f32.mrf.mxu0
    %v1331 = vadd.f32 0.0, %v1330
    %v1332 = vpop.f32.mrf.mxu0
    %1333 = vdwg.mxu0
    %v1335 = vlaneseq
    %v1336 = vshrl.u32 %v1335, 7
    %v1337 = vsub.s32 0, %v1336
    %v1338 = vrot.slane %v1039, %v1337
    %v1340 = vmul.f32 %v1320, %v1338
    %v1341 = vmul.f32 %v1323, %v1338
    %v1342 = vmul.f32 %v1328, %v1338
    %v1343 = vmul.f32 %v1331, %v1338
    %v1345 = vlaneseq
    %v1346 = vshrl.u32 %v1345, 7
    %v1347 = vsub.s32 0, %v1346
    %v1348 = vrot.slane %v1040, %v1347
    %v1350 = vadd.f32 %v1340, %v1348
    %v1351 = vadd.f32 %v1341, %v1348
    %v1352 = vadd.f32 %v1342, %v1348
    %v1353 = vadd.f32 %v1343, %v1348
    %v1354 = vmax.f32 %v1350, 0.0
    %v1355 = vmax.f32 %v1351, 0.0
    %v1356 = vmax.f32 %v1352, 0.0
    %v1357 = vmax.f32 %v1353, 0.0
    %v1362 = vcombine.high %v1354, %v1354
    %v1363 = vcombine.high %v1355, %v1355
    %v1364 = vcombine.high %v1356, %v1356
    %v1365 = vcombine.high %v1357, %v1357
    %vm1370 = vcmask 519168
    %v1371 = vsel %vm1370, %v1354, -inf
    %v1372 = vrot.slane %v1371, 4
    %v1373 = vmax.f32 %v1371, %v1372
    %v1374 = vrot.slane %v1373, 2
    %v1375 = vmax.f32 %v1373, %v1374
    %v1376 = vrot.slane %v1375, 1
    %v1377 = vmax.f32 %v1375, %v1376
    %v1378 = vsel %vm1370, %v1362, -inf
    %v1379 = vrot.slane %v1378, 4
    %v1380 = vmax.f32 %v1378, %v1379
    %v1381 = vrot.slane %v1380, 2
    %v1382 = vmax.f32 %v1380, %v1381
    %v1383 = vrot.slane %v1382, 1
    %v1384 = vmax.f32 %v1382, %v1383
    %v1385 = vsel %vm1370, %v1355, -inf
    %v1386 = vrot.slane %v1385, 4
    %v1387 = vmax.f32 %v1385, %v1386
    %v1388 = vrot.slane %v1387, 2
    %v1389 = vmax.f32 %v1387, %v1388
    %v1390 = vrot.slane %v1389, 1
    %v1391 = vmax.f32 %v1389, %v1390
    %v1392 = vsel %vm1370, %v1363, -inf
    %v1393 = vrot.slane %v1392, 4
    %v1394 = vmax.f32 %v1392, %v1393
    %v1395 = vrot.slane %v1394, 2
    %v1396 = vmax.f32 %v1394, %v1395
    %v1397 = vrot.slane %v1396, 1
    %v1398 = vmax.f32 %v1396, %v1397
    %v1399 = vsel %vm1370, %v1356, -inf
    %v1400 = vrot.slane %v1399, 4
    %v1401 = vmax.f32 %v1399, %v1400
    %v1402 = vrot.slane %v1401, 2
    %v1403 = vmax.f32 %v1401, %v1402
    %v1404 = vrot.slane %v1403, 1
    %v1405 = vmax.f32 %v1403, %v1404
    %v1406 = vsel %vm1370, %v1364, -inf
    %v1407 = vrot.slane %v1406, 4
    %v1408 = vmax.f32 %v1406, %v1407
    %v1409 = vrot.slane %v1408, 2
    %v1410 = vmax.f32 %v1408, %v1409
    %v1411 = vrot.slane %v1410, 1
    %v1412 = vmax.f32 %v1410, %v1411
    %v1413 = vsel %vm1370, %v1357, -inf
    %v1414 = vrot.slane %v1413, 4
    %v1415 = vmax.f32 %v1413, %v1414
    %v1416 = vrot.slane %v1415, 2
    %v1417 = vmax.f32 %v1415, %v1416
    %v1418 = vrot.slane %v1417, 1
    %v1419 = vmax.f32 %v1417, %v1418
    %v1420 = vsel %vm1370, %v1365, -inf
    %v1421 = vrot.slane %v1420, 4
    %v1422 = vmax.f32 %v1420, %v1421
    %v1423 = vrot.slane %v1422, 2
    %v1424 = vmax.f32 %v1422, %v1423
    %v1425 = vrot.slane %v1424, 1
    %v1426 = vmax.f32 %v1424, %v1425
    %v1427 = vld [vmem:[%s7] sm:$0xf]
    %v1428 = vld [vmem:[%s7 + $0x4] sm:$0xf]
    %v1429 = vld [vmem:[%s7 + $0x8] sm:$0xf]
    %v1430 = vld [vmem:[%s7 + $0xc] sm:$0xf]
    %v1431 = vld [vmem:[%s7 + $0x10] sm:$0xf]
    %v1432 = vld [vmem:[%s7 + $0x14] sm:$0xf]
    %v1433 = vld [vmem:[%s7 + $0x18] sm:$0xf]
    %v1434 = vld [vmem:[%s7 + $0x1c] sm:$0xf]
    %v1435 = vld [vmem:[%s7 + $0x20] sm:$0xf]
    %v1436 = vld [vmem:[%s7 + $0x24] sm:$0xf]
    %v1437 = vld [vmem:[%s7 + $0x28] sm:$0xf]
    %v1438 = vld [vmem:[%s7 + $0x2c] sm:$0xf]
    %v1439 = vld [vmem:[%s7 + $0x30] sm:$0xf]
    %v1440 = vld [vmem:[%s7 + $0x34] sm:$0xf]
    %v1441 = vld [vmem:[%s7 + $0x38] sm:$0xf]
    %v1442 = vld [vmem:[%s7 + $0x3c] sm:$0xf]
    %v1443 = vld [vmem:[%s7 + $0x40] sm:$0xf]
    %v1444 = vld [vmem:[%s7 + $0x44] sm:$0xf]
    %v1445 = vld [vmem:[%s7 + $0x48] sm:$0xf]
    %v1446 = vld [vmem:[%s7 + $0x4c] sm:$0xf]
    %v1447 = vld [vmem:[%s7 + $0x50] sm:$0xf]
    %v1448 = vld [vmem:[%s7 + $0x54] sm:$0xf]
    %v1449 = vld [vmem:[%s7 + $0x58] sm:$0xf]
    %v1450 = vld [vmem:[%s7 + $0x5c] sm:$0xf]
    %v1451 = vld [vmem:[%s8] sm:$0x1]
    %v1452 = vld [vmem:[%s9] sm:$0x1]
    %v1461 = vsel %vm1085, %v1384, %v1377
    %v1462 = vsel %vm1073, %v1391, %v1461
    %v1463 = vsel %vm1075, %v1398, %v1462
    %v1464 = vsel %vm1085, %v1412, %v1405
    %v1465 = vsel %vm1073, %v1419, %v1464
    %v1466 = vsel %vm1075, %v1426, %v1465
    %vm1469 = vcmask 1040384
    %v1470 = vsel %vm1469, 0.0, %v1463
    %v1471 = vsel %vm1469, 0.0, %v1466
    %v1472 = vsel %vm310, %v1470, 0.0
    %v1473 = vsel %vm310, %v1471, 0.0
    %v1476 = vrot.slane %v1472, 1
    %v1477 = vrot.slane %v1473, 1
    %1478 = vrot.lane.b32.xlu0 %v1476, 64
    %v1479 = vpop.permute.xlu0 %1478
    %1480 = vrot.lane.b32.xlu0 %v1477, 64
    %v1481 = vpop.permute.xlu0 %1480
    %v1484 = vrot.slane %v1472, 2
    %v1485 = vrot.slane %v1473, 2
    %v1486 = vsel %vm1205, %v1472, %v1479
    %v1487 = vsel %vm1205, %v1473, %v1481
    %v1490 = vcombine.low %v1486, %v1484
    %v1491 = vcombine.low %v1487, %v1485
    %v1492 = vcombine.low %v1490, %v1491
    %v1493 = vcombine.high %v1490, %v1491
    %v1496 = vpack.c.bf16 %v1492, %v1492
    %v1497 = vpack.c.bf16 %v1493, %v1493
    %v1522 = vunpack.c.l.b16 %v1427
    %v1523 = vunpack.c.l.b16 %v1428
    %v1524 = vunpack.c.l.b16 %v1429
    %v1525 = vunpack.c.l.b16 %v1430
    %v1526 = vunpack.c.l.b16 %v1431
    %v1527 = vunpack.c.l.b16 %v1432
    %v1528 = vunpack.c.l.b16 %v1433
    %v1529 = vunpack.c.l.b16 %v1434
    %v1530 = vunpack.c.l.b16 %v1435
    %v1531 = vunpack.c.l.b16 %v1436
    %v1532 = vunpack.c.l.b16 %v1437
    %v1533 = vunpack.c.l.b16 %v1438
    %v1534 = vunpack.c.l.b16 %v1439
    %v1535 = vunpack.c.l.b16 %v1440
    %v1536 = vunpack.c.l.b16 %v1441
    %v1537 = vunpack.c.l.b16 %v1442
    %v1538 = vunpack.c.l.b16 %v1443
    %v1539 = vunpack.c.l.b16 %v1444
    %v1540 = vunpack.c.l.b16 %v1445
    %v1541 = vunpack.c.l.b16 %v1446
    %v1542 = vunpack.c.l.b16 %v1447
    %v1543 = vunpack.c.l.b16 %v1448
    %v1544 = vunpack.c.l.b16 %v1449
    %v1545 = vunpack.c.l.b16 %v1450
    %v1546 = vpack.c.b16 %v1523, %v1522
    %v1547 = vpack.c.b16 %v1525, %v1524
    %v1548 = vpack.c.b16 %v1527, %v1526
    %v1549 = vpack.c.b16 %v1529, %v1528
    %v1550 = vpack.c.b16 %v1531, %v1530
    %v1551 = vpack.c.b16 %v1533, %v1532
    %v1552 = vpack.c.b16 %v1535, %v1534
    %v1553 = vpack.c.b16 %v1537, %v1536
    %v1554 = vpack.c.b16 %v1539, %v1538
    %v1555 = vpack.c.b16 %v1541, %v1540
    %v1556 = vpack.c.b16 %v1543, %v1542
    %v1557 = vpack.c.b16 %v1545, %v1544
    %v1571 = vsel %vm1205, %v1497, 0
    %1573 = vmatprep.subr.bf16.mxu0 0
    %1574 = vmatpush1.bf16.msra.mxu0 %v1553
    %1575 = vmatprep.subr.bf16.mxu0 0
    %1576 = vmatpush1.bf16.msra.mxu0 %v1552
    %1577 = vmatprep.subr.bf16.mxu0 0
    %1578 = vmatpush1.bf16.msra.mxu0 %v1551
    %1579 = vmatprep.subr.bf16.mxu0 0
    %1580 = vmatpush1.bf16.msra.mxu0 %v1550
    %1581 = vmatprep.subr.bf16.mxu0 0
    %1582 = vmatpush1.bf16.msra.mxu0 %v1549
    %1583 = vmatprep.subr.bf16.mxu0 0
    %1584 = vmatpush1.bf16.msra.mxu0 %v1548
    %1585 = vmatprep.subr.bf16.mxu0 0
    %1586 = vmatpush1.bf16.msra.mxu0 %v1547
    %1587 = vmatprep.subr.bf16.mxu0 0
    %1588 = vmatpush1.bf16.msra.mxu0 %v1546
    %1589 = vmatprep.subr.bf16.mxu0 0
    %1590 = vmatpush2.bf16.msra.mxu0 0
    %1591 = vmatprep.subr.bf16.mxu0 0
    %1592 = vmatpush2.bf16.msra.mxu0 0
    %1593 = vmatprep.subr.bf16.mxu0 0
    %1594 = vmatpush2.bf16.msra.mxu0 0
    %1595 = vmatprep.subr.bf16.mxu0 0
    %1596 = vmatpush2.bf16.msra.mxu0 0
    %1597 = vmatprep.subr.bf16.mxu0 0
    %1598 = vmatpush2.bf16.msra.mxu0 %v1557
    %1599 = vmatprep.subr.bf16.mxu0 0
    %1600 = vmatpush2.bf16.msra.mxu0 %v1556
    %1601 = vmatprep.subr.bf16.mxu0 0
    %1602 = vmatpush2.bf16.msra.mxu0 %v1555
    %1603 = vmatprep.subr.bf16.mxu0 0
    %1604 = vmatpush2.bf16.msra.mxu0 %v1554
    %1605 = vmatprep.mubr.bf16.mxu0 %v1571
    %1606 = vmatmul.mubr.bf16.gmra.mxu0 %v1496
    %v1607 = vpop.f32.mrf.mxu0
    %v1608 = vadd.f32 0.0, %v1607
    %v1609 = vpop.f32.mrf.mxu0
    %v1610 = vpop.f32.mrf.mxu0
    %v1611 = vpop.f32.mrf.mxu0
    %1612 = vdwg.mxu0
    %v1614 = vlaneseq
    %v1615 = vshrl.u32 %v1614, 7
    %v1616 = vsub.s32 0, %v1615
    %v1617 = vrot.slane %v1451, %v1616
    %v1619 = vmul.f32 %v1608, %v1617
    %v1621 = vlaneseq
    %v1622 = vshrl.u32 %v1621, 7
    %v1623 = vsub.s32 0, %v1622
    %v1624 = vrot.slane %v1452, %v1623
    %v1626 = vadd.f32 %v1619, %v1624
    %v1627 = vmax.f32 %v1626, 0.0
    %v1629 = vcombine.high %v1627, %v1627
    %v1631 = vunpack.c.l.s4 1983009808
    %v1632 = vunpack.c.0.s8 %v1631
    %v1633 = vlaneseq
    %v1634 = vshrl.u32 %v1633, 7
    %v1635 = vsub.s32 %v1632, %v1634
    %v1636 = vrot.slane %v1627, %v1635
    %v1638 = vunpack.c.l.s4 1983009808
    %v1639 = vunpack.c.0.s8 %v1638
    %v1640 = vlaneseq
    %v1641 = vshrl.u32 %v1640, 7
    %v1642 = vsub.s32 %v1639, %v1641
    %v1643 = vrot.slane %v1629, %v1642
    %v1644 = vcombine.high %v1636, %v1636
    %v1645 = vcombine.high %v1643, %v1643
    %v1650 = vsel %vm87, %v1636, -inf
    %v1651 = vrot.slane %v1650, 4
    %v1652 = vmax.f32 %v1650, %v1651
    %v1653 = vrot.slane %v1652, 2
    %v1654 = vmax.f32 %v1652, %v1653
    %v1655 = vrot.slane %v1654, 1
    %v1656 = vmax.f32 %v1654, %v1655
    %v1657 = vsel %vm87, %v1644, -inf
    %v1658 = vrot.slane %v1657, 4
    %v1659 = vmax.f32 %v1657, %v1658
    %v1660 = vrot.slane %v1659, 2
    %v1661 = vmax.f32 %v1659, %v1660
    %v1662 = vrot.slane %v1661, 1
    %v1663 = vmax.f32 %v1661, %v1662
    %v1664 = vsel %vm87, %v1643, -inf
    %v1665 = vrot.slane %v1664, 4
    %v1666 = vmax.f32 %v1664, %v1665
    %v1667 = vrot.slane %v1666, 2
    %v1668 = vmax.f32 %v1666, %v1667
    %v1669 = vrot.slane %v1668, 1
    %v1670 = vmax.f32 %v1668, %v1669
    %v1671 = vsel %vm87, %v1645, -inf
    %v1672 = vrot.slane %v1671, 4
    %v1673 = vmax.f32 %v1671, %v1672
    %v1674 = vrot.slane %v1673, 2
    %v1675 = vmax.f32 %v1673, %v1674
    %v1676 = vrot.slane %v1675, 1
    %v1677 = vmax.f32 %v1675, %v1676
    %v1682 = vsel %vm1083, %v1663, %v1656
    %v1683 = vsel %vm1083, %v1677, %v1670
    %1686 = vst [vmem:[%s10] sm:$0x3] %v1682
    %1687 = vst [vmem:[%s10 + $0x2] sm:$0x3] %v1683
    // Predicated region
    $region46: #{_lambda_.4} parent=1 // pred_check
      _
    $region47: #{_lambda_.4} parent=1 // pred_check_branch
      %1689 = sbr.rel (0) target = $region49
    $region48: #{_lambda_.4} parent=1 // pred_region
      _
    $region49: #{_lambda_.4} parent=1 // pred_fallthru
      _
    // Predicated region
    $region50: #{_lambda_.4} parent=1 // pred_check
      _
    $region51: #{_lambda_.4} parent=1 // pred_check_branch
      %1691 = sbr.rel (0) target = $region53
    $region52: #{_lambda_.4} parent=1 // pred_region
      _
    $region53: #{_lambda_.4} parent=1 // pred_fallthru
      _
    %1692 = vsyncpa [#allocation3], 1

// kernel: _lambda_.7
$region0: #{_lambda_.7}
  #allocation0 [shape = 'u32[]', space=smem, size = 0x4, offset = 0x4, fixed_abs, tag = 'smem constant byte address 0x4 - core index']
  #allocation1 [shape = 'u32[144,128]{1,0:T(1,128)}', space=vmem, size = 0x12000, scoped, tag = 'internal scratch']
  %s0 = inlined_call_operand.vmem [shape: f32[2,1024], index: 0, kind: input, shape index: {}]
  %s1 = inlined_call_operand.vmem [shape: bf16[1024,512], index: 1, kind: input, shape index: {}]
  %s2 = inlined_call_operand.vmem [shape: f32[1,512], index: 2, kind: input, shape index: {}]
  %s3 = inlined_call_operand.vmem [shape: bf16[512,128], index: 3, kind: input, shape index: {}]
  %s4 = inlined_call_operand.vmem [shape: f32[1,128], index: 4, kind: input, shape index: {}]
  %s5 = inlined_call_operand.vmem [shape: bf16[128,8], index: 5, kind: input, shape index: {}]
  %s6 = inlined_call_operand.vmem [shape: f32[1,8], index: 6, kind: input, shape index: {}]
  %s7 = inlined_call_operand.hbm [shape: f32[2,8], index: 7, kind: output, shape index: {}]
  %s8 = sld [smem:[#allocation0]]
  $region38: #{_lambda_.7} parent=0
    _
  %s10 = ssub.s32 1, %s8
  %s11 = scalar_select 0, %s10, %s8
  $region1: #{_lambda_.7} parent=0
    #allocation2 [shape = 'u8[1024]{0}', space=vmem, size = 0x400, scoped, tag = 'output window, operand 0, single buffered']
    #allocation3 [shape = 's32[1]{0}', space=sflag, size = 0x4, scoped, tag = 'scoped memory for _lambda_.7']
    %12 = vsyncpa [#allocation3], 0
    // Predicated region
    $region2: #{_lambda_.7} parent=1 // pred_check
      _
    $region3: #{_lambda_.7} parent=1 // pred_check_branch
      %14 = sbr.rel (0) target = $region5
    $region4: #{_lambda_.7} parent=1 // pred_region
      _
    $region5: #{_lambda_.7} parent=1 // pred_fallthru
      _
    // Predicated region
    $region6: #{_lambda_.7} parent=1 // pred_check
      _
    $region7: #{_lambda_.7} parent=1 // pred_check_branch
      %16 = sbr.rel (0) target = $region9
    $region8: #{_lambda_.7} parent=1 // pred_region
      _
    $region9: #{_lambda_.7} parent=1 // pred_fallthru
      _
    // Predicated region
    $region10: #{_lambda_.7} parent=1 // pred_check
      _
    $region11: #{_lambda_.7} parent=1 // pred_check_branch
      %18 = sbr.rel (0) target = $region13
    $region12: #{_lambda_.7} parent=1 // pred_region
      _
    $region13: #{_lambda_.7} parent=1 // pred_fallthru
      _
    // Predicated region
    $region14: #{_lambda_.7} parent=1 // pred_check
      _
    $region15: #{_lambda_.7} parent=1 // pred_check_branch
      %20 = sbr.rel (0) target = $region17
    $region16: #{_lambda_.7} parent=1 // pred_region
      _
    $region17: #{_lambda_.7} parent=1 // pred_fallthru
      _
    // Predicated region
    $region18: #{_lambda_.7} parent=1 // pred_check
      _
    $region19: #{_lambda_.7} parent=1 // pred_check_branch
      %22 = sbr.rel (0) target = $region21
    $region20: #{_lambda_.7} parent=1 // pred_region
      _
    $region21: #{_lambda_.7} parent=1 // pred_fallthru
      _
    // Predicated region
    $region22: #{_lambda_.7} parent=1 // pred_check
      _
    $region23: #{_lambda_.7} parent=1 // pred_check_branch
      %24 = sbr.rel (0) target = $region25
    $region24: #{_lambda_.7} parent=1 // pred_region
      _
    $region25: #{_lambda_.7} parent=1 // pred_fallthru
      _
    // Predicated region
    $region26: #{_lambda_.7} parent=1 // pred_check
      _
    $region27: #{_lambda_.7} parent=1 // pred_check_branch
      %26 = sbr.rel (0) target = $region29
    $region28: #{_lambda_.7} parent=1 // pred_region
      _
    $region29: #{_lambda_.7} parent=1 // pred_fallthru
      _
    %v28 = vld [vmem:[%s0] sm:$0xff]
    %v29 = vld [vmem:[%s0 + $0x8] sm:$0xff]
    %v32 = vcombine.high %v28, %v28
    %v34 = vunpack.c.l.s4 1983009808
    %v35 = vunpack.c.0.s8 %v34
    %v36 = vlaneseq
    %v37 = vshrl.u32 %v36, 7
    %v38 = vsub.s32 %v35, %v37
    %v39 = vrot.slane %v28, %v38
    %v41 = vunpack.c.l.s4 1983009808
    %v42 = vunpack.c.0.s8 %v41
    %v43 = vlaneseq
    %v44 = vshrl.u32 %v43, 7
    %v45 = vsub.s32 %v42, %v44
    %v46 = vrot.slane %v32, %v45
    %v47 = vcombine.high %v39, %v39
    %v48 = vcombine.high %v46, %v46
    %v49 = vcombine.high %v29, %v29
    %v51 = vunpack.c.l.s4 1983009808
    %v52 = vunpack.c.0.s8 %v51
    %v53 = vlaneseq
    %v54 = vshrl.u32 %v53, 7
    %v55 = vsub.s32 %v52, %v54
    %v56 = vrot.slane %v29, %v55
    %v58 = vunpack.c.l.s4 1983009808
    %v59 = vunpack.c.0.s8 %v58
    %v60 = vlaneseq
    %v61 = vshrl.u32 %v60, 7
    %v62 = vsub.s32 %v59, %v61
    %v63 = vrot.slane %v49, %v62
    %v64 = vcombine.high %v56, %v56
    %v65 = vcombine.high %v63, %v63
    %v74 = vpack.c.bf16 %v39, %v39
    %v75 = vpack.c.bf16 %v47, %v47
    %v76 = vpack.c.bf16 %v46, %v46
    %v77 = vpack.c.bf16 %v48, %v48
    %v78 = vpack.c.bf16 %v56, %v56
    %v79 = vpack.c.bf16 %v64, %v64
    %v80 = vpack.c.bf16 %v63, %v63
    %v81 = vpack.c.bf16 %v65, %v65
    %v82 = vld [vmem:[%s1] sm:$0xff]
    %v83 = vld [vmem:[%s1 + $0x8] sm:$0xff]
    %v84 = vld [vmem:[%s1 + $0x10] sm:$0xff]
    %v85 = vld [vmem:[%s1 + $0x18] sm:$0xff]
    %v86 = vld [vmem:[%s1 + $0x20] sm:$0xff]
    %v87 = vld [vmem:[%s1 + $0x28] sm:$0xff]
    %v88 = vld [vmem:[%s1 + $0x30] sm:$0xff]
    %v89 = vld [vmem:[%s1 + $0x38] sm:$0xff]
    %v90 = vld [vmem:[%s1 + $0x40] sm:$0xff]
    %v91 = vld [vmem:[%s1 + $0x48] sm:$0xff]
    %v92 = vld [vmem:[%s1 + $0x50] sm:$0xff]
    %v93 = vld [vmem:[%s1 + $0x58] sm:$0xff]
    %v94 = vld [vmem:[%s1 + $0x60] sm:$0xff]
    %v95 = vld [vmem:[%s1 + $0x68] sm:$0xff]
    %v96 = vld [vmem:[%s1 + $0x70] sm:$0xff]
    %v97 = vld [vmem:[%s1 + $0x78] sm:$0xff]
    %v98 = vld [vmem:[%s1 + $0x80] sm:$0xff]
    %v99 = vld [vmem:[%s1 + $0x88] sm:$0xff]
    %v100 = vld [vmem:[%s1 + $0x90] sm:$0xff]
    %v101 = vld [vmem:[%s1 + $0x98] sm:$0xff]
    %v102 = vld [vmem:[%s1 + $0xa0] sm:$0xff]
    %v103 = vld [vmem:[%s1 + $0xa8] sm:$0xff]
    %v104 = vld [vmem:[%s1 + $0xb0] sm:$0xff]
    %v105 = vld [vmem:[%s1 + $0xb8] sm:$0xff]
    %v106 = vld [vmem:[%s1 + $0xc0] sm:$0xff]
    %v107 = vld [vmem:[%s1 + $0xc8] sm:$0xff]
    %v108 = vld [vmem:[%s1 + $0xd0] sm:$0xff]
    %v109 = vld [vmem:[%s1 + $0xd8] sm:$0xff]
    %v110 = vld [vmem:[%s1 + $0xe0] sm:$0xff]
    %v111 = vld [vmem:[%s1 + $0xe8] sm:$0xff]
    %v112 = vld [vmem:[%s1 + $0xf0] sm:$0xff]
    %v113 = vld [vmem:[%s1 + $0xf8] sm:$0xff]
    %v114 = vld [vmem:[%s1 + $0x100] sm:$0xff]
    %v115 = vld [vmem:[%s1 + $0x108] sm:$0xff]
    %v116 = vld [vmem:[%s1 + $0x110] sm:$0xff]
    %v117 = vld [vmem:[%s1 + $0x118] sm:$0xff]
    %v118 = vld [vmem:[%s1 + $0x120] sm:$0xff]
    %v119 = vld [vmem:[%s1 + $0x128] sm:$0xff]
    %v120 = vld [vmem:[%s1 + $0x130] sm:$0xff]
    %v121 = vld [vmem:[%s1 + $0x138] sm:$0xff]
    %v122 = vld [vmem:[%s1 + $0x140] sm:$0xff]
    %v123 = vld [vmem:[%s1 + $0x148] sm:$0xff]
    %v124 = vld [vmem:[%s1 + $0x150] sm:$0xff]
    %v125 = vld [vmem:[%s1 + $0x158] sm:$0xff]
    %v126 = vld [vmem:[%s1 + $0x160] sm:$0xff]
    %v127 = vld [vmem:[%s1 + $0x168] sm:$0xff]
    %v128 = vld [vmem:[%s1 + $0x170] sm:$0xff]
    %v129 = vld [vmem:[%s1 + $0x178] sm:$0xff]
    %v130 = vld [vmem:[%s1 + $0x180] sm:$0xff]
    %v131 = vld [vmem:[%s1 + $0x188] sm:$0xff]
    %v132 = vld [vmem:[%s1 + $0x190] sm:$0xff]
    %v133 = vld [vmem:[%s1 + $0x198] sm:$0xff]
    %v134 = vld [vmem:[%s1 + $0x1a0] sm:$0xff]
    %v135 = vld [vmem:[%s1 + $0x1a8] sm:$0xff]
    %v136 = vld [vmem:[%s1 + $0x1b0] sm:$0xff]
    %v137 = vld [vmem:[%s1 + $0x1b8] sm:$0xff]
    %v138 = vld [vmem:[%s1 + $0x1c0] sm:$0xff]
    %v139 = vld [vmem:[%s1 + $0x1c8] sm:$0xff]
    %v140 = vld [vmem:[%s1 + $0x1d0] sm:$0xff]
    %v141 = vld [vmem:[%s1 + $0x1d8] sm:$0xff]
    %v142 = vld [vmem:[%s1 + $0x1e0] sm:$0xff]
    %v143 = vld [vmem:[%s1 + $0x1e8] sm:$0xff]
    %v144 = vld [vmem:[%s1 + $0x1f0] sm:$0xff]
    %v145 = vld [vmem:[%s1 + $0x1f8] sm:$0xff]
    %v146 = vld [vmem:[%s1 + $0x200] sm:$0xff]
    %v147 = vld [vmem:[%s1 + $0x208] sm:$0xff]
    %v148 = vld [vmem:[%s1 + $0x210] sm:$0xff]
    %v149 = vld [vmem:[%s1 + $0x218] sm:$0xff]
    %v150 = vld [vmem:[%s1 + $0x220] sm:$0xff]
    %v151 = vld [vmem:[%s1 + $0x228] sm:$0xff]
    %v152 = vld [vmem:[%s1 + $0x230] sm:$0xff]
    %v153 = vld [vmem:[%s1 + $0x238] sm:$0xff]
    %v154 = vld [vmem:[%s1 + $0x240] sm:$0xff]
    %v155 = vld [vmem:[%s1 + $0x248] sm:$0xff]
    %v156 = vld [vmem:[%s1 + $0x250] sm:$0xff]
    %v157 = vld [vmem:[%s1 + $0x258] sm:$0xff]
    %v158 = vld [vmem:[%s1 + $0x260] sm:$0xff]
    %v159 = vld [vmem:[%s1 + $0x268] sm:$0xff]
    %v160 = vld [vmem:[%s1 + $0x270] sm:$0xff]
    %v161 = vld [vmem:[%s1 + $0x278] sm:$0xff]
    %v162 = vld [vmem:[%s1 + $0x280] sm:$0xff]
    %v163 = vld [vmem:[%s1 + $0x288] sm:$0xff]
    %v164 = vld [vmem:[%s1 + $0x290] sm:$0xff]
    %v165 = vld [vmem:[%s1 + $0x298] sm:$0xff]
    %v166 = vld [vmem:[%s1 + $0x2a0] sm:$0xff]
    %v167 = vld [vmem:[%s1 + $0x2a8] sm:$0xff]
    %v168 = vld [vmem:[%s1 + $0x2b0] sm:$0xff]
    %v169 = vld [vmem:[%s1 + $0x2b8] sm:$0xff]
    %v170 = vld [vmem:[%s1 + $0x2c0] sm:$0xff]
    %v171 = vld [vmem:[%s1 + $0x2c8] sm:$0xff]
    %v172 = vld [vmem:[%s1 + $0x2d0] sm:$0xff]
    %v173 = vld [vmem:[%s1 + $0x2d8] sm:$0xff]
    %v174 = vld [vmem:[%s1 + $0x2e0] sm:$0xff]
    %v175 = vld [vmem:[%s1 + $0x2e8] sm:$0xff]
    %v176 = vld [vmem:[%s1 + $0x2f0] sm:$0xff]
    %v177 = vld [vmem:[%s1 + $0x2f8] sm:$0xff]
    %v178 = vld [vmem:[%s1 + $0x300] sm:$0xff]
    %v179 = vld [vmem:[%s1 + $0x308] sm:$0xff]
    %v180 = vld [vmem:[%s1 + $0x310] sm:$0xff]
    %v181 = vld [vmem:[%s1 + $0x318] sm:$0xff]
    %v182 = vld [vmem:[%s1 + $0x320] sm:$0xff]
    %v183 = vld [vmem:[%s1 + $0x328] sm:$0xff]
    %v184 = vld [vmem:[%s1 + $0x330] sm:$0xff]
    %v185 = vld [vmem:[%s1 + $0x338] sm:$0xff]
    %v186 = vld [vmem:[%s1 + $0x340] sm:$0xff]
    %v187 = vld [vmem:[%s1 + $0x348] sm:$0xff]
    %v188 = vld [vmem:[%s1 + $0x350] sm:$0xff]
    %v189 = vld [vmem:[%s1 + $0x358] sm:$0xff]
    %v190 = vld [vmem:[%s1 + $0x360] sm:$0xff]
    %v191 = vld [vmem:[%s1 + $0x368] sm:$0xff]
    %v192 = vld [vmem:[%s1 + $0x370] sm:$0xff]
    %v193 = vld [vmem:[%s1 + $0x378] sm:$0xff]
    %v194 = vld [vmem:[%s1 + $0x380] sm:$0xff]
    %v195 = vld [vmem:[%s1 + $0x388] sm:$0xff]
    %v196 = vld [vmem:[%s1 + $0x390] sm:$0xff]
    %v197 = vld [vmem:[%s1 + $0x398] sm:$0xff]
    %v198 = vld [vmem:[%s1 + $0x3a0] sm:$0xff]
    %v199 = vld [vmem:[%s1 + $0x3a8] sm:$0xff]
    %v200 = vld [vmem:[%s1 + $0x3b0] sm:$0xff]
    %v201 = vld [vmem:[%s1 + $0x3b8] sm:$0xff]
    %v202 = vld [vmem:[%s1 + $0x3c0] sm:$0xff]
    %v203 = vld [vmem:[%s1 + $0x3c8] sm:$0xff]
    %v204 = vld [vmem:[%s1 + $0x3d0] sm:$0xff]
    %v205 = vld [vmem:[%s1 + $0x3d8] sm:$0xff]
    %v206 = vld [vmem:[%s1 + $0x3e0] sm:$0xff]
    %v207 = vld [vmem:[%s1 + $0x3e8] sm:$0xff]
    %v208 = vld [vmem:[%s1 + $0x3f0] sm:$0xff]
    %v209 = vld [vmem:[%s1 + $0x3f8] sm:$0xff]
    %v210 = vld [vmem:[%s1 + $0x400] sm:$0xff]
    %v211 = vld [vmem:[%s1 + $0x408] sm:$0xff]
    %v212 = vld [vmem:[%s1 + $0x410] sm:$0xff]
    %v213 = vld [vmem:[%s1 + $0x418] sm:$0xff]
    %v214 = vld [vmem:[%s1 + $0x420] sm:$0xff]
    %v215 = vld [vmem:[%s1 + $0x428] sm:$0xff]
    %v216 = vld [vmem:[%s1 + $0x430] sm:$0xff]
    %v217 = vld [vmem:[%s1 + $0x438] sm:$0xff]
    %v218 = vld [vmem:[%s1 + $0x440] sm:$0xff]
    %v219 = vld [vmem:[%s1 + $0x448] sm:$0xff]
    %v220 = vld [vmem:[%s1 + $0x450] sm:$0xff]
    %v221 = vld [vmem:[%s1 + $0x458] sm:$0xff]
    %v222 = vld [vmem:[%s1 + $0x460] sm:$0xff]
    %v223 = vld [vmem:[%s1 + $0x468] sm:$0xff]
    %v224 = vld [vmem:[%s1 + $0x470] sm:$0xff]
    %v225 = vld [vmem:[%s1 + $0x478] sm:$0xff]
    %v226 = vld [vmem:[%s1 + $0x480] sm:$0xff]
    %v227 = vld [vmem:[%s1 + $0x488] sm:$0xff]
    %v228 = vld [vmem:[%s1 + $0x490] sm:$0xff]
    %v229 = vld [vmem:[%s1 + $0x498] sm:$0xff]
    %v230 = vld [vmem:[%s1 + $0x4a0] sm:$0xff]
    %v231 = vld [vmem:[%s1 + $0x4a8] sm:$0xff]
    %v232 = vld [vmem:[%s1 + $0x4b0] sm:$0xff]
    %v233 = vld [vmem:[%s1 + $0x4b8] sm:$0xff]
    %v234 = vld [vmem:[%s1 + $0x4c0] sm:$0xff]
    %v235 = vld [vmem:[%s1 + $0x4c8] sm:$0xff]
    %v236 = vld [vmem:[%s1 + $0x4d0] sm:$0xff]
    %v237 = vld [vmem:[%s1 + $0x4d8] sm:$0xff]
    %v238 = vld [vmem:[%s1 + $0x4e0] sm:$0xff]
    %v239 = vld [vmem:[%s1 + $0x4e8] sm:$0xff]
    %v240 = vld [vmem:[%s1 + $0x4f0] sm:$0xff]
    %v241 = vld [vmem:[%s1 + $0x4f8] sm:$0xff]
    %v242 = vld [vmem:[%s1 + $0x500] sm:$0xff]
    %v243 = vld [vmem:[%s1 + $0x508] sm:$0xff]
    %v244 = vld [vmem:[%s1 + $0x510] sm:$0xff]
    %v245 = vld [vmem:[%s1 + $0x518] sm:$0xff]
    %v246 = vld [vmem:[%s1 + $0x520] sm:$0xff]
    %v247 = vld [vmem:[%s1 + $0x528] sm:$0xff]
    %v248 = vld [vmem:[%s1 + $0x530] sm:$0xff]
    %v249 = vld [vmem:[%s1 + $0x538] sm:$0xff]
    %v250 = vld [vmem:[%s1 + $0x540] sm:$0xff]
    %v251 = vld [vmem:[%s1 + $0x548] sm:$0xff]
    %v252 = vld [vmem:[%s1 + $0x550] sm:$0xff]
    %v253 = vld [vmem:[%s1 + $0x558] sm:$0xff]
    %v254 = vld [vmem:[%s1 + $0x560] sm:$0xff]
    %v255 = vld [vmem:[%s1 + $0x568] sm:$0xff]
    %v256 = vld [vmem:[%s1 + $0x570] sm:$0xff]
    %v257 = vld [vmem:[%s1 + $0x578] sm:$0xff]
    %v258 = vld [vmem:[%s1 + $0x580] sm:$0xff]
    %v259 = vld [vmem:[%s1 + $0x588] sm:$0xff]
    %v260 = vld [vmem:[%s1 + $0x590] sm:$0xff]
    %v261 = vld [vmem:[%s1 + $0x598] sm:$0xff]
    %v262 = vld [vmem:[%s1 + $0x5a0] sm:$0xff]
    %v263 = vld [vmem:[%s1 + $0x5a8] sm:$0xff]
    %v264 = vld [vmem:[%s1 + $0x5b0] sm:$0xff]
    %v265 = vld [vmem:[%s1 + $0x5b8] sm:$0xff]
    %v266 = vld [vmem:[%s1 + $0x5c0] sm:$0xff]
    %v267 = vld [vmem:[%s1 + $0x5c8] sm:$0xff]
    %v268 = vld [vmem:[%s1 + $0x5d0] sm:$0xff]
    %v269 = vld [vmem:[%s1 + $0x5d8] sm:$0xff]
    %v270 = vld [vmem:[%s1 + $0x5e0] sm:$0xff]
    %v271 = vld [vmem:[%s1 + $0x5e8] sm:$0xff]
    %v272 = vld [vmem:[%s1 + $0x5f0] sm:$0xff]
    %v273 = vld [vmem:[%s1 + $0x5f8] sm:$0xff]
    %v274 = vld [vmem:[%s1 + $0x600] sm:$0xff]
    %v275 = vld [vmem:[%s1 + $0x608] sm:$0xff]
    %v276 = vld [vmem:[%s1 + $0x610] sm:$0xff]
    %v277 = vld [vmem:[%s1 + $0x618] sm:$0xff]
    %v278 = vld [vmem:[%s1 + $0x620] sm:$0xff]
    %v279 = vld [vmem:[%s1 + $0x628] sm:$0xff]
    %v280 = vld [vmem:[%s1 + $0x630] sm:$0xff]
    %v281 = vld [vmem:[%s1 + $0x638] sm:$0xff]
    %v282 = vld [vmem:[%s1 + $0x640] sm:$0xff]
    %v283 = vld [vmem:[%s1 + $0x648] sm:$0xff]
    %v284 = vld [vmem:[%s1 + $0x650] sm:$0xff]
    %v285 = vld [vmem:[%s1 + $0x658] sm:$0xff]
    %v286 = vld [vmem:[%s1 + $0x660] sm:$0xff]
    %v287 = vld [vmem:[%s1 + $0x668] sm:$0xff]
    %v288 = vld [vmem:[%s1 + $0x670] sm:$0xff]
    %v289 = vld [vmem:[%s1 + $0x678] sm:$0xff]
    %v290 = vld [vmem:[%s1 + $0x680] sm:$0xff]
    %v291 = vld [vmem:[%s1 + $0x688] sm:$0xff]
    %v292 = vld [vmem:[%s1 + $0x690] sm:$0xff]
    %v293 = vld [vmem:[%s1 + $0x698] sm:$0xff]
    %v294 = vld [vmem:[%s1 + $0x6a0] sm:$0xff]
    %v295 = vld [vmem:[%s1 + $0x6a8] sm:$0xff]
    %v296 = vld [vmem:[%s1 + $0x6b0] sm:$0xff]
    %v297 = vld [vmem:[%s1 + $0x6b8] sm:$0xff]
    %v298 = vld [vmem:[%s1 + $0x6c0] sm:$0xff]
    %v299 = vld [vmem:[%s1 + $0x6c8] sm:$0xff]
    %v300 = vld [vmem:[%s1 + $0x6d0] sm:$0xff]
    %v301 = vld [vmem:[%s1 + $0x6d8] sm:$0xff]
    %v302 = vld [vmem:[%s1 + $0x6e0] sm:$0xff]
    %v303 = vld [vmem:[%s1 + $0x6e8] sm:$0xff]
    %v304 = vld [vmem:[%s1 + $0x6f0] sm:$0xff]
    %v305 = vld [vmem:[%s1 + $0x6f8] sm:$0xff]
    %v306 = vld [vmem:[%s1 + $0x700] sm:$0xff]
    %v307 = vld [vmem:[%s1 + $0x708] sm:$0xff]
    %v308 = vld [vmem:[%s1 + $0x710] sm:$0xff]
    %v309 = vld [vmem:[%s1 + $0x718] sm:$0xff]
    %v310 = vld [vmem:[%s1 + $0x720] sm:$0xff]
    %v311 = vld [vmem:[%s1 + $0x728] sm:$0xff]
    %v312 = vld [vmem:[%s1 + $0x730] sm:$0xff]
    %v313 = vld [vmem:[%s1 + $0x738] sm:$0xff]
    %v314 = vld [vmem:[%s1 + $0x740] sm:$0xff]
    %v315 = vld [vmem:[%s1 + $0x748] sm:$0xff]
    %v316 = vld [vmem:[%s1 + $0x750] sm:$0xff]
    %v317 = vld [vmem:[%s1 + $0x758] sm:$0xff]
    %v318 = vld [vmem:[%s1 + $0x760] sm:$0xff]
    %v319 = vld [vmem:[%s1 + $0x768] sm:$0xff]
    %v320 = vld [vmem:[%s1 + $0x770] sm:$0xff]
    %v321 = vld [vmem:[%s1 + $0x778] sm:$0xff]
    %v322 = vld [vmem:[%s1 + $0x780] sm:$0xff]
    %v323 = vld [vmem:[%s1 + $0x788] sm:$0xff]
    %v324 = vld [vmem:[%s1 + $0x790] sm:$0xff]
    %v325 = vld [vmem:[%s1 + $0x798] sm:$0xff]
    %v326 = vld [vmem:[%s1 + $0x7a0] sm:$0xff]
    %v327 = vld [vmem:[%s1 + $0x7a8] sm:$0xff]
    %v328 = vld [vmem:[%s1 + $0x7b0] sm:$0xff]
    %v329 = vld [vmem:[%s1 + $0x7b8] sm:$0xff]
    %v330 = vld [vmem:[%s1 + $0x7c0] sm:$0xff]
    %v331 = vld [vmem:[%s1 + $0x7c8] sm:$0xff]
    %v332 = vld [vmem:[%s1 + $0x7d0] sm:$0xff]
    %v333 = vld [vmem:[%s1 + $0x7d8] sm:$0xff]
    %v334 = vld [vmem:[%s1 + $0x7e0] sm:$0xff]
    %v335 = vld [vmem:[%s1 + $0x7e8] sm:$0xff]
    %v336 = vld [vmem:[%s1 + $0x7f0] sm:$0xff]
    %v337 = vld [vmem:[%s1 + $0x7f8] sm:$0xff]
    %v338 = vld [vmem:[%s2] sm:$0xf]
    %v340 = vlaneseq
    %v341 = vshrl.u32 %v340, 7
    %v342 = vsub.s32 0, %v341
    %v343 = vrot.slane %v338, %v342
    %v344 = vlaneseq
    %v345 = vshrl.u32 %v344, 7
    %v346 = vsub.s32 1, %v345
    %v347 = vrot.slane %v338, %v346
    %v348 = vlaneseq
    %v349 = vshrl.u32 %v348, 7
    %v350 = vsub.s32 2, %v349
    %v351 = vrot.slane %v338, %v350
    %v352 = vlaneseq
    %v353 = vshrl.u32 %v352, 7
    %v354 = vsub.s32 3, %v353
    %v355 = vrot.slane %v338, %v354
    %v616 = vunpack.c.l.b16 %v82
    %v617 = vunpack.c.h.b16 %v82
    %v618 = vunpack.c.l.b16 %v83
    %v619 = vunpack.c.h.b16 %v83
    %v620 = vunpack.c.l.b16 %v84
    %v621 = vunpack.c.h.b16 %v84
    %v622 = vunpack.c.l.b16 %v85
    %v623 = vunpack.c.h.b16 %v85
    %v624 = vunpack.c.l.b16 %v86
    %v625 = vunpack.c.h.b16 %v86
    %v626 = vunpack.c.l.b16 %v87
    %v627 = vunpack.c.h.b16 %v87
    %v628 = vunpack.c.l.b16 %v88
    %v629 = vunpack.c.h.b16 %v88
    %v630 = vunpack.c.l.b16 %v89
    %v631 = vunpack.c.h.b16 %v89
    %v632 = vunpack.c.l.b16 %v90
    %v633 = vunpack.c.h.b16 %v90
    %v634 = vunpack.c.l.b16 %v91
    %v635 = vunpack.c.h.b16 %v91
    %v636 = vunpack.c.l.b16 %v92
    %v637 = vunpack.c.h.b16 %v92
    %v638 = vunpack.c.l.b16 %v93
    %v639 = vunpack.c.h.b16 %v93
    %v640 = vunpack.c.l.b16 %v94
    %v641 = vunpack.c.h.b16 %v94
    %v642 = vunpack.c.l.b16 %v95
    %v643 = vunpack.c.h.b16 %v95
    %v644 = vunpack.c.l.b16 %v96
    %v645 = vunpack.c.h.b16 %v96
    %v646 = vunpack.c.l.b16 %v97
    %v647 = vunpack.c.h.b16 %v97
    %v648 = vunpack.c.l.b16 %v98
    %v649 = vunpack.c.h.b16 %v98
    %v650 = vunpack.c.l.b16 %v99
    %v651 = vunpack.c.h.b16 %v99
    %v652 = vunpack.c.l.b16 %v100
    %v653 = vunpack.c.h.b16 %v100
    %v654 = vunpack.c.l.b16 %v101
    %v655 = vunpack.c.h.b16 %v101
    %v656 = vunpack.c.l.b16 %v102
    %v657 = vunpack.c.h.b16 %v102
    %v658 = vunpack.c.l.b16 %v103
    %v659 = vunpack.c.h.b16 %v103
    %v660 = vunpack.c.l.b16 %v104
    %v661 = vunpack.c.h.b16 %v104
    %v662 = vunpack.c.l.b16 %v105
    %v663 = vunpack.c.h.b16 %v105
    %v664 = vunpack.c.l.b16 %v106
    %v665 = vunpack.c.h.b16 %v106
    %v666 = vunpack.c.l.b16 %v107
    %v667 = vunpack.c.h.b16 %v107
    %v668 = vunpack.c.l.b16 %v108
    %v669 = vunpack.c.h.b16 %v108
    %v670 = vunpack.c.l.b16 %v109
    %v671 = vunpack.c.h.b16 %v109
    %v672 = vunpack.c.l.b16 %v110
    %v673 = vunpack.c.h.b16 %v110
    %v674 = vunpack.c.l.b16 %v111
    %v675 = vunpack.c.h.b16 %v111
    %v676 = vunpack.c.l.b16 %v112
    %v677 = vunpack.c.h.b16 %v112
    %v678 = vunpack.c.l.b16 %v113
    %v679 = vunpack.c.h.b16 %v113
    %v680 = vunpack.c.l.b16 %v114
    %v681 = vunpack.c.h.b16 %v114
    %v682 = vunpack.c.l.b16 %v115
    %v683 = vunpack.c.h.b16 %v115
    %v684 = vunpack.c.l.b16 %v116
    %v685 = vunpack.c.h.b16 %v116
    %v686 = vunpack.c.l.b16 %v117
    %v687 = vunpack.c.h.b16 %v117
    %v688 = vunpack.c.l.b16 %v118
    %v689 = vunpack.c.h.b16 %v118
    %v690 = vunpack.c.l.b16 %v119
    %v691 = vunpack.c.h.b16 %v119
    %v692 = vunpack.c.l.b16 %v120
    %v693 = vunpack.c.h.b16 %v120
    %v694 = vunpack.c.l.b16 %v121
    %v695 = vunpack.c.h.b16 %v121
    %v696 = vunpack.c.l.b16 %v122
    %v697 = vunpack.c.h.b16 %v122
    %v698 = vunpack.c.l.b16 %v123
    %v699 = vunpack.c.h.b16 %v123
    %v700 = vunpack.c.l.b16 %v124
    %v701 = vunpack.c.h.b16 %v124
    %v702 = vunpack.c.l.b16 %v125
    %v703 = vunpack.c.h.b16 %v125
    %v704 = vunpack.c.l.b16 %v126
    %v705 = vunpack.c.h.b16 %v126
    %v706 = vunpack.c.l.b16 %v127
    %v707 = vunpack.c.h.b16 %v127
    %v708 = vunpack.c.l.b16 %v128
    %v709 = vunpack.c.h.b16 %v128
    %v710 = vunpack.c.l.b16 %v129
    %v711 = vunpack.c.h.b16 %v129
    %v712 = vunpack.c.l.b16 %v130
    %v713 = vunpack.c.h.b16 %v130
    %v714 = vunpack.c.l.b16 %v131
    %v715 = vunpack.c.h.b16 %v131
    %v716 = vunpack.c.l.b16 %v132
    %v717 = vunpack.c.h.b16 %v132
    %v718 = vunpack.c.l.b16 %v133
    %v719 = vunpack.c.h.b16 %v133
    %v720 = vunpack.c.l.b16 %v134
    %v721 = vunpack.c.h.b16 %v134
    %v722 = vunpack.c.l.b16 %v135
    %v723 = vunpack.c.h.b16 %v135
    %v724 = vunpack.c.l.b16 %v136
    %v725 = vunpack.c.h.b16 %v136
    %v726 = vunpack.c.l.b16 %v137
    %v727 = vunpack.c.h.b16 %v137
    %v728 = vunpack.c.l.b16 %v138
    %v729 = vunpack.c.h.b16 %v138
    %v730 = vunpack.c.l.b16 %v139
    %v731 = vunpack.c.h.b16 %v139
    %v732 = vunpack.c.l.b16 %v140
    %v733 = vunpack.c.h.b16 %v140
    %v734 = vunpack.c.l.b16 %v141
    %v735 = vunpack.c.h.b16 %v141
    %v736 = vunpack.c.l.b16 %v142
    %v737 = vunpack.c.h.b16 %v142
    %v738 = vunpack.c.l.b16 %v143
    %v739 = vunpack.c.h.b16 %v143
    %v740 = vunpack.c.l.b16 %v144
    %v741 = vunpack.c.h.b16 %v144
    %v742 = vunpack.c.l.b16 %v145
    %v743 = vunpack.c.h.b16 %v145
    %v744 = vunpack.c.l.b16 %v146
    %v745 = vunpack.c.h.b16 %v146
    %v746 = vunpack.c.l.b16 %v147
    %v747 = vunpack.c.h.b16 %v147
    %v748 = vunpack.c.l.b16 %v148
    %v749 = vunpack.c.h.b16 %v148
    %v750 = vunpack.c.l.b16 %v149
    %v751 = vunpack.c.h.b16 %v149
    %v752 = vunpack.c.l.b16 %v150
    %v753 = vunpack.c.h.b16 %v150
    %v754 = vunpack.c.l.b16 %v151
    %v755 = vunpack.c.h.b16 %v151
    %v756 = vunpack.c.l.b16 %v152
    %v757 = vunpack.c.h.b16 %v152
    %v758 = vunpack.c.l.b16 %v153
    %v759 = vunpack.c.h.b16 %v153
    %v760 = vunpack.c.l.b16 %v154
    %v761 = vunpack.c.h.b16 %v154
    %v762 = vunpack.c.l.b16 %v155
    %v763 = vunpack.c.h.b16 %v155
    %v764 = vunpack.c.l.b16 %v156
    %v765 = vunpack.c.h.b16 %v156
    %v766 = vunpack.c.l.b16 %v157
    %v767 = vunpack.c.h.b16 %v157
    %v768 = vunpack.c.l.b16 %v158
    %v769 = vunpack.c.h.b16 %v158
    %v770 = vunpack.c.l.b16 %v159
    %v771 = vunpack.c.h.b16 %v159
    %v772 = vunpack.c.l.b16 %v160
    %v773 = vunpack.c.h.b16 %v160
    %v774 = vunpack.c.l.b16 %v161
    %v775 = vunpack.c.h.b16 %v161
    %v776 = vunpack.c.l.b16 %v162
    %v777 = vunpack.c.h.b16 %v162
    %v778 = vunpack.c.l.b16 %v163
    %v779 = vunpack.c.h.b16 %v163
    %v780 = vunpack.c.l.b16 %v164
    %v781 = vunpack.c.h.b16 %v164
    %v782 = vunpack.c.l.b16 %v165
    %v783 = vunpack.c.h.b16 %v165
    %v784 = vunpack.c.l.b16 %v166
    %v785 = vunpack.c.h.b16 %v166
    %v786 = vunpack.c.l.b16 %v167
    %v787 = vunpack.c.h.b16 %v167
    %v788 = vunpack.c.l.b16 %v168
    %v789 = vunpack.c.h.b16 %v168
    %v790 = vunpack.c.l.b16 %v169
    %v791 = vunpack.c.h.b16 %v169
    %v792 = vunpack.c.l.b16 %v170
    %v793 = vunpack.c.h.b16 %v170
    %v794 = vunpack.c.l.b16 %v171
    %v795 = vunpack.c.h.b16 %v171
    %v796 = vunpack.c.l.b16 %v172
    %v797 = vunpack.c.h.b16 %v172
    %v798 = vunpack.c.l.b16 %v173
    %v799 = vunpack.c.h.b16 %v173
    %v800 = vunpack.c.l.b16 %v174
    %v801 = vunpack.c.h.b16 %v174
    %v802 = vunpack.c.l.b16 %v175
    %v803 = vunpack.c.h.b16 %v175
    %v804 = vunpack.c.l.b16 %v176
    %v805 = vunpack.c.h.b16 %v176
    %v806 = vunpack.c.l.b16 %v177
    %v807 = vunpack.c.h.b16 %v177
    %v808 = vunpack.c.l.b16 %v178
    %v809 = vunpack.c.h.b16 %v178
    %v810 = vunpack.c.l.b16 %v179
    %v811 = vunpack.c.h.b16 %v179
    %v812 = vunpack.c.l.b16 %v180
    %v813 = vunpack.c.h.b16 %v180
    %v814 = vunpack.c.l.b16 %v181
    %v815 = vunpack.c.h.b16 %v181
    %v816 = vunpack.c.l.b16 %v182
    %v817 = vunpack.c.h.b16 %v182
    %v818 = vunpack.c.l.b16 %v183
    %v819 = vunpack.c.h.b16 %v183
    %v820 = vunpack.c.l.b16 %v184
    %v821 = vunpack.c.h.b16 %v184
    %v822 = vunpack.c.l.b16 %v185
    %v823 = vunpack.c.h.b16 %v185
    %v824 = vunpack.c.l.b16 %v186
    %v825 = vunpack.c.h.b16 %v186
    %v826 = vunpack.c.l.b16 %v187
    %v827 = vunpack.c.h.b16 %v187
    %v828 = vunpack.c.l.b16 %v188
    %v829 = vunpack.c.h.b16 %v188
    %v830 = vunpack.c.l.b16 %v189
    %v831 = vunpack.c.h.b16 %v189
    %v832 = vunpack.c.l.b16 %v190
    %v833 = vunpack.c.h.b16 %v190
    %v834 = vunpack.c.l.b16 %v191
    %v835 = vunpack.c.h.b16 %v191
    %v836 = vunpack.c.l.b16 %v192
    %v837 = vunpack.c.h.b16 %v192
    %v838 = vunpack.c.l.b16 %v193
    %v839 = vunpack.c.h.b16 %v193
    %v840 = vunpack.c.l.b16 %v194
    %v841 = vunpack.c.h.b16 %v194
    %v842 = vunpack.c.l.b16 %v195
    %v843 = vunpack.c.h.b16 %v195
    %v844 = vunpack.c.l.b16 %v196
    %v845 = vunpack.c.h.b16 %v196
    %v846 = vunpack.c.l.b16 %v197
    %v847 = vunpack.c.h.b16 %v197
    %v848 = vunpack.c.l.b16 %v198
    %v849 = vunpack.c.h.b16 %v198
    %v850 = vunpack.c.l.b16 %v199
    %v851 = vunpack.c.h.b16 %v199
    %v852 = vunpack.c.l.b16 %v200
    %v853 = vunpack.c.h.b16 %v200
    %v854 = vunpack.c.l.b16 %v201
    %v855 = vunpack.c.h.b16 %v201
    %v856 = vunpack.c.l.b16 %v202
    %v857 = vunpack.c.h.b16 %v202
    %v858 = vunpack.c.l.b16 %v203
    %v859 = vunpack.c.h.b16 %v203
    %v860 = vunpack.c.l.b16 %v204
    %v861 = vunpack.c.h.b16 %v204
    %v862 = vunpack.c.l.b16 %v205
    %v863 = vunpack.c.h.b16 %v205
    %v864 = vunpack.c.l.b16 %v206
    %v865 = vunpack.c.h.b16 %v206
    %v866 = vunpack.c.l.b16 %v207
    %v867 = vunpack.c.h.b16 %v207
    %v868 = vunpack.c.l.b16 %v208
    %v869 = vunpack.c.h.b16 %v208
    %v870 = vunpack.c.l.b16 %v209
    %v871 = vunpack.c.h.b16 %v209
    %v872 = vunpack.c.l.b16 %v210
    %v873 = vunpack.c.h.b16 %v210
    %v874 = vunpack.c.l.b16 %v211
    %v875 = vunpack.c.h.b16 %v211
    %v876 = vunpack.c.l.b16 %v212
    %v877 = vunpack.c.h.b16 %v212
    %v878 = vunpack.c.l.b16 %v213
    %v879 = vunpack.c.h.b16 %v213
    %v880 = vunpack.c.l.b16 %v214
    %v881 = vunpack.c.h.b16 %v214
    %v882 = vunpack.c.l.b16 %v215
    %v883 = vunpack.c.h.b16 %v215
    %v884 = vunpack.c.l.b16 %v216
    %v885 = vunpack.c.h.b16 %v216
    %v886 = vunpack.c.l.b16 %v217
    %v887 = vunpack.c.h.b16 %v217
    %v888 = vunpack.c.l.b16 %v218
    %v889 = vunpack.c.h.b16 %v218
    %v890 = vunpack.c.l.b16 %v219
    %v891 = vunpack.c.h.b16 %v219
    %v892 = vunpack.c.l.b16 %v220
    %v893 = vunpack.c.h.b16 %v220
    %v894 = vunpack.c.l.b16 %v221
    %v895 = vunpack.c.h.b16 %v221
    %v896 = vunpack.c.l.b16 %v222
    %v897 = vunpack.c.h.b16 %v222
    %v898 = vunpack.c.l.b16 %v223
    %v899 = vunpack.c.h.b16 %v223
    %v900 = vunpack.c.l.b16 %v224
    %v901 = vunpack.c.h.b16 %v224
    %v902 = vunpack.c.l.b16 %v225
    %v903 = vunpack.c.h.b16 %v225
    %v904 = vunpack.c.l.b16 %v226
    %v905 = vunpack.c.h.b16 %v226
    %v906 = vunpack.c.l.b16 %v227
    %v907 = vunpack.c.h.b16 %v227
    %v908 = vunpack.c.l.b16 %v228
    %v909 = vunpack.c.h.b16 %v228
    %v910 = vunpack.c.l.b16 %v229
    %v911 = vunpack.c.h.b16 %v229
    %v912 = vunpack.c.l.b16 %v230
    %v913 = vunpack.c.h.b16 %v230
    %v914 = vunpack.c.l.b16 %v231
    %v915 = vunpack.c.h.b16 %v231
    %v916 = vunpack.c.l.b16 %v232
    %v917 = vunpack.c.h.b16 %v232
    %v918 = vunpack.c.l.b16 %v233
    %v919 = vunpack.c.h.b16 %v233
    %v920 = vunpack.c.l.b16 %v234
    %v921 = vunpack.c.h.b16 %v234
    %v922 = vunpack.c.l.b16 %v235
    %v923 = vunpack.c.h.b16 %v235
    %v924 = vunpack.c.l.b16 %v236
    %v925 = vunpack.c.h.b16 %v236
    %v926 = vunpack.c.l.b16 %v237
    %v927 = vunpack.c.h.b16 %v237
    %v928 = vunpack.c.l.b16 %v238
    %v929 = vunpack.c.h.b16 %v238
    %v930 = vunpack.c.l.b16 %v239
    %v931 = vunpack.c.h.b16 %v239
    %v932 = vunpack.c.l.b16 %v240
    %v933 = vunpack.c.h.b16 %v240
    %v934 = vunpack.c.l.b16 %v241
    %v935 = vunpack.c.h.b16 %v241
    %v936 = vunpack.c.l.b16 %v242
    %v937 = vunpack.c.h.b16 %v242
    %v938 = vunpack.c.l.b16 %v243
    %v939 = vunpack.c.h.b16 %v243
    %v940 = vunpack.c.l.b16 %v244
    %v941 = vunpack.c.h.b16 %v244
    %v942 = vunpack.c.l.b16 %v245
    %v943 = vunpack.c.h.b16 %v245
    %v944 = vunpack.c.l.b16 %v246
    %v945 = vunpack.c.h.b16 %v246
    %v946 = vunpack.c.l.b16 %v247
    %v947 = vunpack.c.h.b16 %v247
    %v948 = vunpack.c.l.b16 %v248
    %v949 = vunpack.c.h.b16 %v248
    %v950 = vunpack.c.l.b16 %v249
    %v951 = vunpack.c.h.b16 %v249
    %v952 = vunpack.c.l.b16 %v250
    %v953 = vunpack.c.h.b16 %v250
    %v954 = vunpack.c.l.b16 %v251
    %v955 = vunpack.c.h.b16 %v251
    %v956 = vunpack.c.l.b16 %v252
    %v957 = vunpack.c.h.b16 %v252
    %v958 = vunpack.c.l.b16 %v253
    %v959 = vunpack.c.h.b16 %v253
    %v960 = vunpack.c.l.b16 %v254
    %v961 = vunpack.c.h.b16 %v254
    %v962 = vunpack.c.l.b16 %v255
    %v963 = vunpack.c.h.b16 %v255
    %v964 = vunpack.c.l.b16 %v256
    %v965 = vunpack.c.h.b16 %v256
    %v966 = vunpack.c.l.b16 %v257
    %v967 = vunpack.c.h.b16 %v257
    %v968 = vunpack.c.l.b16 %v258
    %v969 = vunpack.c.h.b16 %v258
    %v970 = vunpack.c.l.b16 %v259
    %v971 = vunpack.c.h.b16 %v259
    %v972 = vunpack.c.l.b16 %v260
    %v973 = vunpack.c.h.b16 %v260
    %v974 = vunpack.c.l.b16 %v261
    %v975 = vunpack.c.h.b16 %v261
    %v976 = vunpack.c.l.b16 %v262
    %v977 = vunpack.c.h.b16 %v262
    %v978 = vunpack.c.l.b16 %v263
    %v979 = vunpack.c.h.b16 %v263
    %v980 = vunpack.c.l.b16 %v264
    %v981 = vunpack.c.h.b16 %v264
    %v982 = vunpack.c.l.b16 %v265
    %v983 = vunpack.c.h.b16 %v265
    %v984 = vunpack.c.l.b16 %v266
    %v985 = vunpack.c.h.b16 %v266
    %v986 = vunpack.c.l.b16 %v267
    %v987 = vunpack.c.h.b16 %v267
    %v988 = vunpack.c.l.b16 %v268
    %v989 = vunpack.c.h.b16 %v268
    %v990 = vunpack.c.l.b16 %v269
    %v991 = vunpack.c.h.b16 %v269
    %v992 = vunpack.c.l.b16 %v270
    %v993 = vunpack.c.h.b16 %v270
    %v994 = vunpack.c.l.b16 %v271
    %v995 = vunpack.c.h.b16 %v271
    %v996 = vunpack.c.l.b16 %v272
    %v997 = vunpack.c.h.b16 %v272
    %v998 = vunpack.c.l.b16 %v273
    %v999 = vunpack.c.h.b16 %v273
    %v1000 = vunpack.c.l.b16 %v274
    %v1001 = vunpack.c.h.b16 %v274
    %v1002 = vunpack.c.l.b16 %v275
    %v1003 = vunpack.c.h.b16 %v275
    %v1004 = vunpack.c.l.b16 %v276
    %v1005 = vunpack.c.h.b16 %v276
    %v1006 = vunpack.c.l.b16 %v277
    %v1007 = vunpack.c.h.b16 %v277
    %v1008 = vunpack.c.l.b16 %v278
    %v1009 = vunpack.c.h.b16 %v278
    %v1010 = vunpack.c.l.b16 %v279
    %v1011 = vunpack.c.h.b16 %v279
    %v1012 = vunpack.c.l.b16 %v280
    %v1013 = vunpack.c.h.b16 %v280
    %v1014 = vunpack.c.l.b16 %v281
    %v1015 = vunpack.c.h.b16 %v281
    %v1016 = vunpack.c.l.b16 %v282
    %v1017 = vunpack.c.h.b16 %v282
    %v1018 = vunpack.c.l.b16 %v283
    %v1019 = vunpack.c.h.b16 %v283
    %v1020 = vunpack.c.l.b16 %v284
    %v1021 = vunpack.c.h.b16 %v284
    %v1022 = vunpack.c.l.b16 %v285
    %v1023 = vunpack.c.h.b16 %v285
    %v1024 = vunpack.c.l.b16 %v286
    %v1025 = vunpack.c.h.b16 %v286
    %v1026 = vunpack.c.l.b16 %v287
    %v1027 = vunpack.c.h.b16 %v287
    %v1028 = vunpack.c.l.b16 %v288
    %v1029 = vunpack.c.h.b16 %v288
    %v1030 = vunpack.c.l.b16 %v289
    %v1031 = vunpack.c.h.b16 %v289
    %v1032 = vunpack.c.l.b16 %v290
    %v1033 = vunpack.c.h.b16 %v290
    %v1034 = vunpack.c.l.b16 %v291
    %v1035 = vunpack.c.h.b16 %v291
    %v1036 = vunpack.c.l.b16 %v292
    %v1037 = vunpack.c.h.b16 %v292
    %v1038 = vunpack.c.l.b16 %v293
    %v1039 = vunpack.c.h.b16 %v293
    %v1040 = vunpack.c.l.b16 %v294
    %v1041 = vunpack.c.h.b16 %v294
    %v1042 = vunpack.c.l.b16 %v295
    %v1043 = vunpack.c.h.b16 %v295
    %v1044 = vunpack.c.l.b16 %v296
    %v1045 = vunpack.c.h.b16 %v296
    %v1046 = vunpack.c.l.b16 %v297
    %v1047 = vunpack.c.h.b16 %v297
    %v1048 = vunpack.c.l.b16 %v298
    %v1049 = vunpack.c.h.b16 %v298
    %v1050 = vunpack.c.l.b16 %v299
    %v1051 = vunpack.c.h.b16 %v299
    %v1052 = vunpack.c.l.b16 %v300
    %v1053 = vunpack.c.h.b16 %v300
    %v1054 = vunpack.c.l.b16 %v301
    %v1055 = vunpack.c.h.b16 %v301
    %v1056 = vunpack.c.l.b16 %v302
    %v1057 = vunpack.c.h.b16 %v302
    %v1058 = vunpack.c.l.b16 %v303
    %v1059 = vunpack.c.h.b16 %v303
    %v1060 = vunpack.c.l.b16 %v304
    %v1061 = vunpack.c.h.b16 %v304
    %v1062 = vunpack.c.l.b16 %v305
    %v1063 = vunpack.c.h.b16 %v305
    %v1064 = vunpack.c.l.b16 %v306
    %v1065 = vunpack.c.h.b16 %v306
    %v1066 = vunpack.c.l.b16 %v307
    %v1067 = vunpack.c.h.b16 %v307
    %v1068 = vunpack.c.l.b16 %v308
    %v1069 = vunpack.c.h.b16 %v308
    %v1070 = vunpack.c.l.b16 %v309
    %v1071 = vunpack.c.h.b16 %v309
    %v1072 = vunpack.c.l.b16 %v310
    %v1073 = vunpack.c.h.b16 %v310
    %v1074 = vunpack.c.l.b16 %v311
    %v1075 = vunpack.c.h.b16 %v311
    %v1076 = vunpack.c.l.b16 %v312
    %v1077 = vunpack.c.h.b16 %v312
    %v1078 = vunpack.c.l.b16 %v313
    %v1079 = vunpack.c.h.b16 %v313
    %v1080 = vunpack.c.l.b16 %v314
    %v1081 = vunpack.c.h.b16 %v314
    %v1082 = vunpack.c.l.b16 %v315
    %v1083 = vunpack.c.h.b16 %v315
    %v1084 = vunpack.c.l.b16 %v316
    %v1085 = vunpack.c.h.b16 %v316
    %v1086 = vunpack.c.l.b16 %v317
    %v1087 = vunpack.c.h.b16 %v317
    %v1088 = vunpack.c.l.b16 %v318
    %v1089 = vunpack.c.h.b16 %v318
    %v1090 = vunpack.c.l.b16 %v319
    %v1091 = vunpack.c.h.b16 %v319
    %v1092 = vunpack.c.l.b16 %v320
    %v1093 = vunpack.c.h.b16 %v320
    %v1094 = vunpack.c.l.b16 %v321
    %v1095 = vunpack.c.h.b16 %v321
    %v1096 = vunpack.c.l.b16 %v322
    %v1097 = vunpack.c.h.b16 %v322
    %v1098 = vunpack.c.l.b16 %v323
    %v1099 = vunpack.c.h.b16 %v323
    %v1100 = vunpack.c.l.b16 %v324
    %v1101 = vunpack.c.h.b16 %v324
    %v1102 = vunpack.c.l.b16 %v325
    %v1103 = vunpack.c.h.b16 %v325
    %v1104 = vunpack.c.l.b16 %v326
    %v1105 = vunpack.c.h.b16 %v326
    %v1106 = vunpack.c.l.b16 %v327
    %v1107 = vunpack.c.h.b16 %v327
    %v1108 = vunpack.c.l.b16 %v328
    %v1109 = vunpack.c.h.b16 %v328
    %v1110 = vunpack.c.l.b16 %v329
    %v1111 = vunpack.c.h.b16 %v329
    %v1112 = vunpack.c.l.b16 %v330
    %v1113 = vunpack.c.h.b16 %v330
    %v1114 = vunpack.c.l.b16 %v331
    %v1115 = vunpack.c.h.b16 %v331
    %v1116 = vunpack.c.l.b16 %v332
    %v1117 = vunpack.c.h.b16 %v332
    %v1118 = vunpack.c.l.b16 %v333
    %v1119 = vunpack.c.h.b16 %v333
    %v1120 = vunpack.c.l.b16 %v334
    %v1121 = vunpack.c.h.b16 %v334
    %v1122 = vunpack.c.l.b16 %v335
    %v1123 = vunpack.c.h.b16 %v335
    %v1124 = vunpack.c.l.b16 %v336
    %v1125 = vunpack.c.h.b16 %v336
    %v1126 = vunpack.c.l.b16 %v337
    %v1127 = vunpack.c.h.b16 %v337
    %v1128 = vpack.c.b16 %v620, %v616
    %v1129 = vpack.c.b16 %v621, %v617
    %v1130 = vpack.c.b16 %v622, %v618
    %v1131 = vpack.c.b16 %v623, %v619
    %v1132 = vpack.c.b16 %v628, %v624
    %v1133 = vpack.c.b16 %v629, %v625
    %v1134 = vpack.c.b16 %v630, %v626
    %v1135 = vpack.c.b16 %v631, %v627
    %v1136 = vpack.c.b16 %v636, %v632
    %v1137 = vpack.c.b16 %v637, %v633
    %v1138 = vpack.c.b16 %v638, %v634
    %v1139 = vpack.c.b16 %v639, %v635
    %v1140 = vpack.c.b16 %v644, %v640
    %v1141 = vpack.c.b16 %v645, %v641
    %v1142 = vpack.c.b16 %v646, %v642
    %v1143 = vpack.c.b16 %v647, %v643
    %v1144 = vpack.c.b16 %v652, %v648
    %v1145 = vpack.c.b16 %v653, %v649
    %v1146 = vpack.c.b16 %v654, %v650
    %v1147 = vpack.c.b16 %v655, %v651
    %v1148 = vpack.c.b16 %v660, %v656
    %v1149 = vpack.c.b16 %v661, %v657
    %v1150 = vpack.c.b16 %v662, %v658
    %v1151 = vpack.c.b16 %v663, %v659
    %v1152 = vpack.c.b16 %v668, %v664
    %v1153 = vpack.c.b16 %v669, %v665
    %v1154 = vpack.c.b16 %v670, %v666
    %v1155 = vpack.c.b16 %v671, %v667
    %v1156 = vpack.c.b16 %v676, %v672
    %v1157 = vpack.c.b16 %v677, %v673
    %v1158 = vpack.c.b16 %v678, %v674
    %v1159 = vpack.c.b16 %v679, %v675
    %v1160 = vpack.c.b16 %v684, %v680
    %v1161 = vpack.c.b16 %v685, %v681
    %v1162 = vpack.c.b16 %v686, %v682
    %v1163 = vpack.c.b16 %v687, %v683
    %v1164 = vpack.c.b16 %v692, %v688
    %v1165 = vpack.c.b16 %v693, %v689
    %v1166 = vpack.c.b16 %v694, %v690
    %v1167 = vpack.c.b16 %v695, %v691
    %v1168 = vpack.c.b16 %v700, %v696
    %v1169 = vpack.c.b16 %v701, %v697
    %v1170 = vpack.c.b16 %v702, %v698
    %v1171 = vpack.c.b16 %v703, %v699
    %v1172 = vpack.c.b16 %v708, %v704
    %v1173 = vpack.c.b16 %v709, %v705
    %v1174 = vpack.c.b16 %v710, %v706
    %v1175 = vpack.c.b16 %v711, %v707
    %v1176 = vpack.c.b16 %v716, %v712
    %v1177 = vpack.c.b16 %v717, %v713
    %v1178 = vpack.c.b16 %v718, %v714
    %v1179 = vpack.c.b16 %v719, %v715
    %v1180 = vpack.c.b16 %v724, %v720
    %v1181 = vpack.c.b16 %v725, %v721
    %v1182 = vpack.c.b16 %v726, %v722
    %v1183 = vpack.c.b16 %v727, %v723
    %v1184 = vpack.c.b16 %v732, %v728
    %v1185 = vpack.c.b16 %v733, %v729
    %v1186 = vpack.c.b16 %v734, %v730
    %v1187 = vpack.c.b16 %v735, %v731
    %v1188 = vpack.c.b16 %v740, %v736
    %v1189 = vpack.c.b16 %v741, %v737
    %v1190 = vpack.c.b16 %v742, %v738
    %v1191 = vpack.c.b16 %v743, %v739
    %v1192 = vpack.c.b16 %v748, %v744
    %v1193 = vpack.c.b16 %v749, %v745
    %v1194 = vpack.c.b16 %v750, %v746
    %v1195 = vpack.c.b16 %v751, %v747
    %v1196 = vpack.c.b16 %v756, %v752
    %v1197 = vpack.c.b16 %v757, %v753
    %v1198 = vpack.c.b16 %v758, %v754
    %v1199 = vpack.c.b16 %v759, %v755
    %v1200 = vpack.c.b16 %v764, %v760
    %v1201 = vpack.c.b16 %v765, %v761
    %v1202 = vpack.c.b16 %v766, %v762
    %v1203 = vpack.c.b16 %v767, %v763
    %v1204 = vpack.c.b16 %v772, %v768
    %v1205 = vpack.c.b16 %v773, %v769
    %v1206 = vpack.c.b16 %v774, %v770
    %v1207 = vpack.c.b16 %v775, %v771
    %v1208 = vpack.c.b16 %v780, %v776
    %v1209 = vpack.c.b16 %v781, %v777
    %v1210 = vpack.c.b16 %v782, %v778
    %v1211 = vpack.c.b16 %v783, %v779
    %v1212 = vpack.c.b16 %v788, %v784
    %v1213 = vpack.c.b16 %v789, %v785
    %v1214 = vpack.c.b16 %v790, %v786
    %v1215 = vpack.c.b16 %v791, %v787
    %v1216 = vpack.c.b16 %v796, %v792
    %v1217 = vpack.c.b16 %v797, %v793
    %v1218 = vpack.c.b16 %v798, %v794
    %v1219 = vpack.c.b16 %v799, %v795
    %v1220 = vpack.c.b16 %v804, %v800
    %v1221 = vpack.c.b16 %v805, %v801
    %v1222 = vpack.c.b16 %v806, %v802
    %v1223 = vpack.c.b16 %v807, %v803
    %v1224 = vpack.c.b16 %v812, %v808
    %v1225 = vpack.c.b16 %v813, %v809
    %v1226 = vpack.c.b16 %v814, %v810
    %v1227 = vpack.c.b16 %v815, %v811
    %v1228 = vpack.c.b16 %v820, %v816
    %v1229 = vpack.c.b16 %v821, %v817
    %v1230 = vpack.c.b16 %v822, %v818
    %v1231 = vpack.c.b16 %v823, %v819
    %v1232 = vpack.c.b16 %v828, %v824
    %v1233 = vpack.c.b16 %v829, %v825
    %v1234 = vpack.c.b16 %v830, %v826
    %v1235 = vpack.c.b16 %v831, %v827
    %v1236 = vpack.c.b16 %v836, %v832
    %v1237 = vpack.c.b16 %v837, %v833
    %v1238 = vpack.c.b16 %v838, %v834
    %v1239 = vpack.c.b16 %v839, %v835
    %v1240 = vpack.c.b16 %v844, %v840
    %v1241 = vpack.c.b16 %v845, %v841
    %v1242 = vpack.c.b16 %v846, %v842
    %v1243 = vpack.c.b16 %v847, %v843
    %v1244 = vpack.c.b16 %v852, %v848
    %v1245 = vpack.c.b16 %v853, %v849
    %v1246 = vpack.c.b16 %v854, %v850
    %v1247 = vpack.c.b16 %v855, %v851
    %v1248 = vpack.c.b16 %v860, %v856
    %v1249 = vpack.c.b16 %v861, %v857
    %v1250 = vpack.c.b16 %v862, %v858
    %v1251 = vpack.c.b16 %v863, %v859
    %v1252 = vpack.c.b16 %v868, %v864
    %v1253 = vpack.c.b16 %v869, %v865
    %v1254 = vpack.c.b16 %v870, %v866
    %v1255 = vpack.c.b16 %v871, %v867
    %v1256 = vpack.c.b16 %v876, %v872
    %v1257 = vpack.c.b16 %v877, %v873
    %v1258 = vpack.c.b16 %v878, %v874
    %v1259 = vpack.c.b16 %v879, %v875
    %v1260 = vpack.c.b16 %v884, %v880
    %v1261 = vpack.c.b16 %v885, %v881
    %v1262 = vpack.c.b16 %v886, %v882
    %v1263 = vpack.c.b16 %v887, %v883
    %v1264 = vpack.c.b16 %v892, %v888
    %v1265 = vpack.c.b16 %v893, %v889
    %v1266 = vpack.c.b16 %v894, %v890
    %v1267 = vpack.c.b16 %v895, %v891
    %v1268 = vpack.c.b16 %v900, %v896
    %v1269 = vpack.c.b16 %v901, %v897
    %v1270 = vpack.c.b16 %v902, %v898
    %v1271 = vpack.c.b16 %v903, %v899
    %v1272 = vpack.c.b16 %v908, %v904
    %v1273 = vpack.c.b16 %v909, %v905
    %v1274 = vpack.c.b16 %v910, %v906
    %v1275 = vpack.c.b16 %v911, %v907
    %v1276 = vpack.c.b16 %v916, %v912
    %v1277 = vpack.c.b16 %v917, %v913
    %v1278 = vpack.c.b16 %v918, %v914
    %v1279 = vpack.c.b16 %v919, %v915
    %v1280 = vpack.c.b16 %v924, %v920
    %v1281 = vpack.c.b16 %v925, %v921
    %v1282 = vpack.c.b16 %v926, %v922
    %v1283 = vpack.c.b16 %v927, %v923
    %v1284 = vpack.c.b16 %v932, %v928
    %v1285 = vpack.c.b16 %v933, %v929
    %v1286 = vpack.c.b16 %v934, %v930
    %v1287 = vpack.c.b16 %v935, %v931
    %v1288 = vpack.c.b16 %v940, %v936
    %v1289 = vpack.c.b16 %v941, %v937
    %v1290 = vpack.c.b16 %v942, %v938
    %v1291 = vpack.c.b16 %v943, %v939
    %v1292 = vpack.c.b16 %v948, %v944
    %v1293 = vpack.c.b16 %v949, %v945
    %v1294 = vpack.c.b16 %v950, %v946
    %v1295 = vpack.c.b16 %v951, %v947
    %v1296 = vpack.c.b16 %v956, %v952
    %v1297 = vpack.c.b16 %v957, %v953
    %v1298 = vpack.c.b16 %v958, %v954
    %v1299 = vpack.c.b16 %v959, %v955
    %v1300 = vpack.c.b16 %v964, %v960
    %v1301 = vpack.c.b16 %v965, %v961
    %v1302 = vpack.c.b16 %v966, %v962
    %v1303 = vpack.c.b16 %v967, %v963
    %v1304 = vpack.c.b16 %v972, %v968
    %v1305 = vpack.c.b16 %v973, %v969
    %v1306 = vpack.c.b16 %v974, %v970
    %v1307 = vpack.c.b16 %v975, %v971
    %v1308 = vpack.c.b16 %v980, %v976
    %v1309 = vpack.c.b16 %v981, %v977
    %v1310 = vpack.c.b16 %v982, %v978
    %v1311 = vpack.c.b16 %v983, %v979
    %v1312 = vpack.c.b16 %v988, %v984
    %v1313 = vpack.c.b16 %v989, %v985
    %v1314 = vpack.c.b16 %v990, %v986
    %v1315 = vpack.c.b16 %v991, %v987
    %v1316 = vpack.c.b16 %v996, %v992
    %v1317 = vpack.c.b16 %v997, %v993
    %v1318 = vpack.c.b16 %v998, %v994
    %v1319 = vpack.c.b16 %v999, %v995
    %v1320 = vpack.c.b16 %v1004, %v1000
    %v1321 = vpack.c.b16 %v1005, %v1001
    %v1322 = vpack.c.b16 %v1006, %v1002
    %v1323 = vpack.c.b16 %v1007, %v1003
    %v1324 = vpack.c.b16 %v1012, %v1008
    %v1325 = vpack.c.b16 %v1013, %v1009
    %v1326 = vpack.c.b16 %v1014, %v1010
    %v1327 = vpack.c.b16 %v1015, %v1011
    %v1328 = vpack.c.b16 %v1020, %v1016
    %v1329 = vpack.c.b16 %v1021, %v1017
    %v1330 = vpack.c.b16 %v1022, %v1018
    %v1331 = vpack.c.b16 %v1023, %v1019
    %v1332 = vpack.c.b16 %v1028, %v1024
    %v1333 = vpack.c.b16 %v1029, %v1025
    %v1334 = vpack.c.b16 %v1030, %v1026
    %v1335 = vpack.c.b16 %v1031, %v1027
    %v1336 = vpack.c.b16 %v1036, %v1032
    %v1337 = vpack.c.b16 %v1037, %v1033
    %v1338 = vpack.c.b16 %v1038, %v1034
    %v1339 = vpack.c.b16 %v1039, %v1035
    %v1340 = vpack.c.b16 %v1044, %v1040
    %v1341 = vpack.c.b16 %v1045, %v1041
    %v1342 = vpack.c.b16 %v1046, %v1042
    %v1343 = vpack.c.b16 %v1047, %v1043
    %v1344 = vpack.c.b16 %v1052, %v1048
    %v1345 = vpack.c.b16 %v1053, %v1049
    %v1346 = vpack.c.b16 %v1054, %v1050
    %v1347 = vpack.c.b16 %v1055, %v1051
    %v1348 = vpack.c.b16 %v1060, %v1056
    %v1349 = vpack.c.b16 %v1061, %v1057
    %v1350 = vpack.c.b16 %v1062, %v1058
    %v1351 = vpack.c.b16 %v1063, %v1059
    %v1352 = vpack.c.b16 %v1068, %v1064
    %v1353 = vpack.c.b16 %v1069, %v1065
    %v1354 = vpack.c.b16 %v1070, %v1066
    %v1355 = vpack.c.b16 %v1071, %v1067
    %v1356 = vpack.c.b16 %v1076, %v1072
    %v1357 = vpack.c.b16 %v1077, %v1073
    %v1358 = vpack.c.b16 %v1078, %v1074
    %v1359 = vpack.c.b16 %v1079, %v1075
    %v1360 = vpack.c.b16 %v1084, %v1080
    %v1361 = vpack.c.b16 %v1085, %v1081
    %v1362 = vpack.c.b16 %v1086, %v1082
    %v1363 = vpack.c.b16 %v1087, %v1083
    %v1364 = vpack.c.b16 %v1092, %v1088
    %v1365 = vpack.c.b16 %v1093, %v1089
    %v1366 = vpack.c.b16 %v1094, %v1090
    %v1367 = vpack.c.b16 %v1095, %v1091
    %v1368 = vpack.c.b16 %v1100, %v1096
    %v1369 = vpack.c.b16 %v1101, %v1097
    %v1370 = vpack.c.b16 %v1102, %v1098
    %v1371 = vpack.c.b16 %v1103, %v1099
    %v1372 = vpack.c.b16 %v1108, %v1104
    %v1373 = vpack.c.b16 %v1109, %v1105
    %v1374 = vpack.c.b16 %v1110, %v1106
    %v1375 = vpack.c.b16 %v1111, %v1107
    %v1376 = vpack.c.b16 %v1116, %v1112
    %v1377 = vpack.c.b16 %v1117, %v1113
    %v1378 = vpack.c.b16 %v1118, %v1114
    %v1379 = vpack.c.b16 %v1119, %v1115
    %v1380 = vpack.c.b16 %v1124, %v1120
    %v1381 = vpack.c.b16 %v1125, %v1121
    %v1382 = vpack.c.b16 %v1126, %v1122
    %v1383 = vpack.c.b16 %v1127, %v1123
    %1640 = vmatprep.subr.bf16.mxu0 %v1157
    %1641 = vmatpush1.bf16.msra.mxu0 %v1156
    %1642 = vmatprep.subr.bf16.mxu0 %v1153
    %1643 = vmatpush1.bf16.msra.mxu0 %v1152
    %1644 = vmatprep.subr.bf16.mxu0 %v1149
    %1645 = vmatpush1.bf16.msra.mxu0 %v1148
    %1646 = vmatprep.subr.bf16.mxu0 %v1145
    %1647 = vmatpush1.bf16.msra.mxu0 %v1144
    %1648 = vmatprep.subr.bf16.mxu0 %v1141
    %1649 = vmatpush1.bf16.msra.mxu0 %v1140
    %1650 = vmatprep.subr.bf16.mxu0 %v1137
    %1651 = vmatpush1.bf16.msra.mxu0 %v1136
    %1652 = vmatprep.subr.bf16.mxu0 %v1133
    %1653 = vmatpush1.bf16.msra.mxu0 %v1132
    %1654 = vmatprep.subr.bf16.mxu0 %v1129
    %1655 = vmatpush1.bf16.msra.mxu0 %v1128
    %1656 = vmatprep.subr.bf16.mxu0 %v1189
    %1657 = vmatpush2.bf16.msra.mxu0 %v1188
    %1658 = vmatprep.subr.bf16.mxu0 %v1185
    %1659 = vmatpush2.bf16.msra.mxu0 %v1184
    %1660 = vmatprep.subr.bf16.mxu0 %v1181
    %1661 = vmatpush2.bf16.msra.mxu0 %v1180
    %1662 = vmatprep.subr.bf16.mxu0 %v1177
    %1663 = vmatpush2.bf16.msra.mxu0 %v1176
    %1664 = vmatprep.subr.bf16.mxu0 %v1173
    %1665 = vmatpush2.bf16.msra.mxu0 %v1172
    %1666 = vmatprep.subr.bf16.mxu0 %v1169
    %1667 = vmatpush2.bf16.msra.mxu0 %v1168
    %1668 = vmatprep.subr.bf16.mxu0 %v1165
    %1669 = vmatpush2.bf16.msra.mxu0 %v1164
    %1670 = vmatprep.subr.bf16.mxu0 %v1161
    %1671 = vmatpush2.bf16.msra.mxu0 %v1160
    %1672 = vmatprep.mubr.bf16.mxu0 %v75
    %1673 = vmatmul.mubr.bf16.gmra.mxu0 %v74
    %v1674 = vpop.f32.mrf.mxu0
    %v1675 = vadd.f32 %v343, %v1674
    %v1676 = vpop.f32.mrf.mxu0
    %v1677 = vadd.f32 %v347, %v1676
    %v1678 = vpop.f32.mrf.mxu0
    %v1679 = vpop.f32.mrf.mxu0
    %1680 = vdwg.mxu0
    %1681 = vmatprep.subr.bf16.mxu0 %v1221
    %1682 = vmatpush1.bf16.msra.mxu0 %v1220
    %1683 = vmatprep.subr.bf16.mxu0 %v1217
    %1684 = vmatpush1.bf16.msra.mxu0 %v1216
    %1685 = vmatprep.subr.bf16.mxu0 %v1213
    %1686 = vmatpush1.bf16.msra.mxu0 %v1212
    %1687 = vmatprep.subr.bf16.mxu0 %v1209
    %1688 = vmatpush1.bf16.msra.mxu0 %v1208
    %1689 = vmatprep.subr.bf16.mxu0 %v1205
    %1690 = vmatpush1.bf16.msra.mxu0 %v1204
    %1691 = vmatprep.subr.bf16.mxu0 %v1201
    %1692 = vmatpush1.bf16.msra.mxu0 %v1200
    %1693 = vmatprep.subr.bf16.mxu0 %v1197
    %1694 = vmatpush1.bf16.msra.mxu0 %v1196
    %1695 = vmatprep.subr.bf16.mxu0 %v1193
    %1696 = vmatpush1.bf16.msra.mxu0 %v1192
    %1697 = vmatprep.subr.bf16.mxu0 %v1253
    %1698 = vmatpush2.bf16.msra.mxu0 %v1252
    %1699 = vmatprep.subr.bf16.mxu0 %v1249
    %1700 = vmatpush2.bf16.msra.mxu0 %v1248
    %1701 = vmatprep.subr.bf16.mxu0 %v1245
    %1702 = vmatpush2.bf16.msra.mxu0 %v1244
    %1703 = vmatprep.subr.bf16.mxu0 %v1241
    %1704 = vmatpush2.bf16.msra.mxu0 %v1240
    %1705 = vmatprep.subr.bf16.mxu0 %v1237
    %1706 = vmatpush2.bf16.msra.mxu0 %v1236
    %1707 = vmatprep.subr.bf16.mxu0 %v1233
    %1708 = vmatpush2.bf16.msra.mxu0 %v1232
    %1709 = vmatprep.subr.bf16.mxu0 %v1229
    %1710 = vmatpush2.bf16.msra.mxu0 %v1228
    %1711 = vmatprep.subr.bf16.mxu0 %v1225
    %1712 = vmatpush2.bf16.msra.mxu0 %v1224
    %1713 = vmatprep.mubr.bf16.mxu0 %v77
    %1714 = vmatmul.mubr.bf16.gmra.mxu0 %v76
    %v1715 = vpop.f32.mrf.mxu0
    %v1716 = vadd.f32 %v1675, %v1715
    %v1717 = vpop.f32.mrf.mxu0
    %v1718 = vadd.f32 %v1677, %v1717
    %v1719 = vpop.f32.mrf.mxu0
    %v1720 = vpop.f32.mrf.mxu0
    %1721 = vdwg.mxu0
    %1722 = vmatprep.subr.bf16.mxu0 %v1285
    %1723 = vmatpush1.bf16.msra.mxu0 %v1284
    %1724 = vmatprep.subr.bf16.mxu0 %v1281
    %1725 = vmatpush1.bf16.msra.mxu0 %v1280
    %1726 = vmatprep.subr.bf16.mxu0 %v1277
    %1727 = vmatpush1.bf16.msra.mxu0 %v1276
    %1728 = vmatprep.subr.bf16.mxu0 %v1273
    %1729 = vmatpush1.bf16.msra.mxu0 %v1272
    %1730 = vmatprep.subr.bf16.mxu0 %v1269
    %1731 = vmatpush1.bf16.msra.mxu0 %v1268
    %1732 = vmatprep.subr.bf16.mxu0 %v1265
    %1733 = vmatpush1.bf16.msra.mxu0 %v1264
    %1734 = vmatprep.subr.bf16.mxu0 %v1261
    %1735 = vmatpush1.bf16.msra.mxu0 %v1260
    %1736 = vmatprep.subr.bf16.mxu0 %v1257
    %1737 = vmatpush1.bf16.msra.mxu0 %v1256
    %1738 = vmatprep.subr.bf16.mxu0 %v1317
    %1739 = vmatpush2.bf16.msra.mxu0 %v1316
    %1740 = vmatprep.subr.bf16.mxu0 %v1313
    %1741 = vmatpush2.bf16.msra.mxu0 %v1312
    %1742 = vmatprep.subr.bf16.mxu0 %v1309
    %1743 = vmatpush2.bf16.msra.mxu0 %v1308
    %1744 = vmatprep.subr.bf16.mxu0 %v1305
    %1745 = vmatpush2.bf16.msra.mxu0 %v1304
    %1746 = vmatprep.subr.bf16.mxu0 %v1301
    %1747 = vmatpush2.bf16.msra.mxu0 %v1300
    %1748 = vmatprep.subr.bf16.mxu0 %v1297
    %1749 = vmatpush2.bf16.msra.mxu0 %v1296
    %1750 = vmatprep.subr.bf16.mxu0 %v1293
    %1751 = vmatpush2.bf16.msra.mxu0 %v1292
    %1752 = vmatprep.subr.bf16.mxu0 %v1289
    %1753 = vmatpush2.bf16.msra.mxu0 %v1288
    %1754 = vmatprep.mubr.bf16.mxu0 %v79
    %1755 = vmatmul.mubr.bf16.gmra.mxu0 %v78
    %v1756 = vpop.f32.mrf.mxu0
    %v1757 = vadd.f32 %v1716, %v1756
    %v1758 = vpop.f32.mrf.mxu0
    %v1759 = vadd.f32 %v1718, %v1758
    %v1760 = vpop.f32.mrf.mxu0
    %v1761 = vpop.f32.mrf.mxu0
    %1762 = vdwg.mxu0
    %1763 = vmatprep.subr.bf16.mxu0 %v1349
    %1764 = vmatpush1.bf16.msra.mxu0 %v1348
    %1765 = vmatprep.subr.bf16.mxu0 %v1345
    %1766 = vmatpush1.bf16.msra.mxu0 %v1344
    %1767 = vmatprep.subr.bf16.mxu0 %v1341
    %1768 = vmatpush1.bf16.msra.mxu0 %v1340
    %1769 = vmatprep.subr.bf16.mxu0 %v1337
    %1770 = vmatpush1.bf16.msra.mxu0 %v1336
    %1771 = vmatprep.subr.bf16.mxu0 %v1333
    %1772 = vmatpush1.bf16.msra.mxu0 %v1332
    %1773 = vmatprep.subr.bf16.mxu0 %v1329
    %1774 = vmatpush1.bf16.msra.mxu0 %v1328
    %1775 = vmatprep.subr.bf16.mxu0 %v1325
    %1776 = vmatpush1.bf16.msra.mxu0 %v1324
    %1777 = vmatprep.subr.bf16.mxu0 %v1321
    %1778 = vmatpush1.bf16.msra.mxu0 %v1320
    %1779 = vmatprep.subr.bf16.mxu0 %v1381
    %1780 = vmatpush2.bf16.msra.mxu0 %v1380
    %1781 = vmatprep.subr.bf16.mxu0 %v1377
    %1782 = vmatpush2.bf16.msra.mxu0 %v1376
    %1783 = vmatprep.subr.bf16.mxu0 %v1373
    %1784 = vmatpush2.bf16.msra.mxu0 %v1372
    %1785 = vmatprep.subr.bf16.mxu0 %v1369
    %1786 = vmatpush2.bf16.msra.mxu0 %v1368
    %1787 = vmatprep.subr.bf16.mxu0 %v1365
    %1788 = vmatpush2.bf16.msra.mxu0 %v1364
    %1789 = vmatprep.subr.bf16.mxu0 %v1361
    %1790 = vmatpush2.bf16.msra.mxu0 %v1360
    %1791 = vmatprep.subr.bf16.mxu0 %v1357
    %1792 = vmatpush2.bf16.msra.mxu0 %v1356
    %1793 = vmatprep.subr.bf16.mxu0 %v1353
    %1794 = vmatpush2.bf16.msra.mxu0 %v1352
    %1795 = vmatprep.mubr.bf16.mxu0 %v81
    %1796 = vmatmul.mubr.bf16.gmra.mxu0 %v80
    %v1797 = vpop.f32.mrf.mxu0
    %v1798 = vadd.f32 %v1757, %v1797
    %v1799 = vpop.f32.mrf.mxu0
    %v1800 = vadd.f32 %v1759, %v1799
    %v1801 = vpop.f32.mrf.mxu0
    %v1802 = vpop.f32.mrf.mxu0
    %1803 = vdwg.mxu0
    %1804 = vmatprep.subr.bf16.mxu0 %v1159
    %1805 = vmatpush1.bf16.msra.mxu0 %v1158
    %1806 = vmatprep.subr.bf16.mxu0 %v1155
    %1807 = vmatpush1.bf16.msra.mxu0 %v1154
    %1808 = vmatprep.subr.bf16.mxu0 %v1151
    %1809 = vmatpush1.bf16.msra.mxu0 %v1150
    %1810 = vmatprep.subr.bf16.mxu0 %v1147
    %1811 = vmatpush1.bf16.msra.mxu0 %v1146
    %1812 = vmatprep.subr.bf16.mxu0 %v1143
    %1813 = vmatpush1.bf16.msra.mxu0 %v1142
    %1814 = vmatprep.subr.bf16.mxu0 %v1139
    %1815 = vmatpush1.bf16.msra.mxu0 %v1138
    %1816 = vmatprep.subr.bf16.mxu0 %v1135
    %1817 = vmatpush1.bf16.msra.mxu0 %v1134
    %1818 = vmatprep.subr.bf16.mxu0 %v1131
    %1819 = vmatpush1.bf16.msra.mxu0 %v1130
    %1820 = vmatprep.subr.bf16.mxu0 %v1191
    %1821 = vmatpush2.bf16.msra.mxu0 %v1190
    %1822 = vmatprep.subr.bf16.mxu0 %v1187
    %1823 = vmatpush2.bf16.msra.mxu0 %v1186
    %1824 = vmatprep.subr.bf16.mxu0 %v1183
    %1825 = vmatpush2.bf16.msra.mxu0 %v1182
    %1826 = vmatprep.subr.bf16.mxu0 %v1179
    %1827 = vmatpush2.bf16.msra.mxu0 %v1178
    %1828 = vmatprep.subr.bf16.mxu0 %v1175
    %1829 = vmatpush2.bf16.msra.mxu0 %v1174
    %1830 = vmatprep.subr.bf16.mxu0 %v1171
    %1831 = vmatpush2.bf16.msra.mxu0 %v1170
    %1832 = vmatprep.subr.bf16.mxu0 %v1167
    %1833 = vmatpush2.bf16.msra.mxu0 %v1166
    %1834 = vmatprep.subr.bf16.mxu0 %v1163
    %1835 = vmatpush2.bf16.msra.mxu0 %v1162
    %1836 = vmatprep.mubr.bf16.mxu0 %v75
    %1837 = vmatmul.mubr.bf16.gmra.mxu0 %v74
    %v1838 = vpop.f32.mrf.mxu0
    %v1839 = vadd.f32 %v351, %v1838
    %v1840 = vpop.f32.mrf.mxu0
    %v1841 = vadd.f32 %v355, %v1840
    %v1842 = vpop.f32.mrf.mxu0
    %v1843 = vpop.f32.mrf.mxu0
    %1844 = vdwg.mxu0
    %1845 = vmatprep.subr.bf16.mxu0 %v1223
    %1846 = vmatpush1.bf16.msra.mxu0 %v1222
    %1847 = vmatprep.subr.bf16.mxu0 %v1219
    %1848 = vmatpush1.bf16.msra.mxu0 %v1218
    %1849 = vmatprep.subr.bf16.mxu0 %v1215
    %1850 = vmatpush1.bf16.msra.mxu0 %v1214
    %1851 = vmatprep.subr.bf16.mxu0 %v1211
    %1852 = vmatpush1.bf16.msra.mxu0 %v1210
    %1853 = vmatprep.subr.bf16.mxu0 %v1207
    %1854 = vmatpush1.bf16.msra.mxu0 %v1206
    %1855 = vmatprep.subr.bf16.mxu0 %v1203
    %1856 = vmatpush1.bf16.msra.mxu0 %v1202
    %1857 = vmatprep.subr.bf16.mxu0 %v1199
    %1858 = vmatpush1.bf16.msra.mxu0 %v1198
    %1859 = vmatprep.subr.bf16.mxu0 %v1195
    %1860 = vmatpush1.bf16.msra.mxu0 %v1194
    %1861 = vmatprep.subr.bf16.mxu0 %v1255
    %1862 = vmatpush2.bf16.msra.mxu0 %v1254
    %1863 = vmatprep.subr.bf16.mxu0 %v1251
    %1864 = vmatpush2.bf16.msra.mxu0 %v1250
    %1865 = vmatprep.subr.bf16.mxu0 %v1247
    %1866 = vmatpush2.bf16.msra.mxu0 %v1246
    %1867 = vmatprep.subr.bf16.mxu0 %v1243
    %1868 = vmatpush2.bf16.msra.mxu0 %v1242
    %1869 = vmatprep.subr.bf16.mxu0 %v1239
    %1870 = vmatpush2.bf16.msra.mxu0 %v1238
    %1871 = vmatprep.subr.bf16.mxu0 %v1235
    %1872 = vmatpush2.bf16.msra.mxu0 %v1234
    %1873 = vmatprep.subr.bf16.mxu0 %v1231
    %1874 = vmatpush2.bf16.msra.mxu0 %v1230
    %1875 = vmatprep.subr.bf16.mxu0 %v1227
    %1876 = vmatpush2.bf16.msra.mxu0 %v1226
    %1877 = vmatprep.mubr.bf16.mxu0 %v77
    %1878 = vmatmul.mubr.bf16.gmra.mxu0 %v76
    %v1879 = vpop.f32.mrf.mxu0
    %v1880 = vadd.f32 %v1839, %v1879
    %v1881 = vpop.f32.mrf.mxu0
    %v1882 = vadd.f32 %v1841, %v1881
    %v1883 = vpop.f32.mrf.mxu0
    %v1884 = vpop.f32.mrf.mxu0
    %1885 = vdwg.mxu0
    %1886 = vmatprep.subr.bf16.mxu0 %v1287
    %1887 = vmatpush1.bf16.msra.mxu0 %v1286
    %1888 = vmatprep.subr.bf16.mxu0 %v1283
    %1889 = vmatpush1.bf16.msra.mxu0 %v1282
    %1890 = vmatprep.subr.bf16.mxu0 %v1279
    %1891 = vmatpush1.bf16.msra.mxu0 %v1278
    %1892 = vmatprep.subr.bf16.mxu0 %v1275
    %1893 = vmatpush1.bf16.msra.mxu0 %v1274
    %1894 = vmatprep.subr.bf16.mxu0 %v1271
    %1895 = vmatpush1.bf16.msra.mxu0 %v1270
    %1896 = vmatprep.subr.bf16.mxu0 %v1267
    %1897 = vmatpush1.bf16.msra.mxu0 %v1266
    %1898 = vmatprep.subr.bf16.mxu0 %v1263
    %1899 = vmatpush1.bf16.msra.mxu0 %v1262
    %1900 = vmatprep.subr.bf16.mxu0 %v1259
    %1901 = vmatpush1.bf16.msra.mxu0 %v1258
    %1902 = vmatprep.subr.bf16.mxu0 %v1319
    %1903 = vmatpush2.bf16.msra.mxu0 %v1318
    %1904 = vmatprep.subr.bf16.mxu0 %v1315
    %1905 = vmatpush2.bf16.msra.mxu0 %v1314
    %1906 = vmatprep.subr.bf16.mxu0 %v1311
    %1907 = vmatpush2.bf16.msra.mxu0 %v1310
    %1908 = vmatprep.subr.bf16.mxu0 %v1307
    %1909 = vmatpush2.bf16.msra.mxu0 %v1306
    %1910 = vmatprep.subr.bf16.mxu0 %v1303
    %1911 = vmatpush2.bf16.msra.mxu0 %v1302
    %1912 = vmatprep.subr.bf16.mxu0 %v1299
    %1913 = vmatpush2.bf16.msra.mxu0 %v1298
    %1914 = vmatprep.subr.bf16.mxu0 %v1295
    %1915 = vmatpush2.bf16.msra.mxu0 %v1294
    %1916 = vmatprep.subr.bf16.mxu0 %v1291
    %1917 = vmatpush2.bf16.msra.mxu0 %v1290
    %1918 = vmatprep.mubr.bf16.mxu0 %v79
    %1919 = vmatmul.mubr.bf16.gmra.mxu0 %v78
    %v1920 = vpop.f32.mrf.mxu0
    %v1921 = vadd.f32 %v1880, %v1920
    %v1922 = vpop.f32.mrf.mxu0
    %v1923 = vadd.f32 %v1882, %v1922
    %v1924 = vpop.f32.mrf.mxu0
    %v1925 = vpop.f32.mrf.mxu0
    %1926 = vdwg.mxu0
    %1927 = vmatprep.subr.bf16.mxu0 %v1351
    %1928 = vmatpush1.bf16.msra.mxu0 %v1350
    %1929 = vmatprep.subr.bf16.mxu0 %v1347
    %1930 = vmatpush1.bf16.msra.mxu0 %v1346
    %1931 = vmatprep.subr.bf16.mxu0 %v1343
    %1932 = vmatpush1.bf16.msra.mxu0 %v1342
    %1933 = vmatprep.subr.bf16.mxu0 %v1339
    %1934 = vmatpush1.bf16.msra.mxu0 %v1338
    %1935 = vmatprep.subr.bf16.mxu0 %v1335
    %1936 = vmatpush1.bf16.msra.mxu0 %v1334
    %1937 = vmatprep.subr.bf16.mxu0 %v1331
    %1938 = vmatpush1.bf16.msra.mxu0 %v1330
    %1939 = vmatprep.subr.bf16.mxu0 %v1327
    %1940 = vmatpush1.bf16.msra.mxu0 %v1326
    %1941 = vmatprep.subr.bf16.mxu0 %v1323
    %1942 = vmatpush1.bf16.msra.mxu0 %v1322
    %1943 = vmatprep.subr.bf16.mxu0 %v1383
    %1944 = vmatpush2.bf16.msra.mxu0 %v1382
    %1945 = vmatprep.subr.bf16.mxu0 %v1379
    %1946 = vmatpush2.bf16.msra.mxu0 %v1378
    %1947 = vmatprep.subr.bf16.mxu0 %v1375
    %1948 = vmatpush2.bf16.msra.mxu0 %v1374
    %1949 = vmatprep.subr.bf16.mxu0 %v1371
    %1950 = vmatpush2.bf16.msra.mxu0 %v1370
    %1951 = vmatprep.subr.bf16.mxu0 %v1367
    %1952 = vmatpush2.bf16.msra.mxu0 %v1366
    %1953 = vmatprep.subr.bf16.mxu0 %v1363
    %1954 = vmatpush2.bf16.msra.mxu0 %v1362
    %1955 = vmatprep.subr.bf16.mxu0 %v1359
    %1956 = vmatpush2.bf16.msra.mxu0 %v1358
    %1957 = vmatprep.subr.bf16.mxu0 %v1355
    %1958 = vmatpush2.bf16.msra.mxu0 %v1354
    %1959 = vmatprep.mubr.bf16.mxu0 %v81
    %1960 = vmatmul.mubr.bf16.gmra.mxu0 %v80
    %v1961 = vpop.f32.mrf.mxu0
    %v1962 = vadd.f32 %v1921, %v1961
    %v1963 = vpop.f32.mrf.mxu0
    %v1964 = vadd.f32 %v1923, %v1963
    %v1965 = vpop.f32.mrf.mxu0
    %v1966 = vpop.f32.mrf.mxu0
    %1967 = vdwg.mxu0
    %v1968 = vmax.f32 %v1798, 0.0
    %v1969 = vmax.f32 %v1800, 0.0
    %v1970 = vmax.f32 %v1962, 0.0
    %v1971 = vmax.f32 %v1964, 0.0
    %v1972 = vpack.c.bf16 %v1968, %v1968
    %v1973 = vpack.c.bf16 %v1969, %v1969
    %v1974 = vpack.c.bf16 %v1970, %v1970
    %v1975 = vpack.c.bf16 %v1971, %v1971
    %v1976 = vld [vmem:[%s3] sm:$0xf]
    %v1977 = vld [vmem:[%s3 + $0x4] sm:$0xf]
    %v1978 = vld [vmem:[%s3 + $0x8] sm:$0xf]
    %v1979 = vld [vmem:[%s3 + $0xc] sm:$0xf]
    %v1980 = vld [vmem:[%s3 + $0x10] sm:$0xf]
    %v1981 = vld [vmem:[%s3 + $0x14] sm:$0xf]
    %v1982 = vld [vmem:[%s3 + $0x18] sm:$0xf]
    %v1983 = vld [vmem:[%s3 + $0x1c] sm:$0xf]
    %v1984 = vld [vmem:[%s3 + $0x20] sm:$0xf]
    %v1985 = vld [vmem:[%s3 + $0x24] sm:$0xf]
    %v1986 = vld [vmem:[%s3 + $0x28] sm:$0xf]
    %v1987 = vld [vmem:[%s3 + $0x2c] sm:$0xf]
    %v1988 = vld [vmem:[%s3 + $0x30] sm:$0xf]
    %v1989 = vld [vmem:[%s3 + $0x34] sm:$0xf]
    %v1990 = vld [vmem:[%s3 + $0x38] sm:$0xf]
    %v1991 = vld [vmem:[%s3 + $0x3c] sm:$0xf]
    %v1992 = vld [vmem:[%s3 + $0x40] sm:$0xf]
    %v1993 = vld [vmem:[%s3 + $0x44] sm:$0xf]
    %v1994 = vld [vmem:[%s3 + $0x48] sm:$0xf]
    %v1995 = vld [vmem:[%s3 + $0x4c] sm:$0xf]
    %v1996 = vld [vmem:[%s3 + $0x50] sm:$0xf]
    %v1997 = vld [vmem:[%s3 + $0x54] sm:$0xf]
    %v1998 = vld [vmem:[%s3 + $0x58] sm:$0xf]
    %v1999 = vld [vmem:[%s3 + $0x5c] sm:$0xf]
    %v2000 = vld [vmem:[%s3 + $0x60] sm:$0xf]
    %v2001 = vld [vmem:[%s3 + $0x64] sm:$0xf]
    %v2002 = vld [vmem:[%s3 + $0x68] sm:$0xf]
    %v2003 = vld [vmem:[%s3 + $0x6c] sm:$0xf]
    %v2004 = vld [vmem:[%s3 + $0x70] sm:$0xf]
    %v2005 = vld [vmem:[%s3 + $0x74] sm:$0xf]
    %v2006 = vld [vmem:[%s3 + $0x78] sm:$0xf]
    %v2007 = vld [vmem:[%s3 + $0x7c] sm:$0xf]
    %v2008 = vld [vmem:[%s3 + $0x80] sm:$0xf]
    %v2009 = vld [vmem:[%s3 + $0x84] sm:$0xf]
    %v2010 = vld [vmem:[%s3 + $0x88] sm:$0xf]
    %v2011 = vld [vmem:[%s3 + $0x8c] sm:$0xf]
    %v2012 = vld [vmem:[%s3 + $0x90] sm:$0xf]
    %v2013 = vld [vmem:[%s3 + $0x94] sm:$0xf]
    %v2014 = vld [vmem:[%s3 + $0x98] sm:$0xf]
    %v2015 = vld [vmem:[%s3 + $0x9c] sm:$0xf]
    %v2016 = vld [vmem:[%s3 + $0xa0] sm:$0xf]
    %v2017 = vld [vmem:[%s3 + $0xa4] sm:$0xf]
    %v2018 = vld [vmem:[%s3 + $0xa8] sm:$0xf]
    %v2019 = vld [vmem:[%s3 + $0xac] sm:$0xf]
    %v2020 = vld [vmem:[%s3 + $0xb0] sm:$0xf]
    %v2021 = vld [vmem:[%s3 + $0xb4] sm:$0xf]
    %v2022 = vld [vmem:[%s3 + $0xb8] sm:$0xf]
    %v2023 = vld [vmem:[%s3 + $0xbc] sm:$0xf]
    %v2024 = vld [vmem:[%s3 + $0xc0] sm:$0xf]
    %v2025 = vld [vmem:[%s3 + $0xc4] sm:$0xf]
    %v2026 = vld [vmem:[%s3 + $0xc8] sm:$0xf]
    %v2027 = vld [vmem:[%s3 + $0xcc] sm:$0xf]
    %v2028 = vld [vmem:[%s3 + $0xd0] sm:$0xf]
    %v2029 = vld [vmem:[%s3 + $0xd4] sm:$0xf]
    %v2030 = vld [vmem:[%s3 + $0xd8] sm:$0xf]
    %v2031 = vld [vmem:[%s3 + $0xdc] sm:$0xf]
    %v2032 = vld [vmem:[%s3 + $0xe0] sm:$0xf]
    %v2033 = vld [vmem:[%s3 + $0xe4] sm:$0xf]
    %v2034 = vld [vmem:[%s3 + $0xe8] sm:$0xf]
    %v2035 = vld [vmem:[%s3 + $0xec] sm:$0xf]
    %v2036 = vld [vmem:[%s3 + $0xf0] sm:$0xf]
    %v2037 = vld [vmem:[%s3 + $0xf4] sm:$0xf]
    %v2038 = vld [vmem:[%s3 + $0xf8] sm:$0xf]
    %v2039 = vld [vmem:[%s3 + $0xfc] sm:$0xf]
    %v2040 = vld [vmem:[%s4] sm:$0x1]
    %v2042 = vlaneseq
    %v2043 = vshrl.u32 %v2042, 7
    %v2044 = vsub.s32 0, %v2043
    %v2045 = vrot.slane %v2040, %v2044
    %v2111 = vunpack.c.l.b16 %v1976
    %v2112 = vunpack.c.l.b16 %v1977
    %v2113 = vunpack.c.l.b16 %v1978
    %v2114 = vunpack.c.l.b16 %v1979
    %v2115 = vunpack.c.l.b16 %v1980
    %v2116 = vunpack.c.l.b16 %v1981
    %v2117 = vunpack.c.l.b16 %v1982
    %v2118 = vunpack.c.l.b16 %v1983
    %v2119 = vunpack.c.l.b16 %v1984
    %v2120 = vunpack.c.l.b16 %v1985
    %v2121 = vunpack.c.l.b16 %v1986
    %v2122 = vunpack.c.l.b16 %v1987
    %v2123 = vunpack.c.l.b16 %v1988
    %v2124 = vunpack.c.l.b16 %v1989
    %v2125 = vunpack.c.l.b16 %v1990
    %v2126 = vunpack.c.l.b16 %v1991
    %v2127 = vunpack.c.l.b16 %v1992
    %v2128 = vunpack.c.l.b16 %v1993
    %v2129 = vunpack.c.l.b16 %v1994
    %v2130 = vunpack.c.l.b16 %v1995
    %v2131 = vunpack.c.l.b16 %v1996
    %v2132 = vunpack.c.l.b16 %v1997
    %v2133 = vunpack.c.l.b16 %v1998
    %v2134 = vunpack.c.l.b16 %v1999
    %v2135 = vunpack.c.l.b16 %v2000
    %v2136 = vunpack.c.l.b16 %v2001
    %v2137 = vunpack.c.l.b16 %v2002
    %v2138 = vunpack.c.l.b16 %v2003
    %v2139 = vunpack.c.l.b16 %v2004
    %v2140 = vunpack.c.l.b16 %v2005
    %v2141 = vunpack.c.l.b16 %v2006
    %v2142 = vunpack.c.l.b16 %v2007
    %v2143 = vunpack.c.l.b16 %v2008
    %v2144 = vunpack.c.l.b16 %v2009
    %v2145 = vunpack.c.l.b16 %v2010
    %v2146 = vunpack.c.l.b16 %v2011
    %v2147 = vunpack.c.l.b16 %v2012
    %v2148 = vunpack.c.l.b16 %v2013
    %v2149 = vunpack.c.l.b16 %v2014
    %v2150 = vunpack.c.l.b16 %v2015
    %v2151 = vunpack.c.l.b16 %v2016
    %v2152 = vunpack.c.l.b16 %v2017
    %v2153 = vunpack.c.l.b16 %v2018
    %v2154 = vunpack.c.l.b16 %v2019
    %v2155 = vunpack.c.l.b16 %v2020
    %v2156 = vunpack.c.l.b16 %v2021
    %v2157 = vunpack.c.l.b16 %v2022
    %v2158 = vunpack.c.l.b16 %v2023
    %v2159 = vunpack.c.l.b16 %v2024
    %v2160 = vunpack.c.l.b16 %v2025
    %v2161 = vunpack.c.l.b16 %v2026
    %v2162 = vunpack.c.l.b16 %v2027
    %v2163 = vunpack.c.l.b16 %v2028
    %v2164 = vunpack.c.l.b16 %v2029
    %v2165 = vunpack.c.l.b16 %v2030
    %v2166 = vunpack.c.l.b16 %v2031
    %v2167 = vunpack.c.l.b16 %v2032
    %v2168 = vunpack.c.l.b16 %v2033
    %v2169 = vunpack.c.l.b16 %v2034
    %v2170 = vunpack.c.l.b16 %v2035
    %v2171 = vunpack.c.l.b16 %v2036
    %v2172 = vunpack.c.l.b16 %v2037
    %v2173 = vunpack.c.l.b16 %v2038
    %v2174 = vunpack.c.l.b16 %v2039
    %v2175 = vpack.c.b16 %v2112, %v2111
    %v2176 = vpack.c.b16 %v2114, %v2113
    %v2177 = vpack.c.b16 %v2116, %v2115
    %v2178 = vpack.c.b16 %v2118, %v2117
    %v2179 = vpack.c.b16 %v2120, %v2119
    %v2180 = vpack.c.b16 %v2122, %v2121
    %v2181 = vpack.c.b16 %v2124, %v2123
    %v2182 = vpack.c.b16 %v2126, %v2125
    %v2183 = vpack.c.b16 %v2128, %v2127
    %v2184 = vpack.c.b16 %v2130, %v2129
    %v2185 = vpack.c.b16 %v2132, %v2131
    %v2186 = vpack.c.b16 %v2134, %v2133
    %v2187 = vpack.c.b16 %v2136, %v2135
    %v2188 = vpack.c.b16 %v2138, %v2137
    %v2189 = vpack.c.b16 %v2140, %v2139
    %v2190 = vpack.c.b16 %v2142, %v2141
    %v2191 = vpack.c.b16 %v2144, %v2143
    %v2192 = vpack.c.b16 %v2146, %v2145
    %v2193 = vpack.c.b16 %v2148, %v2147
    %v2194 = vpack.c.b16 %v2150, %v2149
    %v2195 = vpack.c.b16 %v2152, %v2151
    %v2196 = vpack.c.b16 %v2154, %v2153
    %v2197 = vpack.c.b16 %v2156, %v2155
    %v2198 = vpack.c.b16 %v2158, %v2157
    %v2199 = vpack.c.b16 %v2160, %v2159
    %v2200 = vpack.c.b16 %v2162, %v2161
    %v2201 = vpack.c.b16 %v2164, %v2163
    %v2202 = vpack.c.b16 %v2166, %v2165
    %v2203 = vpack.c.b16 %v2168, %v2167
    %v2204 = vpack.c.b16 %v2170, %v2169
    %v2205 = vpack.c.b16 %v2172, %v2171
    %v2206 = vpack.c.b16 %v2174, %v2173
    %2239 = vmatprep.subr.bf16.mxu0 0
    %2240 = vmatpush1.bf16.msra.mxu0 %v2182
    %2241 = vmatprep.subr.bf16.mxu0 0
    %2242 = vmatpush1.bf16.msra.mxu0 %v2181
    %2243 = vmatprep.subr.bf16.mxu0 0
    %2244 = vmatpush1.bf16.msra.mxu0 %v2180
    %2245 = vmatprep.subr.bf16.mxu0 0
    %2246 = vmatpush1.bf16.msra.mxu0 %v2179
    %2247 = vmatprep.subr.bf16.mxu0 0
    %2248 = vmatpush1.bf16.msra.mxu0 %v2178
    %2249 = vmatprep.subr.bf16.mxu0 0
    %2250 = vmatpush1.bf16.msra.mxu0 %v2177
    %2251 = vmatprep.subr.bf16.mxu0 0
    %2252 = vmatpush1.bf16.msra.mxu0 %v2176
    %2253 = vmatprep.subr.bf16.mxu0 0
    %2254 = vmatpush1.bf16.msra.mxu0 %v2175
    %2255 = vmatprep.subr.bf16.mxu0 0
    %2256 = vmatpush2.bf16.msra.mxu0 %v2190
    %2257 = vmatprep.subr.bf16.mxu0 0
    %2258 = vmatpush2.bf16.msra.mxu0 %v2189
    %2259 = vmatprep.subr.bf16.mxu0 0
    %2260 = vmatpush2.bf16.msra.mxu0 %v2188
    %2261 = vmatprep.subr.bf16.mxu0 0
    %2262 = vmatpush2.bf16.msra.mxu0 %v2187
    %2263 = vmatprep.subr.bf16.mxu0 0
    %2264 = vmatpush2.bf16.msra.mxu0 %v2186
    %2265 = vmatprep.subr.bf16.mxu0 0
    %2266 = vmatpush2.bf16.msra.mxu0 %v2185
    %2267 = vmatprep.subr.bf16.mxu0 0
    %2268 = vmatpush2.bf16.msra.mxu0 %v2184
    %2269 = vmatprep.subr.bf16.mxu0 0
    %2270 = vmatpush2.bf16.msra.mxu0 %v2183
    %2271 = vmatprep.mubr.bf16.mxu0 %v1973
    %2272 = vmatmul.mubr.bf16.gmra.mxu0 %v1972
    %v2273 = vpop.f32.mrf.mxu0
    %v2274 = vadd.f32 %v2045, %v2273
    %v2275 = vpop.f32.mrf.mxu0
    %v2276 = vpop.f32.mrf.mxu0
    %v2277 = vpop.f32.mrf.mxu0
    %2278 = vdwg.mxu0
    %2279 = vmatprep.subr.bf16.mxu0 0
    %2280 = vmatpush1.bf16.msra.mxu0 %v2198
    %2281 = vmatprep.subr.bf16.mxu0 0
    %2282 = vmatpush1.bf16.msra.mxu0 %v2197
    %2283 = vmatprep.subr.bf16.mxu0 0
    %2284 = vmatpush1.bf16.msra.mxu0 %v2196
    %2285 = vmatprep.subr.bf16.mxu0 0
    %2286 = vmatpush1.bf16.msra.mxu0 %v2195
    %2287 = vmatprep.subr.bf16.mxu0 0
    %2288 = vmatpush1.bf16.msra.mxu0 %v2194
    %2289 = vmatprep.subr.bf16.mxu0 0
    %2290 = vmatpush1.bf16.msra.mxu0 %v2193
    %2291 = vmatprep.subr.bf16.mxu0 0
    %2292 = vmatpush1.bf16.msra.mxu0 %v2192
    %2293 = vmatprep.subr.bf16.mxu0 0
    %2294 = vmatpush1.bf16.msra.mxu0 %v2191
    %2295 = vmatprep.subr.bf16.mxu0 0
    %2296 = vmatpush2.bf16.msra.mxu0 %v2206
    %2297 = vmatprep.subr.bf16.mxu0 0
    %2298 = vmatpush2.bf16.msra.mxu0 %v2205
    %2299 = vmatprep.subr.bf16.mxu0 0
    %2300 = vmatpush2.bf16.msra.mxu0 %v2204
    %2301 = vmatprep.subr.bf16.mxu0 0
    %2302 = vmatpush2.bf16.msra.mxu0 %v2203
    %2303 = vmatprep.subr.bf16.mxu0 0
    %2304 = vmatpush2.bf16.msra.mxu0 %v2202
    %2305 = vmatprep.subr.bf16.mxu0 0
    %2306 = vmatpush2.bf16.msra.mxu0 %v2201
    %2307 = vmatprep.subr.bf16.mxu0 0
    %2308 = vmatpush2.bf16.msra.mxu0 %v2200
    %2309 = vmatprep.subr.bf16.mxu0 0
    %2310 = vmatpush2.bf16.msra.mxu0 %v2199
    %2311 = vmatprep.mubr.bf16.mxu0 %v1975
    %2312 = vmatmul.mubr.bf16.gmra.mxu0 %v1974
    %v2313 = vpop.f32.mrf.mxu0
    %v2314 = vadd.f32 %v2274, %v2313
    %v2315 = vpop.f32.mrf.mxu0
    %v2316 = vpop.f32.mrf.mxu0
    %v2317 = vpop.f32.mrf.mxu0
    %2318 = vdwg.mxu0
    %v2319 = vmax.f32 %v2314, 0.0
    %v2320 = vpack.c.bf16 %v2319, %v2319
    %v2321 = vld [vmem:[%s5] sm:$0xf]
    %v2322 = vld [vmem:[%s5 + $0x4] sm:$0xf]
    %v2323 = vld [vmem:[%s5 + $0x8] sm:$0xf]
    %v2324 = vld [vmem:[%s5 + $0xc] sm:$0xf]
    %v2325 = vld [vmem:[%s5 + $0x10] sm:$0xf]
    %v2326 = vld [vmem:[%s5 + $0x14] sm:$0xf]
    %v2327 = vld [vmem:[%s5 + $0x18] sm:$0xf]
    %v2328 = vld [vmem:[%s5 + $0x1c] sm:$0xf]
    %v2329 = vld [vmem:[%s5 + $0x20] sm:$0xf]
    %v2330 = vld [vmem:[%s5 + $0x24] sm:$0xf]
    %v2331 = vld [vmem:[%s5 + $0x28] sm:$0xf]
    %v2332 = vld [vmem:[%s5 + $0x2c] sm:$0xf]
    %v2333 = vld [vmem:[%s5 + $0x30] sm:$0xf]
    %v2334 = vld [vmem:[%s5 + $0x34] sm:$0xf]
    %v2335 = vld [vmem:[%s5 + $0x38] sm:$0xf]
    %v2336 = vld [vmem:[%s5 + $0x3c] sm:$0xf]
    %v2337 = vld [vmem:[%s6] sm:$0x1]
    %v2339 = vlaneseq
    %v2340 = vshrl.u32 %v2339, 7
    %v2341 = vsub.s32 0, %v2340
    %v2342 = vrot.slane %v2337, %v2341
    %v2360 = vunpack.c.l.b16 %v2321
    %v2361 = vunpack.c.l.b16 %v2322
    %v2362 = vunpack.c.l.b16 %v2323
    %v2363 = vunpack.c.l.b16 %v2324
    %v2364 = vunpack.c.l.b16 %v2325
    %v2365 = vunpack.c.l.b16 %v2326
    %v2366 = vunpack.c.l.b16 %v2327
    %v2367 = vunpack.c.l.b16 %v2328
    %v2368 = vunpack.c.l.b16 %v2329
    %v2369 = vunpack.c.l.b16 %v2330
    %v2370 = vunpack.c.l.b16 %v2331
    %v2371 = vunpack.c.l.b16 %v2332
    %v2372 = vunpack.c.l.b16 %v2333
    %v2373 = vunpack.c.l.b16 %v2334
    %v2374 = vunpack.c.l.b16 %v2335
    %v2375 = vunpack.c.l.b16 %v2336
    %v2376 = vpack.c.b16 %v2361, %v2360
    %v2377 = vpack.c.b16 %v2363, %v2362
    %v2378 = vpack.c.b16 %v2365, %v2364
    %v2379 = vpack.c.b16 %v2367, %v2366
    %v2380 = vpack.c.b16 %v2369, %v2368
    %v2381 = vpack.c.b16 %v2371, %v2370
    %v2382 = vpack.c.b16 %v2373, %v2372
    %v2383 = vpack.c.b16 %v2375, %v2374
    %2392 = vmatprep.subr.bf16.mxu0 0
    %2393 = vmatpush1.bf16.msra.mxu0 %v2383
    %2394 = vmatprep.subr.bf16.mxu0 0
    %2395 = vmatpush1.bf16.msra.mxu0 %v2382
    %2396 = vmatprep.subr.bf16.mxu0 0
    %2397 = vmatpush1.bf16.msra.mxu0 %v2381
    %2398 = vmatprep.subr.bf16.mxu0 0
    %2399 = vmatpush1.bf16.msra.mxu0 %v2380
    %2400 = vmatprep.subr.bf16.mxu0 0
    %2401 = vmatpush1.bf16.msra.mxu0 %v2379
    %2402 = vmatprep.subr.bf16.mxu0 0
    %2403 = vmatpush1.bf16.msra.mxu0 %v2378
    %2404 = vmatprep.subr.bf16.mxu0 0
    %2405 = vmatpush1.bf16.msra.mxu0 %v2377
    %2406 = vmatprep.subr.bf16.mxu0 0
    %2407 = vmatpush1.bf16.msra.mxu0 %v2376
    %2408 = vmatprep.subr.bf16.mxu0 0
    %2409 = vmatpush2.bf16.msra.mxu0 0
    %2410 = vmatprep.subr.bf16.mxu0 0
    %2411 = vmatpush2.bf16.msra.mxu0 0
    %2412 = vmatprep.subr.bf16.mxu0 0
    %2413 = vmatpush2.bf16.msra.mxu0 0
    %2414 = vmatprep.subr.bf16.mxu0 0
    %2415 = vmatpush2.bf16.msra.mxu0 0
    %2416 = vmatprep.subr.bf16.mxu0 0
    %2417 = vmatpush2.bf16.msra.mxu0 0
    %2418 = vmatprep.subr.bf16.mxu0 0
    %2419 = vmatpush2.bf16.msra.mxu0 0
    %2420 = vmatprep.subr.bf16.mxu0 0
    %2421 = vmatpush2.bf16.msra.mxu0 0
    %2422 = vmatprep.subr.bf16.mxu0 0
    %2423 = vmatpush2.bf16.msra.mxu0 0
    %2424 = vmatprep.mubr.bf16.mxu0 0
    %2425 = vmatmul.mubr.bf16.gmra.mxu0 %v2320
    %v2426 = vpop.f32.mrf.mxu0
    %v2427 = vadd.f32 %v2342, %v2426
    %v2428 = vpop.f32.mrf.mxu0
    %v2429 = vpop.f32.mrf.mxu0
    %v2430 = vpop.f32.mrf.mxu0
    %2431 = vdwg.mxu0
    %vm2432 = vcmask 58368
    %2433 = vst.msk [vmem:[#allocation2] sm:$0x3] %vm2432, %v2427
    // Predicated region
    $region30: #{_lambda_.7} parent=1 // pred_check
      _
    $region31: #{_lambda_.7} parent=1 // pred_check_branch
      %2435 = sbr.rel (0) target = $region33
    $region32: #{_lambda_.7} parent=1 // pred_region
      %s2437 = ssub.s32 32, 32
      %2438 = vsyncadd [#allocation3], %s2437
      %s2440 = sshll.u32 [#allocation2], 4
      %s2441 = int_to_ptr.vmem [resolvable:$true] %s2440
      %2443 = dma.vmem_to_hbm [thread:$0]  %s2441, 32, %s7, [#allocation3]
    $region33: #{_lambda_.7} parent=1 // pred_fallthru
      _
    // Predicated region
    $region34: #{_lambda_.7} parent=1 // pred_check
      _
    $region35: #{_lambda_.7} parent=1 // pred_check_branch
      %2445 = sbr.rel (0) target = $region37
    $region36: #{_lambda_.7} parent=1 // pred_region
      %2446 = dma.done [#allocation3], 32
    $region37: #{_lambda_.7} parent=1 // pred_fallthru
      _
    %2447 = vsyncpa [#allocation3], 1

// kernel: _lambda_.5
$region0: #{_lambda_.5}
  #allocation0 [shape = 'u32[]', space=smem, size = 0x4, offset = 0x4, fixed_abs, tag = 'smem constant byte address 0x4 - core index']
  #allocation1 [shape = 'u32[144,128]{1,0:T(1,128)}', space=vmem, size = 0x12000, scoped, tag = 'internal scratch']
  #allocation2 [shape = 'f32[2,2,1024]{2,1,0:T(2,128)}', space=vmem, size = 0x4000, scoped, tag = 'scratch operand']
  #allocation3 [shape = 'f32[2,2,1024]{2,1,0:T(2,128)}', space=vmem, size = 0x4000, scoped, tag = 'scratch operand']
  %s0 = inlined_call_operand.vmem [shape: f32[2,2,128], index: 0, kind: input, shape index: {}]
  %s1 = inlined_call_operand.hbm [shape: bf16[128,1024], index: 1, kind: input, shape index: {}]
  %s2 = inlined_call_operand.hbm [shape: bf16[256,1024], index: 2, kind: input, shape index: {}]
  %s3 = inlined_call_operand.hbm [shape: f32[1,1024], index: 3, kind: input, shape index: {}]
  %s4 = inlined_call_operand.hbm [shape: bf16[128,1024], index: 4, kind: input, shape index: {}]
  %s5 = inlined_call_operand.hbm [shape: bf16[256,1024], index: 5, kind: input, shape index: {}]
  %s6 = inlined_call_operand.hbm [shape: f32[1,1024], index: 6, kind: input, shape index: {}]
  %s7 = inlined_call_operand.vmem [shape: f32[2,2,512], index: 7, kind: output, shape index: {}]
  %s8 = sld [smem:[#allocation0]]
  $region69: #{_lambda_.5} parent=0
    _
  %s10 = ssub.s32 1, %s8
  %s11 = scalar_select 0, %s10, %s8
  $region1: #{_lambda_.5} parent=0
    #allocation4 [shape = 'u8[262144]{0}', space=vmem, size = 0x40000, scoped, tag = 'input window, operand 1, single buffered']
    #allocation5 [shape = 's32[1]{0}', space=sflag, size = 0x4, scoped, tag = 'scoped memory for _lambda_.5']
    #allocation6 [shape = 'u8[524288]{0}', space=vmem, size = 0x80000, scoped, tag = 'input window, operand 2, single buffered']
    #allocation7 [shape = 's32[1]{0}', space=sflag, size = 0x4, scoped, tag = 'scoped memory for _lambda_.5']
    #allocation8 [shape = 'u8[4096]{0}', space=vmem, size = 0x1000, scoped, tag = 'input window, operand 3, single buffered']
    #allocation9 [shape = 'u8[262144]{0}', space=vmem, size = 0x40000, scoped, tag = 'input window, operand 4, single buffered']
    #allocation10 [shape = 's32[1]{0}', space=sflag, size = 0x4, scoped, tag = 'scoped memory for _lambda_.5']
    #allocation11 [shape = 'u8[524288]{0}', space=vmem, size = 0x80000, scoped, tag = 'input window, operand 5, single buffered']
    #allocation12 [shape = 'u8[4096]{0}', space=vmem, size = 0x1000, scoped, tag = 'input window, operand 6, single buffered']
    #allocation13 [shape = 's32[1]{0}', space=sflag, size = 0x4, scoped, tag = 'scoped memory for _lambda_.5']
    %12 = vsyncpa [#allocation5], 0
    %13 = vsyncpa [#allocation7], 0
    %14 = vsyncpa [#allocation10], 0
    %15 = vsyncpa [#allocation13], 0
    // Predicated region
    $region2: #{_lambda_.5} parent=1 // pred_check
      _
    $region3: #{_lambda_.5} parent=1 // pred_check_branch
      %17 = sbr.rel (0) target = $region5
    $region4: #{_lambda_.5} parent=1 // pred_region
      _
    $region5: #{_lambda_.5} parent=1 // pred_fallthru
      _
    // Predicated region
    $region6: #{_lambda_.5} parent=1 // pred_check
      _
    $region7: #{_lambda_.5} parent=1 // pred_check_branch
      %19 = sbr.rel (0) target = $region9
    $region8: #{_lambda_.5} parent=1 // pred_region
      %s21 = ssub.s32 8192, 8192
      %22 = vsyncadd [#allocation5], %s21
      %s23 = sshll.u32 [#allocation4], 4
      %s24 = int_to_ptr.vmem [resolvable:$true] %s23
      %29 = dma.hbm_to_vmem [thread:$0]  %s1, 8192, %s24, [#allocation5], 512, 512, 32
    $region9: #{_lambda_.5} parent=1 // pred_fallthru
      _
    // Predicated region
    $region10: #{_lambda_.5} parent=1 // pred_check
      _
    $region11: #{_lambda_.5} parent=1 // pred_check_branch
      %31 = sbr.rel (0) target = $region13
    $region12: #{_lambda_.5} parent=1 // pred_region
      %s33 = ssub.s32 16384, 16384
      %34 = vsyncadd [#allocation7], %s33
      %s35 = sshll.u32 [#allocation6], 4
      %s36 = int_to_ptr.vmem [resolvable:$true] %s35
      %41 = dma.hbm_to_vmem [thread:$0]  %s2, 16384, %s36, [#allocation7], 512, 512, 32
    $region13: #{_lambda_.5} parent=1 // pred_fallthru
      _
    // Predicated region
    $region14: #{_lambda_.5} parent=1 // pred_check
      _
    $region15: #{_lambda_.5} parent=1 // pred_check_branch
      %43 = sbr.rel (0) target = $region17
    $region16: #{_lambda_.5} parent=1 // pred_region
      %s45 = ssub.s32 128, 128
      %46 = vsyncadd [#allocation7], %s45
      %s48 = sshll.u32 [#allocation8], 4
      %s49 = int_to_ptr.vmem [resolvable:$true] %s48
      %51 = dma.hbm_to_vmem [thread:$0]  %s3, 128, %s49, [#allocation7]
    $region17: #{_lambda_.5} parent=1 // pred_fallthru
      _
    // Predicated region
    $region18: #{_lambda_.5} parent=1 // pred_check
      _
    $region19: #{_lambda_.5} parent=1 // pred_check_branch
      %53 = sbr.rel (0) target = $region21
    $region20: #{_lambda_.5} parent=1 // pred_region
      %s55 = ssub.s32 8192, 8192
      %56 = vsyncadd [#allocation10], %s55
      %s57 = sshll.u32 [#allocation9], 4
      %s58 = int_to_ptr.vmem [resolvable:$true] %s57
      %63 = dma.hbm_to_vmem [thread:$0]  %s4, 8192, %s58, [#allocation10], 512, 512, 32
    $region21: #{_lambda_.5} parent=1 // pred_fallthru
      _
    // Predicated region
    $region22: #{_lambda_.5} parent=1 // pred_check
      _
    $region23: #{_lambda_.5} parent=1 // pred_check_branch
      %65 = sbr.rel (0) target = $region25
    $region24: #{_lambda_.5} parent=1 // pred_region
      %s67 = ssub.s32 16384, 16384
      %68 = vsyncadd [#allocation10], %s67
      %s69 = sshll.u32 [#allocation11], 4
      %s70 = int_to_ptr.vmem [resolvable:$true] %s69
      %75 = dma.hbm_to_vmem [thread:$0]  %s5, 16384, %s70, [#allocation10], 512, 512, 32
    $region25: #{_lambda_.5} parent=1 // pred_fallthru
      _
    // Predicated region
    $region26: #{_lambda_.5} parent=1 // pred_check
      _
    $region27: #{_lambda_.5} parent=1 // pred_check_branch
      %77 = sbr.rel (0) target = $region29
    $region28: #{_lambda_.5} parent=1 // pred_region
      %s79 = ssub.s32 128, 128
      %80 = vsyncadd [#allocation13], %s79
      %s82 = sshll.u32 [#allocation12], 4
      %s83 = int_to_ptr.vmem [resolvable:$true] %s82
      %85 = dma.hbm_to_vmem [thread:$0]  %s6, 128, %s83, [#allocation13]
    $region29: #{_lambda_.5} parent=1 // pred_fallthru
      _
    // Predicated region
    $region30: #{_lambda_.5} parent=1 // pred_check
      _
    $region31: #{_lambda_.5} parent=1 // pred_check_branch
      %87 = sbr.rel (0) target = $region33
    $region32: #{_lambda_.5} parent=1 // pred_region
      %88 = dma.done [#allocation5], 8192
    $region33: #{_lambda_.5} parent=1 // pred_fallthru
      _
    // Predicated region
    $region34: #{_lambda_.5} parent=1 // pred_check
      _
    $region35: #{_lambda_.5} parent=1 // pred_check_branch
      %90 = sbr.rel (0) target = $region37
    $region36: #{_lambda_.5} parent=1 // pred_region
      %91 = dma.done [#allocation7], 16384
    $region37: #{_lambda_.5} parent=1 // pred_fallthru
      _
    // Predicated region
    $region38: #{_lambda_.5} parent=1 // pred_check
      _
    $region39: #{_lambda_.5} parent=1 // pred_check_branch
      %93 = sbr.rel (0) target = $region41
    $region40: #{_lambda_.5} parent=1 // pred_region
      %94 = dma.done [#allocation7], 128
    $region41: #{_lambda_.5} parent=1 // pred_fallthru
      _
    // Predicated region
    $region42: #{_lambda_.5} parent=1 // pred_check
      _
    $region43: #{_lambda_.5} parent=1 // pred_check_branch
      %96 = sbr.rel (0) target = $region45
    $region44: #{_lambda_.5} parent=1 // pred_region
      %97 = dma.done [#allocation10], 8192
    $region45: #{_lambda_.5} parent=1 // pred_fallthru
      _
    // Predicated region
    $region46: #{_lambda_.5} parent=1 // pred_check
      _
    $region47: #{_lambda_.5} parent=1 // pred_check_branch
      %99 = sbr.rel (0) target = $region49
    $region48: #{_lambda_.5} parent=1 // pred_region
      %100 = dma.done [#allocation10], 16384
    $region49: #{_lambda_.5} parent=1 // pred_fallthru
      _
    // Predicated region
    $region50: #{_lambda_.5} parent=1 // pred_check
      _
    $region51: #{_lambda_.5} parent=1 // pred_check_branch
      %102 = sbr.rel (0) target = $region53
    $region52: #{_lambda_.5} parent=1 // pred_region
      %103 = dma.done [#allocation13], 128
    $region53: #{_lambda_.5} parent=1 // pred_fallthru
      _
    %v105 = vld [vmem:[%s0] sm:$0x3]
    %v106 = vld [vmem:[%s0 + $0x2] sm:$0x3]
    %v109 = vcombine.low %v105, %v106
    %v111 = vunpack.c.l.s4 1983009808
    %v112 = vunpack.c.0.s8 %v111
    %v113 = vlaneseq
    %v114 = vshrl.u32 %v113, 7
    %v115 = vsub.s32 %v112, %v114
    %v116 = vrot.slane %v109, %v115
    %v118 = vpack.c.bf16 %v116, %v116
    %v119 = vld [vmem:[#allocation4] sm:$0xff]
    %v120 = vld [vmem:[#allocation4 + $0x8] sm:$0xff]
    %v121 = vld [vmem:[#allocation4 + $0x10] sm:$0xff]
    %v122 = vld [vmem:[#allocation4 + $0x18] sm:$0xff]
    %v123 = vld [vmem:[#allocation4 + $0x20] sm:$0xff]
    %v124 = vld [vmem:[#allocation4 + $0x28] sm:$0xff]
    %v125 = vld [vmem:[#allocation4 + $0x30] sm:$0xff]
    %v126 = vld [vmem:[#allocation4 + $0x38] sm:$0xff]
    %v127 = vld [vmem:[#allocation4 + $0x40] sm:$0xff]
    %v128 = vld [vmem:[#allocation4 + $0x48] sm:$0xff]
    %v129 = vld [vmem:[#allocation4 + $0x50] sm:$0xff]
    %v130 = vld [vmem:[#allocation4 + $0x58] sm:$0xff]
    %v131 = vld [vmem:[#allocation4 + $0x60] sm:$0xff]
    %v132 = vld [vmem:[#allocation4 + $0x68] sm:$0xff]
    %v133 = vld [vmem:[#allocation4 + $0x70] sm:$0xff]
    %v134 = vld [vmem:[#allocation4 + $0x78] sm:$0xff]
    %v135 = vld [vmem:[#allocation4 + $0x80] sm:$0xff]
    %v136 = vld [vmem:[#allocation4 + $0x88] sm:$0xff]
    %v137 = vld [vmem:[#allocation4 + $0x90] sm:$0xff]
    %v138 = vld [vmem:[#allocation4 + $0x98] sm:$0xff]
    %v139 = vld [vmem:[#allocation4 + $0xa0] sm:$0xff]
    %v140 = vld [vmem:[#allocation4 + $0xa8] sm:$0xff]
    %v141 = vld [vmem:[#allocation4 + $0xb0] sm:$0xff]
    %v142 = vld [vmem:[#allocation4 + $0xb8] sm:$0xff]
    %v143 = vld [vmem:[#allocation4 + $0xc0] sm:$0xff]
    %v144 = vld [vmem:[#allocation4 + $0xc8] sm:$0xff]
    %v145 = vld [vmem:[#allocation4 + $0xd0] sm:$0xff]
    %v146 = vld [vmem:[#allocation4 + $0xd8] sm:$0xff]
    %v147 = vld [vmem:[#allocation4 + $0xe0] sm:$0xff]
    %v148 = vld [vmem:[#allocation4 + $0xe8] sm:$0xff]
    %v149 = vld [vmem:[#allocation4 + $0xf0] sm:$0xff]
    %v150 = vld [vmem:[#allocation4 + $0xf8] sm:$0xff]
    %v151 = vld [vmem:[#allocation4 + $0x100] sm:$0xff]
    %v152 = vld [vmem:[#allocation4 + $0x108] sm:$0xff]
    %v153 = vld [vmem:[#allocation4 + $0x110] sm:$0xff]
    %v154 = vld [vmem:[#allocation4 + $0x118] sm:$0xff]
    %v155 = vld [vmem:[#allocation4 + $0x120] sm:$0xff]
    %v156 = vld [vmem:[#allocation4 + $0x128] sm:$0xff]
    %v157 = vld [vmem:[#allocation4 + $0x130] sm:$0xff]
    %v158 = vld [vmem:[#allocation4 + $0x138] sm:$0xff]
    %v159 = vld [vmem:[#allocation4 + $0x140] sm:$0xff]
    %v160 = vld [vmem:[#allocation4 + $0x148] sm:$0xff]
    %v161 = vld [vmem:[#allocation4 + $0x150] sm:$0xff]
    %v162 = vld [vmem:[#allocation4 + $0x158] sm:$0xff]
    %v163 = vld [vmem:[#allocation4 + $0x160] sm:$0xff]
    %v164 = vld [vmem:[#allocation4 + $0x168] sm:$0xff]
    %v165 = vld [vmem:[#allocation4 + $0x170] sm:$0xff]
    %v166 = vld [vmem:[#allocation4 + $0x178] sm:$0xff]
    %v167 = vld [vmem:[#allocation4 + $0x180] sm:$0xff]
    %v168 = vld [vmem:[#allocation4 + $0x188] sm:$0xff]
    %v169 = vld [vmem:[#allocation4 + $0x190] sm:$0xff]
    %v170 = vld [vmem:[#allocation4 + $0x198] sm:$0xff]
    %v171 = vld [vmem:[#allocation4 + $0x1a0] sm:$0xff]
    %v172 = vld [vmem:[#allocation4 + $0x1a8] sm:$0xff]
    %v173 = vld [vmem:[#allocation4 + $0x1b0] sm:$0xff]
    %v174 = vld [vmem:[#allocation4 + $0x1b8] sm:$0xff]
    %v175 = vld [vmem:[#allocation4 + $0x1c0] sm:$0xff]
    %v176 = vld [vmem:[#allocation4 + $0x1c8] sm:$0xff]
    %v177 = vld [vmem:[#allocation4 + $0x1d0] sm:$0xff]
    %v178 = vld [vmem:[#allocation4 + $0x1d8] sm:$0xff]
    %v179 = vld [vmem:[#allocation4 + $0x1e0] sm:$0xff]
    %v180 = vld [vmem:[#allocation4 + $0x1e8] sm:$0xff]
    %v181 = vld [vmem:[#allocation4 + $0x1f0] sm:$0xff]
    %v182 = vld [vmem:[#allocation4 + $0x1f8] sm:$0xff]
    %v183 = vld [vmem:[#allocation8] sm:$0xff]
    %v185 = vlaneseq
    %v186 = vshrl.u32 %v185, 7
    %v187 = vsub.s32 0, %v186
    %v188 = vrot.slane %v183, %v187
    %v189 = vlaneseq
    %v190 = vshrl.u32 %v189, 7
    %v191 = vsub.s32 1, %v190
    %v192 = vrot.slane %v183, %v191
    %v193 = vlaneseq
    %v194 = vshrl.u32 %v193, 7
    %v195 = vsub.s32 2, %v194
    %v196 = vrot.slane %v183, %v195
    %v197 = vlaneseq
    %v198 = vshrl.u32 %v197, 7
    %v199 = vsub.s32 3, %v198
    %v200 = vrot.slane %v183, %v199
    %v201 = vlaneseq
    %v202 = vshrl.u32 %v201, 7
    %v203 = vsub.s32 4, %v202
    %v204 = vrot.slane %v183, %v203
    %v205 = vlaneseq
    %v206 = vshrl.u32 %v205, 7
    %v207 = vsub.s32 5, %v206
    %v208 = vrot.slane %v183, %v207
    %v209 = vlaneseq
    %v210 = vshrl.u32 %v209, 7
    %v211 = vsub.s32 6, %v210
    %v212 = vrot.slane %v183, %v211
    %v213 = vlaneseq
    %v214 = vshrl.u32 %v213, 7
    %v215 = vsub.s32 7, %v214
    %v216 = vrot.slane %v183, %v215
    %v289 = vunpack.c.l.b16 %v119
    %v290 = vunpack.c.h.b16 %v119
    %v291 = vunpack.c.l.b16 %v120
    %v292 = vunpack.c.h.b16 %v120
    %v293 = vunpack.c.l.b16 %v121
    %v294 = vunpack.c.h.b16 %v121
    %v295 = vunpack.c.l.b16 %v122
    %v296 = vunpack.c.h.b16 %v122
    %v297 = vunpack.c.l.b16 %v123
    %v298 = vunpack.c.h.b16 %v123
    %v299 = vunpack.c.l.b16 %v124
    %v300 = vunpack.c.h.b16 %v124
    %v301 = vunpack.c.l.b16 %v125
    %v302 = vunpack.c.h.b16 %v125
    %v303 = vunpack.c.l.b16 %v126
    %v304 = vunpack.c.h.b16 %v126
    %v305 = vunpack.c.l.b16 %v127
    %v306 = vunpack.c.h.b16 %v127
    %v307 = vunpack.c.l.b16 %v128
    %v308 = vunpack.c.h.b16 %v128
    %v309 = vunpack.c.l.b16 %v129
    %v310 = vunpack.c.h.b16 %v129
    %v311 = vunpack.c.l.b16 %v130
    %v312 = vunpack.c.h.b16 %v130
    %v313 = vunpack.c.l.b16 %v131
    %v314 = vunpack.c.h.b16 %v131
    %v315 = vunpack.c.l.b16 %v132
    %v316 = vunpack.c.h.b16 %v132
    %v317 = vunpack.c.l.b16 %v133
    %v318 = vunpack.c.h.b16 %v133
    %v319 = vunpack.c.l.b16 %v134
    %v320 = vunpack.c.h.b16 %v134
    %v321 = vunpack.c.l.b16 %v135
    %v322 = vunpack.c.h.b16 %v135
    %v323 = vunpack.c.l.b16 %v136
    %v324 = vunpack.c.h.b16 %v136
    %v325 = vunpack.c.l.b16 %v137
    %v326 = vunpack.c.h.b16 %v137
    %v327 = vunpack.c.l.b16 %v138
    %v328 = vunpack.c.h.b16 %v138
    %v329 = vunpack.c.l.b16 %v139
    %v330 = vunpack.c.h.b16 %v139
    %v331 = vunpack.c.l.b16 %v140
    %v332 = vunpack.c.h.b16 %v140
    %v333 = vunpack.c.l.b16 %v141
    %v334 = vunpack.c.h.b16 %v141
    %v335 = vunpack.c.l.b16 %v142
    %v336 = vunpack.c.h.b16 %v142
    %v337 = vunpack.c.l.b16 %v143
    %v338 = vunpack.c.h.b16 %v143
    %v339 = vunpack.c.l.b16 %v144
    %v340 = vunpack.c.h.b16 %v144
    %v341 = vunpack.c.l.b16 %v145
    %v342 = vunpack.c.h.b16 %v145
    %v343 = vunpack.c.l.b16 %v146
    %v344 = vunpack.c.h.b16 %v146
    %v345 = vunpack.c.l.b16 %v147
    %v346 = vunpack.c.h.b16 %v147
    %v347 = vunpack.c.l.b16 %v148
    %v348 = vunpack.c.h.b16 %v148
    %v349 = vunpack.c.l.b16 %v149
    %v350 = vunpack.c.h.b16 %v149
    %v351 = vunpack.c.l.b16 %v150
    %v352 = vunpack.c.h.b16 %v150
    %v353 = vunpack.c.l.b16 %v151
    %v354 = vunpack.c.h.b16 %v151
    %v355 = vunpack.c.l.b16 %v152
    %v356 = vunpack.c.h.b16 %v152
    %v357 = vunpack.c.l.b16 %v153
    %v358 = vunpack.c.h.b16 %v153
    %v359 = vunpack.c.l.b16 %v154
    %v360 = vunpack.c.h.b16 %v154
    %v361 = vunpack.c.l.b16 %v155
    %v362 = vunpack.c.h.b16 %v155
    %v363 = vunpack.c.l.b16 %v156
    %v364 = vunpack.c.h.b16 %v156
    %v365 = vunpack.c.l.b16 %v157
    %v366 = vunpack.c.h.b16 %v157
    %v367 = vunpack.c.l.b16 %v158
    %v368 = vunpack.c.h.b16 %v158
    %v369 = vunpack.c.l.b16 %v159
    %v370 = vunpack.c.h.b16 %v159
    %v371 = vunpack.c.l.b16 %v160
    %v372 = vunpack.c.h.b16 %v160
    %v373 = vunpack.c.l.b16 %v161
    %v374 = vunpack.c.h.b16 %v161
    %v375 = vunpack.c.l.b16 %v162
    %v376 = vunpack.c.h.b16 %v162
    %v377 = vunpack.c.l.b16 %v163
    %v378 = vunpack.c.h.b16 %v163
    %v379 = vunpack.c.l.b16 %v164
    %v380 = vunpack.c.h.b16 %v164
    %v381 = vunpack.c.l.b16 %v165
    %v382 = vunpack.c.h.b16 %v165
    %v383 = vunpack.c.l.b16 %v166
    %v384 = vunpack.c.h.b16 %v166
    %v385 = vunpack.c.l.b16 %v167
    %v386 = vunpack.c.h.b16 %v167
    %v387 = vunpack.c.l.b16 %v168
    %v388 = vunpack.c.h.b16 %v168
    %v389 = vunpack.c.l.b16 %v169
    %v390 = vunpack.c.h.b16 %v169
    %v391 = vunpack.c.l.b16 %v170
    %v392 = vunpack.c.h.b16 %v170
    %v393 = vunpack.c.l.b16 %v171
    %v394 = vunpack.c.h.b16 %v171
    %v395 = vunpack.c.l.b16 %v172
    %v396 = vunpack.c.h.b16 %v172
    %v397 = vunpack.c.l.b16 %v173
    %v398 = vunpack.c.h.b16 %v173
    %v399 = vunpack.c.l.b16 %v174
    %v400 = vunpack.c.h.b16 %v174
    %v401 = vunpack.c.l.b16 %v175
    %v402 = vunpack.c.h.b16 %v175
    %v403 = vunpack.c.l.b16 %v176
    %v404 = vunpack.c.h.b16 %v176
    %v405 = vunpack.c.l.b16 %v177
    %v406 = vunpack.c.h.b16 %v177
    %v407 = vunpack.c.l.b16 %v178
    %v408 = vunpack.c.h.b16 %v178
    %v409 = vunpack.c.l.b16 %v179
    %v410 = vunpack.c.h.b16 %v179
    %v411 = vunpack.c.l.b16 %v180
    %v412 = vunpack.c.h.b16 %v180
    %v413 = vunpack.c.l.b16 %v181
    %v414 = vunpack.c.h.b16 %v181
    %v415 = vunpack.c.l.b16 %v182
    %v416 = vunpack.c.h.b16 %v182
    %v417 = vpack.c.b16 %v297, %v289
    %v418 = vpack.c.b16 %v298, %v290
    %v419 = vpack.c.b16 %v299, %v291
    %v420 = vpack.c.b16 %v300, %v292
    %v421 = vpack.c.b16 %v301, %v293
    %v422 = vpack.c.b16 %v302, %v294
    %v423 = vpack.c.b16 %v303, %v295
    %v424 = vpack.c.b16 %v304, %v296
    %v425 = vpack.c.b16 %v313, %v305
    %v426 = vpack.c.b16 %v314, %v306
    %v427 = vpack.c.b16 %v315, %v307
    %v428 = vpack.c.b16 %v316, %v308
    %v429 = vpack.c.b16 %v317, %v309
    %v430 = vpack.c.b16 %v318, %v310
    %v431 = vpack.c.b16 %v319, %v311
    %v432 = vpack.c.b16 %v320, %v312
    %v433 = vpack.c.b16 %v329, %v321
    %v434 = vpack.c.b16 %v330, %v322
    %v435 = vpack.c.b16 %v331, %v323
    %v436 = vpack.c.b16 %v332, %v324
    %v437 = vpack.c.b16 %v333, %v325
    %v438 = vpack.c.b16 %v334, %v326
    %v439 = vpack.c.b16 %v335, %v327
    %v440 = vpack.c.b16 %v336, %v328
    %v441 = vpack.c.b16 %v345, %v337
    %v442 = vpack.c.b16 %v346, %v338
    %v443 = vpack.c.b16 %v347, %v339
    %v444 = vpack.c.b16 %v348, %v340
    %v445 = vpack.c.b16 %v349, %v341
    %v446 = vpack.c.b16 %v350, %v342
    %v447 = vpack.c.b16 %v351, %v343
    %v448 = vpack.c.b16 %v352, %v344
    %v449 = vpack.c.b16 %v361, %v353
    %v450 = vpack.c.b16 %v362, %v354
    %v451 = vpack.c.b16 %v363, %v355
    %v452 = vpack.c.b16 %v364, %v356
    %v453 = vpack.c.b16 %v365, %v357
    %v454 = vpack.c.b16 %v366, %v358
    %v455 = vpack.c.b16 %v367, %v359
    %v456 = vpack.c.b16 %v368, %v360
    %v457 = vpack.c.b16 %v377, %v369
    %v458 = vpack.c.b16 %v378, %v370
    %v459 = vpack.c.b16 %v379, %v371
    %v460 = vpack.c.b16 %v380, %v372
    %v461 = vpack.c.b16 %v381, %v373
    %v462 = vpack.c.b16 %v382, %v374
    %v463 = vpack.c.b16 %v383, %v375
    %v464 = vpack.c.b16 %v384, %v376
    %v465 = vpack.c.b16 %v393, %v385
    %v466 = vpack.c.b16 %v394, %v386
    %v467 = vpack.c.b16 %v395, %v387
    %v468 = vpack.c.b16 %v396, %v388
    %v469 = vpack.c.b16 %v397, %v389
    %v470 = vpack.c.b16 %v398, %v390
    %v471 = vpack.c.b16 %v399, %v391
    %v472 = vpack.c.b16 %v400, %v392
    %v473 = vpack.c.b16 %v409, %v401
    %v474 = vpack.c.b16 %v410, %v402
    %v475 = vpack.c.b16 %v411, %v403
    %v476 = vpack.c.b16 %v412, %v404
    %v477 = vpack.c.b16 %v413, %v405
    %v478 = vpack.c.b16 %v414, %v406
    %v479 = vpack.c.b16 %v415, %v407
    %v480 = vpack.c.b16 %v416, %v408
    %545 = vmatprep.subr.bf16.mxu0 %v474
    %546 = vmatpush1.bf16.msra.mxu0 %v473
    %547 = vmatprep.subr.bf16.mxu0 %v466
    %548 = vmatpush1.bf16.msra.mxu0 %v465
    %549 = vmatprep.subr.bf16.mxu0 %v458
    %550 = vmatpush1.bf16.msra.mxu0 %v457
    %551 = vmatprep.subr.bf16.mxu0 %v450
    %552 = vmatpush1.bf16.msra.mxu0 %v449
    %553 = vmatprep.subr.bf16.mxu0 %v442
    %554 = vmatpush1.bf16.msra.mxu0 %v441
    %555 = vmatprep.subr.bf16.mxu0 %v434
    %556 = vmatpush1.bf16.msra.mxu0 %v433
    %557 = vmatprep.subr.bf16.mxu0 %v426
    %558 = vmatpush1.bf16.msra.mxu0 %v425
    %559 = vmatprep.subr.bf16.mxu0 %v418
    %560 = vmatpush1.bf16.msra.mxu0 %v417
    %561 = vmatprep.subr.bf16.mxu0 0
    %562 = vmatpush2.bf16.msra.mxu0 0
    %563 = vmatprep.subr.bf16.mxu0 0
    %564 = vmatpush2.bf16.msra.mxu0 0
    %565 = vmatprep.subr.bf16.mxu0 0
    %566 = vmatpush2.bf16.msra.mxu0 0
    %567 = vmatprep.subr.bf16.mxu0 0
    %568 = vmatpush2.bf16.msra.mxu0 0
    %569 = vmatprep.subr.bf16.mxu0 0
    %570 = vmatpush2.bf16.msra.mxu0 0
    %571 = vmatprep.subr.bf16.mxu0 0
    %572 = vmatpush2.bf16.msra.mxu0 0
    %573 = vmatprep.subr.bf16.mxu0 0
    %574 = vmatpush2.bf16.msra.mxu0 0
    %575 = vmatprep.subr.bf16.mxu0 0
    %576 = vmatpush2.bf16.msra.mxu0 0
    %577 = vmatprep.mubr.bf16.mxu0 0
    %578 = vmatmul.mubr.bf16.gmra.mxu0 %v118
    %v579 = vpop.f32.mrf.mxu0
    %v580 = vadd.f32 %v188, %v579
    %v581 = vpop.f32.mrf.mxu0
    %v582 = vadd.f32 %v192, %v581
    %v583 = vpop.f32.mrf.mxu0
    %v584 = vpop.f32.mrf.mxu0
    %585 = vdwg.mxu0
    %586 = vmatprep.subr.bf16.mxu0 %v476
    %587 = vmatpush1.bf16.msra.mxu0 %v475
    %588 = vmatprep.subr.bf16.mxu0 %v468
    %589 = vmatpush1.bf16.msra.mxu0 %v467
    %590 = vmatprep.subr.bf16.mxu0 %v460
    %591 = vmatpush1.bf16.msra.mxu0 %v459
    %592 = vmatprep.subr.bf16.mxu0 %v452
    %593 = vmatpush1.bf16.msra.mxu0 %v451
    %594 = vmatprep.subr.bf16.mxu0 %v444
    %595 = vmatpush1.bf16.msra.mxu0 %v443
    %596 = vmatprep.subr.bf16.mxu0 %v436
    %597 = vmatpush1.bf16.msra.mxu0 %v435
    %598 = vmatprep.subr.bf16.mxu0 %v428
    %599 = vmatpush1.bf16.msra.mxu0 %v427
    %600 = vmatprep.subr.bf16.mxu0 %v420
    %601 = vmatpush1.bf16.msra.mxu0 %v419
    %602 = vmatprep.subr.bf16.mxu0 0
    %603 = vmatpush2.bf16.msra.mxu0 0
    %604 = vmatprep.subr.bf16.mxu0 0
    %605 = vmatpush2.bf16.msra.mxu0 0
    %606 = vmatprep.subr.bf16.mxu0 0
    %607 = vmatpush2.bf16.msra.mxu0 0
    %608 = vmatprep.subr.bf16.mxu0 0
    %609 = vmatpush2.bf16.msra.mxu0 0
    %610 = vmatprep.subr.bf16.mxu0 0
    %611 = vmatpush2.bf16.msra.mxu0 0
    %612 = vmatprep.subr.bf16.mxu0 0
    %613 = vmatpush2.bf16.msra.mxu0 0
    %614 = vmatprep.subr.bf16.mxu0 0
    %615 = vmatpush2.bf16.msra.mxu0 0
    %616 = vmatprep.subr.bf16.mxu0 0
    %617 = vmatpush2.bf16.msra.mxu0 0
    %618 = vmatprep.mubr.bf16.mxu0 0
    %619 = vmatmul.mubr.bf16.gmra.mxu0 %v118
    %v620 = vpop.f32.mrf.mxu0
    %v621 = vadd.f32 %v196, %v620
    %v622 = vpop.f32.mrf.mxu0
    %v623 = vadd.f32 %v200, %v622
    %v624 = vpop.f32.mrf.mxu0
    %v625 = vpop.f32.mrf.mxu0
    %626 = vdwg.mxu0
    %627 = vmatprep.subr.bf16.mxu0 %v478
    %628 = vmatpush1.bf16.msra.mxu0 %v477
    %629 = vmatprep.subr.bf16.mxu0 %v470
    %630 = vmatpush1.bf16.msra.mxu0 %v469
    %631 = vmatprep.subr.bf16.mxu0 %v462
    %632 = vmatpush1.bf16.msra.mxu0 %v461
    %633 = vmatprep.subr.bf16.mxu0 %v454
    %634 = vmatpush1.bf16.msra.mxu0 %v453
    %635 = vmatprep.subr.bf16.mxu0 %v446
    %636 = vmatpush1.bf16.msra.mxu0 %v445
    %637 = vmatprep.subr.bf16.mxu0 %v438
    %638 = vmatpush1.bf16.msra.mxu0 %v437
    %639 = vmatprep.subr.bf16.mxu0 %v430
    %640 = vmatpush1.bf16.msra.mxu0 %v429
    %641 = vmatprep.subr.bf16.mxu0 %v422
    %642 = vmatpush1.bf16.msra.mxu0 %v421
    %643 = vmatprep.subr.bf16.mxu0 0
    %644 = vmatpush2.bf16.msra.mxu0 0
    %645 = vmatprep.subr.bf16.mxu0 0
    %646 = vmatpush2.bf16.msra.mxu0 0
    %647 = vmatprep.subr.bf16.mxu0 0
    %648 = vmatpush2.bf16.msra.mxu0 0
    %649 = vmatprep.subr.bf16.mxu0 0
    %650 = vmatpush2.bf16.msra.mxu0 0
    %651 = vmatprep.subr.bf16.mxu0 0
    %652 = vmatpush2.bf16.msra.mxu0 0
    %653 = vmatprep.subr.bf16.mxu0 0
    %654 = vmatpush2.bf16.msra.mxu0 0
    %655 = vmatprep.subr.bf16.mxu0 0
    %656 = vmatpush2.bf16.msra.mxu0 0
    %657 = vmatprep.subr.bf16.mxu0 0
    %658 = vmatpush2.bf16.msra.mxu0 0
    %659 = vmatprep.mubr.bf16.mxu0 0
    %660 = vmatmul.mubr.bf16.gmra.mxu0 %v118
    %v661 = vpop.f32.mrf.mxu0
    %v662 = vadd.f32 %v204, %v661
    %v663 = vpop.f32.mrf.mxu0
    %v664 = vadd.f32 %v208, %v663
    %v665 = vpop.f32.mrf.mxu0
    %v666 = vpop.f32.mrf.mxu0
    %667 = vdwg.mxu0
    %668 = vmatprep.subr.bf16.mxu0 %v480
    %669 = vmatpush1.bf16.msra.mxu0 %v479
    %670 = vmatprep.subr.bf16.mxu0 %v472
    %671 = vmatpush1.bf16.msra.mxu0 %v471
    %672 = vmatprep.subr.bf16.mxu0 %v464
    %673 = vmatpush1.bf16.msra.mxu0 %v463
    %674 = vmatprep.subr.bf16.mxu0 %v456
    %675 = vmatpush1.bf16.msra.mxu0 %v455
    %676 = vmatprep.subr.bf16.mxu0 %v448
    %677 = vmatpush1.bf16.msra.mxu0 %v447
    %678 = vmatprep.subr.bf16.mxu0 %v440
    %679 = vmatpush1.bf16.msra.mxu0 %v439
    %680 = vmatprep.subr.bf16.mxu0 %v432
    %681 = vmatpush1.bf16.msra.mxu0 %v431
    %682 = vmatprep.subr.bf16.mxu0 %v424
    %683 = vmatpush1.bf16.msra.mxu0 %v423
    %684 = vmatprep.subr.bf16.mxu0 0
    %685 = vmatpush2.bf16.msra.mxu0 0
    %686 = vmatprep.subr.bf16.mxu0 0
    %687 = vmatpush2.bf16.msra.mxu0 0
    %688 = vmatprep.subr.bf16.mxu0 0
    %689 = vmatpush2.bf16.msra.mxu0 0
    %690 = vmatprep.subr.bf16.mxu0 0
    %691 = vmatpush2.bf16.msra.mxu0 0
    %692 = vmatprep.subr.bf16.mxu0 0
    %693 = vmatpush2.bf16.msra.mxu0 0
    %694 = vmatprep.subr.bf16.mxu0 0
    %695 = vmatpush2.bf16.msra.mxu0 0
    %696 = vmatprep.subr.bf16.mxu0 0
    %697 = vmatpush2.bf16.msra.mxu0 0
    %698 = vmatprep.subr.bf16.mxu0 0
    %699 = vmatpush2.bf16.msra.mxu0 0
    %700 = vmatprep.mubr.bf16.mxu0 0
    %701 = vmatmul.mubr.bf16.gmra.mxu0 %v118
    %v702 = vpop.f32.mrf.mxu0
    %v703 = vadd.f32 %v212, %v702
    %v704 = vpop.f32.mrf.mxu0
    %v705 = vadd.f32 %v216, %v704
    %v706 = vpop.f32.mrf.mxu0
    %v707 = vpop.f32.mrf.mxu0
    %708 = vdwg.mxu0
    %v717 = vcombine.low %v580, %v582
    %v718 = vcombine.low %v621, %v623
    %v720 = vunpack.c.l.s4 1983009808
    %v721 = vunpack.c.0.s8 %v720
    %v722 = vlaneseq
    %v723 = vshrl.u32 %v722, 7
    %v724 = vsub.s32 %v721, %v723
    %v725 = vrot.slane %v717, %v724
    %v727 = vunpack.c.l.s4 1983009808
    %v728 = vunpack.c.0.s8 %v727
    %v729 = vlaneseq
    %v730 = vshrl.u32 %v729, 7
    %v731 = vsub.s32 %v728, %v730
    %v732 = vrot.slane %v718, %v731
    %v733 = vcombine.low %v725, %v732
    %v734 = vcombine.high %v725, %v732
    %v735 = vcombine.low %v662, %v664
    %v736 = vcombine.low %v703, %v705
    %v738 = vunpack.c.l.s4 1983009808
    %v739 = vunpack.c.0.s8 %v738
    %v740 = vlaneseq
    %v741 = vshrl.u32 %v740, 7
    %v742 = vsub.s32 %v739, %v741
    %v743 = vrot.slane %v735, %v742
    %v745 = vunpack.c.l.s4 1983009808
    %v746 = vunpack.c.0.s8 %v745
    %v747 = vlaneseq
    %v748 = vshrl.u32 %v747, 7
    %v749 = vsub.s32 %v746, %v748
    %v750 = vrot.slane %v736, %v749
    %v751 = vcombine.low %v743, %v750
    %v752 = vcombine.high %v743, %v750
    %757 = vst [vmem:[#allocation2] sm:$0xff] %v733
    %758 = vst [vmem:[#allocation2 + $0x8] sm:$0xff] %v751
    %759 = vst [vmem:[#allocation2 + $0x10] sm:$0xff] %v734
    %760 = vst [vmem:[#allocation2 + $0x18] sm:$0xff] %v752
    %v761 = vld [vmem:[#allocation9] sm:$0xff]
    %v762 = vld [vmem:[#allocation9 + $0x8] sm:$0xff]
    %v763 = vld [vmem:[#allocation9 + $0x10] sm:$0xff]
    %v764 = vld [vmem:[#allocation9 + $0x18] sm:$0xff]
    %v765 = vld [vmem:[#allocation9 + $0x20] sm:$0xff]
    %v766 = vld [vmem:[#allocation9 + $0x28] sm:$0xff]
    %v767 = vld [vmem:[#allocation9 + $0x30] sm:$0xff]
    %v768 = vld [vmem:[#allocation9 + $0x38] sm:$0xff]
    %v769 = vld [vmem:[#allocation9 + $0x40] sm:$0xff]
    %v770 = vld [vmem:[#allocation9 + $0x48] sm:$0xff]
    %v771 = vld [vmem:[#allocation9 + $0x50] sm:$0xff]
    %v772 = vld [vmem:[#allocation9 + $0x58] sm:$0xff]
    %v773 = vld [vmem:[#allocation9 + $0x60] sm:$0xff]
    %v774 = vld [vmem:[#allocation9 + $0x68] sm:$0xff]
    %v775 = vld [vmem:[#allocation9 + $0x70] sm:$0xff]
    %v776 = vld [vmem:[#allocation9 + $0x78] sm:$0xff]
    %v777 = vld [vmem:[#allocation9 + $0x80] sm:$0xff]
    %v778 = vld [vmem:[#allocation9 + $0x88] sm:$0xff]
    %v779 = vld [vmem:[#allocation9 + $0x90] sm:$0xff]
    %v780 = vld [vmem:[#allocation9 + $0x98] sm:$0xff]
    %v781 = vld [vmem:[#allocation9 + $0xa0] sm:$0xff]
    %v782 = vld [vmem:[#allocation9 + $0xa8] sm:$0xff]
    %v783 = vld [vmem:[#allocation9 + $0xb0] sm:$0xff]
    %v784 = vld [vmem:[#allocation9 + $0xb8] sm:$0xff]
    %v785 = vld [vmem:[#allocation9 + $0xc0] sm:$0xff]
    %v786 = vld [vmem:[#allocation9 + $0xc8] sm:$0xff]
    %v787 = vld [vmem:[#allocation9 + $0xd0] sm:$0xff]
    %v788 = vld [vmem:[#allocation9 + $0xd8] sm:$0xff]
    %v789 = vld [vmem:[#allocation9 + $0xe0] sm:$0xff]
    %v790 = vld [vmem:[#allocation9 + $0xe8] sm:$0xff]
    %v791 = vld [vmem:[#allocation9 + $0xf0] sm:$0xff]
    %v792 = vld [vmem:[#allocation9 + $0xf8] sm:$0xff]
    %v793 = vld [vmem:[#allocation9 + $0x100] sm:$0xff]
    %v794 = vld [vmem:[#allocation9 + $0x108] sm:$0xff]
    %v795 = vld [vmem:[#allocation9 + $0x110] sm:$0xff]
    %v796 = vld [vmem:[#allocation9 + $0x118] sm:$0xff]
    %v797 = vld [vmem:[#allocation9 + $0x120] sm:$0xff]
    %v798 = vld [vmem:[#allocation9 + $0x128] sm:$0xff]
    %v799 = vld [vmem:[#allocation9 + $0x130] sm:$0xff]
    %v800 = vld [vmem:[#allocation9 + $0x138] sm:$0xff]
    %v801 = vld [vmem:[#allocation9 + $0x140] sm:$0xff]
    %v802 = vld [vmem:[#allocation9 + $0x148] sm:$0xff]
    %v803 = vld [vmem:[#allocation9 + $0x150] sm:$0xff]
    %v804 = vld [vmem:[#allocation9 + $0x158] sm:$0xff]
    %v805 = vld [vmem:[#allocation9 + $0x160] sm:$0xff]
    %v806 = vld [vmem:[#allocation9 + $0x168] sm:$0xff]
    %v807 = vld [vmem:[#allocation9 + $0x170] sm:$0xff]
    %v808 = vld [vmem:[#allocation9 + $0x178] sm:$0xff]
    %v809 = vld [vmem:[#allocation9 + $0x180] sm:$0xff]
    %v810 = vld [vmem:[#allocation9 + $0x188] sm:$0xff]
    %v811 = vld [vmem:[#allocation9 + $0x190] sm:$0xff]
    %v812 = vld [vmem:[#allocation9 + $0x198] sm:$0xff]
    %v813 = vld [vmem:[#allocation9 + $0x1a0] sm:$0xff]
    %v814 = vld [vmem:[#allocation9 + $0x1a8] sm:$0xff]
    %v815 = vld [vmem:[#allocation9 + $0x1b0] sm:$0xff]
    %v816 = vld [vmem:[#allocation9 + $0x1b8] sm:$0xff]
    %v817 = vld [vmem:[#allocation9 + $0x1c0] sm:$0xff]
    %v818 = vld [vmem:[#allocation9 + $0x1c8] sm:$0xff]
    %v819 = vld [vmem:[#allocation9 + $0x1d0] sm:$0xff]
    %v820 = vld [vmem:[#allocation9 + $0x1d8] sm:$0xff]
    %v821 = vld [vmem:[#allocation9 + $0x1e0] sm:$0xff]
    %v822 = vld [vmem:[#allocation9 + $0x1e8] sm:$0xff]
    %v823 = vld [vmem:[#allocation9 + $0x1f0] sm:$0xff]
    %v824 = vld [vmem:[#allocation9 + $0x1f8] sm:$0xff]
    %v825 = vld [vmem:[#allocation12] sm:$0xff]
    %v827 = vlaneseq
    %v828 = vshrl.u32 %v827, 7
    %v829 = vsub.s32 0, %v828
    %v830 = vrot.slane %v825, %v829
    %v831 = vlaneseq
    %v832 = vshrl.u32 %v831, 7
    %v833 = vsub.s32 1, %v832
    %v834 = vrot.slane %v825, %v833
    %v835 = vlaneseq
    %v836 = vshrl.u32 %v835, 7
    %v837 = vsub.s32 2, %v836
    %v838 = vrot.slane %v825, %v837
    %v839 = vlaneseq
    %v840 = vshrl.u32 %v839, 7
    %v841 = vsub.s32 3, %v840
    %v842 = vrot.slane %v825, %v841
    %v843 = vlaneseq
    %v844 = vshrl.u32 %v843, 7
    %v845 = vsub.s32 4, %v844
    %v846 = vrot.slane %v825, %v845
    %v847 = vlaneseq
    %v848 = vshrl.u32 %v847, 7
    %v849 = vsub.s32 5, %v848
    %v850 = vrot.slane %v825, %v849
    %v851 = vlaneseq
    %v852 = vshrl.u32 %v851, 7
    %v853 = vsub.s32 6, %v852
    %v854 = vrot.slane %v825, %v853
    %v855 = vlaneseq
    %v856 = vshrl.u32 %v855, 7
    %v857 = vsub.s32 7, %v856
    %v858 = vrot.slane %v825, %v857
    %v931 = vunpack.c.l.b16 %v761
    %v932 = vunpack.c.h.b16 %v761
    %v933 = vunpack.c.l.b16 %v762
    %v934 = vunpack.c.h.b16 %v762
    %v935 = vunpack.c.l.b16 %v763
    %v936 = vunpack.c.h.b16 %v763
    %v937 = vunpack.c.l.b16 %v764
    %v938 = vunpack.c.h.b16 %v764
    %v939 = vunpack.c.l.b16 %v765
    %v940 = vunpack.c.h.b16 %v765
    %v941 = vunpack.c.l.b16 %v766
    %v942 = vunpack.c.h.b16 %v766
    %v943 = vunpack.c.l.b16 %v767
    %v944 = vunpack.c.h.b16 %v767
    %v945 = vunpack.c.l.b16 %v768
    %v946 = vunpack.c.h.b16 %v768
    %v947 = vunpack.c.l.b16 %v769
    %v948 = vunpack.c.h.b16 %v769
    %v949 = vunpack.c.l.b16 %v770
    %v950 = vunpack.c.h.b16 %v770
    %v951 = vunpack.c.l.b16 %v771
    %v952 = vunpack.c.h.b16 %v771
    %v953 = vunpack.c.l.b16 %v772
    %v954 = vunpack.c.h.b16 %v772
    %v955 = vunpack.c.l.b16 %v773
    %v956 = vunpack.c.h.b16 %v773
    %v957 = vunpack.c.l.b16 %v774
    %v958 = vunpack.c.h.b16 %v774
    %v959 = vunpack.c.l.b16 %v775
    %v960 = vunpack.c.h.b16 %v775
    %v961 = vunpack.c.l.b16 %v776
    %v962 = vunpack.c.h.b16 %v776
    %v963 = vunpack.c.l.b16 %v777
    %v964 = vunpack.c.h.b16 %v777
    %v965 = vunpack.c.l.b16 %v778
    %v966 = vunpack.c.h.b16 %v778
    %v967 = vunpack.c.l.b16 %v779
    %v968 = vunpack.c.h.b16 %v779
    %v969 = vunpack.c.l.b16 %v780
    %v970 = vunpack.c.h.b16 %v780
    %v971 = vunpack.c.l.b16 %v781
    %v972 = vunpack.c.h.b16 %v781
    %v973 = vunpack.c.l.b16 %v782
    %v974 = vunpack.c.h.b16 %v782
    %v975 = vunpack.c.l.b16 %v783
    %v976 = vunpack.c.h.b16 %v783
    %v977 = vunpack.c.l.b16 %v784
    %v978 = vunpack.c.h.b16 %v784
    %v979 = vunpack.c.l.b16 %v785
    %v980 = vunpack.c.h.b16 %v785
    %v981 = vunpack.c.l.b16 %v786
    %v982 = vunpack.c.h.b16 %v786
    %v983 = vunpack.c.l.b16 %v787
    %v984 = vunpack.c.h.b16 %v787
    %v985 = vunpack.c.l.b16 %v788
    %v986 = vunpack.c.h.b16 %v788
    %v987 = vunpack.c.l.b16 %v789
    %v988 = vunpack.c.h.b16 %v789
    %v989 = vunpack.c.l.b16 %v790
    %v990 = vunpack.c.h.b16 %v790
    %v991 = vunpack.c.l.b16 %v791
    %v992 = vunpack.c.h.b16 %v791
    %v993 = vunpack.c.l.b16 %v792
    %v994 = vunpack.c.h.b16 %v792
    %v995 = vunpack.c.l.b16 %v793
    %v996 = vunpack.c.h.b16 %v793
    %v997 = vunpack.c.l.b16 %v794
    %v998 = vunpack.c.h.b16 %v794
    %v999 = vunpack.c.l.b16 %v795
    %v1000 = vunpack.c.h.b16 %v795
    %v1001 = vunpack.c.l.b16 %v796
    %v1002 = vunpack.c.h.b16 %v796
    %v1003 = vunpack.c.l.b16 %v797
    %v1004 = vunpack.c.h.b16 %v797
    %v1005 = vunpack.c.l.b16 %v798
    %v1006 = vunpack.c.h.b16 %v798
    %v1007 = vunpack.c.l.b16 %v799
    %v1008 = vunpack.c.h.b16 %v799
    %v1009 = vunpack.c.l.b16 %v800
    %v1010 = vunpack.c.h.b16 %v800
    %v1011 = vunpack.c.l.b16 %v801
    %v1012 = vunpack.c.h.b16 %v801
    %v1013 = vunpack.c.l.b16 %v802
    %v1014 = vunpack.c.h.b16 %v802
    %v1015 = vunpack.c.l.b16 %v803
    %v1016 = vunpack.c.h.b16 %v803
    %v1017 = vunpack.c.l.b16 %v804
    %v1018 = vunpack.c.h.b16 %v804
    %v1019 = vunpack.c.l.b16 %v805
    %v1020 = vunpack.c.h.b16 %v805
    %v1021 = vunpack.c.l.b16 %v806
    %v1022 = vunpack.c.h.b16 %v806
    %v1023 = vunpack.c.l.b16 %v807
    %v1024 = vunpack.c.h.b16 %v807
    %v1025 = vunpack.c.l.b16 %v808
    %v1026 = vunpack.c.h.b16 %v808
    %v1027 = vunpack.c.l.b16 %v809
    %v1028 = vunpack.c.h.b16 %v809
    %v1029 = vunpack.c.l.b16 %v810
    %v1030 = vunpack.c.h.b16 %v810
    %v1031 = vunpack.c.l.b16 %v811
    %v1032 = vunpack.c.h.b16 %v811
    %v1033 = vunpack.c.l.b16 %v812
    %v1034 = vunpack.c.h.b16 %v812
    %v1035 = vunpack.c.l.b16 %v813
    %v1036 = vunpack.c.h.b16 %v813
    %v1037 = vunpack.c.l.b16 %v814
    %v1038 = vunpack.c.h.b16 %v814
    %v1039 = vunpack.c.l.b16 %v815
    %v1040 = vunpack.c.h.b16 %v815
    %v1041 = vunpack.c.l.b16 %v816
    %v1042 = vunpack.c.h.b16 %v816
    %v1043 = vunpack.c.l.b16 %v817
    %v1044 = vunpack.c.h.b16 %v817
    %v1045 = vunpack.c.l.b16 %v818
    %v1046 = vunpack.c.h.b16 %v818
    %v1047 = vunpack.c.l.b16 %v819
    %v1048 = vunpack.c.h.b16 %v819
    %v1049 = vunpack.c.l.b16 %v820
    %v1050 = vunpack.c.h.b16 %v820
    %v1051 = vunpack.c.l.b16 %v821
    %v1052 = vunpack.c.h.b16 %v821
    %v1053 = vunpack.c.l.b16 %v822
    %v1054 = vunpack.c.h.b16 %v822
    %v1055 = vunpack.c.l.b16 %v823
    %v1056 = vunpack.c.h.b16 %v823
    %v1057 = vunpack.c.l.b16 %v824
    %v1058 = vunpack.c.h.b16 %v824
    %v1059 = vpack.c.b16 %v939, %v931
    %v1060 = vpack.c.b16 %v940, %v932
    %v1061 = vpack.c.b16 %v941, %v933
    %v1062 = vpack.c.b16 %v942, %v934
    %v1063 = vpack.c.b16 %v943, %v935
    %v1064 = vpack.c.b16 %v944, %v936
    %v1065 = vpack.c.b16 %v945, %v937
    %v1066 = vpack.c.b16 %v946, %v938
    %v1067 = vpack.c.b16 %v955, %v947
    %v1068 = vpack.c.b16 %v956, %v948
    %v1069 = vpack.c.b16 %v957, %v949
    %v1070 = vpack.c.b16 %v958, %v950
    %v1071 = vpack.c.b16 %v959, %v951
    %v1072 = vpack.c.b16 %v960, %v952
    %v1073 = vpack.c.b16 %v961, %v953
    %v1074 = vpack.c.b16 %v962, %v954
    %v1075 = vpack.c.b16 %v971, %v963
    %v1076 = vpack.c.b16 %v972, %v964
    %v1077 = vpack.c.b16 %v973, %v965
    %v1078 = vpack.c.b16 %v974, %v966
    %v1079 = vpack.c.b16 %v975, %v967
    %v1080 = vpack.c.b16 %v976, %v968
    %v1081 = vpack.c.b16 %v977, %v969
    %v1082 = vpack.c.b16 %v978, %v970
    %v1083 = vpack.c.b16 %v987, %v979
    %v1084 = vpack.c.b16 %v988, %v980
    %v1085 = vpack.c.b16 %v989, %v981
    %v1086 = vpack.c.b16 %v990, %v982
    %v1087 = vpack.c.b16 %v991, %v983
    %v1088 = vpack.c.b16 %v992, %v984
    %v1089 = vpack.c.b16 %v993, %v985
    %v1090 = vpack.c.b16 %v994, %v986
    %v1091 = vpack.c.b16 %v1003, %v995
    %v1092 = vpack.c.b16 %v1004, %v996
    %v1093 = vpack.c.b16 %v1005, %v997
    %v1094 = vpack.c.b16 %v1006, %v998
    %v1095 = vpack.c.b16 %v1007, %v999
    %v1096 = vpack.c.b16 %v1008, %v1000
    %v1097 = vpack.c.b16 %v1009, %v1001
    %v1098 = vpack.c.b16 %v1010, %v1002
    %v1099 = vpack.c.b16 %v1019, %v1011
    %v1100 = vpack.c.b16 %v1020, %v1012
    %v1101 = vpack.c.b16 %v1021, %v1013
    %v1102 = vpack.c.b16 %v1022, %v1014
    %v1103 = vpack.c.b16 %v1023, %v1015
    %v1104 = vpack.c.b16 %v1024, %v1016
    %v1105 = vpack.c.b16 %v1025, %v1017
    %v1106 = vpack.c.b16 %v1026, %v1018
    %v1107 = vpack.c.b16 %v1035, %v1027
    %v1108 = vpack.c.b16 %v1036, %v1028
    %v1109 = vpack.c.b16 %v1037, %v1029
    %v1110 = vpack.c.b16 %v1038, %v1030
    %v1111 = vpack.c.b16 %v1039, %v1031
    %v1112 = vpack.c.b16 %v1040, %v1032
    %v1113 = vpack.c.b16 %v1041, %v1033
    %v1114 = vpack.c.b16 %v1042, %v1034
    %v1115 = vpack.c.b16 %v1051, %v1043
    %v1116 = vpack.c.b16 %v1052, %v1044
    %v1117 = vpack.c.b16 %v1053, %v1045
    %v1118 = vpack.c.b16 %v1054, %v1046
    %v1119 = vpack.c.b16 %v1055, %v1047
    %v1120 = vpack.c.b16 %v1056, %v1048
    %v1121 = vpack.c.b16 %v1057, %v1049
    %v1122 = vpack.c.b16 %v1058, %v1050
    %1187 = vmatprep.subr.bf16.mxu0 %v1116
    %1188 = vmatpush1.bf16.msra.mxu0 %v1115
    %1189 = vmatprep.subr.bf16.mxu0 %v1108
    %1190 = vmatpush1.bf16.msra.mxu0 %v1107
    %1191 = vmatprep.subr.bf16.mxu0 %v1100
    %1192 = vmatpush1.bf16.msra.mxu0 %v1099
    %1193 = vmatprep.subr.bf16.mxu0 %v1092
    %1194 = vmatpush1.bf16.msra.mxu0 %v1091
    %1195 = vmatprep.subr.bf16.mxu0 %v1084
    %1196 = vmatpush1.bf16.msra.mxu0 %v1083
    %1197 = vmatprep.subr.bf16.mxu0 %v1076
    %1198 = vmatpush1.bf16.msra.mxu0 %v1075
    %1199 = vmatprep.subr.bf16.mxu0 %v1068
    %1200 = vmatpush1.bf16.msra.mxu0 %v1067
    %1201 = vmatprep.subr.bf16.mxu0 %v1060
    %1202 = vmatpush1.bf16.msra.mxu0 %v1059
    %1203 = vmatprep.subr.bf16.mxu0 0
    %1204 = vmatpush2.bf16.msra.mxu0 0
    %1205 = vmatprep.subr.bf16.mxu0 0
    %1206 = vmatpush2.bf16.msra.mxu0 0
    %1207 = vmatprep.subr.bf16.mxu0 0
    %1208 = vmatpush2.bf16.msra.mxu0 0
    %1209 = vmatprep.subr.bf16.mxu0 0
    %1210 = vmatpush2.bf16.msra.mxu0 0
    %1211 = vmatprep.subr.bf16.mxu0 0
    %1212 = vmatpush2.bf16.msra.mxu0 0
    %1213 = vmatprep.subr.bf16.mxu0 0
    %1214 = vmatpush2.bf16.msra.mxu0 0
    %1215 = vmatprep.subr.bf16.mxu0 0
    %1216 = vmatpush2.bf16.msra.mxu0 0
    %1217 = vmatprep.subr.bf16.mxu0 0
    %1218 = vmatpush2.bf16.msra.mxu0 0
    %1219 = vmatprep.mubr.bf16.mxu0 0
    %1220 = vmatmul.mubr.bf16.gmra.mxu0 %v118
    %v1221 = vpop.f32.mrf.mxu0
    %v1222 = vadd.f32 %v830, %v1221
    %v1223 = vpop.f32.mrf.mxu0
    %v1224 = vadd.f32 %v834, %v1223
    %v1225 = vpop.f32.mrf.mxu0
    %v1226 = vpop.f32.mrf.mxu0
    %1227 = vdwg.mxu0
    %1228 = vmatprep.subr.bf16.mxu0 %v1118
    %1229 = vmatpush1.bf16.msra.mxu0 %v1117
    %1230 = vmatprep.subr.bf16.mxu0 %v1110
    %1231 = vmatpush1.bf16.msra.mxu0 %v1109
    %1232 = vmatprep.subr.bf16.mxu0 %v1102
    %1233 = vmatpush1.bf16.msra.mxu0 %v1101
    %1234 = vmatprep.subr.bf16.mxu0 %v1094
    %1235 = vmatpush1.bf16.msra.mxu0 %v1093
    %1236 = vmatprep.subr.bf16.mxu0 %v1086
    %1237 = vmatpush1.bf16.msra.mxu0 %v1085
    %1238 = vmatprep.subr.bf16.mxu0 %v1078
    %1239 = vmatpush1.bf16.msra.mxu0 %v1077
    %1240 = vmatprep.subr.bf16.mxu0 %v1070
    %1241 = vmatpush1.bf16.msra.mxu0 %v1069
    %1242 = vmatprep.subr.bf16.mxu0 %v1062
    %1243 = vmatpush1.bf16.msra.mxu0 %v1061
    %1244 = vmatprep.subr.bf16.mxu0 0
    %1245 = vmatpush2.bf16.msra.mxu0 0
    %1246 = vmatprep.subr.bf16.mxu0 0
    %1247 = vmatpush2.bf16.msra.mxu0 0
    %1248 = vmatprep.subr.bf16.mxu0 0
    %1249 = vmatpush2.bf16.msra.mxu0 0
    %1250 = vmatprep.subr.bf16.mxu0 0
    %1251 = vmatpush2.bf16.msra.mxu0 0
    %1252 = vmatprep.subr.bf16.mxu0 0
    %1253 = vmatpush2.bf16.msra.mxu0 0
    %1254 = vmatprep.subr.bf16.mxu0 0
    %1255 = vmatpush2.bf16.msra.mxu0 0
    %1256 = vmatprep.subr.bf16.mxu0 0
    %1257 = vmatpush2.bf16.msra.mxu0 0
    %1258 = vmatprep.subr.bf16.mxu0 0
    %1259 = vmatpush2.bf16.msra.mxu0 0
    %1260 = vmatprep.mubr.bf16.mxu0 0
    %1261 = vmatmul.mubr.bf16.gmra.mxu0 %v118
    %v1262 = vpop.f32.mrf.mxu0
    %v1263 = vadd.f32 %v838, %v1262
    %v1264 = vpop.f32.mrf.mxu0
    %v1265 = vadd.f32 %v842, %v1264
    %v1266 = vpop.f32.mrf.mxu0
    %v1267 = vpop.f32.mrf.mxu0
    %1268 = vdwg.mxu0
    %1269 = vmatprep.subr.bf16.mxu0 %v1120
    %1270 = vmatpush1.bf16.msra.mxu0 %v1119
    %1271 = vmatprep.subr.bf16.mxu0 %v1112
    %1272 = vmatpush1.bf16.msra.mxu0 %v1111
    %1273 = vmatprep.subr.bf16.mxu0 %v1104
    %1274 = vmatpush1.bf16.msra.mxu0 %v1103
    %1275 = vmatprep.subr.bf16.mxu0 %v1096
    %1276 = vmatpush1.bf16.msra.mxu0 %v1095
    %1277 = vmatprep.subr.bf16.mxu0 %v1088
    %1278 = vmatpush1.bf16.msra.mxu0 %v1087
    %1279 = vmatprep.subr.bf16.mxu0 %v1080
    %1280 = vmatpush1.bf16.msra.mxu0 %v1079
    %1281 = vmatprep.subr.bf16.mxu0 %v1072
    %1282 = vmatpush1.bf16.msra.mxu0 %v1071
    %1283 = vmatprep.subr.bf16.mxu0 %v1064
    %1284 = vmatpush1.bf16.msra.mxu0 %v1063
    %1285 = vmatprep.subr.bf16.mxu0 0
    %1286 = vmatpush2.bf16.msra.mxu0 0
    %1287 = vmatprep.subr.bf16.mxu0 0
    %1288 = vmatpush2.bf16.msra.mxu0 0
    %1289 = vmatprep.subr.bf16.mxu0 0
    %1290 = vmatpush2.bf16.msra.mxu0 0
    %1291 = vmatprep.subr.bf16.mxu0 0
    %1292 = vmatpush2.bf16.msra.mxu0 0
    %1293 = vmatprep.subr.bf16.mxu0 0
    %1294 = vmatpush2.bf16.msra.mxu0 0
    %1295 = vmatprep.subr.bf16.mxu0 0
    %1296 = vmatpush2.bf16.msra.mxu0 0
    %1297 = vmatprep.subr.bf16.mxu0 0
    %1298 = vmatpush2.bf16.msra.mxu0 0
    %1299 = vmatprep.subr.bf16.mxu0 0
    %1300 = vmatpush2.bf16.msra.mxu0 0
    %1301 = vmatprep.mubr.bf16.mxu0 0
    %1302 = vmatmul.mubr.bf16.gmra.mxu0 %v118
    %v1303 = vpop.f32.mrf.mxu0
    %v1304 = vadd.f32 %v846, %v1303
    %v1305 = vpop.f32.mrf.mxu0
    %v1306 = vadd.f32 %v850, %v1305
    %v1307 = vpop.f32.mrf.mxu0
    %v1308 = vpop.f32.mrf.mxu0
    %1309 = vdwg.mxu0
    %1310 = vmatprep.subr.bf16.mxu0 %v1122
    %1311 = vmatpush1.bf16.msra.mxu0 %v1121
    %1312 = vmatprep.subr.bf16.mxu0 %v1114
    %1313 = vmatpush1.bf16.msra.mxu0 %v1113
    %1314 = vmatprep.subr.bf16.mxu0 %v1106
    %1315 = vmatpush1.bf16.msra.mxu0 %v1105
    %1316 = vmatprep.subr.bf16.mxu0 %v1098
    %1317 = vmatpush1.bf16.msra.mxu0 %v1097
    %1318 = vmatprep.subr.bf16.mxu0 %v1090
    %1319 = vmatpush1.bf16.msra.mxu0 %v1089
    %1320 = vmatprep.subr.bf16.mxu0 %v1082
    %1321 = vmatpush1.bf16.msra.mxu0 %v1081
    %1322 = vmatprep.subr.bf16.mxu0 %v1074
    %1323 = vmatpush1.bf16.msra.mxu0 %v1073
    %1324 = vmatprep.subr.bf16.mxu0 %v1066
    %1325 = vmatpush1.bf16.msra.mxu0 %v1065
    %1326 = vmatprep.subr.bf16.mxu0 0
    %1327 = vmatpush2.bf16.msra.mxu0 0
    %1328 = vmatprep.subr.bf16.mxu0 0
    %1329 = vmatpush2.bf16.msra.mxu0 0
    %1330 = vmatprep.subr.bf16.mxu0 0
    %1331 = vmatpush2.bf16.msra.mxu0 0
    %1332 = vmatprep.subr.bf16.mxu0 0
    %1333 = vmatpush2.bf16.msra.mxu0 0
    %1334 = vmatprep.subr.bf16.mxu0 0
    %1335 = vmatpush2.bf16.msra.mxu0 0
    %1336 = vmatprep.subr.bf16.mxu0 0
    %1337 = vmatpush2.bf16.msra.mxu0 0
    %1338 = vmatprep.subr.bf16.mxu0 0
    %1339 = vmatpush2.bf16.msra.mxu0 0
    %1340 = vmatprep.subr.bf16.mxu0 0
    %1341 = vmatpush2.bf16.msra.mxu0 0
    %1342 = vmatprep.mubr.bf16.mxu0 0
    %1343 = vmatmul.mubr.bf16.gmra.mxu0 %v118
    %v1344 = vpop.f32.mrf.mxu0
    %v1345 = vadd.f32 %v854, %v1344
    %v1346 = vpop.f32.mrf.mxu0
    %v1347 = vadd.f32 %v858, %v1346
    %v1348 = vpop.f32.mrf.mxu0
    %v1349 = vpop.f32.mrf.mxu0
    %1350 = vdwg.mxu0
    %v1359 = vcombine.low %v1222, %v1224
    %v1360 = vcombine.low %v1263, %v1265
    %v1362 = vunpack.c.l.s4 1983009808
    %v1363 = vunpack.c.0.s8 %v1362
    %v1364 = vlaneseq
    %v1365 = vshrl.u32 %v1364, 7
    %v1366 = vsub.s32 %v1363, %v1365
    %v1367 = vrot.slane %v1359, %v1366
    %v1369 = vunpack.c.l.s4 1983009808
    %v1370 = vunpack.c.0.s8 %v1369
    %v1371 = vlaneseq
    %v1372 = vshrl.u32 %v1371, 7
    %v1373 = vsub.s32 %v1370, %v1372
    %v1374 = vrot.slane %v1360, %v1373
    %v1375 = vcombine.low %v1367, %v1374
    %v1376 = vcombine.high %v1367, %v1374
    %v1377 = vcombine.low %v1304, %v1306
    %v1378 = vcombine.low %v1345, %v1347
    %v1380 = vunpack.c.l.s4 1983009808
    %v1381 = vunpack.c.0.s8 %v1380
    %v1382 = vlaneseq
    %v1383 = vshrl.u32 %v1382, 7
    %v1384 = vsub.s32 %v1381, %v1383
    %v1385 = vrot.slane %v1377, %v1384
    %v1387 = vunpack.c.l.s4 1983009808
    %v1388 = vunpack.c.0.s8 %v1387
    %v1389 = vlaneseq
    %v1390 = vshrl.u32 %v1389, 7
    %v1391 = vsub.s32 %v1388, %v1390
    %v1392 = vrot.slane %v1378, %v1391
    %v1393 = vcombine.low %v1385, %v1392
    %v1394 = vcombine.high %v1385, %v1392
    %1399 = vst [vmem:[#allocation3] sm:$0xff] %v1375
    %1400 = vst [vmem:[#allocation3 + $0x8] sm:$0xff] %v1393
    %1401 = vst [vmem:[#allocation3 + $0x10] sm:$0xff] %v1376
    %1402 = vst [vmem:[#allocation3 + $0x18] sm:$0xff] %v1394
    loop: start=0, step=1, limit=2
    $region54: #{_lambda_.5} parent=1 // loop_pre_header
      _
    $region55: #{_lambda_.5} parent=1 // loop_header
      %s1404 = sphi 0, %s1408
      %p1405 = scmp.ge.s32.totalorder %s1404, 2
      %v1409 = vphi 0.0, %v2438
      %v1410 = vphi 0.0, %v2436
      %v1411 = vphi 0.0, %v3465
      %v1412 = vphi 0.0, %v3463
    $region56: #{_lambda_.5} parent=1 // loop_header_branch
      %1407 = sbr.rel (%p1405) target = $region60
    $region57: #{_lambda_.5} parent=1 // loop_body
      %s1413 = smul.u32 %s1404, 8
      %s1414 = smul.addr %s1413, 2
      %s1415 = scalar_lea.vmem [#allocation2], %s1414
      %v1416 = vld [vmem:[%s1415] sm:$0xff]
      %v1417 = vld [vmem:[%s1415 + $0x8] sm:$0xff]
      %v1420 = vunpack.c.l.s4 1983009808
      %v1421 = vunpack.c.0.s8 %v1420
      %v1422 = vlaneseq
      %v1423 = vshrl.u32 %v1422, 7
      %v1424 = vsub.s32 %v1421, %v1423
      %v1425 = vrot.slane %v1409, %v1424
      %v1426 = vcombine.high %v1425, %v1425
      %v1429 = vpack.c.bf16 %v1425, %v1425
      %v1430 = vpack.c.bf16 %v1426, %v1426
      %v1431 = vld [vmem:[#allocation6] sm:$0xff]
      %v1432 = vld [vmem:[#allocation6 + $0x8] sm:$0xff]
      %v1433 = vld [vmem:[#allocation6 + $0x10] sm:$0xff]
      %v1434 = vld [vmem:[#allocation6 + $0x18] sm:$0xff]
      %v1435 = vld [vmem:[#allocation6 + $0x20] sm:$0xff]
      %v1436 = vld [vmem:[#allocation6 + $0x28] sm:$0xff]
      %v1437 = vld [vmem:[#allocation6 + $0x30] sm:$0xff]
      %v1438 = vld [vmem:[#allocation6 + $0x38] sm:$0xff]
      %v1439 = vld [vmem:[#allocation6 + $0x40] sm:$0xff]
      %v1440 = vld [vmem:[#allocation6 + $0x48] sm:$0xff]
      %v1441 = vld [vmem:[#allocation6 + $0x50] sm:$0xff]
      %v1442 = vld [vmem:[#allocation6 + $0x58] sm:$0xff]
      %v1443 = vld [vmem:[#allocation6 + $0x60] sm:$0xff]
      %v1444 = vld [vmem:[#allocation6 + $0x68] sm:$0xff]
      %v1445 = vld [vmem:[#allocation6 + $0x70] sm:$0xff]
      %v1446 = vld [vmem:[#allocation6 + $0x78] sm:$0xff]
      %v1447 = vld [vmem:[#allocation6 + $0x80] sm:$0xff]
      %v1448 = vld [vmem:[#allocation6 + $0x88] sm:$0xff]
      %v1449 = vld [vmem:[#allocation6 + $0x90] sm:$0xff]
      %v1450 = vld [vmem:[#allocation6 + $0x98] sm:$0xff]
      %v1451 = vld [vmem:[#allocation6 + $0xa0] sm:$0xff]
      %v1452 = vld [vmem:[#allocation6 + $0xa8] sm:$0xff]
      %v1453 = vld [vmem:[#allocation6 + $0xb0] sm:$0xff]
      %v1454 = vld [vmem:[#allocation6 + $0xb8] sm:$0xff]
      %v1455 = vld [vmem:[#allocation6 + $0xc0] sm:$0xff]
      %v1456 = vld [vmem:[#allocation6 + $0xc8] sm:$0xff]
      %v1457 = vld [vmem:[#allocation6 + $0xd0] sm:$0xff]
      %v1458 = vld [vmem:[#allocation6 + $0xd8] sm:$0xff]
      %v1459 = vld [vmem:[#allocation6 + $0xe0] sm:$0xff]
      %v1460 = vld [vmem:[#allocation6 + $0xe8] sm:$0xff]
      %v1461 = vld [vmem:[#allocation6 + $0xf0] sm:$0xff]
      %v1462 = vld [vmem:[#allocation6 + $0xf8] sm:$0xff]
      %v1463 = vld [vmem:[#allocation6 + $0x100] sm:$0xff]
      %v1464 = vld [vmem:[#allocation6 + $0x108] sm:$0xff]
      %v1465 = vld [vmem:[#allocation6 + $0x110] sm:$0xff]
      %v1466 = vld [vmem:[#allocation6 + $0x118] sm:$0xff]
      %v1467 = vld [vmem:[#allocation6 + $0x120] sm:$0xff]
      %v1468 = vld [vmem:[#allocation6 + $0x128] sm:$0xff]
      %v1469 = vld [vmem:[#allocation6 + $0x130] sm:$0xff]
      %v1470 = vld [vmem:[#allocation6 + $0x138] sm:$0xff]
      %v1471 = vld [vmem:[#allocation6 + $0x140] sm:$0xff]
      %v1472 = vld [vmem:[#allocation6 + $0x148] sm:$0xff]
      %v1473 = vld [vmem:[#allocation6 + $0x150] sm:$0xff]
      %v1474 = vld [vmem:[#allocation6 + $0x158] sm:$0xff]
      %v1475 = vld [vmem:[#allocation6 + $0x160] sm:$0xff]
      %v1476 = vld [vmem:[#allocation6 + $0x168] sm:$0xff]
      %v1477 = vld [vmem:[#allocation6 + $0x170] sm:$0xff]
      %v1478 = vld [vmem:[#allocation6 + $0x178] sm:$0xff]
      %v1479 = vld [vmem:[#allocation6 + $0x180] sm:$0xff]
      %v1480 = vld [vmem:[#allocation6 + $0x188] sm:$0xff]
      %v1481 = vld [vmem:[#allocation6 + $0x190] sm:$0xff]
      %v1482 = vld [vmem:[#allocation6 + $0x198] sm:$0xff]
      %v1483 = vld [vmem:[#allocation6 + $0x1a0] sm:$0xff]
      %v1484 = vld [vmem:[#allocation6 + $0x1a8] sm:$0xff]
      %v1485 = vld [vmem:[#allocation6 + $0x1b0] sm:$0xff]
      %v1486 = vld [vmem:[#allocation6 + $0x1b8] sm:$0xff]
      %v1487 = vld [vmem:[#allocation6 + $0x1c0] sm:$0xff]
      %v1488 = vld [vmem:[#allocation6 + $0x1c8] sm:$0xff]
      %v1489 = vld [vmem:[#allocation6 + $0x1d0] sm:$0xff]
      %v1490 = vld [vmem:[#allocation6 + $0x1d8] sm:$0xff]
      %v1491 = vld [vmem:[#allocation6 + $0x1e0] sm:$0xff]
      %v1492 = vld [vmem:[#allocation6 + $0x1e8] sm:$0xff]
      %v1493 = vld [vmem:[#allocation6 + $0x1f0] sm:$0xff]
      %v1494 = vld [vmem:[#allocation6 + $0x1f8] sm:$0xff]
      %v1495 = vld [vmem:[#allocation6 + $0x200] sm:$0xff]
      %v1496 = vld [vmem:[#allocation6 + $0x208] sm:$0xff]
      %v1497 = vld [vmem:[#allocation6 + $0x210] sm:$0xff]
      %v1498 = vld [vmem:[#allocation6 + $0x218] sm:$0xff]
      %v1499 = vld [vmem:[#allocation6 + $0x220] sm:$0xff]
      %v1500 = vld [vmem:[#allocation6 + $0x228] sm:$0xff]
      %v1501 = vld [vmem:[#allocation6 + $0x230] sm:$0xff]
      %v1502 = vld [vmem:[#allocation6 + $0x238] sm:$0xff]
      %v1503 = vld [vmem:[#allocation6 + $0x240] sm:$0xff]
      %v1504 = vld [vmem:[#allocation6 + $0x248] sm:$0xff]
      %v1505 = vld [vmem:[#allocation6 + $0x250] sm:$0xff]
      %v1506 = vld [vmem:[#allocation6 + $0x258] sm:$0xff]
      %v1507 = vld [vmem:[#allocation6 + $0x260] sm:$0xff]
      %v1508 = vld [vmem:[#allocation6 + $0x268] sm:$0xff]
      %v1509 = vld [vmem:[#allocation6 + $0x270] sm:$0xff]
      %v1510 = vld [vmem:[#allocation6 + $0x278] sm:$0xff]
      %v1511 = vld [vmem:[#allocation6 + $0x280] sm:$0xff]
      %v1512 = vld [vmem:[#allocation6 + $0x288] sm:$0xff]
      %v1513 = vld [vmem:[#allocation6 + $0x290] sm:$0xff]
      %v1514 = vld [vmem:[#allocation6 + $0x298] sm:$0xff]
      %v1515 = vld [vmem:[#allocation6 + $0x2a0] sm:$0xff]
      %v1516 = vld [vmem:[#allocation6 + $0x2a8] sm:$0xff]
      %v1517 = vld [vmem:[#allocation6 + $0x2b0] sm:$0xff]
      %v1518 = vld [vmem:[#allocation6 + $0x2b8] sm:$0xff]
      %v1519 = vld [vmem:[#allocation6 + $0x2c0] sm:$0xff]
      %v1520 = vld [vmem:[#allocation6 + $0x2c8] sm:$0xff]
      %v1521 = vld [vmem:[#allocation6 + $0x2d0] sm:$0xff]
      %v1522 = vld [vmem:[#allocation6 + $0x2d8] sm:$0xff]
      %v1523 = vld [vmem:[#allocation6 + $0x2e0] sm:$0xff]
      %v1524 = vld [vmem:[#allocation6 + $0x2e8] sm:$0xff]
      %v1525 = vld [vmem:[#allocation6 + $0x2f0] sm:$0xff]
      %v1526 = vld [vmem:[#allocation6 + $0x2f8] sm:$0xff]
      %v1527 = vld [vmem:[#allocation6 + $0x300] sm:$0xff]
      %v1528 = vld [vmem:[#allocation6 + $0x308] sm:$0xff]
      %v1529 = vld [vmem:[#allocation6 + $0x310] sm:$0xff]
      %v1530 = vld [vmem:[#allocation6 + $0x318] sm:$0xff]
      %v1531 = vld [vmem:[#allocation6 + $0x320] sm:$0xff]
      %v1532 = vld [vmem:[#allocation6 + $0x328] sm:$0xff]
      %v1533 = vld [vmem:[#allocation6 + $0x330] sm:$0xff]
      %v1534 = vld [vmem:[#allocation6 + $0x338] sm:$0xff]
      %v1535 = vld [vmem:[#allocation6 + $0x340] sm:$0xff]
      %v1536 = vld [vmem:[#allocation6 + $0x348] sm:$0xff]
      %v1537 = vld [vmem:[#allocation6 + $0x350] sm:$0xff]
      %v1538 = vld [vmem:[#allocation6 + $0x358] sm:$0xff]
      %v1539 = vld [vmem:[#allocation6 + $0x360] sm:$0xff]
      %v1540 = vld [vmem:[#allocation6 + $0x368] sm:$0xff]
      %v1541 = vld [vmem:[#allocation6 + $0x370] sm:$0xff]
      %v1542 = vld [vmem:[#allocation6 + $0x378] sm:$0xff]
      %v1543 = vld [vmem:[#allocation6 + $0x380] sm:$0xff]
      %v1544 = vld [vmem:[#allocation6 + $0x388] sm:$0xff]
      %v1545 = vld [vmem:[#allocation6 + $0x390] sm:$0xff]
      %v1546 = vld [vmem:[#allocation6 + $0x398] sm:$0xff]
      %v1547 = vld [vmem:[#allocation6 + $0x3a0] sm:$0xff]
      %v1548 = vld [vmem:[#allocation6 + $0x3a8] sm:$0xff]
      %v1549 = vld [vmem:[#allocation6 + $0x3b0] sm:$0xff]
      %v1550 = vld [vmem:[#allocation6 + $0x3b8] sm:$0xff]
      %v1551 = vld [vmem:[#allocation6 + $0x3c0] sm:$0xff]
      %v1552 = vld [vmem:[#allocation6 + $0x3c8] sm:$0xff]
      %v1553 = vld [vmem:[#allocation6 + $0x3d0] sm:$0xff]
      %v1554 = vld [vmem:[#allocation6 + $0x3d8] sm:$0xff]
      %v1555 = vld [vmem:[#allocation6 + $0x3e0] sm:$0xff]
      %v1556 = vld [vmem:[#allocation6 + $0x3e8] sm:$0xff]
      %v1557 = vld [vmem:[#allocation6 + $0x3f0] sm:$0xff]
      %v1558 = vld [vmem:[#allocation6 + $0x3f8] sm:$0xff]
      %v1687 = vunpack.c.l.b16 %v1431
      %v1688 = vunpack.c.h.b16 %v1431
      %v1689 = vunpack.c.l.b16 %v1432
      %v1690 = vunpack.c.h.b16 %v1432
      %v1691 = vunpack.c.l.b16 %v1433
      %v1692 = vunpack.c.h.b16 %v1433
      %v1693 = vunpack.c.l.b16 %v1434
      %v1694 = vunpack.c.h.b16 %v1434
      %v1695 = vunpack.c.l.b16 %v1435
      %v1696 = vunpack.c.h.b16 %v1435
      %v1697 = vunpack.c.l.b16 %v1436
      %v1698 = vunpack.c.h.b16 %v1436
      %v1699 = vunpack.c.l.b16 %v1437
      %v1700 = vunpack.c.h.b16 %v1437
      %v1701 = vunpack.c.l.b16 %v1438
      %v1702 = vunpack.c.h.b16 %v1438
      %v1703 = vunpack.c.l.b16 %v1439
      %v1704 = vunpack.c.h.b16 %v1439
      %v1705 = vunpack.c.l.b16 %v1440
      %v1706 = vunpack.c.h.b16 %v1440
      %v1707 = vunpack.c.l.b16 %v1441
      %v1708 = vunpack.c.h.b16 %v1441
      %v1709 = vunpack.c.l.b16 %v1442
      %v1710 = vunpack.c.h.b16 %v1442
      %v1711 = vunpack.c.l.b16 %v1443
      %v1712 = vunpack.c.h.b16 %v1443
      %v1713 = vunpack.c.l.b16 %v1444
      %v1714 = vunpack.c.h.b16 %v1444
      %v1715 = vunpack.c.l.b16 %v1445
      %v1716 = vunpack.c.h.b16 %v1445
      %v1717 = vunpack.c.l.b16 %v1446
      %v1718 = vunpack.c.h.b16 %v1446
      %v1719 = vunpack.c.l.b16 %v1447
      %v1720 = vunpack.c.h.b16 %v1447
      %v1721 = vunpack.c.l.b16 %v1448
      %v1722 = vunpack.c.h.b16 %v1448
      %v1723 = vunpack.c.l.b16 %v1449
      %v1724 = vunpack.c.h.b16 %v1449
      %v1725 = vunpack.c.l.b16 %v1450
      %v1726 = vunpack.c.h.b16 %v1450
      %v1727 = vunpack.c.l.b16 %v1451
      %v1728 = vunpack.c.h.b16 %v1451
      %v1729 = vunpack.c.l.b16 %v1452
      %v1730 = vunpack.c.h.b16 %v1452
      %v1731 = vunpack.c.l.b16 %v1453
      %v1732 = vunpack.c.h.b16 %v1453
      %v1733 = vunpack.c.l.b16 %v1454
      %v1734 = vunpack.c.h.b16 %v1454
      %v1735 = vunpack.c.l.b16 %v1455
      %v1736 = vunpack.c.h.b16 %v1455
      %v1737 = vunpack.c.l.b16 %v1456
      %v1738 = vunpack.c.h.b16 %v1456
      %v1739 = vunpack.c.l.b16 %v1457
      %v1740 = vunpack.c.h.b16 %v1457
      %v1741 = vunpack.c.l.b16 %v1458
      %v1742 = vunpack.c.h.b16 %v1458
      %v1743 = vunpack.c.l.b16 %v1459
      %v1744 = vunpack.c.h.b16 %v1459
      %v1745 = vunpack.c.l.b16 %v1460
      %v1746 = vunpack.c.h.b16 %v1460
      %v1747 = vunpack.c.l.b16 %v1461
      %v1748 = vunpack.c.h.b16 %v1461
      %v1749 = vunpack.c.l.b16 %v1462
      %v1750 = vunpack.c.h.b16 %v1462
      %v1751 = vunpack.c.l.b16 %v1463
      %v1752 = vunpack.c.h.b16 %v1463
      %v1753 = vunpack.c.l.b16 %v1464
      %v1754 = vunpack.c.h.b16 %v1464
      %v1755 = vunpack.c.l.b16 %v1465
      %v1756 = vunpack.c.h.b16 %v1465
      %v1757 = vunpack.c.l.b16 %v1466
      %v1758 = vunpack.c.h.b16 %v1466
      %v1759 = vunpack.c.l.b16 %v1467
      %v1760 = vunpack.c.h.b16 %v1467
      %v1761 = vunpack.c.l.b16 %v1468
      %v1762 = vunpack.c.h.b16 %v1468
      %v1763 = vunpack.c.l.b16 %v1469
      %v1764 = vunpack.c.h.b16 %v1469
      %v1765 = vunpack.c.l.b16 %v1470
      %v1766 = vunpack.c.h.b16 %v1470
      %v1767 = vunpack.c.l.b16 %v1471
      %v1768 = vunpack.c.h.b16 %v1471
      %v1769 = vunpack.c.l.b16 %v1472
      %v1770 = vunpack.c.h.b16 %v1472
      %v1771 = vunpack.c.l.b16 %v1473
      %v1772 = vunpack.c.h.b16 %v1473
      %v1773 = vunpack.c.l.b16 %v1474
      %v1774 = vunpack.c.h.b16 %v1474
      %v1775 = vunpack.c.l.b16 %v1475
      %v1776 = vunpack.c.h.b16 %v1475
      %v1777 = vunpack.c.l.b16 %v1476
      %v1778 = vunpack.c.h.b16 %v1476
      %v1779 = vunpack.c.l.b16 %v1477
      %v1780 = vunpack.c.h.b16 %v1477
      %v1781 = vunpack.c.l.b16 %v1478
      %v1782 = vunpack.c.h.b16 %v1478
      %v1783 = vunpack.c.l.b16 %v1479
      %v1784 = vunpack.c.h.b16 %v1479
      %v1785 = vunpack.c.l.b16 %v1480
      %v1786 = vunpack.c.h.b16 %v1480
      %v1787 = vunpack.c.l.b16 %v1481
      %v1788 = vunpack.c.h.b16 %v1481
      %v1789 = vunpack.c.l.b16 %v1482
      %v1790 = vunpack.c.h.b16 %v1482
      %v1791 = vunpack.c.l.b16 %v1483
      %v1792 = vunpack.c.h.b16 %v1483
      %v1793 = vunpack.c.l.b16 %v1484
      %v1794 = vunpack.c.h.b16 %v1484
      %v1795 = vunpack.c.l.b16 %v1485
      %v1796 = vunpack.c.h.b16 %v1485
      %v1797 = vunpack.c.l.b16 %v1486
      %v1798 = vunpack.c.h.b16 %v1486
      %v1799 = vunpack.c.l.b16 %v1487
      %v1800 = vunpack.c.h.b16 %v1487
      %v1801 = vunpack.c.l.b16 %v1488
      %v1802 = vunpack.c.h.b16 %v1488
      %v1803 = vunpack.c.l.b16 %v1489
      %v1804 = vunpack.c.h.b16 %v1489
      %v1805 = vunpack.c.l.b16 %v1490
      %v1806 = vunpack.c.h.b16 %v1490
      %v1807 = vunpack.c.l.b16 %v1491
      %v1808 = vunpack.c.h.b16 %v1491
      %v1809 = vunpack.c.l.b16 %v1492
      %v1810 = vunpack.c.h.b16 %v1492
      %v1811 = vunpack.c.l.b16 %v1493
      %v1812 = vunpack.c.h.b16 %v1493
      %v1813 = vunpack.c.l.b16 %v1494
      %v1814 = vunpack.c.h.b16 %v1494
      %v1815 = vunpack.c.l.b16 %v1495
      %v1816 = vunpack.c.h.b16 %v1495
      %v1817 = vunpack.c.l.b16 %v1496
      %v1818 = vunpack.c.h.b16 %v1496
      %v1819 = vunpack.c.l.b16 %v1497
      %v1820 = vunpack.c.h.b16 %v1497
      %v1821 = vunpack.c.l.b16 %v1498
      %v1822 = vunpack.c.h.b16 %v1498
      %v1823 = vunpack.c.l.b16 %v1499
      %v1824 = vunpack.c.h.b16 %v1499
      %v1825 = vunpack.c.l.b16 %v1500
      %v1826 = vunpack.c.h.b16 %v1500
      %v1827 = vunpack.c.l.b16 %v1501
      %v1828 = vunpack.c.h.b16 %v1501
      %v1829 = vunpack.c.l.b16 %v1502
      %v1830 = vunpack.c.h.b16 %v1502
      %v1831 = vunpack.c.l.b16 %v1503
      %v1832 = vunpack.c.h.b16 %v1503
      %v1833 = vunpack.c.l.b16 %v1504
      %v1834 = vunpack.c.h.b16 %v1504
      %v1835 = vunpack.c.l.b16 %v1505
      %v1836 = vunpack.c.h.b16 %v1505
      %v1837 = vunpack.c.l.b16 %v1506
      %v1838 = vunpack.c.h.b16 %v1506
      %v1839 = vunpack.c.l.b16 %v1507
      %v1840 = vunpack.c.h.b16 %v1507
      %v1841 = vunpack.c.l.b16 %v1508
      %v1842 = vunpack.c.h.b16 %v1508
      %v1843 = vunpack.c.l.b16 %v1509
      %v1844 = vunpack.c.h.b16 %v1509
      %v1845 = vunpack.c.l.b16 %v1510
      %v1846 = vunpack.c.h.b16 %v1510
      %v1847 = vunpack.c.l.b16 %v1511
      %v1848 = vunpack.c.h.b16 %v1511
      %v1849 = vunpack.c.l.b16 %v1512
      %v1850 = vunpack.c.h.b16 %v1512
      %v1851 = vunpack.c.l.b16 %v1513
      %v1852 = vunpack.c.h.b16 %v1513
      %v1853 = vunpack.c.l.b16 %v1514
      %v1854 = vunpack.c.h.b16 %v1514
      %v1855 = vunpack.c.l.b16 %v1515
      %v1856 = vunpack.c.h.b16 %v1515
      %v1857 = vunpack.c.l.b16 %v1516
      %v1858 = vunpack.c.h.b16 %v1516
      %v1859 = vunpack.c.l.b16 %v1517
      %v1860 = vunpack.c.h.b16 %v1517
      %v1861 = vunpack.c.l.b16 %v1518
      %v1862 = vunpack.c.h.b16 %v1518
      %v1863 = vunpack.c.l.b16 %v1519
      %v1864 = vunpack.c.h.b16 %v1519
      %v1865 = vunpack.c.l.b16 %v1520
      %v1866 = vunpack.c.h.b16 %v1520
      %v1867 = vunpack.c.l.b16 %v1521
      %v1868 = vunpack.c.h.b16 %v1521
      %v1869 = vunpack.c.l.b16 %v1522
      %v1870 = vunpack.c.h.b16 %v1522
      %v1871 = vunpack.c.l.b16 %v1523
      %v1872 = vunpack.c.h.b16 %v1523
      %v1873 = vunpack.c.l.b16 %v1524
      %v1874 = vunpack.c.h.b16 %v1524
      %v1875 = vunpack.c.l.b16 %v1525
      %v1876 = vunpack.c.h.b16 %v1525
      %v1877 = vunpack.c.l.b16 %v1526
      %v1878 = vunpack.c.h.b16 %v1526
      %v1879 = vunpack.c.l.b16 %v1527
      %v1880 = vunpack.c.h.b16 %v1527
      %v1881 = vunpack.c.l.b16 %v1528
      %v1882 = vunpack.c.h.b16 %v1528
      %v1883 = vunpack.c.l.b16 %v1529
      %v1884 = vunpack.c.h.b16 %v1529
      %v1885 = vunpack.c.l.b16 %v1530
      %v1886 = vunpack.c.h.b16 %v1530
      %v1887 = vunpack.c.l.b16 %v1531
      %v1888 = vunpack.c.h.b16 %v1531
      %v1889 = vunpack.c.l.b16 %v1532
      %v1890 = vunpack.c.h.b16 %v1532
      %v1891 = vunpack.c.l.b16 %v1533
      %v1892 = vunpack.c.h.b16 %v1533
      %v1893 = vunpack.c.l.b16 %v1534
      %v1894 = vunpack.c.h.b16 %v1534
      %v1895 = vunpack.c.l.b16 %v1535
      %v1896 = vunpack.c.h.b16 %v1535
      %v1897 = vunpack.c.l.b16 %v1536
      %v1898 = vunpack.c.h.b16 %v1536
      %v1899 = vunpack.c.l.b16 %v1537
      %v1900 = vunpack.c.h.b16 %v1537
      %v1901 = vunpack.c.l.b16 %v1538
      %v1902 = vunpack.c.h.b16 %v1538
      %v1903 = vunpack.c.l.b16 %v1539
      %v1904 = vunpack.c.h.b16 %v1539
      %v1905 = vunpack.c.l.b16 %v1540
      %v1906 = vunpack.c.h.b16 %v1540
      %v1907 = vunpack.c.l.b16 %v1541
      %v1908 = vunpack.c.h.b16 %v1541
      %v1909 = vunpack.c.l.b16 %v1542
      %v1910 = vunpack.c.h.b16 %v1542
      %v1911 = vunpack.c.l.b16 %v1543
      %v1912 = vunpack.c.h.b16 %v1543
      %v1913 = vunpack.c.l.b16 %v1544
      %v1914 = vunpack.c.h.b16 %v1544
      %v1915 = vunpack.c.l.b16 %v1545
      %v1916 = vunpack.c.h.b16 %v1545
      %v1917 = vunpack.c.l.b16 %v1546
      %v1918 = vunpack.c.h.b16 %v1546
      %v1919 = vunpack.c.l.b16 %v1547
      %v1920 = vunpack.c.h.b16 %v1547
      %v1921 = vunpack.c.l.b16 %v1548
      %v1922 = vunpack.c.h.b16 %v1548
      %v1923 = vunpack.c.l.b16 %v1549
      %v1924 = vunpack.c.h.b16 %v1549
      %v1925 = vunpack.c.l.b16 %v1550
      %v1926 = vunpack.c.h.b16 %v1550
      %v1927 = vunpack.c.l.b16 %v1551
      %v1928 = vunpack.c.h.b16 %v1551
      %v1929 = vunpack.c.l.b16 %v1552
      %v1930 = vunpack.c.h.b16 %v1552
      %v1931 = vunpack.c.l.b16 %v1553
      %v1932 = vunpack.c.h.b16 %v1553
      %v1933 = vunpack.c.l.b16 %v1554
      %v1934 = vunpack.c.h.b16 %v1554
      %v1935 = vunpack.c.l.b16 %v1555
      %v1936 = vunpack.c.h.b16 %v1555
      %v1937 = vunpack.c.l.b16 %v1556
      %v1938 = vunpack.c.h.b16 %v1556
      %v1939 = vunpack.c.l.b16 %v1557
      %v1940 = vunpack.c.h.b16 %v1557
      %v1941 = vunpack.c.l.b16 %v1558
      %v1942 = vunpack.c.h.b16 %v1558
      %v1943 = vpack.c.b16 %v1695, %v1687
      %v1944 = vpack.c.b16 %v1696, %v1688
      %v1945 = vpack.c.b16 %v1697, %v1689
      %v1946 = vpack.c.b16 %v1698, %v1690
      %v1947 = vpack.c.b16 %v1699, %v1691
      %v1948 = vpack.c.b16 %v1700, %v1692
      %v1949 = vpack.c.b16 %v1701, %v1693
      %v1950 = vpack.c.b16 %v1702, %v1694
      %v1951 = vpack.c.b16 %v1711, %v1703
      %v1952 = vpack.c.b16 %v1712, %v1704
      %v1953 = vpack.c.b16 %v1713, %v1705
      %v1954 = vpack.c.b16 %v1714, %v1706
      %v1955 = vpack.c.b16 %v1715, %v1707
      %v1956 = vpack.c.b16 %v1716, %v1708
      %v1957 = vpack.c.b16 %v1717, %v1709
      %v1958 = vpack.c.b16 %v1718, %v1710
      %v1959 = vpack.c.b16 %v1727, %v1719
      %v1960 = vpack.c.b16 %v1728, %v1720
      %v1961 = vpack.c.b16 %v1729, %v1721
      %v1962 = vpack.c.b16 %v1730, %v1722
      %v1963 = vpack.c.b16 %v1731, %v1723
      %v1964 = vpack.c.b16 %v1732, %v1724
      %v1965 = vpack.c.b16 %v1733, %v1725
      %v1966 = vpack.c.b16 %v1734, %v1726
      %v1967 = vpack.c.b16 %v1743, %v1735
      %v1968 = vpack.c.b16 %v1744, %v1736
      %v1969 = vpack.c.b16 %v1745, %v1737
      %v1970 = vpack.c.b16 %v1746, %v1738
      %v1971 = vpack.c.b16 %v1747, %v1739
      %v1972 = vpack.c.b16 %v1748, %v1740
      %v1973 = vpack.c.b16 %v1749, %v1741
      %v1974 = vpack.c.b16 %v1750, %v1742
      %v1975 = vpack.c.b16 %v1759, %v1751
      %v1976 = vpack.c.b16 %v1760, %v1752
      %v1977 = vpack.c.b16 %v1761, %v1753
      %v1978 = vpack.c.b16 %v1762, %v1754
      %v1979 = vpack.c.b16 %v1763, %v1755
      %v1980 = vpack.c.b16 %v1764, %v1756
      %v1981 = vpack.c.b16 %v1765, %v1757
      %v1982 = vpack.c.b16 %v1766, %v1758
      %v1983 = vpack.c.b16 %v1775, %v1767
      %v1984 = vpack.c.b16 %v1776, %v1768
      %v1985 = vpack.c.b16 %v1777, %v1769
      %v1986 = vpack.c.b16 %v1778, %v1770
      %v1987 = vpack.c.b16 %v1779, %v1771
      %v1988 = vpack.c.b16 %v1780, %v1772
      %v1989 = vpack.c.b16 %v1781, %v1773
      %v1990 = vpack.c.b16 %v1782, %v1774
      %v1991 = vpack.c.b16 %v1791, %v1783
      %v1992 = vpack.c.b16 %v1792, %v1784
      %v1993 = vpack.c.b16 %v1793, %v1785
      %v1994 = vpack.c.b16 %v1794, %v1786
      %v1995 = vpack.c.b16 %v1795, %v1787
      %v1996 = vpack.c.b16 %v1796, %v1788
      %v1997 = vpack.c.b16 %v1797, %v1789
      %v1998 = vpack.c.b16 %v1798, %v1790
      %v1999 = vpack.c.b16 %v1807, %v1799
      %v2000 = vpack.c.b16 %v1808, %v1800
      %v2001 = vpack.c.b16 %v1809, %v1801
      %v2002 = vpack.c.b16 %v1810, %v1802
      %v2003 = vpack.c.b16 %v1811, %v1803
      %v2004 = vpack.c.b16 %v1812, %v1804
      %v2005 = vpack.c.b16 %v1813, %v1805
      %v2006 = vpack.c.b16 %v1814, %v1806
      %v2007 = vpack.c.b16 %v1823, %v1815
      %v2008 = vpack.c.b16 %v1824, %v1816
      %v2009 = vpack.c.b16 %v1825, %v1817
      %v2010 = vpack.c.b16 %v1826, %v1818
      %v2011 = vpack.c.b16 %v1827, %v1819
      %v2012 = vpack.c.b16 %v1828, %v1820
      %v2013 = vpack.c.b16 %v1829, %v1821
      %v2014 = vpack.c.b16 %v1830, %v1822
      %v2015 = vpack.c.b16 %v1839, %v1831
      %v2016 = vpack.c.b16 %v1840, %v1832
      %v2017 = vpack.c.b16 %v1841, %v1833
      %v2018 = vpack.c.b16 %v1842, %v1834
      %v2019 = vpack.c.b16 %v1843, %v1835
      %v2020 = vpack.c.b16 %v1844, %v1836
      %v2021 = vpack.c.b16 %v1845, %v1837
      %v2022 = vpack.c.b16 %v1846, %v1838
      %v2023 = vpack.c.b16 %v1855, %v1847
      %v2024 = vpack.c.b16 %v1856, %v1848
      %v2025 = vpack.c.b16 %v1857, %v1849
      %v2026 = vpack.c.b16 %v1858, %v1850
      %v2027 = vpack.c.b16 %v1859, %v1851
      %v2028 = vpack.c.b16 %v1860, %v1852
      %v2029 = vpack.c.b16 %v1861, %v1853
      %v2030 = vpack.c.b16 %v1862, %v1854
      %v2031 = vpack.c.b16 %v1871, %v1863
      %v2032 = vpack.c.b16 %v1872, %v1864
      %v2033 = vpack.c.b16 %v1873, %v1865
      %v2034 = vpack.c.b16 %v1874, %v1866
      %v2035 = vpack.c.b16 %v1875, %v1867
      %v2036 = vpack.c.b16 %v1876, %v1868
      %v2037 = vpack.c.b16 %v1877, %v1869
      %v2038 = vpack.c.b16 %v1878, %v1870
      %v2039 = vpack.c.b16 %v1887, %v1879
      %v2040 = vpack.c.b16 %v1888, %v1880
      %v2041 = vpack.c.b16 %v1889, %v1881
      %v2042 = vpack.c.b16 %v1890, %v1882
      %v2043 = vpack.c.b16 %v1891, %v1883
      %v2044 = vpack.c.b16 %v1892, %v1884
      %v2045 = vpack.c.b16 %v1893, %v1885
      %v2046 = vpack.c.b16 %v1894, %v1886
      %v2047 = vpack.c.b16 %v1903, %v1895
      %v2048 = vpack.c.b16 %v1904, %v1896
      %v2049 = vpack.c.b16 %v1905, %v1897
      %v2050 = vpack.c.b16 %v1906, %v1898
      %v2051 = vpack.c.b16 %v1907, %v1899
      %v2052 = vpack.c.b16 %v1908, %v1900
      %v2053 = vpack.c.b16 %v1909, %v1901
      %v2054 = vpack.c.b16 %v1910, %v1902
      %v2055 = vpack.c.b16 %v1919, %v1911
      %v2056 = vpack.c.b16 %v1920, %v1912
      %v2057 = vpack.c.b16 %v1921, %v1913
      %v2058 = vpack.c.b16 %v1922, %v1914
      %v2059 = vpack.c.b16 %v1923, %v1915
      %v2060 = vpack.c.b16 %v1924, %v1916
      %v2061 = vpack.c.b16 %v1925, %v1917
      %v2062 = vpack.c.b16 %v1926, %v1918
      %v2063 = vpack.c.b16 %v1935, %v1927
      %v2064 = vpack.c.b16 %v1936, %v1928
      %v2065 = vpack.c.b16 %v1937, %v1929
      %v2066 = vpack.c.b16 %v1938, %v1930
      %v2067 = vpack.c.b16 %v1939, %v1931
      %v2068 = vpack.c.b16 %v1940, %v1932
      %v2069 = vpack.c.b16 %v1941, %v1933
      %v2070 = vpack.c.b16 %v1942, %v1934
      %2199 = vmatprep.subr.bf16.mxu0 %v2000
      %2200 = vmatpush1.bf16.msra.mxu0 %v1999
      %2201 = vmatprep.subr.bf16.mxu0 %v1992
      %2202 = vmatpush1.bf16.msra.mxu0 %v1991
      %2203 = vmatprep.subr.bf16.mxu0 %v1984
      %2204 = vmatpush1.bf16.msra.mxu0 %v1983
      %2205 = vmatprep.subr.bf16.mxu0 %v1976
      %2206 = vmatpush1.bf16.msra.mxu0 %v1975
      %2207 = vmatprep.subr.bf16.mxu0 %v1968
      %2208 = vmatpush1.bf16.msra.mxu0 %v1967
      %2209 = vmatprep.subr.bf16.mxu0 %v1960
      %2210 = vmatpush1.bf16.msra.mxu0 %v1959
      %2211 = vmatprep.subr.bf16.mxu0 %v1952
      %2212 = vmatpush1.bf16.msra.mxu0 %v1951
      %2213 = vmatprep.subr.bf16.mxu0 %v1944
      %2214 = vmatpush1.bf16.msra.mxu0 %v1943
      %2215 = vmatprep.subr.bf16.mxu0 %v2064
      %2216 = vmatpush2.bf16.msra.mxu0 %v2063
      %2217 = vmatprep.subr.bf16.mxu0 %v2056
      %2218 = vmatpush2.bf16.msra.mxu0 %v2055
      %2219 = vmatprep.subr.bf16.mxu0 %v2048
      %2220 = vmatpush2.bf16.msra.mxu0 %v2047
      %2221 = vmatprep.subr.bf16.mxu0 %v2040
      %2222 = vmatpush2.bf16.msra.mxu0 %v2039
      %2223 = vmatprep.subr.bf16.mxu0 %v2032
      %2224 = vmatpush2.bf16.msra.mxu0 %v2031
      %2225 = vmatprep.subr.bf16.mxu0 %v2024
      %2226 = vmatpush2.bf16.msra.mxu0 %v2023
      %2227 = vmatprep.subr.bf16.mxu0 %v2016
      %2228 = vmatpush2.bf16.msra.mxu0 %v2015
      %2229 = vmatprep.subr.bf16.mxu0 %v2008
      %2230 = vmatpush2.bf16.msra.mxu0 %v2007
      %2231 = vmatprep.mubr.bf16.mxu0 %v1430
      %2232 = vmatmul.mubr.bf16.gmra.mxu0 %v1429
      %v2233 = vpop.f32.mrf.mxu0
      %v2234 = vadd.f32 0.0, %v2233
      %v2235 = vpop.f32.mrf.mxu0
      %v2236 = vadd.f32 0.0, %v2235
      %v2237 = vpop.f32.mrf.mxu0
      %v2238 = vpop.f32.mrf.mxu0
      %2239 = vdwg.mxu0
      %2240 = vmatprep.subr.bf16.mxu0 %v2002
      %2241 = vmatpush1.bf16.msra.mxu0 %v2001
      %2242 = vmatprep.subr.bf16.mxu0 %v1994
      %2243 = vmatpush1.bf16.msra.mxu0 %v1993
      %2244 = vmatprep.subr.bf16.mxu0 %v1986
      %2245 = vmatpush1.bf16.msra.mxu0 %v1985
      %2246 = vmatprep.subr.bf16.mxu0 %v1978
      %2247 = vmatpush1.bf16.msra.mxu0 %v1977
      %2248 = vmatprep.subr.bf16.mxu0 %v1970
      %2249 = vmatpush1.bf16.msra.mxu0 %v1969
      %2250 = vmatprep.subr.bf16.mxu0 %v1962
      %2251 = vmatpush1.bf16.msra.mxu0 %v1961
      %2252 = vmatprep.subr.bf16.mxu0 %v1954
      %2253 = vmatpush1.bf16.msra.mxu0 %v1953
      %2254 = vmatprep.subr.bf16.mxu0 %v1946
      %2255 = vmatpush1.bf16.msra.mxu0 %v1945
      %2256 = vmatprep.subr.bf16.mxu0 %v2066
      %2257 = vmatpush2.bf16.msra.mxu0 %v2065
      %2258 = vmatprep.subr.bf16.mxu0 %v2058
      %2259 = vmatpush2.bf16.msra.mxu0 %v2057
      %2260 = vmatprep.subr.bf16.mxu0 %v2050
      %2261 = vmatpush2.bf16.msra.mxu0 %v2049
      %2262 = vmatprep.subr.bf16.mxu0 %v2042
      %2263 = vmatpush2.bf16.msra.mxu0 %v2041
      %2264 = vmatprep.subr.bf16.mxu0 %v2034
      %2265 = vmatpush2.bf16.msra.mxu0 %v2033
      %2266 = vmatprep.subr.bf16.mxu0 %v2026
      %2267 = vmatpush2.bf16.msra.mxu0 %v2025
      %2268 = vmatprep.subr.bf16.mxu0 %v2018
      %2269 = vmatpush2.bf16.msra.mxu0 %v2017
      %2270 = vmatprep.subr.bf16.mxu0 %v2010
      %2271 = vmatpush2.bf16.msra.mxu0 %v2009
      %2272 = vmatprep.mubr.bf16.mxu0 %v1430
      %2273 = vmatmul.mubr.bf16.gmra.mxu0 %v1429
      %v2274 = vpop.f32.mrf.mxu0
      %v2275 = vadd.f32 0.0, %v2274
      %v2276 = vpop.f32.mrf.mxu0
      %v2277 = vadd.f32 0.0, %v2276
      %v2278 = vpop.f32.mrf.mxu0
      %v2279 = vpop.f32.mrf.mxu0
      %2280 = vdwg.mxu0
      %2281 = vmatprep.subr.bf16.mxu0 %v2004
      %2282 = vmatpush1.bf16.msra.mxu0 %v2003
      %2283 = vmatprep.subr.bf16.mxu0 %v1996
      %2284 = vmatpush1.bf16.msra.mxu0 %v1995
      %2285 = vmatprep.subr.bf16.mxu0 %v1988
      %2286 = vmatpush1.bf16.msra.mxu0 %v1987
      %2287 = vmatprep.subr.bf16.mxu0 %v1980
      %2288 = vmatpush1.bf16.msra.mxu0 %v1979
      %2289 = vmatprep.subr.bf16.mxu0 %v1972
      %2290 = vmatpush1.bf16.msra.mxu0 %v1971
      %2291 = vmatprep.subr.bf16.mxu0 %v1964
      %2292 = vmatpush1.bf16.msra.mxu0 %v1963
      %2293 = vmatprep.subr.bf16.mxu0 %v1956
      %2294 = vmatpush1.bf16.msra.mxu0 %v1955
      %2295 = vmatprep.subr.bf16.mxu0 %v1948
      %2296 = vmatpush1.bf16.msra.mxu0 %v1947
      %2297 = vmatprep.subr.bf16.mxu0 %v2068
      %2298 = vmatpush2.bf16.msra.mxu0 %v2067
      %2299 = vmatprep.subr.bf16.mxu0 %v2060
      %2300 = vmatpush2.bf16.msra.mxu0 %v2059
      %2301 = vmatprep.subr.bf16.mxu0 %v2052
      %2302 = vmatpush2.bf16.msra.mxu0 %v2051
      %2303 = vmatprep.subr.bf16.mxu0 %v2044
      %2304 = vmatpush2.bf16.msra.mxu0 %v2043
      %2305 = vmatprep.subr.bf16.mxu0 %v2036
      %2306 = vmatpush2.bf16.msra.mxu0 %v2035
      %2307 = vmatprep.subr.bf16.mxu0 %v2028
      %2308 = vmatpush2.bf16.msra.mxu0 %v2027
      %2309 = vmatprep.subr.bf16.mxu0 %v2020
      %2310 = vmatpush2.bf16.msra.mxu0 %v2019
      %2311 = vmatprep.subr.bf16.mxu0 %v2012
      %2312 = vmatpush2.bf16.msra.mxu0 %v2011
      %2313 = vmatprep.mubr.bf16.mxu0 %v1430
      %2314 = vmatmul.mubr.bf16.gmra.mxu0 %v1429
      %v2315 = vpop.f32.mrf.mxu0
      %v2316 = vadd.f32 0.0, %v2315
      %v2317 = vpop.f32.mrf.mxu0
      %v2318 = vadd.f32 0.0, %v2317
      %v2319 = vpop.f32.mrf.mxu0
      %v2320 = vpop.f32.mrf.mxu0
      %2321 = vdwg.mxu0
      %2322 = vmatprep.subr.bf16.mxu0 %v2006
      %2323 = vmatpush1.bf16.msra.mxu0 %v2005
      %2324 = vmatprep.subr.bf16.mxu0 %v1998
      %2325 = vmatpush1.bf16.msra.mxu0 %v1997
      %2326 = vmatprep.subr.bf16.mxu0 %v1990
      %2327 = vmatpush1.bf16.msra.mxu0 %v1989
      %2328 = vmatprep.subr.bf16.mxu0 %v1982
      %2329 = vmatpush1.bf16.msra.mxu0 %v1981
      %2330 = vmatprep.subr.bf16.mxu0 %v1974
      %2331 = vmatpush1.bf16.msra.mxu0 %v1973
      %2332 = vmatprep.subr.bf16.mxu0 %v1966
      %2333 = vmatpush1.bf16.msra.mxu0 %v1965
      %2334 = vmatprep.subr.bf16.mxu0 %v1958
      %2335 = vmatpush1.bf16.msra.mxu0 %v1957
      %2336 = vmatprep.subr.bf16.mxu0 %v1950
      %2337 = vmatpush1.bf16.msra.mxu0 %v1949
      %2338 = vmatprep.subr.bf16.mxu0 %v2070
      %2339 = vmatpush2.bf16.msra.mxu0 %v2069
      %2340 = vmatprep.subr.bf16.mxu0 %v2062
      %2341 = vmatpush2.bf16.msra.mxu0 %v2061
      %2342 = vmatprep.subr.bf16.mxu0 %v2054
      %2343 = vmatpush2.bf16.msra.mxu0 %v2053
      %2344 = vmatprep.subr.bf16.mxu0 %v2046
      %2345 = vmatpush2.bf16.msra.mxu0 %v2045
      %2346 = vmatprep.subr.bf16.mxu0 %v2038
      %2347 = vmatpush2.bf16.msra.mxu0 %v2037
      %2348 = vmatprep.subr.bf16.mxu0 %v2030
      %2349 = vmatpush2.bf16.msra.mxu0 %v2029
      %2350 = vmatprep.subr.bf16.mxu0 %v2022
      %2351 = vmatpush2.bf16.msra.mxu0 %v2021
      %2352 = vmatprep.subr.bf16.mxu0 %v2014
      %2353 = vmatpush2.bf16.msra.mxu0 %v2013
      %2354 = vmatprep.mubr.bf16.mxu0 %v1430
      %2355 = vmatmul.mubr.bf16.gmra.mxu0 %v1429
      %v2356 = vpop.f32.mrf.mxu0
      %v2357 = vadd.f32 0.0, %v2356
      %v2358 = vpop.f32.mrf.mxu0
      %v2359 = vadd.f32 0.0, %v2358
      %v2360 = vpop.f32.mrf.mxu0
      %v2361 = vpop.f32.mrf.mxu0
      %2362 = vdwg.mxu0
      %v2371 = vcombine.low %v2234, %v2236
      %v2372 = vcombine.low %v2275, %v2277
      %v2374 = vunpack.c.l.s4 1983009808
      %v2375 = vunpack.c.0.s8 %v2374
      %v2376 = vlaneseq
      %v2377 = vshrl.u32 %v2376, 7
      %v2378 = vsub.s32 %v2375, %v2377
      %v2379 = vrot.slane %v2371, %v2378
      %v2381 = vunpack.c.l.s4 1983009808
      %v2382 = vunpack.c.0.s8 %v2381
      %v2383 = vlaneseq
      %v2384 = vshrl.u32 %v2383, 7
      %v2385 = vsub.s32 %v2382, %v2384
      %v2386 = vrot.slane %v2372, %v2385
      %v2387 = vcombine.low %v2379, %v2386
      %v2388 = vcombine.low %v2316, %v2318
      %v2389 = vcombine.low %v2357, %v2359
      %v2391 = vunpack.c.l.s4 1983009808
      %v2392 = vunpack.c.0.s8 %v2391
      %v2393 = vlaneseq
      %v2394 = vshrl.u32 %v2393, 7
      %v2395 = vsub.s32 %v2392, %v2394
      %v2396 = vrot.slane %v2388, %v2395
      %v2398 = vunpack.c.l.s4 1983009808
      %v2399 = vunpack.c.0.s8 %v2398
      %v2400 = vlaneseq
      %v2401 = vshrl.u32 %v2400, 7
      %v2402 = vsub.s32 %v2399, %v2401
      %v2403 = vrot.slane %v2389, %v2402
      %v2404 = vcombine.low %v2396, %v2403
      %v2407 = vadd.f32 %v1416, %v2387
      %v2408 = vadd.f32 %v1417, %v2404
      %v2409 = vxor.u32 %v2407, 2147483648
      %v2410 = vmul.f32 %v2409, 1.442695
      %v2411 = vpow.pop %v2410
      %v2412 = vadd.f32 %v2411, 1.0
      %v2413 = vrcp.pop %v2412
      %v2414 = vmul.f32 1.0, %v2413
      %v2416 = vrot.slane %v2407, 4
      %v2418 = vxor.u32 %v2416, 2147483648
      %v2419 = vmul.f32 %v2418, 1.442695
      %v2420 = vpow.pop %v2419
      %v2421 = vadd.f32 %v2420, 1.0
      %v2422 = vrcp.pop %v2421
      %v2423 = vmul.f32 1.0, %v2422
      %v2424 = vtanh.pop %v2408
      %v2426 = vrot.slane %v2408, 4
      %v2428 = vxor.u32 %v2426, 2147483648
      %v2429 = vmul.f32 %v2428, 1.442695
      %v2430 = vpow.pop %v2429
      %v2431 = vadd.f32 %v2430, 1.0
      %v2432 = vrcp.pop %v2431
      %v2433 = vmul.f32 1.0, %v2432
      %v2434 = vmul.f32 %v2423, %v1410
      %v2435 = vmul.f32 %v2414, %v2424
      %v2436 = vadd.f32 %v2434, %v2435
      %v2437 = vtanh.pop %v2436
      %v2438 = vmul.f32 %v2433, %v2437
      %s2439 = ssub.s32 1, %s1404
      %s2440 = smul.u32 %s2439, 8
      %s2441 = smul.addr %s2440, 2
      %s2442 = scalar_lea.vmem [#allocation3], %s2441
      %v2443 = vld [vmem:[%s2442] sm:$0xff]
      %v2444 = vld [vmem:[%s2442 + $0x8] sm:$0xff]
      %v2447 = vunpack.c.l.s4 1983009808
      %v2448 = vunpack.c.0.s8 %v2447
      %v2449 = vlaneseq
      %v2450 = vshrl.u32 %v2449, 7
      %v2451 = vsub.s32 %v2448, %v2450
      %v2452 = vrot.slane %v1411, %v2451
      %v2453 = vcombine.high %v2452, %v2452
      %v2456 = vpack.c.bf16 %v2452, %v2452
      %v2457 = vpack.c.bf16 %v2453, %v2453
      %v2458 = vld [vmem:[#allocation11] sm:$0xff]
      %v2459 = vld [vmem:[#allocation11 + $0x8] sm:$0xff]
      %v2460 = vld [vmem:[#allocation11 + $0x10] sm:$0xff]
      %v2461 = vld [vmem:[#allocation11 + $0x18] sm:$0xff]
      %v2462 = vld [vmem:[#allocation11 + $0x20] sm:$0xff]
      %v2463 = vld [vmem:[#allocation11 + $0x28] sm:$0xff]
      %v2464 = vld [vmem:[#allocation11 + $0x30] sm:$0xff]
      %v2465 = vld [vmem:[#allocation11 + $0x38] sm:$0xff]
      %v2466 = vld [vmem:[#allocation11 + $0x40] sm:$0xff]
      %v2467 = vld [vmem:[#allocation11 + $0x48] sm:$0xff]
      %v2468 = vld [vmem:[#allocation11 + $0x50] sm:$0xff]
      %v2469 = vld [vmem:[#allocation11 + $0x58] sm:$0xff]
      %v2470 = vld [vmem:[#allocation11 + $0x60] sm:$0xff]
      %v2471 = vld [vmem:[#allocation11 + $0x68] sm:$0xff]
      %v2472 = vld [vmem:[#allocation11 + $0x70] sm:$0xff]
      %v2473 = vld [vmem:[#allocation11 + $0x78] sm:$0xff]
      %v2474 = vld [vmem:[#allocation11 + $0x80] sm:$0xff]
      %v2475 = vld [vmem:[#allocation11 + $0x88] sm:$0xff]
      %v2476 = vld [vmem:[#allocation11 + $0x90] sm:$0xff]
      %v2477 = vld [vmem:[#allocation11 + $0x98] sm:$0xff]
      %v2478 = vld [vmem:[#allocation11 + $0xa0] sm:$0xff]
      %v2479 = vld [vmem:[#allocation11 + $0xa8] sm:$0xff]
      %v2480 = vld [vmem:[#allocation11 + $0xb0] sm:$0xff]
      %v2481 = vld [vmem:[#allocation11 + $0xb8] sm:$0xff]
      %v2482 = vld [vmem:[#allocation11 + $0xc0] sm:$0xff]
      %v2483 = vld [vmem:[#allocation11 + $0xc8] sm:$0xff]
      %v2484 = vld [vmem:[#allocation11 + $0xd0] sm:$0xff]
      %v2485 = vld [vmem:[#allocation11 + $0xd8] sm:$0xff]
      %v2486 = vld [vmem:[#allocation11 + $0xe0] sm:$0xff]
      %v2487 = vld [vmem:[#allocation11 + $0xe8] sm:$0xff]
      %v2488 = vld [vmem:[#allocation11 + $0xf0] sm:$0xff]
      %v2489 = vld [vmem:[#allocation11 + $0xf8] sm:$0xff]
      %v2490 = vld [vmem:[#allocation11 + $0x100] sm:$0xff]
      %v2491 = vld [vmem:[#allocation11 + $0x108] sm:$0xff]
      %v2492 = vld [vmem:[#allocation11 + $0x110] sm:$0xff]
      %v2493 = vld [vmem:[#allocation11 + $0x118] sm:$0xff]
      %v2494 = vld [vmem:[#allocation11 + $0x120] sm:$0xff]
      %v2495 = vld [vmem:[#allocation11 + $0x128] sm:$0xff]
      %v2496 = vld [vmem:[#allocation11 + $0x130] sm:$0xff]
      %v2497 = vld [vmem:[#allocation11 + $0x138] sm:$0xff]
      %v2498 = vld [vmem:[#allocation11 + $0x140] sm:$0xff]
      %v2499 = vld [vmem:[#allocation11 + $0x148] sm:$0xff]
      %v2500 = vld [vmem:[#allocation11 + $0x150] sm:$0xff]
      %v2501 = vld [vmem:[#allocation11 + $0x158] sm:$0xff]
      %v2502 = vld [vmem:[#allocation11 + $0x160] sm:$0xff]
      %v2503 = vld [vmem:[#allocation11 + $0x168] sm:$0xff]
      %v2504 = vld [vmem:[#allocation11 + $0x170] sm:$0xff]
      %v2505 = vld [vmem:[#allocation11 + $0x178] sm:$0xff]
      %v2506 = vld [vmem:[#allocation11 + $0x180] sm:$0xff]
      %v2507 = vld [vmem:[#allocation11 + $0x188] sm:$0xff]
      %v2508 = vld [vmem:[#allocation11 + $0x190] sm:$0xff]
      %v2509 = vld [vmem:[#allocation11 + $0x198] sm:$0xff]
      %v2510 = vld [vmem:[#allocation11 + $0x1a0] sm:$0xff]
      %v2511 = vld [vmem:[#allocation11 + $0x1a8] sm:$0xff]
      %v2512 = vld [vmem:[#allocation11 + $0x1b0] sm:$0xff]
      %v2513 = vld [vmem:[#allocation11 + $0x1b8] sm:$0xff]
      %v2514 = vld [vmem:[#allocation11 + $0x1c0] sm:$0xff]
      %v2515 = vld [vmem:[#allocation11 + $0x1c8] sm:$0xff]
      %v2516 = vld [vmem:[#allocation11 + $0x1d0] sm:$0xff]
      %v2517 = vld [vmem:[#allocation11 + $0x1d8] sm:$0xff]
      %v2518 = vld [vmem:[#allocation11 + $0x1e0] sm:$0xff]
      %v2519 = vld [vmem:[#allocation11 + $0x1e8] sm:$0xff]
      %v2520 = vld [vmem:[#allocation11 + $0x1f0] sm:$0xff]
      %v2521 = vld [vmem:[#allocation11 + $0x1f8] sm:$0xff]
      %v2522 = vld [vmem:[#allocation11 + $0x200] sm:$0xff]
      %v2523 = vld [vmem:[#allocation11 + $0x208] sm:$0xff]
      %v2524 = vld [vmem:[#allocation11 + $0x210] sm:$0xff]
      %v2525 = vld [vmem:[#allocation11 + $0x218] sm:$0xff]
      %v2526 = vld [vmem:[#allocation11 + $0x220] sm:$0xff]
      %v2527 = vld [vmem:[#allocation11 + $0x228] sm:$0xff]
      %v2528 = vld [vmem:[#allocation11 + $0x230] sm:$0xff]
      %v2529 = vld [vmem:[#allocation11 + $0x238] sm:$0xff]
      %v2530 = vld [vmem:[#allocation11 + $0x240] sm:$0xff]
      %v2531 = vld [vmem:[#allocation11 + $0x248] sm:$0xff]
      %v2532 = vld [vmem:[#allocation11 + $0x250] sm:$0xff]
      %v2533 = vld [vmem:[#allocation11 + $0x258] sm:$0xff]
      %v2534 = vld [vmem:[#allocation11 + $0x260] sm:$0xff]
      %v2535 = vld [vmem:[#allocation11 + $0x268] sm:$0xff]
      %v2536 = vld [vmem:[#allocation11 + $0x270] sm:$0xff]
      %v2537 = vld [vmem:[#allocation11 + $0x278] sm:$0xff]
      %v2538 = vld [vmem:[#allocation11 + $0x280] sm:$0xff]
      %v2539 = vld [vmem:[#allocation11 + $0x288] sm:$0xff]
      %v2540 = vld [vmem:[#allocation11 + $0x290] sm:$0xff]
      %v2541 = vld [vmem:[#allocation11 + $0x298] sm:$0xff]
      %v2542 = vld [vmem:[#allocation11 + $0x2a0] sm:$0xff]
      %v2543 = vld [vmem:[#allocation11 + $0x2a8] sm:$0xff]
      %v2544 = vld [vmem:[#allocation11 + $0x2b0] sm:$0xff]
      %v2545 = vld [vmem:[#allocation11 + $0x2b8] sm:$0xff]
      %v2546 = vld [vmem:[#allocation11 + $0x2c0] sm:$0xff]
      %v2547 = vld [vmem:[#allocation11 + $0x2c8] sm:$0xff]
      %v2548 = vld [vmem:[#allocation11 + $0x2d0] sm:$0xff]
      %v2549 = vld [vmem:[#allocation11 + $0x2d8] sm:$0xff]
      %v2550 = vld [vmem:[#allocation11 + $0x2e0] sm:$0xff]
      %v2551 = vld [vmem:[#allocation11 + $0x2e8] sm:$0xff]
      %v2552 = vld [vmem:[#allocation11 + $0x2f0] sm:$0xff]
      %v2553 = vld [vmem:[#allocation11 + $0x2f8] sm:$0xff]
      %v2554 = vld [vmem:[#allocation11 + $0x300] sm:$0xff]
      %v2555 = vld [vmem:[#allocation11 + $0x308] sm:$0xff]
      %v2556 = vld [vmem:[#allocation11 + $0x310] sm:$0xff]
      %v2557 = vld [vmem:[#allocation11 + $0x318] sm:$0xff]
      %v2558 = vld [vmem:[#allocation11 + $0x320] sm:$0xff]
      %v2559 = vld [vmem:[#allocation11 + $0x328] sm:$0xff]
      %v2560 = vld [vmem:[#allocation11 + $0x330] sm:$0xff]
      %v2561 = vld [vmem:[#allocation11 + $0x338] sm:$0xff]
      %v2562 = vld [vmem:[#allocation11 + $0x340] sm:$0xff]
      %v2563 = vld [vmem:[#allocation11 + $0x348] sm:$0xff]
      %v2564 = vld [vmem:[#allocation11 + $0x350] sm:$0xff]
      %v2565 = vld [vmem:[#allocation11 + $0x358] sm:$0xff]
      %v2566 = vld [vmem:[#allocation11 + $0x360] sm:$0xff]
      %v2567 = vld [vmem:[#allocation11 + $0x368] sm:$0xff]
      %v2568 = vld [vmem:[#allocation11 + $0x370] sm:$0xff]
      %v2569 = vld [vmem:[#allocation11 + $0x378] sm:$0xff]
      %v2570 = vld [vmem:[#allocation11 + $0x380] sm:$0xff]
      %v2571 = vld [vmem:[#allocation11 + $0x388] sm:$0xff]
      %v2572 = vld [vmem:[#allocation11 + $0x390] sm:$0xff]
      %v2573 = vld [vmem:[#allocation11 + $0x398] sm:$0xff]
      %v2574 = vld [vmem:[#allocation11 + $0x3a0] sm:$0xff]
      %v2575 = vld [vmem:[#allocation11 + $0x3a8] sm:$0xff]
      %v2576 = vld [vmem:[#allocation11 + $0x3b0] sm:$0xff]
      %v2577 = vld [vmem:[#allocation11 + $0x3b8] sm:$0xff]
      %v2578 = vld [vmem:[#allocation11 + $0x3c0] sm:$0xff]
      %v2579 = vld [vmem:[#allocation11 + $0x3c8] sm:$0xff]
      %v2580 = vld [vmem:[#allocation11 + $0x3d0] sm:$0xff]
      %v2581 = vld [vmem:[#allocation11 + $0x3d8] sm:$0xff]
      %v2582 = vld [vmem:[#allocation11 + $0x3e0] sm:$0xff]
      %v2583 = vld [vmem:[#allocation11 + $0x3e8] sm:$0xff]
      %v2584 = vld [vmem:[#allocation11 + $0x3f0] sm:$0xff]
      %v2585 = vld [vmem:[#allocation11 + $0x3f8] sm:$0xff]
      %v2714 = vunpack.c.l.b16 %v2458
      %v2715 = vunpack.c.h.b16 %v2458
      %v2716 = vunpack.c.l.b16 %v2459
      %v2717 = vunpack.c.h.b16 %v2459
      %v2718 = vunpack.c.l.b16 %v2460
      %v2719 = vunpack.c.h.b16 %v2460
      %v2720 = vunpack.c.l.b16 %v2461
      %v2721 = vunpack.c.h.b16 %v2461
      %v2722 = vunpack.c.l.b16 %v2462
      %v2723 = vunpack.c.h.b16 %v2462
      %v2724 = vunpack.c.l.b16 %v2463
      %v2725 = vunpack.c.h.b16 %v2463
      %v2726 = vunpack.c.l.b16 %v2464
      %v2727 = vunpack.c.h.b16 %v2464
      %v2728 = vunpack.c.l.b16 %v2465
      %v2729 = vunpack.c.h.b16 %v2465
      %v2730 = vunpack.c.l.b16 %v2466
      %v2731 = vunpack.c.h.b16 %v2466
      %v2732 = vunpack.c.l.b16 %v2467
      %v2733 = vunpack.c.h.b16 %v2467
      %v2734 = vunpack.c.l.b16 %v2468
      %v2735 = vunpack.c.h.b16 %v2468
      %v2736 = vunpack.c.l.b16 %v2469
      %v2737 = vunpack.c.h.b16 %v2469
      %v2738 = vunpack.c.l.b16 %v2470
      %v2739 = vunpack.c.h.b16 %v2470
      %v2740 = vunpack.c.l.b16 %v2471
      %v2741 = vunpack.c.h.b16 %v2471
      %v2742 = vunpack.c.l.b16 %v2472
      %v2743 = vunpack.c.h.b16 %v2472
      %v2744 = vunpack.c.l.b16 %v2473
      %v2745 = vunpack.c.h.b16 %v2473
      %v2746 = vunpack.c.l.b16 %v2474
      %v2747 = vunpack.c.h.b16 %v2474
      %v2748 = vunpack.c.l.b16 %v2475
      %v2749 = vunpack.c.h.b16 %v2475
      %v2750 = vunpack.c.l.b16 %v2476
      %v2751 = vunpack.c.h.b16 %v2476
      %v2752 = vunpack.c.l.b16 %v2477
      %v2753 = vunpack.c.h.b16 %v2477
      %v2754 = vunpack.c.l.b16 %v2478
      %v2755 = vunpack.c.h.b16 %v2478
      %v2756 = vunpack.c.l.b16 %v2479
      %v2757 = vunpack.c.h.b16 %v2479
      %v2758 = vunpack.c.l.b16 %v2480
      %v2759 = vunpack.c.h.b16 %v2480
      %v2760 = vunpack.c.l.b16 %v2481
      %v2761 = vunpack.c.h.b16 %v2481
      %v2762 = vunpack.c.l.b16 %v2482
      %v2763 = vunpack.c.h.b16 %v2482
      %v2764 = vunpack.c.l.b16 %v2483
      %v2765 = vunpack.c.h.b16 %v2483
      %v2766 = vunpack.c.l.b16 %v2484
      %v2767 = vunpack.c.h.b16 %v2484
      %v2768 = vunpack.c.l.b16 %v2485
      %v2769 = vunpack.c.h.b16 %v2485
      %v2770 = vunpack.c.l.b16 %v2486
      %v2771 = vunpack.c.h.b16 %v2486
      %v2772 = vunpack.c.l.b16 %v2487
      %v2773 = vunpack.c.h.b16 %v2487
      %v2774 = vunpack.c.l.b16 %v2488
      %v2775 = vunpack.c.h.b16 %v2488
      %v2776 = vunpack.c.l.b16 %v2489
      %v2777 = vunpack.c.h.b16 %v2489
      %v2778 = vunpack.c.l.b16 %v2490
      %v2779 = vunpack.c.h.b16 %v2490
      %v2780 = vunpack.c.l.b16 %v2491
      %v2781 = vunpack.c.h.b16 %v2491
      %v2782 = vunpack.c.l.b16 %v2492
      %v2783 = vunpack.c.h.b16 %v2492
      %v2784 = vunpack.c.l.b16 %v2493
      %v2785 = vunpack.c.h.b16 %v2493
      %v2786 = vunpack.c.l.b16 %v2494
      %v2787 = vunpack.c.h.b16 %v2494
      %v2788 = vunpack.c.l.b16 %v2495
      %v2789 = vunpack.c.h.b16 %v2495
      %v2790 = vunpack.c.l.b16 %v2496
      %v2791 = vunpack.c.h.b16 %v2496
      %v2792 = vunpack.c.l.b16 %v2497
      %v2793 = vunpack.c.h.b16 %v2497
      %v2794 = vunpack.c.l.b16 %v2498
      %v2795 = vunpack.c.h.b16 %v2498
      %v2796 = vunpack.c.l.b16 %v2499
      %v2797 = vunpack.c.h.b16 %v2499
      %v2798 = vunpack.c.l.b16 %v2500
      %v2799 = vunpack.c.h.b16 %v2500
      %v2800 = vunpack.c.l.b16 %v2501
      %v2801 = vunpack.c.h.b16 %v2501
      %v2802 = vunpack.c.l.b16 %v2502
      %v2803 = vunpack.c.h.b16 %v2502
      %v2804 = vunpack.c.l.b16 %v2503
      %v2805 = vunpack.c.h.b16 %v2503
      %v2806 = vunpack.c.l.b16 %v2504
      %v2807 = vunpack.c.h.b16 %v2504
      %v2808 = vunpack.c.l.b16 %v2505
      %v2809 = vunpack.c.h.b16 %v2505
      %v2810 = vunpack.c.l.b16 %v2506
      %v2811 = vunpack.c.h.b16 %v2506
      %v2812 = vunpack.c.l.b16 %v2507
      %v2813 = vunpack.c.h.b16 %v2507
      %v2814 = vunpack.c.l.b16 %v2508
      %v2815 = vunpack.c.h.b16 %v2508
      %v2816 = vunpack.c.l.b16 %v2509
      %v2817 = vunpack.c.h.b16 %v2509
      %v2818 = vunpack.c.l.b16 %v2510
      %v2819 = vunpack.c.h.b16 %v2510
      %v2820 = vunpack.c.l.b16 %v2511
      %v2821 = vunpack.c.h.b16 %v2511
      %v2822 = vunpack.c.l.b16 %v2512
      %v2823 = vunpack.c.h.b16 %v2512
      %v2824 = vunpack.c.l.b16 %v2513
      %v2825 = vunpack.c.h.b16 %v2513
      %v2826 = vunpack.c.l.b16 %v2514
      %v2827 = vunpack.c.h.b16 %v2514
      %v2828 = vunpack.c.l.b16 %v2515
      %v2829 = vunpack.c.h.b16 %v2515
      %v2830 = vunpack.c.l.b16 %v2516
      %v2831 = vunpack.c.h.b16 %v2516
      %v2832 = vunpack.c.l.b16 %v2517
      %v2833 = vunpack.c.h.b16 %v2517
      %v2834 = vunpack.c.l.b16 %v2518
      %v2835 = vunpack.c.h.b16 %v2518
      %v2836 = vunpack.c.l.b16 %v2519
      %v2837 = vunpack.c.h.b16 %v2519
      %v2838 = vunpack.c.l.b16 %v2520
      %v2839 = vunpack.c.h.b16 %v2520
      %v2840 = vunpack.c.l.b16 %v2521
      %v2841 = vunpack.c.h.b16 %v2521
      %v2842 = vunpack.c.l.b16 %v2522
      %v2843 = vunpack.c.h.b16 %v2522
      %v2844 = vunpack.c.l.b16 %v2523
      %v2845 = vunpack.c.h.b16 %v2523
      %v2846 = vunpack.c.l.b16 %v2524
      %v2847 = vunpack.c.h.b16 %v2524
      %v2848 = vunpack.c.l.b16 %v2525
      %v2849 = vunpack.c.h.b16 %v2525
      %v2850 = vunpack.c.l.b16 %v2526
      %v2851 = vunpack.c.h.b16 %v2526
      %v2852 = vunpack.c.l.b16 %v2527
      %v2853 = vunpack.c.h.b16 %v2527
      %v2854 = vunpack.c.l.b16 %v2528
      %v2855 = vunpack.c.h.b16 %v2528
      %v2856 = vunpack.c.l.b16 %v2529
      %v2857 = vunpack.c.h.b16 %v2529
      %v2858 = vunpack.c.l.b16 %v2530
      %v2859 = vunpack.c.h.b16 %v2530
      %v2860 = vunpack.c.l.b16 %v2531
      %v2861 = vunpack.c.h.b16 %v2531
      %v2862 = vunpack.c.l.b16 %v2532
      %v2863 = vunpack.c.h.b16 %v2532
      %v2864 = vunpack.c.l.b16 %v2533
      %v2865 = vunpack.c.h.b16 %v2533
      %v2866 = vunpack.c.l.b16 %v2534
      %v2867 = vunpack.c.h.b16 %v2534
      %v2868 = vunpack.c.l.b16 %v2535
      %v2869 = vunpack.c.h.b16 %v2535
      %v2870 = vunpack.c.l.b16 %v2536
      %v2871 = vunpack.c.h.b16 %v2536
      %v2872 = vunpack.c.l.b16 %v2537
      %v2873 = vunpack.c.h.b16 %v2537
      %v2874 = vunpack.c.l.b16 %v2538
      %v2875 = vunpack.c.h.b16 %v2538
      %v2876 = vunpack.c.l.b16 %v2539
      %v2877 = vunpack.c.h.b16 %v2539
      %v2878 = vunpack.c.l.b16 %v2540
      %v2879 = vunpack.c.h.b16 %v2540
      %v2880 = vunpack.c.l.b16 %v2541
      %v2881 = vunpack.c.h.b16 %v2541
      %v2882 = vunpack.c.l.b16 %v2542
      %v2883 = vunpack.c.h.b16 %v2542
      %v2884 = vunpack.c.l.b16 %v2543
      %v2885 = vunpack.c.h.b16 %v2543
      %v2886 = vunpack.c.l.b16 %v2544
      %v2887 = vunpack.c.h.b16 %v2544
      %v2888 = vunpack.c.l.b16 %v2545
      %v2889 = vunpack.c.h.b16 %v2545
      %v2890 = vunpack.c.l.b16 %v2546
      %v2891 = vunpack.c.h.b16 %v2546
      %v2892 = vunpack.c.l.b16 %v2547
      %v2893 = vunpack.c.h.b16 %v2547
      %v2894 = vunpack.c.l.b16 %v2548
      %v2895 = vunpack.c.h.b16 %v2548
      %v2896 = vunpack.c.l.b16 %v2549
      %v2897 = vunpack.c.h.b16 %v2549
      %v2898 = vunpack.c.l.b16 %v2550
      %v2899 = vunpack.c.h.b16 %v2550
      %v2900 = vunpack.c.l.b16 %v2551
      %v2901 = vunpack.c.h.b16 %v2551
      %v2902 = vunpack.c.l.b16 %v2552
      %v2903 = vunpack.c.h.b16 %v2552
      %v2904 = vunpack.c.l.b16 %v2553
      %v2905 = vunpack.c.h.b16 %v2553
      %v2906 = vunpack.c.l.b16 %v2554
      %v2907 = vunpack.c.h.b16 %v2554
      %v2908 = vunpack.c.l.b16 %v2555
      %v2909 = vunpack.c.h.b16 %v2555
      %v2910 = vunpack.c.l.b16 %v2556
      %v2911 = vunpack.c.h.b16 %v2556
      %v2912 = vunpack.c.l.b16 %v2557
      %v2913 = vunpack.c.h.b16 %v2557
      %v2914 = vunpack.c.l.b16 %v2558
      %v2915 = vunpack.c.h.b16 %v2558
      %v2916 = vunpack.c.l.b16 %v2559
      %v2917 = vunpack.c.h.b16 %v2559
      %v2918 = vunpack.c.l.b16 %v2560
      %v2919 = vunpack.c.h.b16 %v2560
      %v2920 = vunpack.c.l.b16 %v2561
      %v2921 = vunpack.c.h.b16 %v2561
      %v2922 = vunpack.c.l.b16 %v2562
      %v2923 = vunpack.c.h.b16 %v2562
      %v2924 = vunpack.c.l.b16 %v2563
      %v2925 = vunpack.c.h.b16 %v2563
      %v2926 = vunpack.c.l.b16 %v2564
      %v2927 = vunpack.c.h.b16 %v2564
      %v2928 = vunpack.c.l.b16 %v2565
      %v2929 = vunpack.c.h.b16 %v2565
      %v2930 = vunpack.c.l.b16 %v2566
      %v2931 = vunpack.c.h.b16 %v2566
      %v2932 = vunpack.c.l.b16 %v2567
      %v2933 = vunpack.c.h.b16 %v2567
      %v2934 = vunpack.c.l.b16 %v2568
      %v2935 = vunpack.c.h.b16 %v2568
      %v2936 = vunpack.c.l.b16 %v2569
      %v2937 = vunpack.c.h.b16 %v2569
      %v2938 = vunpack.c.l.b16 %v2570
      %v2939 = vunpack.c.h.b16 %v2570
      %v2940 = vunpack.c.l.b16 %v2571
      %v2941 = vunpack.c.h.b16 %v2571
      %v2942 = vunpack.c.l.b16 %v2572
      %v2943 = vunpack.c.h.b16 %v2572
      %v2944 = vunpack.c.l.b16 %v2573
      %v2945 = vunpack.c.h.b16 %v2573
      %v2946 = vunpack.c.l.b16 %v2574
      %v2947 = vunpack.c.h.b16 %v2574
      %v2948 = vunpack.c.l.b16 %v2575
      %v2949 = vunpack.c.h.b16 %v2575
      %v2950 = vunpack.c.l.b16 %v2576
      %v2951 = vunpack.c.h.b16 %v2576
      %v2952 = vunpack.c.l.b16 %v2577
      %v2953 = vunpack.c.h.b16 %v2577
      %v2954 = vunpack.c.l.b16 %v2578
      %v2955 = vunpack.c.h.b16 %v2578
      %v2956 = vunpack.c.l.b16 %v2579
      %v2957 = vunpack.c.h.b16 %v2579
      %v2958 = vunpack.c.l.b16 %v2580
      %v2959 = vunpack.c.h.b16 %v2580
      %v2960 = vunpack.c.l.b16 %v2581
      %v2961 = vunpack.c.h.b16 %v2581
      %v2962 = vunpack.c.l.b16 %v2582
      %v2963 = vunpack.c.h.b16 %v2582
      %v2964 = vunpack.c.l.b16 %v2583
      %v2965 = vunpack.c.h.b16 %v2583
      %v2966 = vunpack.c.l.b16 %v2584
      %v2967 = vunpack.c.h.b16 %v2584
      %v2968 = vunpack.c.l.b16 %v2585
      %v2969 = vunpack.c.h.b16 %v2585
      %v2970 = vpack.c.b16 %v2722, %v2714
      %v2971 = vpack.c.b16 %v2723, %v2715
      %v2972 = vpack.c.b16 %v2724, %v2716
      %v2973 = vpack.c.b16 %v2725, %v2717
      %v2974 = vpack.c.b16 %v2726, %v2718
      %v2975 = vpack.c.b16 %v2727, %v2719
      %v2976 = vpack.c.b16 %v2728, %v2720
      %v2977 = vpack.c.b16 %v2729, %v2721
      %v2978 = vpack.c.b16 %v2738, %v2730
      %v2979 = vpack.c.b16 %v2739, %v2731
      %v2980 = vpack.c.b16 %v2740, %v2732
      %v2981 = vpack.c.b16 %v2741, %v2733
      %v2982 = vpack.c.b16 %v2742, %v2734
      %v2983 = vpack.c.b16 %v2743, %v2735
      %v2984 = vpack.c.b16 %v2744, %v2736
      %v2985 = vpack.c.b16 %v2745, %v2737
      %v2986 = vpack.c.b16 %v2754, %v2746
      %v2987 = vpack.c.b16 %v2755, %v2747
      %v2988 = vpack.c.b16 %v2756, %v2748
      %v2989 = vpack.c.b16 %v2757, %v2749
      %v2990 = vpack.c.b16 %v2758, %v2750
      %v2991 = vpack.c.b16 %v2759, %v2751
      %v2992 = vpack.c.b16 %v2760, %v2752
      %v2993 = vpack.c.b16 %v2761, %v2753
      %v2994 = vpack.c.b16 %v2770, %v2762
      %v2995 = vpack.c.b16 %v2771, %v2763
      %v2996 = vpack.c.b16 %v2772, %v2764
      %v2997 = vpack.c.b16 %v2773, %v2765
      %v2998 = vpack.c.b16 %v2774, %v2766
      %v2999 = vpack.c.b16 %v2775, %v2767
      %v3000 = vpack.c.b16 %v2776, %v2768
      %v3001 = vpack.c.b16 %v2777, %v2769
      %v3002 = vpack.c.b16 %v2786, %v2778
      %v3003 = vpack.c.b16 %v2787, %v2779
      %v3004 = vpack.c.b16 %v2788, %v2780
      %v3005 = vpack.c.b16 %v2789, %v2781
      %v3006 = vpack.c.b16 %v2790, %v2782
      %v3007 = vpack.c.b16 %v2791, %v2783
      %v3008 = vpack.c.b16 %v2792, %v2784
      %v3009 = vpack.c.b16 %v2793, %v2785
      %v3010 = vpack.c.b16 %v2802, %v2794
      %v3011 = vpack.c.b16 %v2803, %v2795
      %v3012 = vpack.c.b16 %v2804, %v2796
      %v3013 = vpack.c.b16 %v2805, %v2797
      %v3014 = vpack.c.b16 %v2806, %v2798
      %v3015 = vpack.c.b16 %v2807, %v2799
      %v3016 = vpack.c.b16 %v2808, %v2800
      %v3017 = vpack.c.b16 %v2809, %v2801
      %v3018 = vpack.c.b16 %v2818, %v2810
      %v3019 = vpack.c.b16 %v2819, %v2811
      %v3020 = vpack.c.b16 %v2820, %v2812
      %v3021 = vpack.c.b16 %v2821, %v2813
      %v3022 = vpack.c.b16 %v2822, %v2814
      %v3023 = vpack.c.b16 %v2823, %v2815
      %v3024 = vpack.c.b16 %v2824, %v2816
      %v3025 = vpack.c.b16 %v2825, %v2817
      %v3026 = vpack.c.b16 %v2834, %v2826
      %v3027 = vpack.c.b16 %v2835, %v2827
      %v3028 = vpack.c.b16 %v2836, %v2828
      %v3029 = vpack.c.b16 %v2837, %v2829
      %v3030 = vpack.c.b16 %v2838, %v2830
      %v3031 = vpack.c.b16 %v2839, %v2831
      %v3032 = vpack.c.b16 %v2840, %v2832
      %v3033 = vpack.c.b16 %v2841, %v2833
      %v3034 = vpack.c.b16 %v2850, %v2842
      %v3035 = vpack.c.b16 %v2851, %v2843
      %v3036 = vpack.c.b16 %v2852, %v2844
      %v3037 = vpack.c.b16 %v2853, %v2845
      %v3038 = vpack.c.b16 %v2854, %v2846
      %v3039 = vpack.c.b16 %v2855, %v2847
      %v3040 = vpack.c.b16 %v2856, %v2848
      %v3041 = vpack.c.b16 %v2857, %v2849
      %v3042 = vpack.c.b16 %v2866, %v2858
      %v3043 = vpack.c.b16 %v2867, %v2859
      %v3044 = vpack.c.b16 %v2868, %v2860
      %v3045 = vpack.c.b16 %v2869, %v2861
      %v3046 = vpack.c.b16 %v2870, %v2862
      %v3047 = vpack.c.b16 %v2871, %v2863
      %v3048 = vpack.c.b16 %v2872, %v2864
      %v3049 = vpack.c.b16 %v2873, %v2865
      %v3050 = vpack.c.b16 %v2882, %v2874
      %v3051 = vpack.c.b16 %v2883, %v2875
      %v3052 = vpack.c.b16 %v2884, %v2876
      %v3053 = vpack.c.b16 %v2885, %v2877
      %v3054 = vpack.c.b16 %v2886, %v2878
      %v3055 = vpack.c.b16 %v2887, %v2879
      %v3056 = vpack.c.b16 %v2888, %v2880
      %v3057 = vpack.c.b16 %v2889, %v2881
      %v3058 = vpack.c.b16 %v2898, %v2890
      %v3059 = vpack.c.b16 %v2899, %v2891
      %v3060 = vpack.c.b16 %v2900, %v2892
      %v3061 = vpack.c.b16 %v2901, %v2893
      %v3062 = vpack.c.b16 %v2902, %v2894
      %v3063 = vpack.c.b16 %v2903, %v2895
      %v3064 = vpack.c.b16 %v2904, %v2896
      %v3065 = vpack.c.b16 %v2905, %v2897
      %v3066 = vpack.c.b16 %v2914, %v2906
      %v3067 = vpack.c.b16 %v2915, %v2907
      %v3068 = vpack.c.b16 %v2916, %v2908
      %v3069 = vpack.c.b16 %v2917, %v2909
      %v3070 = vpack.c.b16 %v2918, %v2910
      %v3071 = vpack.c.b16 %v2919, %v2911
      %v3072 = vpack.c.b16 %v2920, %v2912
      %v3073 = vpack.c.b16 %v2921, %v2913
      %v3074 = vpack.c.b16 %v2930, %v2922
      %v3075 = vpack.c.b16 %v2931, %v2923
      %v3076 = vpack.c.b16 %v2932, %v2924
      %v3077 = vpack.c.b16 %v2933, %v2925
      %v3078 = vpack.c.b16 %v2934, %v2926
      %v3079 = vpack.c.b16 %v2935, %v2927
      %v3080 = vpack.c.b16 %v2936, %v2928
      %v3081 = vpack.c.b16 %v2937, %v2929
      %v3082 = vpack.c.b16 %v2946, %v2938
      %v3083 = vpack.c.b16 %v2947, %v2939
      %v3084 = vpack.c.b16 %v2948, %v2940
      %v3085 = vpack.c.b16 %v2949, %v2941
      %v3086 = vpack.c.b16 %v2950, %v2942
      %v3087 = vpack.c.b16 %v2951, %v2943
      %v3088 = vpack.c.b16 %v2952, %v2944
      %v3089 = vpack.c.b16 %v2953, %v2945
      %v3090 = vpack.c.b16 %v2962, %v2954
      %v3091 = vpack.c.b16 %v2963, %v2955
      %v3092 = vpack.c.b16 %v2964, %v2956
      %v3093 = vpack.c.b16 %v2965, %v2957
      %v3094 = vpack.c.b16 %v2966, %v2958
      %v3095 = vpack.c.b16 %v2967, %v2959
      %v3096 = vpack.c.b16 %v2968, %v2960
      %v3097 = vpack.c.b16 %v2969, %v2961
      %3226 = vmatprep.subr.bf16.mxu0 %v3027
      %3227 = vmatpush1.bf16.msra.mxu0 %v3026
      %3228 = vmatprep.subr.bf16.mxu0 %v3019
      %3229 = vmatpush1.bf16.msra.mxu0 %v3018
      %3230 = vmatprep.subr.bf16.mxu0 %v3011
      %3231 = vmatpush1.bf16.msra.mxu0 %v3010
      %3232 = vmatprep.subr.bf16.mxu0 %v3003
      %3233 = vmatpush1.bf16.msra.mxu0 %v3002
      %3234 = vmatprep.subr.bf16.mxu0 %v2995
      %3235 = vmatpush1.bf16.msra.mxu0 %v2994
      %3236 = vmatprep.subr.bf16.mxu0 %v2987
      %3237 = vmatpush1.bf16.msra.mxu0 %v2986
      %3238 = vmatprep.subr.bf16.mxu0 %v2979
      %3239 = vmatpush1.bf16.msra.mxu0 %v2978
      %3240 = vmatprep.subr.bf16.mxu0 %v2971
      %3241 = vmatpush1.bf16.msra.mxu0 %v2970
      %3242 = vmatprep.subr.bf16.mxu0 %v3091
      %3243 = vmatpush2.bf16.msra.mxu0 %v3090
      %3244 = vmatprep.subr.bf16.mxu0 %v3083
      %3245 = vmatpush2.bf16.msra.mxu0 %v3082
      %3246 = vmatprep.subr.bf16.mxu0 %v3075
      %3247 = vmatpush2.bf16.msra.mxu0 %v3074
      %3248 = vmatprep.subr.bf16.mxu0 %v3067
      %3249 = vmatpush2.bf16.msra.mxu0 %v3066
      %3250 = vmatprep.subr.bf16.mxu0 %v3059
      %3251 = vmatpush2.bf16.msra.mxu0 %v3058
      %3252 = vmatprep.subr.bf16.mxu0 %v3051
      %3253 = vmatpush2.bf16.msra.mxu0 %v3050
      %3254 = vmatprep.subr.bf16.mxu0 %v3043
      %3255 = vmatpush2.bf16.msra.mxu0 %v3042
      %3256 = vmatprep.subr.bf16.mxu0 %v3035
      %3257 = vmatpush2.bf16.msra.mxu0 %v3034
      %3258 = vmatprep.mubr.bf16.mxu0 %v2457
      %3259 = vmatmul.mubr.bf16.gmra.mxu0 %v2456
      %v3260 = vpop.f32.mrf.mxu0
      %v3261 = vadd.f32 0.0, %v3260
      %v3262 = vpop.f32.mrf.mxu0
      %v3263 = vadd.f32 0.0, %v3262
      %v3264 = vpop.f32.mrf.mxu0
      %v3265 = vpop.f32.mrf.mxu0
      %3266 = vdwg.mxu0
      %3267 = vmatprep.subr.bf16.mxu0 %v3029
      %3268 = vmatpush1.bf16.msra.mxu0 %v3028
      %3269 = vmatprep.subr.bf16.mxu0 %v3021
      %3270 = vmatpush1.bf16.msra.mxu0 %v3020
      %3271 = vmatprep.subr.bf16.mxu0 %v3013
      %3272 = vmatpush1.bf16.msra.mxu0 %v3012
      %3273 = vmatprep.subr.bf16.mxu0 %v3005
      %3274 = vmatpush1.bf16.msra.mxu0 %v3004
      %3275 = vmatprep.subr.bf16.mxu0 %v2997
      %3276 = vmatpush1.bf16.msra.mxu0 %v2996
      %3277 = vmatprep.subr.bf16.mxu0 %v2989
      %3278 = vmatpush1.bf16.msra.mxu0 %v2988
      %3279 = vmatprep.subr.bf16.mxu0 %v2981
      %3280 = vmatpush1.bf16.msra.mxu0 %v2980
      %3281 = vmatprep.subr.bf16.mxu0 %v2973
      %3282 = vmatpush1.bf16.msra.mxu0 %v2972
      %3283 = vmatprep.subr.bf16.mxu0 %v3093
      %3284 = vmatpush2.bf16.msra.mxu0 %v3092
      %3285 = vmatprep.subr.bf16.mxu0 %v3085
      %3286 = vmatpush2.bf16.msra.mxu0 %v3084
      %3287 = vmatprep.subr.bf16.mxu0 %v3077
      %3288 = vmatpush2.bf16.msra.mxu0 %v3076
      %3289 = vmatprep.subr.bf16.mxu0 %v3069
      %3290 = vmatpush2.bf16.msra.mxu0 %v3068
      %3291 = vmatprep.subr.bf16.mxu0 %v3061
      %3292 = vmatpush2.bf16.msra.mxu0 %v3060
      %3293 = vmatprep.subr.bf16.mxu0 %v3053
      %3294 = vmatpush2.bf16.msra.mxu0 %v3052
      %3295 = vmatprep.subr.bf16.mxu0 %v3045
      %3296 = vmatpush2.bf16.msra.mxu0 %v3044
      %3297 = vmatprep.subr.bf16.mxu0 %v3037
      %3298 = vmatpush2.bf16.msra.mxu0 %v3036
      %3299 = vmatprep.mubr.bf16.mxu0 %v2457
      %3300 = vmatmul.mubr.bf16.gmra.mxu0 %v2456
      %v3301 = vpop.f32.mrf.mxu0
      %v3302 = vadd.f32 0.0, %v3301
      %v3303 = vpop.f32.mrf.mxu0
      %v3304 = vadd.f32 0.0, %v3303
      %v3305 = vpop.f32.mrf.mxu0
      %v3306 = vpop.f32.mrf.mxu0
      %3307 = vdwg.mxu0
      %3308 = vmatprep.subr.bf16.mxu0 %v3031
      %3309 = vmatpush1.bf16.msra.mxu0 %v3030
      %3310 = vmatprep.subr.bf16.mxu0 %v3023
      %3311 = vmatpush1.bf16.msra.mxu0 %v3022
      %3312 = vmatprep.subr.bf16.mxu0 %v3015
      %3313 = vmatpush1.bf16.msra.mxu0 %v3014
      %3314 = vmatprep.subr.bf16.mxu0 %v3007
      %3315 = vmatpush1.bf16.msra.mxu0 %v3006
      %3316 = vmatprep.subr.bf16.mxu0 %v2999
      %3317 = vmatpush1.bf16.msra.mxu0 %v2998
      %3318 = vmatprep.subr.bf16.mxu0 %v2991
      %3319 = vmatpush1.bf16.msra.mxu0 %v2990
      %3320 = vmatprep.subr.bf16.mxu0 %v2983
      %3321 = vmatpush1.bf16.msra.mxu0 %v2982
      %3322 = vmatprep.subr.bf16.mxu0 %v2975
      %3323 = vmatpush1.bf16.msra.mxu0 %v2974
      %3324 = vmatprep.subr.bf16.mxu0 %v3095
      %3325 = vmatpush2.bf16.msra.mxu0 %v3094
      %3326 = vmatprep.subr.bf16.mxu0 %v3087
      %3327 = vmatpush2.bf16.msra.mxu0 %v3086
      %3328 = vmatprep.subr.bf16.mxu0 %v3079
      %3329 = vmatpush2.bf16.msra.mxu0 %v3078
      %3330 = vmatprep.subr.bf16.mxu0 %v3071
      %3331 = vmatpush2.bf16.msra.mxu0 %v3070
      %3332 = vmatprep.subr.bf16.mxu0 %v3063
      %3333 = vmatpush2.bf16.msra.mxu0 %v3062
      %3334 = vmatprep.subr.bf16.mxu0 %v3055
      %3335 = vmatpush2.bf16.msra.mxu0 %v3054
      %3336 = vmatprep.subr.bf16.mxu0 %v3047
      %3337 = vmatpush2.bf16.msra.mxu0 %v3046
      %3338 = vmatprep.subr.bf16.mxu0 %v3039
      %3339 = vmatpush2.bf16.msra.mxu0 %v3038
      %3340 = vmatprep.mubr.bf16.mxu0 %v2457
      %3341 = vmatmul.mubr.bf16.gmra.mxu0 %v2456
      %v3342 = vpop.f32.mrf.mxu0
      %v3343 = vadd.f32 0.0, %v3342
      %v3344 = vpop.f32.mrf.mxu0
      %v3345 = vadd.f32 0.0, %v3344
      %v3346 = vpop.f32.mrf.mxu0
      %v3347 = vpop.f32.mrf.mxu0
      %3348 = vdwg.mxu0
      %3349 = vmatprep.subr.bf16.mxu0 %v3033
      %3350 = vmatpush1.bf16.msra.mxu0 %v3032
      %3351 = vmatprep.subr.bf16.mxu0 %v3025
      %3352 = vmatpush1.bf16.msra.mxu0 %v3024
      %3353 = vmatprep.subr.bf16.mxu0 %v3017
      %3354 = vmatpush1.bf16.msra.mxu0 %v3016
      %3355 = vmatprep.subr.bf16.mxu0 %v3009
      %3356 = vmatpush1.bf16.msra.mxu0 %v3008
      %3357 = vmatprep.subr.bf16.mxu0 %v3001
      %3358 = vmatpush1.bf16.msra.mxu0 %v3000
      %3359 = vmatprep.subr.bf16.mxu0 %v2993
      %3360 = vmatpush1.bf16.msra.mxu0 %v2992
      %3361 = vmatprep.subr.bf16.mxu0 %v2985
      %3362 = vmatpush1.bf16.msra.mxu0 %v2984
      %3363 = vmatprep.subr.bf16.mxu0 %v2977
      %3364 = vmatpush1.bf16.msra.mxu0 %v2976
      %3365 = vmatprep.subr.bf16.mxu0 %v3097
      %3366 = vmatpush2.bf16.msra.mxu0 %v3096
      %3367 = vmatprep.subr.bf16.mxu0 %v3089
      %3368 = vmatpush2.bf16.msra.mxu0 %v3088
      %3369 = vmatprep.subr.bf16.mxu0 %v3081
      %3370 = vmatpush2.bf16.msra.mxu0 %v3080
      %3371 = vmatprep.subr.bf16.mxu0 %v3073
      %3372 = vmatpush2.bf16.msra.mxu0 %v3072
      %3373 = vmatprep.subr.bf16.mxu0 %v3065
      %3374 = vmatpush2.bf16.msra.mxu0 %v3064
      %3375 = vmatprep.subr.bf16.mxu0 %v3057
      %3376 = vmatpush2.bf16.msra.mxu0 %v3056
      %3377 = vmatprep.subr.bf16.mxu0 %v3049
      %3378 = vmatpush2.bf16.msra.mxu0 %v3048
      %3379 = vmatprep.subr.bf16.mxu0 %v3041
      %3380 = vmatpush2.bf16.msra.mxu0 %v3040
      %3381 = vmatprep.mubr.bf16.mxu0 %v2457
      %3382 = vmatmul.mubr.bf16.gmra.mxu0 %v2456
      %v3383 = vpop.f32.mrf.mxu0
      %v3384 = vadd.f32 0.0, %v3383
      %v3385 = vpop.f32.mrf.mxu0
      %v3386 = vadd.f32 0.0, %v3385
      %v3387 = vpop.f32.mrf.mxu0
      %v3388 = vpop.f32.mrf.mxu0
      %3389 = vdwg.mxu0
      %v3398 = vcombine.low %v3261, %v3263
      %v3399 = vcombine.low %v3302, %v3304
      %v3401 = vunpack.c.l.s4 1983009808
      %v3402 = vunpack.c.0.s8 %v3401
      %v3403 = vlaneseq
      %v3404 = vshrl.u32 %v3403, 7
      %v3405 = vsub.s32 %v3402, %v3404
      %v3406 = vrot.slane %v3398, %v3405
      %v3408 = vunpack.c.l.s4 1983009808
      %v3409 = vunpack.c.0.s8 %v3408
      %v3410 = vlaneseq
      %v3411 = vshrl.u32 %v3410, 7
      %v3412 = vsub.s32 %v3409, %v3411
      %v3413 = vrot.slane %v3399, %v3412
      %v3414 = vcombine.low %v3406, %v3413
      %v3415 = vcombine.low %v3343, %v3345
      %v3416 = vcombine.low %v3384, %v3386
      %v3418 = vunpack.c.l.s4 1983009808
      %v3419 = vunpack.c.0.s8 %v3418
      %v3420 = vlaneseq
      %v3421 = vshrl.u32 %v3420, 7
      %v3422 = vsub.s32 %v3419, %v3421
      %v3423 = vrot.slane %v3415, %v3422
      %v3425 = vunpack.c.l.s4 1983009808
      %v3426 = vunpack.c.0.s8 %v3425
      %v3427 = vlaneseq
      %v3428 = vshrl.u32 %v3427, 7
      %v3429 = vsub.s32 %v3426, %v3428
      %v3430 = vrot.slane %v3416, %v3429
      %v3431 = vcombine.low %v3423, %v3430
      %v3434 = vadd.f32 %v2443, %v3414
      %v3435 = vadd.f32 %v2444, %v3431
      %v3436 = vxor.u32 %v3434, 2147483648
      %v3437 = vmul.f32 %v3436, 1.442695
      %v3438 = vpow.pop %v3437
      %v3439 = vadd.f32 %v3438, 1.0
      %v3440 = vrcp.pop %v3439
      %v3441 = vmul.f32 1.0, %v3440
      %v3443 = vrot.slane %v3434, 4
      %v3445 = vxor.u32 %v3443, 2147483648
      %v3446 = vmul.f32 %v3445, 1.442695
      %v3447 = vpow.pop %v3446
      %v3448 = vadd.f32 %v3447, 1.0
      %v3449 = vrcp.pop %v3448
      %v3450 = vmul.f32 1.0, %v3449
      %v3451 = vtanh.pop %v3435
      %v3453 = vrot.slane %v3435, 4
      %v3455 = vxor.u32 %v3453, 2147483648
      %v3456 = vmul.f32 %v3455, 1.442695
      %v3457 = vpow.pop %v3456
      %v3458 = vadd.f32 %v3457, 1.0
      %v3459 = vrcp.pop %v3458
      %v3460 = vmul.f32 1.0, %v3459
      %v3461 = vmul.f32 %v3450, %v1412
      %v3462 = vmul.f32 %v3441, %v3451
      %v3463 = vadd.f32 %v3461, %v3462
      %v3464 = vtanh.pop %v3463
      %v3465 = vmul.f32 %v3460, %v3464
      %s3466 = smul.u32 %s1404, 4
      %s3467 = smul.addr %s3466, 2
      %s3468 = scalar_lea.vmem %s7, %s3467
      %3469 = vst [vmem:[%s3468] sm:$0xf] %v2438
      %s3470 = smul.u32 %s2439, 4
      %s3471 = smul.addr %s3470, 2
      %s3472 = scalar_lea.vmem %s7, %s3471
      %3473 = vst [vmem:[%s3472 + $0x4] sm:$0xf] %v3465
    $region58: #{_lambda_.5} parent=1 // loop_footer
      %s1408 = sadd.s32 1, %s1404
    $region59: #{_lambda_.5} parent=1 // loop_footer_branch
      %1403 = sbr.rel target = $region55
    $region60: #{_lambda_.5} parent=1 // loop_exit
      _
    // Predicated region
    $region61: #{_lambda_.5} parent=1 // pred_check
      _
    $region62: #{_lambda_.5} parent=1 // pred_check_branch
      %3475 = sbr.rel (0) target = $region64
    $region63: #{_lambda_.5} parent=1 // pred_region
      _
    $region64: #{_lambda_.5} parent=1 // pred_fallthru
      _
    // Predicated region
    $region65: #{_lambda_.5} parent=1 // pred_check
      _
    $region66: #{_lambda_.5} parent=1 // pred_check_branch
      %3477 = sbr.rel (0) target = $region68
    $region67: #{_lambda_.5} parent=1 // pred_region
      _
    $region68: #{_lambda_.5} parent=1 // pred_fallthru
      _
    %3478 = vsyncpa [#allocation5], 1
    %3479 = vsyncpa [#allocation7], 1
    %3480 = vsyncpa [#allocation10], 1
    %3481 = vsyncpa [#allocation13], 1

// kernel: _lambda_.6
$region0: #{_lambda_.6}
  #allocation0 [shape = 'u32[]', space=smem, size = 0x4, offset = 0x4, fixed_abs, tag = 'smem constant byte address 0x4 - core index']
  #allocation1 [shape = 'u32[144,128]{1,0:T(1,128)}', space=vmem, size = 0x12000, scoped, tag = 'internal scratch']
  #allocation2 [shape = 'f32[2,2,1024]{2,1,0:T(2,128)}', space=vmem, size = 0x4000, scoped, tag = 'scratch operand']
  #allocation3 [shape = 'f32[2,2,1024]{2,1,0:T(2,128)}', space=vmem, size = 0x4000, scoped, tag = 'scratch operand']
  %s0 = inlined_call_operand.vmem [shape: f32[2,2,512], index: 0, kind: input, shape index: {}]
  %s1 = inlined_call_operand.vmem [shape: bf16[512,1024], index: 1, kind: input, shape index: {}]
  %s2 = inlined_call_operand.vmem [shape: bf16[256,1024], index: 2, kind: input, shape index: {}]
  %s3 = inlined_call_operand.vmem [shape: f32[1,1024], index: 3, kind: input, shape index: {}]
  %s4 = inlined_call_operand.hbm [shape: bf16[512,1024], index: 4, kind: input, shape index: {}]
  %s5 = inlined_call_operand.hbm [shape: bf16[256,1024], index: 5, kind: input, shape index: {}]
  %s6 = inlined_call_operand.vmem [shape: f32[1,1024], index: 6, kind: input, shape index: {}]
  %s7 = inlined_call_operand.vmem [shape: f32[2,2,512], index: 7, kind: output, shape index: {}]
  %s8 = sld [smem:[#allocation0]]
  $region53: #{_lambda_.6} parent=0
    _
  %s10 = ssub.s32 1, %s8
  %s11 = scalar_select 0, %s10, %s8
  $region1: #{_lambda_.6} parent=0
    #allocation4 [shape = 'u8[1048576]{0}', space=vmem, size = 0x100000, scoped, tag = 'input window, operand 4, single buffered']
    #allocation5 [shape = 's32[1]{0}', space=sflag, size = 0x4, scoped, tag = 'scoped memory for _lambda_.6']
    #allocation6 [shape = 'u8[524288]{0}', space=vmem, size = 0x80000, scoped, tag = 'input window, operand 5, single buffered']
    #allocation7 [shape = 's32[1]{0}', space=sflag, size = 0x4, scoped, tag = 'scoped memory for _lambda_.6']
    %12 = vsyncpa [#allocation5], 0
    %13 = vsyncpa [#allocation7], 0
    // Predicated region
    $region2: #{_lambda_.6} parent=1 // pred_check
      _
    $region3: #{_lambda_.6} parent=1 // pred_check_branch
      %15 = sbr.rel (0) target = $region5
    $region4: #{_lambda_.6} parent=1 // pred_region
      _
    $region5: #{_lambda_.6} parent=1 // pred_fallthru
      _
    // Predicated region
    $region6: #{_lambda_.6} parent=1 // pred_check
      _
    $region7: #{_lambda_.6} parent=1 // pred_check_branch
      %17 = sbr.rel (0) target = $region9
    $region8: #{_lambda_.6} parent=1 // pred_region
      _
    $region9: #{_lambda_.6} parent=1 // pred_fallthru
      _
    // Predicated region
    $region10: #{_lambda_.6} parent=1 // pred_check
      _
    $region11: #{_lambda_.6} parent=1 // pred_check_branch
      %19 = sbr.rel (0) target = $region13
    $region12: #{_lambda_.6} parent=1 // pred_region
      _
    $region13: #{_lambda_.6} parent=1 // pred_fallthru
      _
    // Predicated region
    $region14: #{_lambda_.6} parent=1 // pred_check
      _
    $region15: #{_lambda_.6} parent=1 // pred_check_branch
      %21 = sbr.rel (0) target = $region17
    $region16: #{_lambda_.6} parent=1 // pred_region
      _
    $region17: #{_lambda_.6} parent=1 // pred_fallthru
      _
    // Predicated region
    $region18: #{_lambda_.6} parent=1 // pred_check
      _
    $region19: #{_lambda_.6} parent=1 // pred_check_branch
      %23 = sbr.rel (0) target = $region21
    $region20: #{_lambda_.6} parent=1 // pred_region
      %s25 = ssub.s32 32768, 32768
      %26 = vsyncadd [#allocation5], %s25
      %s27 = sshll.u32 [#allocation4], 4
      %s28 = int_to_ptr.vmem [resolvable:$true] %s27
      %33 = dma.hbm_to_vmem [thread:$0]  %s4, 32768, %s28, [#allocation5], 512, 512, 32
    $region21: #{_lambda_.6} parent=1 // pred_fallthru
      _
    // Predicated region
    $region22: #{_lambda_.6} parent=1 // pred_check
      _
    $region23: #{_lambda_.6} parent=1 // pred_check_branch
      %35 = sbr.rel (0) target = $region25
    $region24: #{_lambda_.6} parent=1 // pred_region
      %s37 = ssub.s32 16384, 16384
      %38 = vsyncadd [#allocation7], %s37
      %s39 = sshll.u32 [#allocation6], 4
      %s40 = int_to_ptr.vmem [resolvable:$true] %s39
      %45 = dma.hbm_to_vmem [thread:$0]  %s5, 16384, %s40, [#allocation7], 512, 512, 32
    $region25: #{_lambda_.6} parent=1 // pred_fallthru
      _
    // Predicated region
    $region26: #{_lambda_.6} parent=1 // pred_check
      _
    $region27: #{_lambda_.6} parent=1 // pred_check_branch
      %47 = sbr.rel (0) target = $region29
    $region28: #{_lambda_.6} parent=1 // pred_region
      _
    $region29: #{_lambda_.6} parent=1 // pred_fallthru
      _
    // Predicated region
    $region30: #{_lambda_.6} parent=1 // pred_check
      _
    $region31: #{_lambda_.6} parent=1 // pred_check_branch
      %49 = sbr.rel (0) target = $region33
    $region32: #{_lambda_.6} parent=1 // pred_region
      %50 = dma.done [#allocation5], 32768
    $region33: #{_lambda_.6} parent=1 // pred_fallthru
      _
    // Predicated region
    $region34: #{_lambda_.6} parent=1 // pred_check
      _
    $region35: #{_lambda_.6} parent=1 // pred_check_branch
      %52 = sbr.rel (0) target = $region37
    $region36: #{_lambda_.6} parent=1 // pred_region
      %53 = dma.done [#allocation7], 16384
    $region37: #{_lambda_.6} parent=1 // pred_fallthru
      _
    %v54 = vld [vmem:[%s0] sm:$0xff]
    %v55 = vld [vmem:[%s0 + $0x8] sm:$0xff]
    %v58 = vcombine.low %v54, %v55
    %v59 = vcombine.high %v54, %v55
    %v61 = vunpack.c.l.s4 1983009808
    %v62 = vunpack.c.0.s8 %v61
    %v63 = vlaneseq
    %v64 = vshrl.u32 %v63, 7
    %v65 = vsub.s32 %v62, %v64
    %v66 = vrot.slane %v58, %v65
    %v68 = vunpack.c.l.s4 1983009808
    %v69 = vunpack.c.0.s8 %v68
    %v70 = vlaneseq
    %v71 = vshrl.u32 %v70, 7
    %v72 = vsub.s32 %v69, %v71
    %v73 = vrot.slane %v59, %v72
    %v74 = vcombine.high %v66, %v66
    %v75 = vcombine.high %v73, %v73
    %v80 = vpack.c.bf16 %v66, %v66
    %v81 = vpack.c.bf16 %v74, %v74
    %v82 = vpack.c.bf16 %v73, %v73
    %v83 = vpack.c.bf16 %v75, %v75
    %v84 = vld [vmem:[%s1] sm:$0xff]
    %v85 = vld [vmem:[%s1 + $0x8] sm:$0xff]
    %v86 = vld [vmem:[%s1 + $0x10] sm:$0xff]
    %v87 = vld [vmem:[%s1 + $0x18] sm:$0xff]
    %v88 = vld [vmem:[%s1 + $0x20] sm:$0xff]
    %v89 = vld [vmem:[%s1 + $0x28] sm:$0xff]
    %v90 = vld [vmem:[%s1 + $0x30] sm:$0xff]
    %v91 = vld [vmem:[%s1 + $0x38] sm:$0xff]
    %v92 = vld [vmem:[%s1 + $0x40] sm:$0xff]
    %v93 = vld [vmem:[%s1 + $0x48] sm:$0xff]
    %v94 = vld [vmem:[%s1 + $0x50] sm:$0xff]
    %v95 = vld [vmem:[%s1 + $0x58] sm:$0xff]
    %v96 = vld [vmem:[%s1 + $0x60] sm:$0xff]
    %v97 = vld [vmem:[%s1 + $0x68] sm:$0xff]
    %v98 = vld [vmem:[%s1 + $0x70] sm:$0xff]
    %v99 = vld [vmem:[%s1 + $0x78] sm:$0xff]
    %v100 = vld [vmem:[%s1 + $0x80] sm:$0xff]
    %v101 = vld [vmem:[%s1 + $0x88] sm:$0xff]
    %v102 = vld [vmem:[%s1 + $0x90] sm:$0xff]
    %v103 = vld [vmem:[%s1 + $0x98] sm:$0xff]
    %v104 = vld [vmem:[%s1 + $0xa0] sm:$0xff]
    %v105 = vld [vmem:[%s1 + $0xa8] sm:$0xff]
    %v106 = vld [vmem:[%s1 + $0xb0] sm:$0xff]
    %v107 = vld [vmem:[%s1 + $0xb8] sm:$0xff]
    %v108 = vld [vmem:[%s1 + $0xc0] sm:$0xff]
    %v109 = vld [vmem:[%s1 + $0xc8] sm:$0xff]
    %v110 = vld [vmem:[%s1 + $0xd0] sm:$0xff]
    %v111 = vld [vmem:[%s1 + $0xd8] sm:$0xff]
    %v112 = vld [vmem:[%s1 + $0xe0] sm:$0xff]
    %v113 = vld [vmem:[%s1 + $0xe8] sm:$0xff]
    %v114 = vld [vmem:[%s1 + $0xf0] sm:$0xff]
    %v115 = vld [vmem:[%s1 + $0xf8] sm:$0xff]
    %v116 = vld [vmem:[%s1 + $0x100] sm:$0xff]
    %v117 = vld [vmem:[%s1 + $0x108] sm:$0xff]
    %v118 = vld [vmem:[%s1 + $0x110] sm:$0xff]
    %v119 = vld [vmem:[%s1 + $0x118] sm:$0xff]
    %v120 = vld [vmem:[%s1 + $0x120] sm:$0xff]
    %v121 = vld [vmem:[%s1 + $0x128] sm:$0xff]
    %v122 = vld [vmem:[%s1 + $0x130] sm:$0xff]
    %v123 = vld [vmem:[%s1 + $0x138] sm:$0xff]
    %v124 = vld [vmem:[%s1 + $0x140] sm:$0xff]
    %v125 = vld [vmem:[%s1 + $0x148] sm:$0xff]
    %v126 = vld [vmem:[%s1 + $0x150] sm:$0xff]
    %v127 = vld [vmem:[%s1 + $0x158] sm:$0xff]
    %v128 = vld [vmem:[%s1 + $0x160] sm:$0xff]
    %v129 = vld [vmem:[%s1 + $0x168] sm:$0xff]
    %v130 = vld [vmem:[%s1 + $0x170] sm:$0xff]
    %v131 = vld [vmem:[%s1 + $0x178] sm:$0xff]
    %v132 = vld [vmem:[%s1 + $0x180] sm:$0xff]
    %v133 = vld [vmem:[%s1 + $0x188] sm:$0xff]
    %v134 = vld [vmem:[%s1 + $0x190] sm:$0xff]
    %v135 = vld [vmem:[%s1 + $0x198] sm:$0xff]
    %v136 = vld [vmem:[%s1 + $0x1a0] sm:$0xff]
    %v137 = vld [vmem:[%s1 + $0x1a8] sm:$0xff]
    %v138 = vld [vmem:[%s1 + $0x1b0] sm:$0xff]
    %v139 = vld [vmem:[%s1 + $0x1b8] sm:$0xff]
    %v140 = vld [vmem:[%s1 + $0x1c0] sm:$0xff]
    %v141 = vld [vmem:[%s1 + $0x1c8] sm:$0xff]
    %v142 = vld [vmem:[%s1 + $0x1d0] sm:$0xff]
    %v143 = vld [vmem:[%s1 + $0x1d8] sm:$0xff]
    %v144 = vld [vmem:[%s1 + $0x1e0] sm:$0xff]
    %v145 = vld [vmem:[%s1 + $0x1e8] sm:$0xff]
    %v146 = vld [vmem:[%s1 + $0x1f0] sm:$0xff]
    %v147 = vld [vmem:[%s1 + $0x1f8] sm:$0xff]
    %v148 = vld [vmem:[%s1 + $0x200] sm:$0xff]
    %v149 = vld [vmem:[%s1 + $0x208] sm:$0xff]
    %v150 = vld [vmem:[%s1 + $0x210] sm:$0xff]
    %v151 = vld [vmem:[%s1 + $0x218] sm:$0xff]
    %v152 = vld [vmem:[%s1 + $0x220] sm:$0xff]
    %v153 = vld [vmem:[%s1 + $0x228] sm:$0xff]
    %v154 = vld [vmem:[%s1 + $0x230] sm:$0xff]
    %v155 = vld [vmem:[%s1 + $0x238] sm:$0xff]
    %v156 = vld [vmem:[%s1 + $0x240] sm:$0xff]
    %v157 = vld [vmem:[%s1 + $0x248] sm:$0xff]
    %v158 = vld [vmem:[%s1 + $0x250] sm:$0xff]
    %v159 = vld [vmem:[%s1 + $0x258] sm:$0xff]
    %v160 = vld [vmem:[%s1 + $0x260] sm:$0xff]
    %v161 = vld [vmem:[%s1 + $0x268] sm:$0xff]
    %v162 = vld [vmem:[%s1 + $0x270] sm:$0xff]
    %v163 = vld [vmem:[%s1 + $0x278] sm:$0xff]
    %v164 = vld [vmem:[%s1 + $0x280] sm:$0xff]
    %v165 = vld [vmem:[%s1 + $0x288] sm:$0xff]
    %v166 = vld [vmem:[%s1 + $0x290] sm:$0xff]
    %v167 = vld [vmem:[%s1 + $0x298] sm:$0xff]
    %v168 = vld [vmem:[%s1 + $0x2a0] sm:$0xff]
    %v169 = vld [vmem:[%s1 + $0x2a8] sm:$0xff]
    %v170 = vld [vmem:[%s1 + $0x2b0] sm:$0xff]
    %v171 = vld [vmem:[%s1 + $0x2b8] sm:$0xff]
    %v172 = vld [vmem:[%s1 + $0x2c0] sm:$0xff]
    %v173 = vld [vmem:[%s1 + $0x2c8] sm:$0xff]
    %v174 = vld [vmem:[%s1 + $0x2d0] sm:$0xff]
    %v175 = vld [vmem:[%s1 + $0x2d8] sm:$0xff]
    %v176 = vld [vmem:[%s1 + $0x2e0] sm:$0xff]
    %v177 = vld [vmem:[%s1 + $0x2e8] sm:$0xff]
    %v178 = vld [vmem:[%s1 + $0x2f0] sm:$0xff]
    %v179 = vld [vmem:[%s1 + $0x2f8] sm:$0xff]
    %v180 = vld [vmem:[%s1 + $0x300] sm:$0xff]
    %v181 = vld [vmem:[%s1 + $0x308] sm:$0xff]
    %v182 = vld [vmem:[%s1 + $0x310] sm:$0xff]
    %v183 = vld [vmem:[%s1 + $0x318] sm:$0xff]
    %v184 = vld [vmem:[%s1 + $0x320] sm:$0xff]
    %v185 = vld [vmem:[%s1 + $0x328] sm:$0xff]
    %v186 = vld [vmem:[%s1 + $0x330] sm:$0xff]
    %v187 = vld [vmem:[%s1 + $0x338] sm:$0xff]
    %v188 = vld [vmem:[%s1 + $0x340] sm:$0xff]
    %v189 = vld [vmem:[%s1 + $0x348] sm:$0xff]
    %v190 = vld [vmem:[%s1 + $0x350] sm:$0xff]
    %v191 = vld [vmem:[%s1 + $0x358] sm:$0xff]
    %v192 = vld [vmem:[%s1 + $0x360] sm:$0xff]
    %v193 = vld [vmem:[%s1 + $0x368] sm:$0xff]
    %v194 = vld [vmem:[%s1 + $0x370] sm:$0xff]
    %v195 = vld [vmem:[%s1 + $0x378] sm:$0xff]
    %v196 = vld [vmem:[%s1 + $0x380] sm:$0xff]
    %v197 = vld [vmem:[%s1 + $0x388] sm:$0xff]
    %v198 = vld [vmem:[%s1 + $0x390] sm:$0xff]
    %v199 = vld [vmem:[%s1 + $0x398] sm:$0xff]
    %v200 = vld [vmem:[%s1 + $0x3a0] sm:$0xff]
    %v201 = vld [vmem:[%s1 + $0x3a8] sm:$0xff]
    %v202 = vld [vmem:[%s1 + $0x3b0] sm:$0xff]
    %v203 = vld [vmem:[%s1 + $0x3b8] sm:$0xff]
    %v204 = vld [vmem:[%s1 + $0x3c0] sm:$0xff]
    %v205 = vld [vmem:[%s1 + $0x3c8] sm:$0xff]
    %v206 = vld [vmem:[%s1 + $0x3d0] sm:$0xff]
    %v207 = vld [vmem:[%s1 + $0x3d8] sm:$0xff]
    %v208 = vld [vmem:[%s1 + $0x3e0] sm:$0xff]
    %v209 = vld [vmem:[%s1 + $0x3e8] sm:$0xff]
    %v210 = vld [vmem:[%s1 + $0x3f0] sm:$0xff]
    %v211 = vld [vmem:[%s1 + $0x3f8] sm:$0xff]
    %v212 = vld [vmem:[%s1 + $0x400] sm:$0xff]
    %v213 = vld [vmem:[%s1 + $0x408] sm:$0xff]
    %v214 = vld [vmem:[%s1 + $0x410] sm:$0xff]
    %v215 = vld [vmem:[%s1 + $0x418] sm:$0xff]
    %v216 = vld [vmem:[%s1 + $0x420] sm:$0xff]
    %v217 = vld [vmem:[%s1 + $0x428] sm:$0xff]
    %v218 = vld [vmem:[%s1 + $0x430] sm:$0xff]
    %v219 = vld [vmem:[%s1 + $0x438] sm:$0xff]
    %v220 = vld [vmem:[%s1 + $0x440] sm:$0xff]
    %v221 = vld [vmem:[%s1 + $0x448] sm:$0xff]
    %v222 = vld [vmem:[%s1 + $0x450] sm:$0xff]
    %v223 = vld [vmem:[%s1 + $0x458] sm:$0xff]
    %v224 = vld [vmem:[%s1 + $0x460] sm:$0xff]
    %v225 = vld [vmem:[%s1 + $0x468] sm:$0xff]
    %v226 = vld [vmem:[%s1 + $0x470] sm:$0xff]
    %v227 = vld [vmem:[%s1 + $0x478] sm:$0xff]
    %v228 = vld [vmem:[%s1 + $0x480] sm:$0xff]
    %v229 = vld [vmem:[%s1 + $0x488] sm:$0xff]
    %v230 = vld [vmem:[%s1 + $0x490] sm:$0xff]
    %v231 = vld [vmem:[%s1 + $0x498] sm:$0xff]
    %v232 = vld [vmem:[%s1 + $0x4a0] sm:$0xff]
    %v233 = vld [vmem:[%s1 + $0x4a8] sm:$0xff]
    %v234 = vld [vmem:[%s1 + $0x4b0] sm:$0xff]
    %v235 = vld [vmem:[%s1 + $0x4b8] sm:$0xff]
    %v236 = vld [vmem:[%s1 + $0x4c0] sm:$0xff]
    %v237 = vld [vmem:[%s1 + $0x4c8] sm:$0xff]
    %v238 = vld [vmem:[%s1 + $0x4d0] sm:$0xff]
    %v239 = vld [vmem:[%s1 + $0x4d8] sm:$0xff]
    %v240 = vld [vmem:[%s1 + $0x4e0] sm:$0xff]
    %v241 = vld [vmem:[%s1 + $0x4e8] sm:$0xff]
    %v242 = vld [vmem:[%s1 + $0x4f0] sm:$0xff]
    %v243 = vld [vmem:[%s1 + $0x4f8] sm:$0xff]
    %v244 = vld [vmem:[%s1 + $0x500] sm:$0xff]
    %v245 = vld [vmem:[%s1 + $0x508] sm:$0xff]
    %v246 = vld [vmem:[%s1 + $0x510] sm:$0xff]
    %v247 = vld [vmem:[%s1 + $0x518] sm:$0xff]
    %v248 = vld [vmem:[%s1 + $0x520] sm:$0xff]
    %v249 = vld [vmem:[%s1 + $0x528] sm:$0xff]
    %v250 = vld [vmem:[%s1 + $0x530] sm:$0xff]
    %v251 = vld [vmem:[%s1 + $0x538] sm:$0xff]
    %v252 = vld [vmem:[%s1 + $0x540] sm:$0xff]
    %v253 = vld [vmem:[%s1 + $0x548] sm:$0xff]
    %v254 = vld [vmem:[%s1 + $0x550] sm:$0xff]
    %v255 = vld [vmem:[%s1 + $0x558] sm:$0xff]
    %v256 = vld [vmem:[%s1 + $0x560] sm:$0xff]
    %v257 = vld [vmem:[%s1 + $0x568] sm:$0xff]
    %v258 = vld [vmem:[%s1 + $0x570] sm:$0xff]
    %v259 = vld [vmem:[%s1 + $0x578] sm:$0xff]
    %v260 = vld [vmem:[%s1 + $0x580] sm:$0xff]
    %v261 = vld [vmem:[%s1 + $0x588] sm:$0xff]
    %v262 = vld [vmem:[%s1 + $0x590] sm:$0xff]
    %v263 = vld [vmem:[%s1 + $0x598] sm:$0xff]
    %v264 = vld [vmem:[%s1 + $0x5a0] sm:$0xff]
    %v265 = vld [vmem:[%s1 + $0x5a8] sm:$0xff]
    %v266 = vld [vmem:[%s1 + $0x5b0] sm:$0xff]
    %v267 = vld [vmem:[%s1 + $0x5b8] sm:$0xff]
    %v268 = vld [vmem:[%s1 + $0x5c0] sm:$0xff]
    %v269 = vld [vmem:[%s1 + $0x5c8] sm:$0xff]
    %v270 = vld [vmem:[%s1 + $0x5d0] sm:$0xff]
    %v271 = vld [vmem:[%s1 + $0x5d8] sm:$0xff]
    %v272 = vld [vmem:[%s1 + $0x5e0] sm:$0xff]
    %v273 = vld [vmem:[%s1 + $0x5e8] sm:$0xff]
    %v274 = vld [vmem:[%s1 + $0x5f0] sm:$0xff]
    %v275 = vld [vmem:[%s1 + $0x5f8] sm:$0xff]
    %v276 = vld [vmem:[%s1 + $0x600] sm:$0xff]
    %v277 = vld [vmem:[%s1 + $0x608] sm:$0xff]
    %v278 = vld [vmem:[%s1 + $0x610] sm:$0xff]
    %v279 = vld [vmem:[%s1 + $0x618] sm:$0xff]
    %v280 = vld [vmem:[%s1 + $0x620] sm:$0xff]
    %v281 = vld [vmem:[%s1 + $0x628] sm:$0xff]
    %v282 = vld [vmem:[%s1 + $0x630] sm:$0xff]
    %v283 = vld [vmem:[%s1 + $0x638] sm:$0xff]
    %v284 = vld [vmem:[%s1 + $0x640] sm:$0xff]
    %v285 = vld [vmem:[%s1 + $0x648] sm:$0xff]
    %v286 = vld [vmem:[%s1 + $0x650] sm:$0xff]
    %v287 = vld [vmem:[%s1 + $0x658] sm:$0xff]
    %v288 = vld [vmem:[%s1 + $0x660] sm:$0xff]
    %v289 = vld [vmem:[%s1 + $0x668] sm:$0xff]
    %v290 = vld [vmem:[%s1 + $0x670] sm:$0xff]
    %v291 = vld [vmem:[%s1 + $0x678] sm:$0xff]
    %v292 = vld [vmem:[%s1 + $0x680] sm:$0xff]
    %v293 = vld [vmem:[%s1 + $0x688] sm:$0xff]
    %v294 = vld [vmem:[%s1 + $0x690] sm:$0xff]
    %v295 = vld [vmem:[%s1 + $0x698] sm:$0xff]
    %v296 = vld [vmem:[%s1 + $0x6a0] sm:$0xff]
    %v297 = vld [vmem:[%s1 + $0x6a8] sm:$0xff]
    %v298 = vld [vmem:[%s1 + $0x6b0] sm:$0xff]
    %v299 = vld [vmem:[%s1 + $0x6b8] sm:$0xff]
    %v300 = vld [vmem:[%s1 + $0x6c0] sm:$0xff]
    %v301 = vld [vmem:[%s1 + $0x6c8] sm:$0xff]
    %v302 = vld [vmem:[%s1 + $0x6d0] sm:$0xff]
    %v303 = vld [vmem:[%s1 + $0x6d8] sm:$0xff]
    %v304 = vld [vmem:[%s1 + $0x6e0] sm:$0xff]
    %v305 = vld [vmem:[%s1 + $0x6e8] sm:$0xff]
    %v306 = vld [vmem:[%s1 + $0x6f0] sm:$0xff]
    %v307 = vld [vmem:[%s1 + $0x6f8] sm:$0xff]
    %v308 = vld [vmem:[%s1 + $0x700] sm:$0xff]
    %v309 = vld [vmem:[%s1 + $0x708] sm:$0xff]
    %v310 = vld [vmem:[%s1 + $0x710] sm:$0xff]
    %v311 = vld [vmem:[%s1 + $0x718] sm:$0xff]
    %v312 = vld [vmem:[%s1 + $0x720] sm:$0xff]
    %v313 = vld [vmem:[%s1 + $0x728] sm:$0xff]
    %v314 = vld [vmem:[%s1 + $0x730] sm:$0xff]
    %v315 = vld [vmem:[%s1 + $0x738] sm:$0xff]
    %v316 = vld [vmem:[%s1 + $0x740] sm:$0xff]
    %v317 = vld [vmem:[%s1 + $0x748] sm:$0xff]
    %v318 = vld [vmem:[%s1 + $0x750] sm:$0xff]
    %v319 = vld [vmem:[%s1 + $0x758] sm:$0xff]
    %v320 = vld [vmem:[%s1 + $0x760] sm:$0xff]
    %v321 = vld [vmem:[%s1 + $0x768] sm:$0xff]
    %v322 = vld [vmem:[%s1 + $0x770] sm:$0xff]
    %v323 = vld [vmem:[%s1 + $0x778] sm:$0xff]
    %v324 = vld [vmem:[%s1 + $0x780] sm:$0xff]
    %v325 = vld [vmem:[%s1 + $0x788] sm:$0xff]
    %v326 = vld [vmem:[%s1 + $0x790] sm:$0xff]
    %v327 = vld [vmem:[%s1 + $0x798] sm:$0xff]
    %v328 = vld [vmem:[%s1 + $0x7a0] sm:$0xff]
    %v329 = vld [vmem:[%s1 + $0x7a8] sm:$0xff]
    %v330 = vld [vmem:[%s1 + $0x7b0] sm:$0xff]
    %v331 = vld [vmem:[%s1 + $0x7b8] sm:$0xff]
    %v332 = vld [vmem:[%s1 + $0x7c0] sm:$0xff]
    %v333 = vld [vmem:[%s1 + $0x7c8] sm:$0xff]
    %v334 = vld [vmem:[%s1 + $0x7d0] sm:$0xff]
    %v335 = vld [vmem:[%s1 + $0x7d8] sm:$0xff]
    %v336 = vld [vmem:[%s1 + $0x7e0] sm:$0xff]
    %v337 = vld [vmem:[%s1 + $0x7e8] sm:$0xff]
    %v338 = vld [vmem:[%s1 + $0x7f0] sm:$0xff]
    %v339 = vld [vmem:[%s1 + $0x7f8] sm:$0xff]
    %v340 = vld [vmem:[%s3] sm:$0xff]
    %v342 = vlaneseq
    %v343 = vshrl.u32 %v342, 7
    %v344 = vsub.s32 0, %v343
    %v345 = vrot.slane %v340, %v344
    %v346 = vlaneseq
    %v347 = vshrl.u32 %v346, 7
    %v348 = vsub.s32 1, %v347
    %v349 = vrot.slane %v340, %v348
    %v350 = vlaneseq
    %v351 = vshrl.u32 %v350, 7
    %v352 = vsub.s32 2, %v351
    %v353 = vrot.slane %v340, %v352
    %v354 = vlaneseq
    %v355 = vshrl.u32 %v354, 7
    %v356 = vsub.s32 3, %v355
    %v357 = vrot.slane %v340, %v356
    %v358 = vlaneseq
    %v359 = vshrl.u32 %v358, 7
    %v360 = vsub.s32 4, %v359
    %v361 = vrot.slane %v340, %v360
    %v362 = vlaneseq
    %v363 = vshrl.u32 %v362, 7
    %v364 = vsub.s32 5, %v363
    %v365 = vrot.slane %v340, %v364
    %v366 = vlaneseq
    %v367 = vshrl.u32 %v366, 7
    %v368 = vsub.s32 6, %v367
    %v369 = vrot.slane %v340, %v368
    %v370 = vlaneseq
    %v371 = vshrl.u32 %v370, 7
    %v372 = vsub.s32 7, %v371
    %v373 = vrot.slane %v340, %v372
    %v638 = vunpack.c.l.b16 %v84
    %v639 = vunpack.c.h.b16 %v84
    %v640 = vunpack.c.l.b16 %v85
    %v641 = vunpack.c.h.b16 %v85
    %v642 = vunpack.c.l.b16 %v86
    %v643 = vunpack.c.h.b16 %v86
    %v644 = vunpack.c.l.b16 %v87
    %v645 = vunpack.c.h.b16 %v87
    %v646 = vunpack.c.l.b16 %v88
    %v647 = vunpack.c.h.b16 %v88
    %v648 = vunpack.c.l.b16 %v89
    %v649 = vunpack.c.h.b16 %v89
    %v650 = vunpack.c.l.b16 %v90
    %v651 = vunpack.c.h.b16 %v90
    %v652 = vunpack.c.l.b16 %v91
    %v653 = vunpack.c.h.b16 %v91
    %v654 = vunpack.c.l.b16 %v92
    %v655 = vunpack.c.h.b16 %v92
    %v656 = vunpack.c.l.b16 %v93
    %v657 = vunpack.c.h.b16 %v93
    %v658 = vunpack.c.l.b16 %v94
    %v659 = vunpack.c.h.b16 %v94
    %v660 = vunpack.c.l.b16 %v95
    %v661 = vunpack.c.h.b16 %v95
    %v662 = vunpack.c.l.b16 %v96
    %v663 = vunpack.c.h.b16 %v96
    %v664 = vunpack.c.l.b16 %v97
    %v665 = vunpack.c.h.b16 %v97
    %v666 = vunpack.c.l.b16 %v98
    %v667 = vunpack.c.h.b16 %v98
    %v668 = vunpack.c.l.b16 %v99
    %v669 = vunpack.c.h.b16 %v99
    %v670 = vunpack.c.l.b16 %v100
    %v671 = vunpack.c.h.b16 %v100
    %v672 = vunpack.c.l.b16 %v101
    %v673 = vunpack.c.h.b16 %v101
    %v674 = vunpack.c.l.b16 %v102
    %v675 = vunpack.c.h.b16 %v102
    %v676 = vunpack.c.l.b16 %v103
    %v677 = vunpack.c.h.b16 %v103
    %v678 = vunpack.c.l.b16 %v104
    %v679 = vunpack.c.h.b16 %v104
    %v680 = vunpack.c.l.b16 %v105
    %v681 = vunpack.c.h.b16 %v105
    %v682 = vunpack.c.l.b16 %v106
    %v683 = vunpack.c.h.b16 %v106
    %v684 = vunpack.c.l.b16 %v107
    %v685 = vunpack.c.h.b16 %v107
    %v686 = vunpack.c.l.b16 %v108
    %v687 = vunpack.c.h.b16 %v108
    %v688 = vunpack.c.l.b16 %v109
    %v689 = vunpack.c.h.b16 %v109
    %v690 = vunpack.c.l.b16 %v110
    %v691 = vunpack.c.h.b16 %v110
    %v692 = vunpack.c.l.b16 %v111
    %v693 = vunpack.c.h.b16 %v111
    %v694 = vunpack.c.l.b16 %v112
    %v695 = vunpack.c.h.b16 %v112
    %v696 = vunpack.c.l.b16 %v113
    %v697 = vunpack.c.h.b16 %v113
    %v698 = vunpack.c.l.b16 %v114
    %v699 = vunpack.c.h.b16 %v114
    %v700 = vunpack.c.l.b16 %v115
    %v701 = vunpack.c.h.b16 %v115
    %v702 = vunpack.c.l.b16 %v116
    %v703 = vunpack.c.h.b16 %v116
    %v704 = vunpack.c.l.b16 %v117
    %v705 = vunpack.c.h.b16 %v117
    %v706 = vunpack.c.l.b16 %v118
    %v707 = vunpack.c.h.b16 %v118
    %v708 = vunpack.c.l.b16 %v119
    %v709 = vunpack.c.h.b16 %v119
    %v710 = vunpack.c.l.b16 %v120
    %v711 = vunpack.c.h.b16 %v120
    %v712 = vunpack.c.l.b16 %v121
    %v713 = vunpack.c.h.b16 %v121
    %v714 = vunpack.c.l.b16 %v122
    %v715 = vunpack.c.h.b16 %v122
    %v716 = vunpack.c.l.b16 %v123
    %v717 = vunpack.c.h.b16 %v123
    %v718 = vunpack.c.l.b16 %v124
    %v719 = vunpack.c.h.b16 %v124
    %v720 = vunpack.c.l.b16 %v125
    %v721 = vunpack.c.h.b16 %v125
    %v722 = vunpack.c.l.b16 %v126
    %v723 = vunpack.c.h.b16 %v126
    %v724 = vunpack.c.l.b16 %v127
    %v725 = vunpack.c.h.b16 %v127
    %v726 = vunpack.c.l.b16 %v128
    %v727 = vunpack.c.h.b16 %v128
    %v728 = vunpack.c.l.b16 %v129
    %v729 = vunpack.c.h.b16 %v129
    %v730 = vunpack.c.l.b16 %v130
    %v731 = vunpack.c.h.b16 %v130
    %v732 = vunpack.c.l.b16 %v131
    %v733 = vunpack.c.h.b16 %v131
    %v734 = vunpack.c.l.b16 %v132
    %v735 = vunpack.c.h.b16 %v132
    %v736 = vunpack.c.l.b16 %v133
    %v737 = vunpack.c.h.b16 %v133
    %v738 = vunpack.c.l.b16 %v134
    %v739 = vunpack.c.h.b16 %v134
    %v740 = vunpack.c.l.b16 %v135
    %v741 = vunpack.c.h.b16 %v135
    %v742 = vunpack.c.l.b16 %v136
    %v743 = vunpack.c.h.b16 %v136
    %v744 = vunpack.c.l.b16 %v137
    %v745 = vunpack.c.h.b16 %v137
    %v746 = vunpack.c.l.b16 %v138
    %v747 = vunpack.c.h.b16 %v138
    %v748 = vunpack.c.l.b16 %v139
    %v749 = vunpack.c.h.b16 %v139
    %v750 = vunpack.c.l.b16 %v140
    %v751 = vunpack.c.h.b16 %v140
    %v752 = vunpack.c.l.b16 %v141
    %v753 = vunpack.c.h.b16 %v141
    %v754 = vunpack.c.l.b16 %v142
    %v755 = vunpack.c.h.b16 %v142
    %v756 = vunpack.c.l.b16 %v143
    %v757 = vunpack.c.h.b16 %v143
    %v758 = vunpack.c.l.b16 %v144
    %v759 = vunpack.c.h.b16 %v144
    %v760 = vunpack.c.l.b16 %v145
    %v761 = vunpack.c.h.b16 %v145
    %v762 = vunpack.c.l.b16 %v146
    %v763 = vunpack.c.h.b16 %v146
    %v764 = vunpack.c.l.b16 %v147
    %v765 = vunpack.c.h.b16 %v147
    %v766 = vunpack.c.l.b16 %v148
    %v767 = vunpack.c.h.b16 %v148
    %v768 = vunpack.c.l.b16 %v149
    %v769 = vunpack.c.h.b16 %v149
    %v770 = vunpack.c.l.b16 %v150
    %v771 = vunpack.c.h.b16 %v150
    %v772 = vunpack.c.l.b16 %v151
    %v773 = vunpack.c.h.b16 %v151
    %v774 = vunpack.c.l.b16 %v152
    %v775 = vunpack.c.h.b16 %v152
    %v776 = vunpack.c.l.b16 %v153
    %v777 = vunpack.c.h.b16 %v153
    %v778 = vunpack.c.l.b16 %v154
    %v779 = vunpack.c.h.b16 %v154
    %v780 = vunpack.c.l.b16 %v155
    %v781 = vunpack.c.h.b16 %v155
    %v782 = vunpack.c.l.b16 %v156
    %v783 = vunpack.c.h.b16 %v156
    %v784 = vunpack.c.l.b16 %v157
    %v785 = vunpack.c.h.b16 %v157
    %v786 = vunpack.c.l.b16 %v158
    %v787 = vunpack.c.h.b16 %v158
    %v788 = vunpack.c.l.b16 %v159
    %v789 = vunpack.c.h.b16 %v159
    %v790 = vunpack.c.l.b16 %v160
    %v791 = vunpack.c.h.b16 %v160
    %v792 = vunpack.c.l.b16 %v161
    %v793 = vunpack.c.h.b16 %v161
    %v794 = vunpack.c.l.b16 %v162
    %v795 = vunpack.c.h.b16 %v162
    %v796 = vunpack.c.l.b16 %v163
    %v797 = vunpack.c.h.b16 %v163
    %v798 = vunpack.c.l.b16 %v164
    %v799 = vunpack.c.h.b16 %v164
    %v800 = vunpack.c.l.b16 %v165
    %v801 = vunpack.c.h.b16 %v165
    %v802 = vunpack.c.l.b16 %v166
    %v803 = vunpack.c.h.b16 %v166
    %v804 = vunpack.c.l.b16 %v167
    %v805 = vunpack.c.h.b16 %v167
    %v806 = vunpack.c.l.b16 %v168
    %v807 = vunpack.c.h.b16 %v168
    %v808 = vunpack.c.l.b16 %v169
    %v809 = vunpack.c.h.b16 %v169
    %v810 = vunpack.c.l.b16 %v170
    %v811 = vunpack.c.h.b16 %v170
    %v812 = vunpack.c.l.b16 %v171
    %v813 = vunpack.c.h.b16 %v171
    %v814 = vunpack.c.l.b16 %v172
    %v815 = vunpack.c.h.b16 %v172
    %v816 = vunpack.c.l.b16 %v173
    %v817 = vunpack.c.h.b16 %v173
    %v818 = vunpack.c.l.b16 %v174
    %v819 = vunpack.c.h.b16 %v174
    %v820 = vunpack.c.l.b16 %v175
    %v821 = vunpack.c.h.b16 %v175
    %v822 = vunpack.c.l.b16 %v176
    %v823 = vunpack.c.h.b16 %v176
    %v824 = vunpack.c.l.b16 %v177
    %v825 = vunpack.c.h.b16 %v177
    %v826 = vunpack.c.l.b16 %v178
    %v827 = vunpack.c.h.b16 %v178
    %v828 = vunpack.c.l.b16 %v179
    %v829 = vunpack.c.h.b16 %v179
    %v830 = vunpack.c.l.b16 %v180
    %v831 = vunpack.c.h.b16 %v180
    %v832 = vunpack.c.l.b16 %v181
    %v833 = vunpack.c.h.b16 %v181
    %v834 = vunpack.c.l.b16 %v182
    %v835 = vunpack.c.h.b16 %v182
    %v836 = vunpack.c.l.b16 %v183
    %v837 = vunpack.c.h.b16 %v183
    %v838 = vunpack.c.l.b16 %v184
    %v839 = vunpack.c.h.b16 %v184
    %v840 = vunpack.c.l.b16 %v185
    %v841 = vunpack.c.h.b16 %v185
    %v842 = vunpack.c.l.b16 %v186
    %v843 = vunpack.c.h.b16 %v186
    %v844 = vunpack.c.l.b16 %v187
    %v845 = vunpack.c.h.b16 %v187
    %v846 = vunpack.c.l.b16 %v188
    %v847 = vunpack.c.h.b16 %v188
    %v848 = vunpack.c.l.b16 %v189
    %v849 = vunpack.c.h.b16 %v189
    %v850 = vunpack.c.l.b16 %v190
    %v851 = vunpack.c.h.b16 %v190
    %v852 = vunpack.c.l.b16 %v191
    %v853 = vunpack.c.h.b16 %v191
    %v854 = vunpack.c.l.b16 %v192
    %v855 = vunpack.c.h.b16 %v192
    %v856 = vunpack.c.l.b16 %v193
    %v857 = vunpack.c.h.b16 %v193
    %v858 = vunpack.c.l.b16 %v194
    %v859 = vunpack.c.h.b16 %v194
    %v860 = vunpack.c.l.b16 %v195
    %v861 = vunpack.c.h.b16 %v195
    %v862 = vunpack.c.l.b16 %v196
    %v863 = vunpack.c.h.b16 %v196
    %v864 = vunpack.c.l.b16 %v197
    %v865 = vunpack.c.h.b16 %v197
    %v866 = vunpack.c.l.b16 %v198
    %v867 = vunpack.c.h.b16 %v198
    %v868 = vunpack.c.l.b16 %v199
    %v869 = vunpack.c.h.b16 %v199
    %v870 = vunpack.c.l.b16 %v200
    %v871 = vunpack.c.h.b16 %v200
    %v872 = vunpack.c.l.b16 %v201
    %v873 = vunpack.c.h.b16 %v201
    %v874 = vunpack.c.l.b16 %v202
    %v875 = vunpack.c.h.b16 %v202
    %v876 = vunpack.c.l.b16 %v203
    %v877 = vunpack.c.h.b16 %v203
    %v878 = vunpack.c.l.b16 %v204
    %v879 = vunpack.c.h.b16 %v204
    %v880 = vunpack.c.l.b16 %v205
    %v881 = vunpack.c.h.b16 %v205
    %v882 = vunpack.c.l.b16 %v206
    %v883 = vunpack.c.h.b16 %v206
    %v884 = vunpack.c.l.b16 %v207
    %v885 = vunpack.c.h.b16 %v207
    %v886 = vunpack.c.l.b16 %v208
    %v887 = vunpack.c.h.b16 %v208
    %v888 = vunpack.c.l.b16 %v209
    %v889 = vunpack.c.h.b16 %v209
    %v890 = vunpack.c.l.b16 %v210
    %v891 = vunpack.c.h.b16 %v210
    %v892 = vunpack.c.l.b16 %v211
    %v893 = vunpack.c.h.b16 %v211
    %v894 = vunpack.c.l.b16 %v212
    %v895 = vunpack.c.h.b16 %v212
    %v896 = vunpack.c.l.b16 %v213
    %v897 = vunpack.c.h.b16 %v213
    %v898 = vunpack.c.l.b16 %v214
    %v899 = vunpack.c.h.b16 %v214
    %v900 = vunpack.c.l.b16 %v215
    %v901 = vunpack.c.h.b16 %v215
    %v902 = vunpack.c.l.b16 %v216
    %v903 = vunpack.c.h.b16 %v216
    %v904 = vunpack.c.l.b16 %v217
    %v905 = vunpack.c.h.b16 %v217
    %v906 = vunpack.c.l.b16 %v218
    %v907 = vunpack.c.h.b16 %v218
    %v908 = vunpack.c.l.b16 %v219
    %v909 = vunpack.c.h.b16 %v219
    %v910 = vunpack.c.l.b16 %v220
    %v911 = vunpack.c.h.b16 %v220
    %v912 = vunpack.c.l.b16 %v221
    %v913 = vunpack.c.h.b16 %v221
    %v914 = vunpack.c.l.b16 %v222
    %v915 = vunpack.c.h.b16 %v222
    %v916 = vunpack.c.l.b16 %v223
    %v917 = vunpack.c.h.b16 %v223
    %v918 = vunpack.c.l.b16 %v224
    %v919 = vunpack.c.h.b16 %v224
    %v920 = vunpack.c.l.b16 %v225
    %v921 = vunpack.c.h.b16 %v225
    %v922 = vunpack.c.l.b16 %v226
    %v923 = vunpack.c.h.b16 %v226
    %v924 = vunpack.c.l.b16 %v227
    %v925 = vunpack.c.h.b16 %v227
    %v926 = vunpack.c.l.b16 %v228
    %v927 = vunpack.c.h.b16 %v228
    %v928 = vunpack.c.l.b16 %v229
    %v929 = vunpack.c.h.b16 %v229
    %v930 = vunpack.c.l.b16 %v230
    %v931 = vunpack.c.h.b16 %v230
    %v932 = vunpack.c.l.b16 %v231
    %v933 = vunpack.c.h.b16 %v231
    %v934 = vunpack.c.l.b16 %v232
    %v935 = vunpack.c.h.b16 %v232
    %v936 = vunpack.c.l.b16 %v233
    %v937 = vunpack.c.h.b16 %v233
    %v938 = vunpack.c.l.b16 %v234
    %v939 = vunpack.c.h.b16 %v234
    %v940 = vunpack.c.l.b16 %v235
    %v941 = vunpack.c.h.b16 %v235
    %v942 = vunpack.c.l.b16 %v236
    %v943 = vunpack.c.h.b16 %v236
    %v944 = vunpack.c.l.b16 %v237
    %v945 = vunpack.c.h.b16 %v237
    %v946 = vunpack.c.l.b16 %v238
    %v947 = vunpack.c.h.b16 %v238
    %v948 = vunpack.c.l.b16 %v239
    %v949 = vunpack.c.h.b16 %v239
    %v950 = vunpack.c.l.b16 %v240
    %v951 = vunpack.c.h.b16 %v240
    %v952 = vunpack.c.l.b16 %v241
    %v953 = vunpack.c.h.b16 %v241
    %v954 = vunpack.c.l.b16 %v242
    %v955 = vunpack.c.h.b16 %v242
    %v956 = vunpack.c.l.b16 %v243
    %v957 = vunpack.c.h.b16 %v243
    %v958 = vunpack.c.l.b16 %v244
    %v959 = vunpack.c.h.b16 %v244
    %v960 = vunpack.c.l.b16 %v245
    %v961 = vunpack.c.h.b16 %v245
    %v962 = vunpack.c.l.b16 %v246
    %v963 = vunpack.c.h.b16 %v246
    %v964 = vunpack.c.l.b16 %v247
    %v965 = vunpack.c.h.b16 %v247
    %v966 = vunpack.c.l.b16 %v248
    %v967 = vunpack.c.h.b16 %v248
    %v968 = vunpack.c.l.b16 %v249
    %v969 = vunpack.c.h.b16 %v249
    %v970 = vunpack.c.l.b16 %v250
    %v971 = vunpack.c.h.b16 %v250
    %v972 = vunpack.c.l.b16 %v251
    %v973 = vunpack.c.h.b16 %v251
    %v974 = vunpack.c.l.b16 %v252
    %v975 = vunpack.c.h.b16 %v252
    %v976 = vunpack.c.l.b16 %v253
    %v977 = vunpack.c.h.b16 %v253
    %v978 = vunpack.c.l.b16 %v254
    %v979 = vunpack.c.h.b16 %v254
    %v980 = vunpack.c.l.b16 %v255
    %v981 = vunpack.c.h.b16 %v255
    %v982 = vunpack.c.l.b16 %v256
    %v983 = vunpack.c.h.b16 %v256
    %v984 = vunpack.c.l.b16 %v257
    %v985 = vunpack.c.h.b16 %v257
    %v986 = vunpack.c.l.b16 %v258
    %v987 = vunpack.c.h.b16 %v258
    %v988 = vunpack.c.l.b16 %v259
    %v989 = vunpack.c.h.b16 %v259
    %v990 = vunpack.c.l.b16 %v260
    %v991 = vunpack.c.h.b16 %v260
    %v992 = vunpack.c.l.b16 %v261
    %v993 = vunpack.c.h.b16 %v261
    %v994 = vunpack.c.l.b16 %v262
    %v995 = vunpack.c.h.b16 %v262
    %v996 = vunpack.c.l.b16 %v263
    %v997 = vunpack.c.h.b16 %v263
    %v998 = vunpack.c.l.b16 %v264
    %v999 = vunpack.c.h.b16 %v264
    %v1000 = vunpack.c.l.b16 %v265
    %v1001 = vunpack.c.h.b16 %v265
    %v1002 = vunpack.c.l.b16 %v266
    %v1003 = vunpack.c.h.b16 %v266
    %v1004 = vunpack.c.l.b16 %v267
    %v1005 = vunpack.c.h.b16 %v267
    %v1006 = vunpack.c.l.b16 %v268
    %v1007 = vunpack.c.h.b16 %v268
    %v1008 = vunpack.c.l.b16 %v269
    %v1009 = vunpack.c.h.b16 %v269
    %v1010 = vunpack.c.l.b16 %v270
    %v1011 = vunpack.c.h.b16 %v270
    %v1012 = vunpack.c.l.b16 %v271
    %v1013 = vunpack.c.h.b16 %v271
    %v1014 = vunpack.c.l.b16 %v272
    %v1015 = vunpack.c.h.b16 %v272
    %v1016 = vunpack.c.l.b16 %v273
    %v1017 = vunpack.c.h.b16 %v273
    %v1018 = vunpack.c.l.b16 %v274
    %v1019 = vunpack.c.h.b16 %v274
    %v1020 = vunpack.c.l.b16 %v275
    %v1021 = vunpack.c.h.b16 %v275
    %v1022 = vunpack.c.l.b16 %v276
    %v1023 = vunpack.c.h.b16 %v276
    %v1024 = vunpack.c.l.b16 %v277
    %v1025 = vunpack.c.h.b16 %v277
    %v1026 = vunpack.c.l.b16 %v278
    %v1027 = vunpack.c.h.b16 %v278
    %v1028 = vunpack.c.l.b16 %v279
    %v1029 = vunpack.c.h.b16 %v279
    %v1030 = vunpack.c.l.b16 %v280
    %v1031 = vunpack.c.h.b16 %v280
    %v1032 = vunpack.c.l.b16 %v281
    %v1033 = vunpack.c.h.b16 %v281
    %v1034 = vunpack.c.l.b16 %v282
    %v1035 = vunpack.c.h.b16 %v282
    %v1036 = vunpack.c.l.b16 %v283
    %v1037 = vunpack.c.h.b16 %v283
    %v1038 = vunpack.c.l.b16 %v284
    %v1039 = vunpack.c.h.b16 %v284
    %v1040 = vunpack.c.l.b16 %v285
    %v1041 = vunpack.c.h.b16 %v285
    %v1042 = vunpack.c.l.b16 %v286
    %v1043 = vunpack.c.h.b16 %v286
    %v1044 = vunpack.c.l.b16 %v287
    %v1045 = vunpack.c.h.b16 %v287
    %v1046 = vunpack.c.l.b16 %v288
    %v1047 = vunpack.c.h.b16 %v288
    %v1048 = vunpack.c.l.b16 %v289
    %v1049 = vunpack.c.h.b16 %v289
    %v1050 = vunpack.c.l.b16 %v290
    %v1051 = vunpack.c.h.b16 %v290
    %v1052 = vunpack.c.l.b16 %v291
    %v1053 = vunpack.c.h.b16 %v291
    %v1054 = vunpack.c.l.b16 %v292
    %v1055 = vunpack.c.h.b16 %v292
    %v1056 = vunpack.c.l.b16 %v293
    %v1057 = vunpack.c.h.b16 %v293
    %v1058 = vunpack.c.l.b16 %v294
    %v1059 = vunpack.c.h.b16 %v294
    %v1060 = vunpack.c.l.b16 %v295
    %v1061 = vunpack.c.h.b16 %v295
    %v1062 = vunpack.c.l.b16 %v296
    %v1063 = vunpack.c.h.b16 %v296
    %v1064 = vunpack.c.l.b16 %v297
    %v1065 = vunpack.c.h.b16 %v297
    %v1066 = vunpack.c.l.b16 %v298
    %v1067 = vunpack.c.h.b16 %v298
    %v1068 = vunpack.c.l.b16 %v299
    %v1069 = vunpack.c.h.b16 %v299
    %v1070 = vunpack.c.l.b16 %v300
    %v1071 = vunpack.c.h.b16 %v300
    %v1072 = vunpack.c.l.b16 %v301
    %v1073 = vunpack.c.h.b16 %v301
    %v1074 = vunpack.c.l.b16 %v302
    %v1075 = vunpack.c.h.b16 %v302
    %v1076 = vunpack.c.l.b16 %v303
    %v1077 = vunpack.c.h.b16 %v303
    %v1078 = vunpack.c.l.b16 %v304
    %v1079 = vunpack.c.h.b16 %v304
    %v1080 = vunpack.c.l.b16 %v305
    %v1081 = vunpack.c.h.b16 %v305
    %v1082 = vunpack.c.l.b16 %v306
    %v1083 = vunpack.c.h.b16 %v306
    %v1084 = vunpack.c.l.b16 %v307
    %v1085 = vunpack.c.h.b16 %v307
    %v1086 = vunpack.c.l.b16 %v308
    %v1087 = vunpack.c.h.b16 %v308
    %v1088 = vunpack.c.l.b16 %v309
    %v1089 = vunpack.c.h.b16 %v309
    %v1090 = vunpack.c.l.b16 %v310
    %v1091 = vunpack.c.h.b16 %v310
    %v1092 = vunpack.c.l.b16 %v311
    %v1093 = vunpack.c.h.b16 %v311
    %v1094 = vunpack.c.l.b16 %v312
    %v1095 = vunpack.c.h.b16 %v312
    %v1096 = vunpack.c.l.b16 %v313
    %v1097 = vunpack.c.h.b16 %v313
    %v1098 = vunpack.c.l.b16 %v314
    %v1099 = vunpack.c.h.b16 %v314
    %v1100 = vunpack.c.l.b16 %v315
    %v1101 = vunpack.c.h.b16 %v315
    %v1102 = vunpack.c.l.b16 %v316
    %v1103 = vunpack.c.h.b16 %v316
    %v1104 = vunpack.c.l.b16 %v317
    %v1105 = vunpack.c.h.b16 %v317
    %v1106 = vunpack.c.l.b16 %v318
    %v1107 = vunpack.c.h.b16 %v318
    %v1108 = vunpack.c.l.b16 %v319
    %v1109 = vunpack.c.h.b16 %v319
    %v1110 = vunpack.c.l.b16 %v320
    %v1111 = vunpack.c.h.b16 %v320
    %v1112 = vunpack.c.l.b16 %v321
    %v1113 = vunpack.c.h.b16 %v321
    %v1114 = vunpack.c.l.b16 %v322
    %v1115 = vunpack.c.h.b16 %v322
    %v1116 = vunpack.c.l.b16 %v323
    %v1117 = vunpack.c.h.b16 %v323
    %v1118 = vunpack.c.l.b16 %v324
    %v1119 = vunpack.c.h.b16 %v324
    %v1120 = vunpack.c.l.b16 %v325
    %v1121 = vunpack.c.h.b16 %v325
    %v1122 = vunpack.c.l.b16 %v326
    %v1123 = vunpack.c.h.b16 %v326
    %v1124 = vunpack.c.l.b16 %v327
    %v1125 = vunpack.c.h.b16 %v327
    %v1126 = vunpack.c.l.b16 %v328
    %v1127 = vunpack.c.h.b16 %v328
    %v1128 = vunpack.c.l.b16 %v329
    %v1129 = vunpack.c.h.b16 %v329
    %v1130 = vunpack.c.l.b16 %v330
    %v1131 = vunpack.c.h.b16 %v330
    %v1132 = vunpack.c.l.b16 %v331
    %v1133 = vunpack.c.h.b16 %v331
    %v1134 = vunpack.c.l.b16 %v332
    %v1135 = vunpack.c.h.b16 %v332
    %v1136 = vunpack.c.l.b16 %v333
    %v1137 = vunpack.c.h.b16 %v333
    %v1138 = vunpack.c.l.b16 %v334
    %v1139 = vunpack.c.h.b16 %v334
    %v1140 = vunpack.c.l.b16 %v335
    %v1141 = vunpack.c.h.b16 %v335
    %v1142 = vunpack.c.l.b16 %v336
    %v1143 = vunpack.c.h.b16 %v336
    %v1144 = vunpack.c.l.b16 %v337
    %v1145 = vunpack.c.h.b16 %v337
    %v1146 = vunpack.c.l.b16 %v338
    %v1147 = vunpack.c.h.b16 %v338
    %v1148 = vunpack.c.l.b16 %v339
    %v1149 = vunpack.c.h.b16 %v339
    %v1150 = vpack.c.b16 %v646, %v638
    %v1151 = vpack.c.b16 %v647, %v639
    %v1152 = vpack.c.b16 %v648, %v640
    %v1153 = vpack.c.b16 %v649, %v641
    %v1154 = vpack.c.b16 %v650, %v642
    %v1155 = vpack.c.b16 %v651, %v643
    %v1156 = vpack.c.b16 %v652, %v644
    %v1157 = vpack.c.b16 %v653, %v645
    %v1158 = vpack.c.b16 %v662, %v654
    %v1159 = vpack.c.b16 %v663, %v655
    %v1160 = vpack.c.b16 %v664, %v656
    %v1161 = vpack.c.b16 %v665, %v657
    %v1162 = vpack.c.b16 %v666, %v658
    %v1163 = vpack.c.b16 %v667, %v659
    %v1164 = vpack.c.b16 %v668, %v660
    %v1165 = vpack.c.b16 %v669, %v661
    %v1166 = vpack.c.b16 %v678, %v670
    %v1167 = vpack.c.b16 %v679, %v671
    %v1168 = vpack.c.b16 %v680, %v672
    %v1169 = vpack.c.b16 %v681, %v673
    %v1170 = vpack.c.b16 %v682, %v674
    %v1171 = vpack.c.b16 %v683, %v675
    %v1172 = vpack.c.b16 %v684, %v676
    %v1173 = vpack.c.b16 %v685, %v677
    %v1174 = vpack.c.b16 %v694, %v686
    %v1175 = vpack.c.b16 %v695, %v687
    %v1176 = vpack.c.b16 %v696, %v688
    %v1177 = vpack.c.b16 %v697, %v689
    %v1178 = vpack.c.b16 %v698, %v690
    %v1179 = vpack.c.b16 %v699, %v691
    %v1180 = vpack.c.b16 %v700, %v692
    %v1181 = vpack.c.b16 %v701, %v693
    %v1182 = vpack.c.b16 %v710, %v702
    %v1183 = vpack.c.b16 %v711, %v703
    %v1184 = vpack.c.b16 %v712, %v704
    %v1185 = vpack.c.b16 %v713, %v705
    %v1186 = vpack.c.b16 %v714, %v706
    %v1187 = vpack.c.b16 %v715, %v707
    %v1188 = vpack.c.b16 %v716, %v708
    %v1189 = vpack.c.b16 %v717, %v709
    %v1190 = vpack.c.b16 %v726, %v718
    %v1191 = vpack.c.b16 %v727, %v719
    %v1192 = vpack.c.b16 %v728, %v720
    %v1193 = vpack.c.b16 %v729, %v721
    %v1194 = vpack.c.b16 %v730, %v722
    %v1195 = vpack.c.b16 %v731, %v723
    %v1196 = vpack.c.b16 %v732, %v724
    %v1197 = vpack.c.b16 %v733, %v725
    %v1198 = vpack.c.b16 %v742, %v734
    %v1199 = vpack.c.b16 %v743, %v735
    %v1200 = vpack.c.b16 %v744, %v736
    %v1201 = vpack.c.b16 %v745, %v737
    %v1202 = vpack.c.b16 %v746, %v738
    %v1203 = vpack.c.b16 %v747, %v739
    %v1204 = vpack.c.b16 %v748, %v740
    %v1205 = vpack.c.b16 %v749, %v741
    %v1206 = vpack.c.b16 %v758, %v750
    %v1207 = vpack.c.b16 %v759, %v751
    %v1208 = vpack.c.b16 %v760, %v752
    %v1209 = vpack.c.b16 %v761, %v753
    %v1210 = vpack.c.b16 %v762, %v754
    %v1211 = vpack.c.b16 %v763, %v755
    %v1212 = vpack.c.b16 %v764, %v756
    %v1213 = vpack.c.b16 %v765, %v757
    %v1214 = vpack.c.b16 %v774, %v766
    %v1215 = vpack.c.b16 %v775, %v767
    %v1216 = vpack.c.b16 %v776, %v768
    %v1217 = vpack.c.b16 %v777, %v769
    %v1218 = vpack.c.b16 %v778, %v770
    %v1219 = vpack.c.b16 %v779, %v771
    %v1220 = vpack.c.b16 %v780, %v772
    %v1221 = vpack.c.b16 %v781, %v773
    %v1222 = vpack.c.b16 %v790, %v782
    %v1223 = vpack.c.b16 %v791, %v783
    %v1224 = vpack.c.b16 %v792, %v784
    %v1225 = vpack.c.b16 %v793, %v785
    %v1226 = vpack.c.b16 %v794, %v786
    %v1227 = vpack.c.b16 %v795, %v787
    %v1228 = vpack.c.b16 %v796, %v788
    %v1229 = vpack.c.b16 %v797, %v789
    %v1230 = vpack.c.b16 %v806, %v798
    %v1231 = vpack.c.b16 %v807, %v799
    %v1232 = vpack.c.b16 %v808, %v800
    %v1233 = vpack.c.b16 %v809, %v801
    %v1234 = vpack.c.b16 %v810, %v802
    %v1235 = vpack.c.b16 %v811, %v803
    %v1236 = vpack.c.b16 %v812, %v804
    %v1237 = vpack.c.b16 %v813, %v805
    %v1238 = vpack.c.b16 %v822, %v814
    %v1239 = vpack.c.b16 %v823, %v815
    %v1240 = vpack.c.b16 %v824, %v816
    %v1241 = vpack.c.b16 %v825, %v817
    %v1242 = vpack.c.b16 %v826, %v818
    %v1243 = vpack.c.b16 %v827, %v819
    %v1244 = vpack.c.b16 %v828, %v820
    %v1245 = vpack.c.b16 %v829, %v821
    %v1246 = vpack.c.b16 %v838, %v830
    %v1247 = vpack.c.b16 %v839, %v831
    %v1248 = vpack.c.b16 %v840, %v832
    %v1249 = vpack.c.b16 %v841, %v833
    %v1250 = vpack.c.b16 %v842, %v834
    %v1251 = vpack.c.b16 %v843, %v835
    %v1252 = vpack.c.b16 %v844, %v836
    %v1253 = vpack.c.b16 %v845, %v837
    %v1254 = vpack.c.b16 %v854, %v846
    %v1255 = vpack.c.b16 %v855, %v847
    %v1256 = vpack.c.b16 %v856, %v848
    %v1257 = vpack.c.b16 %v857, %v849
    %v1258 = vpack.c.b16 %v858, %v850
    %v1259 = vpack.c.b16 %v859, %v851
    %v1260 = vpack.c.b16 %v860, %v852
    %v1261 = vpack.c.b16 %v861, %v853
    %v1262 = vpack.c.b16 %v870, %v862
    %v1263 = vpack.c.b16 %v871, %v863
    %v1264 = vpack.c.b16 %v872, %v864
    %v1265 = vpack.c.b16 %v873, %v865
    %v1266 = vpack.c.b16 %v874, %v866
    %v1267 = vpack.c.b16 %v875, %v867
    %v1268 = vpack.c.b16 %v876, %v868
    %v1269 = vpack.c.b16 %v877, %v869
    %v1270 = vpack.c.b16 %v886, %v878
    %v1271 = vpack.c.b16 %v887, %v879
    %v1272 = vpack.c.b16 %v888, %v880
    %v1273 = vpack.c.b16 %v889, %v881
    %v1274 = vpack.c.b16 %v890, %v882
    %v1275 = vpack.c.b16 %v891, %v883
    %v1276 = vpack.c.b16 %v892, %v884
    %v1277 = vpack.c.b16 %v893, %v885
    %v1278 = vpack.c.b16 %v902, %v894
    %v1279 = vpack.c.b16 %v903, %v895
    %v1280 = vpack.c.b16 %v904, %v896
    %v1281 = vpack.c.b16 %v905, %v897
    %v1282 = vpack.c.b16 %v906, %v898
    %v1283 = vpack.c.b16 %v907, %v899
    %v1284 = vpack.c.b16 %v908, %v900
    %v1285 = vpack.c.b16 %v909, %v901
    %v1286 = vpack.c.b16 %v918, %v910
    %v1287 = vpack.c.b16 %v919, %v911
    %v1288 = vpack.c.b16 %v920, %v912
    %v1289 = vpack.c.b16 %v921, %v913
    %v1290 = vpack.c.b16 %v922, %v914
    %v1291 = vpack.c.b16 %v923, %v915
    %v1292 = vpack.c.b16 %v924, %v916
    %v1293 = vpack.c.b16 %v925, %v917
    %v1294 = vpack.c.b16 %v934, %v926
    %v1295 = vpack.c.b16 %v935, %v927
    %v1296 = vpack.c.b16 %v936, %v928
    %v1297 = vpack.c.b16 %v937, %v929
    %v1298 = vpack.c.b16 %v938, %v930
    %v1299 = vpack.c.b16 %v939, %v931
    %v1300 = vpack.c.b16 %v940, %v932
    %v1301 = vpack.c.b16 %v941, %v933
    %v1302 = vpack.c.b16 %v950, %v942
    %v1303 = vpack.c.b16 %v951, %v943
    %v1304 = vpack.c.b16 %v952, %v944
    %v1305 = vpack.c.b16 %v953, %v945
    %v1306 = vpack.c.b16 %v954, %v946
    %v1307 = vpack.c.b16 %v955, %v947
    %v1308 = vpack.c.b16 %v956, %v948
    %v1309 = vpack.c.b16 %v957, %v949
    %v1310 = vpack.c.b16 %v966, %v958
    %v1311 = vpack.c.b16 %v967, %v959
    %v1312 = vpack.c.b16 %v968, %v960
    %v1313 = vpack.c.b16 %v969, %v961
    %v1314 = vpack.c.b16 %v970, %v962
    %v1315 = vpack.c.b16 %v971, %v963
    %v1316 = vpack.c.b16 %v972, %v964
    %v1317 = vpack.c.b16 %v973, %v965
    %v1318 = vpack.c.b16 %v982, %v974
    %v1319 = vpack.c.b16 %v983, %v975
    %v1320 = vpack.c.b16 %v984, %v976
    %v1321 = vpack.c.b16 %v985, %v977
    %v1322 = vpack.c.b16 %v986, %v978
    %v1323 = vpack.c.b16 %v987, %v979
    %v1324 = vpack.c.b16 %v988, %v980
    %v1325 = vpack.c.b16 %v989, %v981
    %v1326 = vpack.c.b16 %v998, %v990
    %v1327 = vpack.c.b16 %v999, %v991
    %v1328 = vpack.c.b16 %v1000, %v992
    %v1329 = vpack.c.b16 %v1001, %v993
    %v1330 = vpack.c.b16 %v1002, %v994
    %v1331 = vpack.c.b16 %v1003, %v995
    %v1332 = vpack.c.b16 %v1004, %v996
    %v1333 = vpack.c.b16 %v1005, %v997
    %v1334 = vpack.c.b16 %v1014, %v1006
    %v1335 = vpack.c.b16 %v1015, %v1007
    %v1336 = vpack.c.b16 %v1016, %v1008
    %v1337 = vpack.c.b16 %v1017, %v1009
    %v1338 = vpack.c.b16 %v1018, %v1010
    %v1339 = vpack.c.b16 %v1019, %v1011
    %v1340 = vpack.c.b16 %v1020, %v1012
    %v1341 = vpack.c.b16 %v1021, %v1013
    %v1342 = vpack.c.b16 %v1030, %v1022
    %v1343 = vpack.c.b16 %v1031, %v1023
    %v1344 = vpack.c.b16 %v1032, %v1024
    %v1345 = vpack.c.b16 %v1033, %v1025
    %v1346 = vpack.c.b16 %v1034, %v1026
    %v1347 = vpack.c.b16 %v1035, %v1027
    %v1348 = vpack.c.b16 %v1036, %v1028
    %v1349 = vpack.c.b16 %v1037, %v1029
    %v1350 = vpack.c.b16 %v1046, %v1038
    %v1351 = vpack.c.b16 %v1047, %v1039
    %v1352 = vpack.c.b16 %v1048, %v1040
    %v1353 = vpack.c.b16 %v1049, %v1041
    %v1354 = vpack.c.b16 %v1050, %v1042
    %v1355 = vpack.c.b16 %v1051, %v1043
    %v1356 = vpack.c.b16 %v1052, %v1044
    %v1357 = vpack.c.b16 %v1053, %v1045
    %v1358 = vpack.c.b16 %v1062, %v1054
    %v1359 = vpack.c.b16 %v1063, %v1055
    %v1360 = vpack.c.b16 %v1064, %v1056
    %v1361 = vpack.c.b16 %v1065, %v1057
    %v1362 = vpack.c.b16 %v1066, %v1058
    %v1363 = vpack.c.b16 %v1067, %v1059
    %v1364 = vpack.c.b16 %v1068, %v1060
    %v1365 = vpack.c.b16 %v1069, %v1061
    %v1366 = vpack.c.b16 %v1078, %v1070
    %v1367 = vpack.c.b16 %v1079, %v1071
    %v1368 = vpack.c.b16 %v1080, %v1072
    %v1369 = vpack.c.b16 %v1081, %v1073
    %v1370 = vpack.c.b16 %v1082, %v1074
    %v1371 = vpack.c.b16 %v1083, %v1075
    %v1372 = vpack.c.b16 %v1084, %v1076
    %v1373 = vpack.c.b16 %v1085, %v1077
    %v1374 = vpack.c.b16 %v1094, %v1086
    %v1375 = vpack.c.b16 %v1095, %v1087
    %v1376 = vpack.c.b16 %v1096, %v1088
    %v1377 = vpack.c.b16 %v1097, %v1089
    %v1378 = vpack.c.b16 %v1098, %v1090
    %v1379 = vpack.c.b16 %v1099, %v1091
    %v1380 = vpack.c.b16 %v1100, %v1092
    %v1381 = vpack.c.b16 %v1101, %v1093
    %v1382 = vpack.c.b16 %v1110, %v1102
    %v1383 = vpack.c.b16 %v1111, %v1103
    %v1384 = vpack.c.b16 %v1112, %v1104
    %v1385 = vpack.c.b16 %v1113, %v1105
    %v1386 = vpack.c.b16 %v1114, %v1106
    %v1387 = vpack.c.b16 %v1115, %v1107
    %v1388 = vpack.c.b16 %v1116, %v1108
    %v1389 = vpack.c.b16 %v1117, %v1109
    %v1390 = vpack.c.b16 %v1126, %v1118
    %v1391 = vpack.c.b16 %v1127, %v1119
    %v1392 = vpack.c.b16 %v1128, %v1120
    %v1393 = vpack.c.b16 %v1129, %v1121
    %v1394 = vpack.c.b16 %v1130, %v1122
    %v1395 = vpack.c.b16 %v1131, %v1123
    %v1396 = vpack.c.b16 %v1132, %v1124
    %v1397 = vpack.c.b16 %v1133, %v1125
    %v1398 = vpack.c.b16 %v1142, %v1134
    %v1399 = vpack.c.b16 %v1143, %v1135
    %v1400 = vpack.c.b16 %v1144, %v1136
    %v1401 = vpack.c.b16 %v1145, %v1137
    %v1402 = vpack.c.b16 %v1146, %v1138
    %v1403 = vpack.c.b16 %v1147, %v1139
    %v1404 = vpack.c.b16 %v1148, %v1140
    %v1405 = vpack.c.b16 %v1149, %v1141
    %1662 = vmatprep.subr.bf16.mxu0 %v1207
    %1663 = vmatpush1.bf16.msra.mxu0 %v1206
    %1664 = vmatprep.subr.bf16.mxu0 %v1199
    %1665 = vmatpush1.bf16.msra.mxu0 %v1198
    %1666 = vmatprep.subr.bf16.mxu0 %v1191
    %1667 = vmatpush1.bf16.msra.mxu0 %v1190
    %1668 = vmatprep.subr.bf16.mxu0 %v1183
    %1669 = vmatpush1.bf16.msra.mxu0 %v1182
    %1670 = vmatprep.subr.bf16.mxu0 %v1175
    %1671 = vmatpush1.bf16.msra.mxu0 %v1174
    %1672 = vmatprep.subr.bf16.mxu0 %v1167
    %1673 = vmatpush1.bf16.msra.mxu0 %v1166
    %1674 = vmatprep.subr.bf16.mxu0 %v1159
    %1675 = vmatpush1.bf16.msra.mxu0 %v1158
    %1676 = vmatprep.subr.bf16.mxu0 %v1151
    %1677 = vmatpush1.bf16.msra.mxu0 %v1150
    %1678 = vmatprep.subr.bf16.mxu0 %v1271
    %1679 = vmatpush2.bf16.msra.mxu0 %v1270
    %1680 = vmatprep.subr.bf16.mxu0 %v1263
    %1681 = vmatpush2.bf16.msra.mxu0 %v1262
    %1682 = vmatprep.subr.bf16.mxu0 %v1255
    %1683 = vmatpush2.bf16.msra.mxu0 %v1254
    %1684 = vmatprep.subr.bf16.mxu0 %v1247
    %1685 = vmatpush2.bf16.msra.mxu0 %v1246
    %1686 = vmatprep.subr.bf16.mxu0 %v1239
    %1687 = vmatpush2.bf16.msra.mxu0 %v1238
    %1688 = vmatprep.subr.bf16.mxu0 %v1231
    %1689 = vmatpush2.bf16.msra.mxu0 %v1230
    %1690 = vmatprep.subr.bf16.mxu0 %v1223
    %1691 = vmatpush2.bf16.msra.mxu0 %v1222
    %1692 = vmatprep.subr.bf16.mxu0 %v1215
    %1693 = vmatpush2.bf16.msra.mxu0 %v1214
    %1694 = vmatprep.mubr.bf16.mxu0 %v81
    %1695 = vmatmul.mubr.bf16.gmra.mxu0 %v80
    %v1696 = vpop.f32.mrf.mxu0
    %v1697 = vadd.f32 %v345, %v1696
    %v1698 = vpop.f32.mrf.mxu0
    %v1699 = vadd.f32 %v349, %v1698
    %v1700 = vpop.f32.mrf.mxu0
    %v1701 = vpop.f32.mrf.mxu0
    %1702 = vdwg.mxu0
    %1703 = vmatprep.subr.bf16.mxu0 %v1335
    %1704 = vmatpush1.bf16.msra.mxu0 %v1334
    %1705 = vmatprep.subr.bf16.mxu0 %v1327
    %1706 = vmatpush1.bf16.msra.mxu0 %v1326
    %1707 = vmatprep.subr.bf16.mxu0 %v1319
    %1708 = vmatpush1.bf16.msra.mxu0 %v1318
    %1709 = vmatprep.subr.bf16.mxu0 %v1311
    %1710 = vmatpush1.bf16.msra.mxu0 %v1310
    %1711 = vmatprep.subr.bf16.mxu0 %v1303
    %1712 = vmatpush1.bf16.msra.mxu0 %v1302
    %1713 = vmatprep.subr.bf16.mxu0 %v1295
    %1714 = vmatpush1.bf16.msra.mxu0 %v1294
    %1715 = vmatprep.subr.bf16.mxu0 %v1287
    %1716 = vmatpush1.bf16.msra.mxu0 %v1286
    %1717 = vmatprep.subr.bf16.mxu0 %v1279
    %1718 = vmatpush1.bf16.msra.mxu0 %v1278
    %1719 = vmatprep.subr.bf16.mxu0 %v1399
    %1720 = vmatpush2.bf16.msra.mxu0 %v1398
    %1721 = vmatprep.subr.bf16.mxu0 %v1391
    %1722 = vmatpush2.bf16.msra.mxu0 %v1390
    %1723 = vmatprep.subr.bf16.mxu0 %v1383
    %1724 = vmatpush2.bf16.msra.mxu0 %v1382
    %1725 = vmatprep.subr.bf16.mxu0 %v1375
    %1726 = vmatpush2.bf16.msra.mxu0 %v1374
    %1727 = vmatprep.subr.bf16.mxu0 %v1367
    %1728 = vmatpush2.bf16.msra.mxu0 %v1366
    %1729 = vmatprep.subr.bf16.mxu0 %v1359
    %1730 = vmatpush2.bf16.msra.mxu0 %v1358
    %1731 = vmatprep.subr.bf16.mxu0 %v1351
    %1732 = vmatpush2.bf16.msra.mxu0 %v1350
    %1733 = vmatprep.subr.bf16.mxu0 %v1343
    %1734 = vmatpush2.bf16.msra.mxu0 %v1342
    %1735 = vmatprep.mubr.bf16.mxu0 %v83
    %1736 = vmatmul.mubr.bf16.gmra.mxu0 %v82
    %v1737 = vpop.f32.mrf.mxu0
    %v1738 = vadd.f32 %v1697, %v1737
    %v1739 = vpop.f32.mrf.mxu0
    %v1740 = vadd.f32 %v1699, %v1739
    %v1741 = vpop.f32.mrf.mxu0
    %v1742 = vpop.f32.mrf.mxu0
    %1743 = vdwg.mxu0
    %1744 = vmatprep.subr.bf16.mxu0 %v1209
    %1745 = vmatpush1.bf16.msra.mxu0 %v1208
    %1746 = vmatprep.subr.bf16.mxu0 %v1201
    %1747 = vmatpush1.bf16.msra.mxu0 %v1200
    %1748 = vmatprep.subr.bf16.mxu0 %v1193
    %1749 = vmatpush1.bf16.msra.mxu0 %v1192
    %1750 = vmatprep.subr.bf16.mxu0 %v1185
    %1751 = vmatpush1.bf16.msra.mxu0 %v1184
    %1752 = vmatprep.subr.bf16.mxu0 %v1177
    %1753 = vmatpush1.bf16.msra.mxu0 %v1176
    %1754 = vmatprep.subr.bf16.mxu0 %v1169
    %1755 = vmatpush1.bf16.msra.mxu0 %v1168
    %1756 = vmatprep.subr.bf16.mxu0 %v1161
    %1757 = vmatpush1.bf16.msra.mxu0 %v1160
    %1758 = vmatprep.subr.bf16.mxu0 %v1153
    %1759 = vmatpush1.bf16.msra.mxu0 %v1152
    %1760 = vmatprep.subr.bf16.mxu0 %v1273
    %1761 = vmatpush2.bf16.msra.mxu0 %v1272
    %1762 = vmatprep.subr.bf16.mxu0 %v1265
    %1763 = vmatpush2.bf16.msra.mxu0 %v1264
    %1764 = vmatprep.subr.bf16.mxu0 %v1257
    %1765 = vmatpush2.bf16.msra.mxu0 %v1256
    %1766 = vmatprep.subr.bf16.mxu0 %v1249
    %1767 = vmatpush2.bf16.msra.mxu0 %v1248
    %1768 = vmatprep.subr.bf16.mxu0 %v1241
    %1769 = vmatpush2.bf16.msra.mxu0 %v1240
    %1770 = vmatprep.subr.bf16.mxu0 %v1233
    %1771 = vmatpush2.bf16.msra.mxu0 %v1232
    %1772 = vmatprep.subr.bf16.mxu0 %v1225
    %1773 = vmatpush2.bf16.msra.mxu0 %v1224
    %1774 = vmatprep.subr.bf16.mxu0 %v1217
    %1775 = vmatpush2.bf16.msra.mxu0 %v1216
    %1776 = vmatprep.mubr.bf16.mxu0 %v81
    %1777 = vmatmul.mubr.bf16.gmra.mxu0 %v80
    %v1778 = vpop.f32.mrf.mxu0
    %v1779 = vadd.f32 %v353, %v1778
    %v1780 = vpop.f32.mrf.mxu0
    %v1781 = vadd.f32 %v357, %v1780
    %v1782 = vpop.f32.mrf.mxu0
    %v1783 = vpop.f32.mrf.mxu0
    %1784 = vdwg.mxu0
    %1785 = vmatprep.subr.bf16.mxu0 %v1337
    %1786 = vmatpush1.bf16.msra.mxu0 %v1336
    %1787 = vmatprep.subr.bf16.mxu0 %v1329
    %1788 = vmatpush1.bf16.msra.mxu0 %v1328
    %1789 = vmatprep.subr.bf16.mxu0 %v1321
    %1790 = vmatpush1.bf16.msra.mxu0 %v1320
    %1791 = vmatprep.subr.bf16.mxu0 %v1313
    %1792 = vmatpush1.bf16.msra.mxu0 %v1312
    %1793 = vmatprep.subr.bf16.mxu0 %v1305
    %1794 = vmatpush1.bf16.msra.mxu0 %v1304
    %1795 = vmatprep.subr.bf16.mxu0 %v1297
    %1796 = vmatpush1.bf16.msra.mxu0 %v1296
    %1797 = vmatprep.subr.bf16.mxu0 %v1289
    %1798 = vmatpush1.bf16.msra.mxu0 %v1288
    %1799 = vmatprep.subr.bf16.mxu0 %v1281
    %1800 = vmatpush1.bf16.msra.mxu0 %v1280
    %1801 = vmatprep.subr.bf16.mxu0 %v1401
    %1802 = vmatpush2.bf16.msra.mxu0 %v1400
    %1803 = vmatprep.subr.bf16.mxu0 %v1393
    %1804 = vmatpush2.bf16.msra.mxu0 %v1392
    %1805 = vmatprep.subr.bf16.mxu0 %v1385
    %1806 = vmatpush2.bf16.msra.mxu0 %v1384
    %1807 = vmatprep.subr.bf16.mxu0 %v1377
    %1808 = vmatpush2.bf16.msra.mxu0 %v1376
    %1809 = vmatprep.subr.bf16.mxu0 %v1369
    %1810 = vmatpush2.bf16.msra.mxu0 %v1368
    %1811 = vmatprep.subr.bf16.mxu0 %v1361
    %1812 = vmatpush2.bf16.msra.mxu0 %v1360
    %1813 = vmatprep.subr.bf16.mxu0 %v1353
    %1814 = vmatpush2.bf16.msra.mxu0 %v1352
    %1815 = vmatprep.subr.bf16.mxu0 %v1345
    %1816 = vmatpush2.bf16.msra.mxu0 %v1344
    %1817 = vmatprep.mubr.bf16.mxu0 %v83
    %1818 = vmatmul.mubr.bf16.gmra.mxu0 %v82
    %v1819 = vpop.f32.mrf.mxu0
    %v1820 = vadd.f32 %v1779, %v1819
    %v1821 = vpop.f32.mrf.mxu0
    %v1822 = vadd.f32 %v1781, %v1821
    %v1823 = vpop.f32.mrf.mxu0
    %v1824 = vpop.f32.mrf.mxu0
    %1825 = vdwg.mxu0
    %1826 = vmatprep.subr.bf16.mxu0 %v1211
    %1827 = vmatpush1.bf16.msra.mxu0 %v1210
    %1828 = vmatprep.subr.bf16.mxu0 %v1203
    %1829 = vmatpush1.bf16.msra.mxu0 %v1202
    %1830 = vmatprep.subr.bf16.mxu0 %v1195
    %1831 = vmatpush1.bf16.msra.mxu0 %v1194
    %1832 = vmatprep.subr.bf16.mxu0 %v1187
    %1833 = vmatpush1.bf16.msra.mxu0 %v1186
    %1834 = vmatprep.subr.bf16.mxu0 %v1179
    %1835 = vmatpush1.bf16.msra.mxu0 %v1178
    %1836 = vmatprep.subr.bf16.mxu0 %v1171
    %1837 = vmatpush1.bf16.msra.mxu0 %v1170
    %1838 = vmatprep.subr.bf16.mxu0 %v1163
    %1839 = vmatpush1.bf16.msra.mxu0 %v1162
    %1840 = vmatprep.subr.bf16.mxu0 %v1155
    %1841 = vmatpush1.bf16.msra.mxu0 %v1154
    %1842 = vmatprep.subr.bf16.mxu0 %v1275
    %1843 = vmatpush2.bf16.msra.mxu0 %v1274
    %1844 = vmatprep.subr.bf16.mxu0 %v1267
    %1845 = vmatpush2.bf16.msra.mxu0 %v1266
    %1846 = vmatprep.subr.bf16.mxu0 %v1259
    %1847 = vmatpush2.bf16.msra.mxu0 %v1258
    %1848 = vmatprep.subr.bf16.mxu0 %v1251
    %1849 = vmatpush2.bf16.msra.mxu0 %v1250
    %1850 = vmatprep.subr.bf16.mxu0 %v1243
    %1851 = vmatpush2.bf16.msra.mxu0 %v1242
    %1852 = vmatprep.subr.bf16.mxu0 %v1235
    %1853 = vmatpush2.bf16.msra.mxu0 %v1234
    %1854 = vmatprep.subr.bf16.mxu0 %v1227
    %1855 = vmatpush2.bf16.msra.mxu0 %v1226
    %1856 = vmatprep.subr.bf16.mxu0 %v1219
    %1857 = vmatpush2.bf16.msra.mxu0 %v1218
    %1858 = vmatprep.mubr.bf16.mxu0 %v81
    %1859 = vmatmul.mubr.bf16.gmra.mxu0 %v80
    %v1860 = vpop.f32.mrf.mxu0
    %v1861 = vadd.f32 %v361, %v1860
    %v1862 = vpop.f32.mrf.mxu0
    %v1863 = vadd.f32 %v365, %v1862
    %v1864 = vpop.f32.mrf.mxu0
    %v1865 = vpop.f32.mrf.mxu0
    %1866 = vdwg.mxu0
    %1867 = vmatprep.subr.bf16.mxu0 %v1339
    %1868 = vmatpush1.bf16.msra.mxu0 %v1338
    %1869 = vmatprep.subr.bf16.mxu0 %v1331
    %1870 = vmatpush1.bf16.msra.mxu0 %v1330
    %1871 = vmatprep.subr.bf16.mxu0 %v1323
    %1872 = vmatpush1.bf16.msra.mxu0 %v1322
    %1873 = vmatprep.subr.bf16.mxu0 %v1315
    %1874 = vmatpush1.bf16.msra.mxu0 %v1314
    %1875 = vmatprep.subr.bf16.mxu0 %v1307
    %1876 = vmatpush1.bf16.msra.mxu0 %v1306
    %1877 = vmatprep.subr.bf16.mxu0 %v1299
    %1878 = vmatpush1.bf16.msra.mxu0 %v1298
    %1879 = vmatprep.subr.bf16.mxu0 %v1291
    %1880 = vmatpush1.bf16.msra.mxu0 %v1290
    %1881 = vmatprep.subr.bf16.mxu0 %v1283
    %1882 = vmatpush1.bf16.msra.mxu0 %v1282
    %1883 = vmatprep.subr.bf16.mxu0 %v1403
    %1884 = vmatpush2.bf16.msra.mxu0 %v1402
    %1885 = vmatprep.subr.bf16.mxu0 %v1395
    %1886 = vmatpush2.bf16.msra.mxu0 %v1394
    %1887 = vmatprep.subr.bf16.mxu0 %v1387
    %1888 = vmatpush2.bf16.msra.mxu0 %v1386
    %1889 = vmatprep.subr.bf16.mxu0 %v1379
    %1890 = vmatpush2.bf16.msra.mxu0 %v1378
    %1891 = vmatprep.subr.bf16.mxu0 %v1371
    %1892 = vmatpush2.bf16.msra.mxu0 %v1370
    %1893 = vmatprep.subr.bf16.mxu0 %v1363
    %1894 = vmatpush2.bf16.msra.mxu0 %v1362
    %1895 = vmatprep.subr.bf16.mxu0 %v1355
    %1896 = vmatpush2.bf16.msra.mxu0 %v1354
    %1897 = vmatprep.subr.bf16.mxu0 %v1347
    %1898 = vmatpush2.bf16.msra.mxu0 %v1346
    %1899 = vmatprep.mubr.bf16.mxu0 %v83
    %1900 = vmatmul.mubr.bf16.gmra.mxu0 %v82
    %v1901 = vpop.f32.mrf.mxu0
    %v1902 = vadd.f32 %v1861, %v1901
    %v1903 = vpop.f32.mrf.mxu0
    %v1904 = vadd.f32 %v1863, %v1903
    %v1905 = vpop.f32.mrf.mxu0
    %v1906 = vpop.f32.mrf.mxu0
    %1907 = vdwg.mxu0
    %1908 = vmatprep.subr.bf16.mxu0 %v1213
    %1909 = vmatpush1.bf16.msra.mxu0 %v1212
    %1910 = vmatprep.subr.bf16.mxu0 %v1205
    %1911 = vmatpush1.bf16.msra.mxu0 %v1204
    %1912 = vmatprep.subr.bf16.mxu0 %v1197
    %1913 = vmatpush1.bf16.msra.mxu0 %v1196
    %1914 = vmatprep.subr.bf16.mxu0 %v1189
    %1915 = vmatpush1.bf16.msra.mxu0 %v1188
    %1916 = vmatprep.subr.bf16.mxu0 %v1181
    %1917 = vmatpush1.bf16.msra.mxu0 %v1180
    %1918 = vmatprep.subr.bf16.mxu0 %v1173
    %1919 = vmatpush1.bf16.msra.mxu0 %v1172
    %1920 = vmatprep.subr.bf16.mxu0 %v1165
    %1921 = vmatpush1.bf16.msra.mxu0 %v1164
    %1922 = vmatprep.subr.bf16.mxu0 %v1157
    %1923 = vmatpush1.bf16.msra.mxu0 %v1156
    %1924 = vmatprep.subr.bf16.mxu0 %v1277
    %1925 = vmatpush2.bf16.msra.mxu0 %v1276
    %1926 = vmatprep.subr.bf16.mxu0 %v1269
    %1927 = vmatpush2.bf16.msra.mxu0 %v1268
    %1928 = vmatprep.subr.bf16.mxu0 %v1261
    %1929 = vmatpush2.bf16.msra.mxu0 %v1260
    %1930 = vmatprep.subr.bf16.mxu0 %v1253
    %1931 = vmatpush2.bf16.msra.mxu0 %v1252
    %1932 = vmatprep.subr.bf16.mxu0 %v1245
    %1933 = vmatpush2.bf16.msra.mxu0 %v1244
    %1934 = vmatprep.subr.bf16.mxu0 %v1237
    %1935 = vmatpush2.bf16.msra.mxu0 %v1236
    %1936 = vmatprep.subr.bf16.mxu0 %v1229
    %1937 = vmatpush2.bf16.msra.mxu0 %v1228
    %1938 = vmatprep.subr.bf16.mxu0 %v1221
    %1939 = vmatpush2.bf16.msra.mxu0 %v1220
    %1940 = vmatprep.mubr.bf16.mxu0 %v81
    %1941 = vmatmul.mubr.bf16.gmra.mxu0 %v80
    %v1942 = vpop.f32.mrf.mxu0
    %v1943 = vadd.f32 %v369, %v1942
    %v1944 = vpop.f32.mrf.mxu0
    %v1945 = vadd.f32 %v373, %v1944
    %v1946 = vpop.f32.mrf.mxu0
    %v1947 = vpop.f32.mrf.mxu0
    %1948 = vdwg.mxu0
    %1949 = vmatprep.subr.bf16.mxu0 %v1341
    %1950 = vmatpush1.bf16.msra.mxu0 %v1340
    %1951 = vmatprep.subr.bf16.mxu0 %v1333
    %1952 = vmatpush1.bf16.msra.mxu0 %v1332
    %1953 = vmatprep.subr.bf16.mxu0 %v1325
    %1954 = vmatpush1.bf16.msra.mxu0 %v1324
    %1955 = vmatprep.subr.bf16.mxu0 %v1317
    %1956 = vmatpush1.bf16.msra.mxu0 %v1316
    %1957 = vmatprep.subr.bf16.mxu0 %v1309
    %1958 = vmatpush1.bf16.msra.mxu0 %v1308
    %1959 = vmatprep.subr.bf16.mxu0 %v1301
    %1960 = vmatpush1.bf16.msra.mxu0 %v1300
    %1961 = vmatprep.subr.bf16.mxu0 %v1293
    %1962 = vmatpush1.bf16.msra.mxu0 %v1292
    %1963 = vmatprep.subr.bf16.mxu0 %v1285
    %1964 = vmatpush1.bf16.msra.mxu0 %v1284
    %1965 = vmatprep.subr.bf16.mxu0 %v1405
    %1966 = vmatpush2.bf16.msra.mxu0 %v1404
    %1967 = vmatprep.subr.bf16.mxu0 %v1397
    %1968 = vmatpush2.bf16.msra.mxu0 %v1396
    %1969 = vmatprep.subr.bf16.mxu0 %v1389
    %1970 = vmatpush2.bf16.msra.mxu0 %v1388
    %1971 = vmatprep.subr.bf16.mxu0 %v1381
    %1972 = vmatpush2.bf16.msra.mxu0 %v1380
    %1973 = vmatprep.subr.bf16.mxu0 %v1373
    %1974 = vmatpush2.bf16.msra.mxu0 %v1372
    %1975 = vmatprep.subr.bf16.mxu0 %v1365
    %1976 = vmatpush2.bf16.msra.mxu0 %v1364
    %1977 = vmatprep.subr.bf16.mxu0 %v1357
    %1978 = vmatpush2.bf16.msra.mxu0 %v1356
    %1979 = vmatprep.subr.bf16.mxu0 %v1349
    %1980 = vmatpush2.bf16.msra.mxu0 %v1348
    %1981 = vmatprep.mubr.bf16.mxu0 %v83
    %1982 = vmatmul.mubr.bf16.gmra.mxu0 %v82
    %v1983 = vpop.f32.mrf.mxu0
    %v1984 = vadd.f32 %v1943, %v1983
    %v1985 = vpop.f32.mrf.mxu0
    %v1986 = vadd.f32 %v1945, %v1985
    %v1987 = vpop.f32.mrf.mxu0
    %v1988 = vpop.f32.mrf.mxu0
    %1989 = vdwg.mxu0
    %v1998 = vcombine.low %v1738, %v1740
    %v1999 = vcombine.low %v1820, %v1822
    %v2001 = vunpack.c.l.s4 1983009808
    %v2002 = vunpack.c.0.s8 %v2001
    %v2003 = vlaneseq
    %v2004 = vshrl.u32 %v2003, 7
    %v2005 = vsub.s32 %v2002, %v2004
    %v2006 = vrot.slane %v1998, %v2005
    %v2008 = vunpack.c.l.s4 1983009808
    %v2009 = vunpack.c.0.s8 %v2008
    %v2010 = vlaneseq
    %v2011 = vshrl.u32 %v2010, 7
    %v2012 = vsub.s32 %v2009, %v2011
    %v2013 = vrot.slane %v1999, %v2012
    %v2014 = vcombine.low %v2006, %v2013
    %v2015 = vcombine.high %v2006, %v2013
    %v2016 = vcombine.low %v1902, %v1904
    %v2017 = vcombine.low %v1984, %v1986
    %v2019 = vunpack.c.l.s4 1983009808
    %v2020 = vunpack.c.0.s8 %v2019
    %v2021 = vlaneseq
    %v2022 = vshrl.u32 %v2021, 7
    %v2023 = vsub.s32 %v2020, %v2022
    %v2024 = vrot.slane %v2016, %v2023
    %v2026 = vunpack.c.l.s4 1983009808
    %v2027 = vunpack.c.0.s8 %v2026
    %v2028 = vlaneseq
    %v2029 = vshrl.u32 %v2028, 7
    %v2030 = vsub.s32 %v2027, %v2029
    %v2031 = vrot.slane %v2017, %v2030
    %v2032 = vcombine.low %v2024, %v2031
    %v2033 = vcombine.high %v2024, %v2031
    %2038 = vst [vmem:[#allocation2] sm:$0xff] %v2014
    %2039 = vst [vmem:[#allocation2 + $0x8] sm:$0xff] %v2032
    %2040 = vst [vmem:[#allocation2 + $0x10] sm:$0xff] %v2015
    %2041 = vst [vmem:[#allocation2 + $0x18] sm:$0xff] %v2033
    %v2042 = vld [vmem:[#allocation4] sm:$0xff]
    %v2043 = vld [vmem:[#allocation4 + $0x8] sm:$0xff]
    %v2044 = vld [vmem:[#allocation4 + $0x10] sm:$0xff]
    %v2045 = vld [vmem:[#allocation4 + $0x18] sm:$0xff]
    %v2046 = vld [vmem:[#allocation4 + $0x20] sm:$0xff]
    %v2047 = vld [vmem:[#allocation4 + $0x28] sm:$0xff]
    %v2048 = vld [vmem:[#allocation4 + $0x30] sm:$0xff]
    %v2049 = vld [vmem:[#allocation4 + $0x38] sm:$0xff]
    %v2050 = vld [vmem:[#allocation4 + $0x40] sm:$0xff]
    %v2051 = vld [vmem:[#allocation4 + $0x48] sm:$0xff]
    %v2052 = vld [vmem:[#allocation4 + $0x50] sm:$0xff]
    %v2053 = vld [vmem:[#allocation4 + $0x58] sm:$0xff]
    %v2054 = vld [vmem:[#allocation4 + $0x60] sm:$0xff]
    %v2055 = vld [vmem:[#allocation4 + $0x68] sm:$0xff]
    %v2056 = vld [vmem:[#allocation4 + $0x70] sm:$0xff]
    %v2057 = vld [vmem:[#allocation4 + $0x78] sm:$0xff]
    %v2058 = vld [vmem:[#allocation4 + $0x80] sm:$0xff]
    %v2059 = vld [vmem:[#allocation4 + $0x88] sm:$0xff]
    %v2060 = vld [vmem:[#allocation4 + $0x90] sm:$0xff]
    %v2061 = vld [vmem:[#allocation4 + $0x98] sm:$0xff]
    %v2062 = vld [vmem:[#allocation4 + $0xa0] sm:$0xff]
    %v2063 = vld [vmem:[#allocation4 + $0xa8] sm:$0xff]
    %v2064 = vld [vmem:[#allocation4 + $0xb0] sm:$0xff]
    %v2065 = vld [vmem:[#allocation4 + $0xb8] sm:$0xff]
    %v2066 = vld [vmem:[#allocation4 + $0xc0] sm:$0xff]
    %v2067 = vld [vmem:[#allocation4 + $0xc8] sm:$0xff]
    %v2068 = vld [vmem:[#allocation4 + $0xd0] sm:$0xff]
    %v2069 = vld [vmem:[#allocation4 + $0xd8] sm:$0xff]
    %v2070 = vld [vmem:[#allocation4 + $0xe0] sm:$0xff]
    %v2071 = vld [vmem:[#allocation4 + $0xe8] sm:$0xff]
    %v2072 = vld [vmem:[#allocation4 + $0xf0] sm:$0xff]
    %v2073 = vld [vmem:[#allocation4 + $0xf8] sm:$0xff]
    %v2074 = vld [vmem:[#allocation4 + $0x100] sm:$0xff]
    %v2075 = vld [vmem:[#allocation4 + $0x108] sm:$0xff]
    %v2076 = vld [vmem:[#allocation4 + $0x110] sm:$0xff]
    %v2077 = vld [vmem:[#allocation4 + $0x118] sm:$0xff]
    %v2078 = vld [vmem:[#allocation4 + $0x120] sm:$0xff]
    %v2079 = vld [vmem:[#allocation4 + $0x128] sm:$0xff]
    %v2080 = vld [vmem:[#allocation4 + $0x130] sm:$0xff]
    %v2081 = vld [vmem:[#allocation4 + $0x138] sm:$0xff]
    %v2082 = vld [vmem:[#allocation4 + $0x140] sm:$0xff]
    %v2083 = vld [vmem:[#allocation4 + $0x148] sm:$0xff]
    %v2084 = vld [vmem:[#allocation4 + $0x150] sm:$0xff]
    %v2085 = vld [vmem:[#allocation4 + $0x158] sm:$0xff]
    %v2086 = vld [vmem:[#allocation4 + $0x160] sm:$0xff]
    %v2087 = vld [vmem:[#allocation4 + $0x168] sm:$0xff]
    %v2088 = vld [vmem:[#allocation4 + $0x170] sm:$0xff]
    %v2089 = vld [vmem:[#allocation4 + $0x178] sm:$0xff]
    %v2090 = vld [vmem:[#allocation4 + $0x180] sm:$0xff]
    %v2091 = vld [vmem:[#allocation4 + $0x188] sm:$0xff]
    %v2092 = vld [vmem:[#allocation4 + $0x190] sm:$0xff]
    %v2093 = vld [vmem:[#allocation4 + $0x198] sm:$0xff]
    %v2094 = vld [vmem:[#allocation4 + $0x1a0] sm:$0xff]
    %v2095 = vld [vmem:[#allocation4 + $0x1a8] sm:$0xff]
    %v2096 = vld [vmem:[#allocation4 + $0x1b0] sm:$0xff]
    %v2097 = vld [vmem:[#allocation4 + $0x1b8] sm:$0xff]
    %v2098 = vld [vmem:[#allocation4 + $0x1c0] sm:$0xff]
    %v2099 = vld [vmem:[#allocation4 + $0x1c8] sm:$0xff]
    %v2100 = vld [vmem:[#allocation4 + $0x1d0] sm:$0xff]
    %v2101 = vld [vmem:[#allocation4 + $0x1d8] sm:$0xff]
    %v2102 = vld [vmem:[#allocation4 + $0x1e0] sm:$0xff]
    %v2103 = vld [vmem:[#allocation4 + $0x1e8] sm:$0xff]
    %v2104 = vld [vmem:[#allocation4 + $0x1f0] sm:$0xff]
    %v2105 = vld [vmem:[#allocation4 + $0x1f8] sm:$0xff]
    %v2106 = vld [vmem:[#allocation4 + $0x200] sm:$0xff]
    %v2107 = vld [vmem:[#allocation4 + $0x208] sm:$0xff]
    %v2108 = vld [vmem:[#allocation4 + $0x210] sm:$0xff]
    %v2109 = vld [vmem:[#allocation4 + $0x218] sm:$0xff]
    %v2110 = vld [vmem:[#allocation4 + $0x220] sm:$0xff]
    %v2111 = vld [vmem:[#allocation4 + $0x228] sm:$0xff]
    %v2112 = vld [vmem:[#allocation4 + $0x230] sm:$0xff]
    %v2113 = vld [vmem:[#allocation4 + $0x238] sm:$0xff]
    %v2114 = vld [vmem:[#allocation4 + $0x240] sm:$0xff]
    %v2115 = vld [vmem:[#allocation4 + $0x248] sm:$0xff]
    %v2116 = vld [vmem:[#allocation4 + $0x250] sm:$0xff]
    %v2117 = vld [vmem:[#allocation4 + $0x258] sm:$0xff]
    %v2118 = vld [vmem:[#allocation4 + $0x260] sm:$0xff]
    %v2119 = vld [vmem:[#allocation4 + $0x268] sm:$0xff]
    %v2120 = vld [vmem:[#allocation4 + $0x270] sm:$0xff]
    %v2121 = vld [vmem:[#allocation4 + $0x278] sm:$0xff]
    %v2122 = vld [vmem:[#allocation4 + $0x280] sm:$0xff]
    %v2123 = vld [vmem:[#allocation4 + $0x288] sm:$0xff]
    %v2124 = vld [vmem:[#allocation4 + $0x290] sm:$0xff]
    %v2125 = vld [vmem:[#allocation4 + $0x298] sm:$0xff]
    %v2126 = vld [vmem:[#allocation4 + $0x2a0] sm:$0xff]
    %v2127 = vld [vmem:[#allocation4 + $0x2a8] sm:$0xff]
    %v2128 = vld [vmem:[#allocation4 + $0x2b0] sm:$0xff]
    %v2129 = vld [vmem:[#allocation4 + $0x2b8] sm:$0xff]
    %v2130 = vld [vmem:[#allocation4 + $0x2c0] sm:$0xff]
    %v2131 = vld [vmem:[#allocation4 + $0x2c8] sm:$0xff]
    %v2132 = vld [vmem:[#allocation4 + $0x2d0] sm:$0xff]
    %v2133 = vld [vmem:[#allocation4 + $0x2d8] sm:$0xff]
    %v2134 = vld [vmem:[#allocation4 + $0x2e0] sm:$0xff]
    %v2135 = vld [vmem:[#allocation4 + $0x2e8] sm:$0xff]
    %v2136 = vld [vmem:[#allocation4 + $0x2f0] sm:$0xff]
    %v2137 = vld [vmem:[#allocation4 + $0x2f8] sm:$0xff]
    %v2138 = vld [vmem:[#allocation4 + $0x300] sm:$0xff]
    %v2139 = vld [vmem:[#allocation4 + $0x308] sm:$0xff]
    %v2140 = vld [vmem:[#allocation4 + $0x310] sm:$0xff]
    %v2141 = vld [vmem:[#allocation4 + $0x318] sm:$0xff]
    %v2142 = vld [vmem:[#allocation4 + $0x320] sm:$0xff]
    %v2143 = vld [vmem:[#allocation4 + $0x328] sm:$0xff]
    %v2144 = vld [vmem:[#allocation4 + $0x330] sm:$0xff]
    %v2145 = vld [vmem:[#allocation4 + $0x338] sm:$0xff]
    %v2146 = vld [vmem:[#allocation4 + $0x340] sm:$0xff]
    %v2147 = vld [vmem:[#allocation4 + $0x348] sm:$0xff]
    %v2148 = vld [vmem:[#allocation4 + $0x350] sm:$0xff]
    %v2149 = vld [vmem:[#allocation4 + $0x358] sm:$0xff]
    %v2150 = vld [vmem:[#allocation4 + $0x360] sm:$0xff]
    %v2151 = vld [vmem:[#allocation4 + $0x368] sm:$0xff]
    %v2152 = vld [vmem:[#allocation4 + $0x370] sm:$0xff]
    %v2153 = vld [vmem:[#allocation4 + $0x378] sm:$0xff]
    %v2154 = vld [vmem:[#allocation4 + $0x380] sm:$0xff]
    %v2155 = vld [vmem:[#allocation4 + $0x388] sm:$0xff]
    %v2156 = vld [vmem:[#allocation4 + $0x390] sm:$0xff]
    %v2157 = vld [vmem:[#allocation4 + $0x398] sm:$0xff]
    %v2158 = vld [vmem:[#allocation4 + $0x3a0] sm:$0xff]
    %v2159 = vld [vmem:[#allocation4 + $0x3a8] sm:$0xff]
    %v2160 = vld [vmem:[#allocation4 + $0x3b0] sm:$0xff]
    %v2161 = vld [vmem:[#allocation4 + $0x3b8] sm:$0xff]
    %v2162 = vld [vmem:[#allocation4 + $0x3c0] sm:$0xff]
    %v2163 = vld [vmem:[#allocation4 + $0x3c8] sm:$0xff]
    %v2164 = vld [vmem:[#allocation4 + $0x3d0] sm:$0xff]
    %v2165 = vld [vmem:[#allocation4 + $0x3d8] sm:$0xff]
    %v2166 = vld [vmem:[#allocation4 + $0x3e0] sm:$0xff]
    %v2167 = vld [vmem:[#allocation4 + $0x3e8] sm:$0xff]
    %v2168 = vld [vmem:[#allocation4 + $0x3f0] sm:$0xff]
    %v2169 = vld [vmem:[#allocation4 + $0x3f8] sm:$0xff]
    %v2170 = vld [vmem:[#allocation4 + $0x400] sm:$0xff]
    %v2171 = vld [vmem:[#allocation4 + $0x408] sm:$0xff]
    %v2172 = vld [vmem:[#allocation4 + $0x410] sm:$0xff]
    %v2173 = vld [vmem:[#allocation4 + $0x418] sm:$0xff]
    %v2174 = vld [vmem:[#allocation4 + $0x420] sm:$0xff]
    %v2175 = vld [vmem:[#allocation4 + $0x428] sm:$0xff]
    %v2176 = vld [vmem:[#allocation4 + $0x430] sm:$0xff]
    %v2177 = vld [vmem:[#allocation4 + $0x438] sm:$0xff]
    %v2178 = vld [vmem:[#allocation4 + $0x440] sm:$0xff]
    %v2179 = vld [vmem:[#allocation4 + $0x448] sm:$0xff]
    %v2180 = vld [vmem:[#allocation4 + $0x450] sm:$0xff]
    %v2181 = vld [vmem:[#allocation4 + $0x458] sm:$0xff]
    %v2182 = vld [vmem:[#allocation4 + $0x460] sm:$0xff]
    %v2183 = vld [vmem:[#allocation4 + $0x468] sm:$0xff]
    %v2184 = vld [vmem:[#allocation4 + $0x470] sm:$0xff]
    %v2185 = vld [vmem:[#allocation4 + $0x478] sm:$0xff]
    %v2186 = vld [vmem:[#allocation4 + $0x480] sm:$0xff]
    %v2187 = vld [vmem:[#allocation4 + $0x488] sm:$0xff]
    %v2188 = vld [vmem:[#allocation4 + $0x490] sm:$0xff]
    %v2189 = vld [vmem:[#allocation4 + $0x498] sm:$0xff]
    %v2190 = vld [vmem:[#allocation4 + $0x4a0] sm:$0xff]
    %v2191 = vld [vmem:[#allocation4 + $0x4a8] sm:$0xff]
    %v2192 = vld [vmem:[#allocation4 + $0x4b0] sm:$0xff]
    %v2193 = vld [vmem:[#allocation4 + $0x4b8] sm:$0xff]
    %v2194 = vld [vmem:[#allocation4 + $0x4c0] sm:$0xff]
    %v2195 = vld [vmem:[#allocation4 + $0x4c8] sm:$0xff]
    %v2196 = vld [vmem:[#allocation4 + $0x4d0] sm:$0xff]
    %v2197 = vld [vmem:[#allocation4 + $0x4d8] sm:$0xff]
    %v2198 = vld [vmem:[#allocation4 + $0x4e0] sm:$0xff]
    %v2199 = vld [vmem:[#allocation4 + $0x4e8] sm:$0xff]
    %v2200 = vld [vmem:[#allocation4 + $0x4f0] sm:$0xff]
    %v2201 = vld [vmem:[#allocation4 + $0x4f8] sm:$0xff]
    %v2202 = vld [vmem:[#allocation4 + $0x500] sm:$0xff]
    %v2203 = vld [vmem:[#allocation4 + $0x508] sm:$0xff]
    %v2204 = vld [vmem:[#allocation4 + $0x510] sm:$0xff]
    %v2205 = vld [vmem:[#allocation4 + $0x518] sm:$0xff]
    %v2206 = vld [vmem:[#allocation4 + $0x520] sm:$0xff]
    %v2207 = vld [vmem:[#allocation4 + $0x528] sm:$0xff]
    %v2208 = vld [vmem:[#allocation4 + $0x530] sm:$0xff]
    %v2209 = vld [vmem:[#allocation4 + $0x538] sm:$0xff]
    %v2210 = vld [vmem:[#allocation4 + $0x540] sm:$0xff]
    %v2211 = vld [vmem:[#allocation4 + $0x548] sm:$0xff]
    %v2212 = vld [vmem:[#allocation4 + $0x550] sm:$0xff]
    %v2213 = vld [vmem:[#allocation4 + $0x558] sm:$0xff]
    %v2214 = vld [vmem:[#allocation4 + $0x560] sm:$0xff]
    %v2215 = vld [vmem:[#allocation4 + $0x568] sm:$0xff]
    %v2216 = vld [vmem:[#allocation4 + $0x570] sm:$0xff]
    %v2217 = vld [vmem:[#allocation4 + $0x578] sm:$0xff]
    %v2218 = vld [vmem:[#allocation4 + $0x580] sm:$0xff]
    %v2219 = vld [vmem:[#allocation4 + $0x588] sm:$0xff]
    %v2220 = vld [vmem:[#allocation4 + $0x590] sm:$0xff]
    %v2221 = vld [vmem:[#allocation4 + $0x598] sm:$0xff]
    %v2222 = vld [vmem:[#allocation4 + $0x5a0] sm:$0xff]
    %v2223 = vld [vmem:[#allocation4 + $0x5a8] sm:$0xff]
    %v2224 = vld [vmem:[#allocation4 + $0x5b0] sm:$0xff]
    %v2225 = vld [vmem:[#allocation4 + $0x5b8] sm:$0xff]
    %v2226 = vld [vmem:[#allocation4 + $0x5c0] sm:$0xff]
    %v2227 = vld [vmem:[#allocation4 + $0x5c8] sm:$0xff]
    %v2228 = vld [vmem:[#allocation4 + $0x5d0] sm:$0xff]
    %v2229 = vld [vmem:[#allocation4 + $0x5d8] sm:$0xff]
    %v2230 = vld [vmem:[#allocation4 + $0x5e0] sm:$0xff]
    %v2231 = vld [vmem:[#allocation4 + $0x5e8] sm:$0xff]
    %v2232 = vld [vmem:[#allocation4 + $0x5f0] sm:$0xff]
    %v2233 = vld [vmem:[#allocation4 + $0x5f8] sm:$0xff]
    %v2234 = vld [vmem:[#allocation4 + $0x600] sm:$0xff]
    %v2235 = vld [vmem:[#allocation4 + $0x608] sm:$0xff]
    %v2236 = vld [vmem:[#allocation4 + $0x610] sm:$0xff]
    %v2237 = vld [vmem:[#allocation4 + $0x618] sm:$0xff]
    %v2238 = vld [vmem:[#allocation4 + $0x620] sm:$0xff]
    %v2239 = vld [vmem:[#allocation4 + $0x628] sm:$0xff]
    %v2240 = vld [vmem:[#allocation4 + $0x630] sm:$0xff]
    %v2241 = vld [vmem:[#allocation4 + $0x638] sm:$0xff]
    %v2242 = vld [vmem:[#allocation4 + $0x640] sm:$0xff]
    %v2243 = vld [vmem:[#allocation4 + $0x648] sm:$0xff]
    %v2244 = vld [vmem:[#allocation4 + $0x650] sm:$0xff]
    %v2245 = vld [vmem:[#allocation4 + $0x658] sm:$0xff]
    %v2246 = vld [vmem:[#allocation4 + $0x660] sm:$0xff]
    %v2247 = vld [vmem:[#allocation4 + $0x668] sm:$0xff]
    %v2248 = vld [vmem:[#allocation4 + $0x670] sm:$0xff]
    %v2249 = vld [vmem:[#allocation4 + $0x678] sm:$0xff]
    %v2250 = vld [vmem:[#allocation4 + $0x680] sm:$0xff]
    %v2251 = vld [vmem:[#allocation4 + $0x688] sm:$0xff]
    %v2252 = vld [vmem:[#allocation4 + $0x690] sm:$0xff]
    %v2253 = vld [vmem:[#allocation4 + $0x698] sm:$0xff]
    %v2254 = vld [vmem:[#allocation4 + $0x6a0] sm:$0xff]
    %v2255 = vld [vmem:[#allocation4 + $0x6a8] sm:$0xff]
    %v2256 = vld [vmem:[#allocation4 + $0x6b0] sm:$0xff]
    %v2257 = vld [vmem:[#allocation4 + $0x6b8] sm:$0xff]
    %v2258 = vld [vmem:[#allocation4 + $0x6c0] sm:$0xff]
    %v2259 = vld [vmem:[#allocation4 + $0x6c8] sm:$0xff]
    %v2260 = vld [vmem:[#allocation4 + $0x6d0] sm:$0xff]
    %v2261 = vld [vmem:[#allocation4 + $0x6d8] sm:$0xff]
    %v2262 = vld [vmem:[#allocation4 + $0x6e0] sm:$0xff]
    %v2263 = vld [vmem:[#allocation4 + $0x6e8] sm:$0xff]
    %v2264 = vld [vmem:[#allocation4 + $0x6f0] sm:$0xff]
    %v2265 = vld [vmem:[#allocation4 + $0x6f8] sm:$0xff]
    %v2266 = vld [vmem:[#allocation4 + $0x700] sm:$0xff]
    %v2267 = vld [vmem:[#allocation4 + $0x708] sm:$0xff]
    %v2268 = vld [vmem:[#allocation4 + $0x710] sm:$0xff]
    %v2269 = vld [vmem:[#allocation4 + $0x718] sm:$0xff]
    %v2270 = vld [vmem:[#allocation4 + $0x720] sm:$0xff]
    %v2271 = vld [vmem:[#allocation4 + $0x728] sm:$0xff]
    %v2272 = vld [vmem:[#allocation4 + $0x730] sm:$0xff]
    %v2273 = vld [vmem:[#allocation4 + $0x738] sm:$0xff]
    %v2274 = vld [vmem:[#allocation4 + $0x740] sm:$0xff]
    %v2275 = vld [vmem:[#allocation4 + $0x748] sm:$0xff]
    %v2276 = vld [vmem:[#allocation4 + $0x750] sm:$0xff]
    %v2277 = vld [vmem:[#allocation4 + $0x758] sm:$0xff]
    %v2278 = vld [vmem:[#allocation4 + $0x760] sm:$0xff]
    %v2279 = vld [vmem:[#allocation4 + $0x768] sm:$0xff]
    %v2280 = vld [vmem:[#allocation4 + $0x770] sm:$0xff]
    %v2281 = vld [vmem:[#allocation4 + $0x778] sm:$0xff]
    %v2282 = vld [vmem:[#allocation4 + $0x780] sm:$0xff]
    %v2283 = vld [vmem:[#allocation4 + $0x788] sm:$0xff]
    %v2284 = vld [vmem:[#allocation4 + $0x790] sm:$0xff]
    %v2285 = vld [vmem:[#allocation4 + $0x798] sm:$0xff]
    %v2286 = vld [vmem:[#allocation4 + $0x7a0] sm:$0xff]
    %v2287 = vld [vmem:[#allocation4 + $0x7a8] sm:$0xff]
    %v2288 = vld [vmem:[#allocation4 + $0x7b0] sm:$0xff]
    %v2289 = vld [vmem:[#allocation4 + $0x7b8] sm:$0xff]
    %v2290 = vld [vmem:[#allocation4 + $0x7c0] sm:$0xff]
    %v2291 = vld [vmem:[#allocation4 + $0x7c8] sm:$0xff]
    %v2292 = vld [vmem:[#allocation4 + $0x7d0] sm:$0xff]
    %v2293 = vld [vmem:[#allocation4 + $0x7d8] sm:$0xff]
    %v2294 = vld [vmem:[#allocation4 + $0x7e0] sm:$0xff]
    %v2295 = vld [vmem:[#allocation4 + $0x7e8] sm:$0xff]
    %v2296 = vld [vmem:[#allocation4 + $0x7f0] sm:$0xff]
    %v2297 = vld [vmem:[#allocation4 + $0x7f8] sm:$0xff]
    %v2298 = vld [vmem:[%s6] sm:$0xff]
    %v2300 = vlaneseq
    %v2301 = vshrl.u32 %v2300, 7
    %v2302 = vsub.s32 0, %v2301
    %v2303 = vrot.slane %v2298, %v2302
    %v2304 = vlaneseq
    %v2305 = vshrl.u32 %v2304, 7
    %v2306 = vsub.s32 1, %v2305
    %v2307 = vrot.slane %v2298, %v2306
    %v2308 = vlaneseq
    %v2309 = vshrl.u32 %v2308, 7
    %v2310 = vsub.s32 2, %v2309
    %v2311 = vrot.slane %v2298, %v2310
    %v2312 = vlaneseq
    %v2313 = vshrl.u32 %v2312, 7
    %v2314 = vsub.s32 3, %v2313
    %v2315 = vrot.slane %v2298, %v2314
    %v2316 = vlaneseq
    %v2317 = vshrl.u32 %v2316, 7
    %v2318 = vsub.s32 4, %v2317
    %v2319 = vrot.slane %v2298, %v2318
    %v2320 = vlaneseq
    %v2321 = vshrl.u32 %v2320, 7
    %v2322 = vsub.s32 5, %v2321
    %v2323 = vrot.slane %v2298, %v2322
    %v2324 = vlaneseq
    %v2325 = vshrl.u32 %v2324, 7
    %v2326 = vsub.s32 6, %v2325
    %v2327 = vrot.slane %v2298, %v2326
    %v2328 = vlaneseq
    %v2329 = vshrl.u32 %v2328, 7
    %v2330 = vsub.s32 7, %v2329
    %v2331 = vrot.slane %v2298, %v2330
    %v2596 = vunpack.c.l.b16 %v2042
    %v2597 = vunpack.c.h.b16 %v2042
    %v2598 = vunpack.c.l.b16 %v2043
    %v2599 = vunpack.c.h.b16 %v2043
    %v2600 = vunpack.c.l.b16 %v2044
    %v2601 = vunpack.c.h.b16 %v2044
    %v2602 = vunpack.c.l.b16 %v2045
    %v2603 = vunpack.c.h.b16 %v2045
    %v2604 = vunpack.c.l.b16 %v2046
    %v2605 = vunpack.c.h.b16 %v2046
    %v2606 = vunpack.c.l.b16 %v2047
    %v2607 = vunpack.c.h.b16 %v2047
    %v2608 = vunpack.c.l.b16 %v2048
    %v2609 = vunpack.c.h.b16 %v2048
    %v2610 = vunpack.c.l.b16 %v2049
    %v2611 = vunpack.c.h.b16 %v2049
    %v2612 = vunpack.c.l.b16 %v2050
    %v2613 = vunpack.c.h.b16 %v2050
    %v2614 = vunpack.c.l.b16 %v2051
    %v2615 = vunpack.c.h.b16 %v2051
    %v2616 = vunpack.c.l.b16 %v2052
    %v2617 = vunpack.c.h.b16 %v2052
    %v2618 = vunpack.c.l.b16 %v2053
    %v2619 = vunpack.c.h.b16 %v2053
    %v2620 = vunpack.c.l.b16 %v2054
    %v2621 = vunpack.c.h.b16 %v2054
    %v2622 = vunpack.c.l.b16 %v2055
    %v2623 = vunpack.c.h.b16 %v2055
    %v2624 = vunpack.c.l.b16 %v2056
    %v2625 = vunpack.c.h.b16 %v2056
    %v2626 = vunpack.c.l.b16 %v2057
    %v2627 = vunpack.c.h.b16 %v2057
    %v2628 = vunpack.c.l.b16 %v2058
    %v2629 = vunpack.c.h.b16 %v2058
    %v2630 = vunpack.c.l.b16 %v2059
    %v2631 = vunpack.c.h.b16 %v2059
    %v2632 = vunpack.c.l.b16 %v2060
    %v2633 = vunpack.c.h.b16 %v2060
    %v2634 = vunpack.c.l.b16 %v2061
    %v2635 = vunpack.c.h.b16 %v2061
    %v2636 = vunpack.c.l.b16 %v2062
    %v2637 = vunpack.c.h.b16 %v2062
    %v2638 = vunpack.c.l.b16 %v2063
    %v2639 = vunpack.c.h.b16 %v2063
    %v2640 = vunpack.c.l.b16 %v2064
    %v2641 = vunpack.c.h.b16 %v2064
    %v2642 = vunpack.c.l.b16 %v2065
    %v2643 = vunpack.c.h.b16 %v2065
    %v2644 = vunpack.c.l.b16 %v2066
    %v2645 = vunpack.c.h.b16 %v2066
    %v2646 = vunpack.c.l.b16 %v2067
    %v2647 = vunpack.c.h.b16 %v2067
    %v2648 = vunpack.c.l.b16 %v2068
    %v2649 = vunpack.c.h.b16 %v2068
    %v2650 = vunpack.c.l.b16 %v2069
    %v2651 = vunpack.c.h.b16 %v2069
    %v2652 = vunpack.c.l.b16 %v2070
    %v2653 = vunpack.c.h.b16 %v2070
    %v2654 = vunpack.c.l.b16 %v2071
    %v2655 = vunpack.c.h.b16 %v2071
    %v2656 = vunpack.c.l.b16 %v2072
    %v2657 = vunpack.c.h.b16 %v2072
    %v2658 = vunpack.c.l.b16 %v2073
    %v2659 = vunpack.c.h.b16 %v2073
    %v2660 = vunpack.c.l.b16 %v2074
    %v2661 = vunpack.c.h.b16 %v2074
    %v2662 = vunpack.c.l.b16 %v2075
    %v2663 = vunpack.c.h.b16 %v2075
    %v2664 = vunpack.c.l.b16 %v2076
    %v2665 = vunpack.c.h.b16 %v2076
    %v2666 = vunpack.c.l.b16 %v2077
    %v2667 = vunpack.c.h.b16 %v2077
    %v2668 = vunpack.c.l.b16 %v2078
    %v2669 = vunpack.c.h.b16 %v2078
    %v2670 = vunpack.c.l.b16 %v2079
    %v2671 = vunpack.c.h.b16 %v2079
    %v2672 = vunpack.c.l.b16 %v2080
    %v2673 = vunpack.c.h.b16 %v2080
    %v2674 = vunpack.c.l.b16 %v2081
    %v2675 = vunpack.c.h.b16 %v2081
    %v2676 = vunpack.c.l.b16 %v2082
    %v2677 = vunpack.c.h.b16 %v2082
    %v2678 = vunpack.c.l.b16 %v2083
    %v2679 = vunpack.c.h.b16 %v2083
    %v2680 = vunpack.c.l.b16 %v2084
    %v2681 = vunpack.c.h.b16 %v2084
    %v2682 = vunpack.c.l.b16 %v2085
    %v2683 = vunpack.c.h.b16 %v2085
    %v2684 = vunpack.c.l.b16 %v2086
    %v2685 = vunpack.c.h.b16 %v2086
    %v2686 = vunpack.c.l.b16 %v2087
    %v2687 = vunpack.c.h.b16 %v2087
    %v2688 = vunpack.c.l.b16 %v2088
    %v2689 = vunpack.c.h.b16 %v2088
    %v2690 = vunpack.c.l.b16 %v2089
    %v2691 = vunpack.c.h.b16 %v2089
    %v2692 = vunpack.c.l.b16 %v2090
    %v2693 = vunpack.c.h.b16 %v2090
    %v2694 = vunpack.c.l.b16 %v2091
    %v2695 = vunpack.c.h.b16 %v2091
    %v2696 = vunpack.c.l.b16 %v2092
    %v2697 = vunpack.c.h.b16 %v2092
    %v2698 = vunpack.c.l.b16 %v2093
    %v2699 = vunpack.c.h.b16 %v2093
    %v2700 = vunpack.c.l.b16 %v2094
    %v2701 = vunpack.c.h.b16 %v2094
    %v2702 = vunpack.c.l.b16 %v2095
    %v2703 = vunpack.c.h.b16 %v2095
    %v2704 = vunpack.c.l.b16 %v2096
    %v2705 = vunpack.c.h.b16 %v2096
    %v2706 = vunpack.c.l.b16 %v2097
    %v2707 = vunpack.c.h.b16 %v2097
    %v2708 = vunpack.c.l.b16 %v2098
    %v2709 = vunpack.c.h.b16 %v2098
    %v2710 = vunpack.c.l.b16 %v2099
    %v2711 = vunpack.c.h.b16 %v2099
    %v2712 = vunpack.c.l.b16 %v2100
    %v2713 = vunpack.c.h.b16 %v2100
    %v2714 = vunpack.c.l.b16 %v2101
    %v2715 = vunpack.c.h.b16 %v2101
    %v2716 = vunpack.c.l.b16 %v2102
    %v2717 = vunpack.c.h.b16 %v2102
    %v2718 = vunpack.c.l.b16 %v2103
    %v2719 = vunpack.c.h.b16 %v2103
    %v2720 = vunpack.c.l.b16 %v2104
    %v2721 = vunpack.c.h.b16 %v2104
    %v2722 = vunpack.c.l.b16 %v2105
    %v2723 = vunpack.c.h.b16 %v2105
    %v2724 = vunpack.c.l.b16 %v2106
    %v2725 = vunpack.c.h.b16 %v2106
    %v2726 = vunpack.c.l.b16 %v2107
    %v2727 = vunpack.c.h.b16 %v2107
    %v2728 = vunpack.c.l.b16 %v2108
    %v2729 = vunpack.c.h.b16 %v2108
    %v2730 = vunpack.c.l.b16 %v2109
    %v2731 = vunpack.c.h.b16 %v2109
    %v2732 = vunpack.c.l.b16 %v2110
    %v2733 = vunpack.c.h.b16 %v2110
    %v2734 = vunpack.c.l.b16 %v2111
    %v2735 = vunpack.c.h.b16 %v2111
    %v2736 = vunpack.c.l.b16 %v2112
    %v2737 = vunpack.c.h.b16 %v2112
    %v2738 = vunpack.c.l.b16 %v2113
    %v2739 = vunpack.c.h.b16 %v2113
    %v2740 = vunpack.c.l.b16 %v2114
    %v2741 = vunpack.c.h.b16 %v2114
    %v2742 = vunpack.c.l.b16 %v2115
    %v2743 = vunpack.c.h.b16 %v2115
    %v2744 = vunpack.c.l.b16 %v2116
    %v2745 = vunpack.c.h.b16 %v2116
    %v2746 = vunpack.c.l.b16 %v2117
    %v2747 = vunpack.c.h.b16 %v2117
    %v2748 = vunpack.c.l.b16 %v2118
    %v2749 = vunpack.c.h.b16 %v2118
    %v2750 = vunpack.c.l.b16 %v2119
    %v2751 = vunpack.c.h.b16 %v2119
    %v2752 = vunpack.c.l.b16 %v2120
    %v2753 = vunpack.c.h.b16 %v2120
    %v2754 = vunpack.c.l.b16 %v2121
    %v2755 = vunpack.c.h.b16 %v2121
    %v2756 = vunpack.c.l.b16 %v2122
    %v2757 = vunpack.c.h.b16 %v2122
    %v2758 = vunpack.c.l.b16 %v2123
    %v2759 = vunpack.c.h.b16 %v2123
    %v2760 = vunpack.c.l.b16 %v2124
    %v2761 = vunpack.c.h.b16 %v2124
    %v2762 = vunpack.c.l.b16 %v2125
    %v2763 = vunpack.c.h.b16 %v2125
    %v2764 = vunpack.c.l.b16 %v2126
    %v2765 = vunpack.c.h.b16 %v2126
    %v2766 = vunpack.c.l.b16 %v2127
    %v2767 = vunpack.c.h.b16 %v2127
    %v2768 = vunpack.c.l.b16 %v2128
    %v2769 = vunpack.c.h.b16 %v2128
    %v2770 = vunpack.c.l.b16 %v2129
    %v2771 = vunpack.c.h.b16 %v2129
    %v2772 = vunpack.c.l.b16 %v2130
    %v2773 = vunpack.c.h.b16 %v2130
    %v2774 = vunpack.c.l.b16 %v2131
    %v2775 = vunpack.c.h.b16 %v2131
    %v2776 = vunpack.c.l.b16 %v2132
    %v2777 = vunpack.c.h.b16 %v2132
    %v2778 = vunpack.c.l.b16 %v2133
    %v2779 = vunpack.c.h.b16 %v2133
    %v2780 = vunpack.c.l.b16 %v2134
    %v2781 = vunpack.c.h.b16 %v2134
    %v2782 = vunpack.c.l.b16 %v2135
    %v2783 = vunpack.c.h.b16 %v2135
    %v2784 = vunpack.c.l.b16 %v2136
    %v2785 = vunpack.c.h.b16 %v2136
    %v2786 = vunpack.c.l.b16 %v2137
    %v2787 = vunpack.c.h.b16 %v2137
    %v2788 = vunpack.c.l.b16 %v2138
    %v2789 = vunpack.c.h.b16 %v2138
    %v2790 = vunpack.c.l.b16 %v2139
    %v2791 = vunpack.c.h.b16 %v2139
    %v2792 = vunpack.c.l.b16 %v2140
    %v2793 = vunpack.c.h.b16 %v2140
    %v2794 = vunpack.c.l.b16 %v2141
    %v2795 = vunpack.c.h.b16 %v2141
    %v2796 = vunpack.c.l.b16 %v2142
    %v2797 = vunpack.c.h.b16 %v2142
    %v2798 = vunpack.c.l.b16 %v2143
    %v2799 = vunpack.c.h.b16 %v2143
    %v2800 = vunpack.c.l.b16 %v2144
    %v2801 = vunpack.c.h.b16 %v2144
    %v2802 = vunpack.c.l.b16 %v2145
    %v2803 = vunpack.c.h.b16 %v2145
    %v2804 = vunpack.c.l.b16 %v2146
    %v2805 = vunpack.c.h.b16 %v2146
    %v2806 = vunpack.c.l.b16 %v2147
    %v2807 = vunpack.c.h.b16 %v2147
    %v2808 = vunpack.c.l.b16 %v2148
    %v2809 = vunpack.c.h.b16 %v2148
    %v2810 = vunpack.c.l.b16 %v2149
    %v2811 = vunpack.c.h.b16 %v2149
    %v2812 = vunpack.c.l.b16 %v2150
    %v2813 = vunpack.c.h.b16 %v2150
    %v2814 = vunpack.c.l.b16 %v2151
    %v2815 = vunpack.c.h.b16 %v2151
    %v2816 = vunpack.c.l.b16 %v2152
    %v2817 = vunpack.c.h.b16 %v2152
    %v2818 = vunpack.c.l.b16 %v2153
    %v2819 = vunpack.c.h.b16 %v2153
    %v2820 = vunpack.c.l.b16 %v2154
    %v2821 = vunpack.c.h.b16 %v2154
    %v2822 = vunpack.c.l.b16 %v2155
    %v2823 = vunpack.c.h.b16 %v2155
    %v2824 = vunpack.c.l.b16 %v2156
    %v2825 = vunpack.c.h.b16 %v2156
    %v2826 = vunpack.c.l.b16 %v2157
    %v2827 = vunpack.c.h.b16 %v2157
    %v2828 = vunpack.c.l.b16 %v2158
    %v2829 = vunpack.c.h.b16 %v2158
    %v2830 = vunpack.c.l.b16 %v2159
    %v2831 = vunpack.c.h.b16 %v2159
    %v2832 = vunpack.c.l.b16 %v2160
    %v2833 = vunpack.c.h.b16 %v2160
    %v2834 = vunpack.c.l.b16 %v2161
    %v2835 = vunpack.c.h.b16 %v2161
    %v2836 = vunpack.c.l.b16 %v2162
    %v2837 = vunpack.c.h.b16 %v2162
    %v2838 = vunpack.c.l.b16 %v2163
    %v2839 = vunpack.c.h.b16 %v2163
    %v2840 = vunpack.c.l.b16 %v2164
    %v2841 = vunpack.c.h.b16 %v2164
    %v2842 = vunpack.c.l.b16 %v2165
    %v2843 = vunpack.c.h.b16 %v2165
    %v2844 = vunpack.c.l.b16 %v2166
    %v2845 = vunpack.c.h.b16 %v2166
    %v2846 = vunpack.c.l.b16 %v2167
    %v2847 = vunpack.c.h.b16 %v2167
    %v2848 = vunpack.c.l.b16 %v2168
    %v2849 = vunpack.c.h.b16 %v2168
    %v2850 = vunpack.c.l.b16 %v2169
    %v2851 = vunpack.c.h.b16 %v2169
    %v2852 = vunpack.c.l.b16 %v2170
    %v2853 = vunpack.c.h.b16 %v2170
    %v2854 = vunpack.c.l.b16 %v2171
    %v2855 = vunpack.c.h.b16 %v2171
    %v2856 = vunpack.c.l.b16 %v2172
    %v2857 = vunpack.c.h.b16 %v2172
    %v2858 = vunpack.c.l.b16 %v2173
    %v2859 = vunpack.c.h.b16 %v2173
    %v2860 = vunpack.c.l.b16 %v2174
    %v2861 = vunpack.c.h.b16 %v2174
    %v2862 = vunpack.c.l.b16 %v2175
    %v2863 = vunpack.c.h.b16 %v2175
    %v2864 = vunpack.c.l.b16 %v2176
    %v2865 = vunpack.c.h.b16 %v2176
    %v2866 = vunpack.c.l.b16 %v2177
    %v2867 = vunpack.c.h.b16 %v2177
    %v2868 = vunpack.c.l.b16 %v2178
    %v2869 = vunpack.c.h.b16 %v2178
    %v2870 = vunpack.c.l.b16 %v2179
    %v2871 = vunpack.c.h.b16 %v2179
    %v2872 = vunpack.c.l.b16 %v2180
    %v2873 = vunpack.c.h.b16 %v2180
    %v2874 = vunpack.c.l.b16 %v2181
    %v2875 = vunpack.c.h.b16 %v2181
    %v2876 = vunpack.c.l.b16 %v2182
    %v2877 = vunpack.c.h.b16 %v2182
    %v2878 = vunpack.c.l.b16 %v2183
    %v2879 = vunpack.c.h.b16 %v2183
    %v2880 = vunpack.c.l.b16 %v2184
    %v2881 = vunpack.c.h.b16 %v2184
    %v2882 = vunpack.c.l.b16 %v2185
    %v2883 = vunpack.c.h.b16 %v2185
    %v2884 = vunpack.c.l.b16 %v2186
    %v2885 = vunpack.c.h.b16 %v2186
    %v2886 = vunpack.c.l.b16 %v2187
    %v2887 = vunpack.c.h.b16 %v2187
    %v2888 = vunpack.c.l.b16 %v2188
    %v2889 = vunpack.c.h.b16 %v2188
    %v2890 = vunpack.c.l.b16 %v2189
    %v2891 = vunpack.c.h.b16 %v2189
    %v2892 = vunpack.c.l.b16 %v2190
    %v2893 = vunpack.c.h.b16 %v2190
    %v2894 = vunpack.c.l.b16 %v2191
    %v2895 = vunpack.c.h.b16 %v2191
    %v2896 = vunpack.c.l.b16 %v2192
    %v2897 = vunpack.c.h.b16 %v2192
    %v2898 = vunpack.c.l.b16 %v2193
    %v2899 = vunpack.c.h.b16 %v2193
    %v2900 = vunpack.c.l.b16 %v2194
    %v2901 = vunpack.c.h.b16 %v2194
    %v2902 = vunpack.c.l.b16 %v2195
    %v2903 = vunpack.c.h.b16 %v2195
    %v2904 = vunpack.c.l.b16 %v2196
    %v2905 = vunpack.c.h.b16 %v2196
    %v2906 = vunpack.c.l.b16 %v2197
    %v2907 = vunpack.c.h.b16 %v2197
    %v2908 = vunpack.c.l.b16 %v2198
    %v2909 = vunpack.c.h.b16 %v2198
    %v2910 = vunpack.c.l.b16 %v2199
    %v2911 = vunpack.c.h.b16 %v2199
    %v2912 = vunpack.c.l.b16 %v2200
    %v2913 = vunpack.c.h.b16 %v2200
    %v2914 = vunpack.c.l.b16 %v2201
    %v2915 = vunpack.c.h.b16 %v2201
    %v2916 = vunpack.c.l.b16 %v2202
    %v2917 = vunpack.c.h.b16 %v2202
    %v2918 = vunpack.c.l.b16 %v2203
    %v2919 = vunpack.c.h.b16 %v2203
    %v2920 = vunpack.c.l.b16 %v2204
    %v2921 = vunpack.c.h.b16 %v2204
    %v2922 = vunpack.c.l.b16 %v2205
    %v2923 = vunpack.c.h.b16 %v2205
    %v2924 = vunpack.c.l.b16 %v2206
    %v2925 = vunpack.c.h.b16 %v2206
    %v2926 = vunpack.c.l.b16 %v2207
    %v2927 = vunpack.c.h.b16 %v2207
    %v2928 = vunpack.c.l.b16 %v2208
    %v2929 = vunpack.c.h.b16 %v2208
    %v2930 = vunpack.c.l.b16 %v2209
    %v2931 = vunpack.c.h.b16 %v2209
    %v2932 = vunpack.c.l.b16 %v2210
    %v2933 = vunpack.c.h.b16 %v2210
    %v2934 = vunpack.c.l.b16 %v2211
    %v2935 = vunpack.c.h.b16 %v2211
    %v2936 = vunpack.c.l.b16 %v2212
    %v2937 = vunpack.c.h.b16 %v2212
    %v2938 = vunpack.c.l.b16 %v2213
    %v2939 = vunpack.c.h.b16 %v2213
    %v2940 = vunpack.c.l.b16 %v2214
    %v2941 = vunpack.c.h.b16 %v2214
    %v2942 = vunpack.c.l.b16 %v2215
    %v2943 = vunpack.c.h.b16 %v2215
    %v2944 = vunpack.c.l.b16 %v2216
    %v2945 = vunpack.c.h.b16 %v2216
    %v2946 = vunpack.c.l.b16 %v2217
    %v2947 = vunpack.c.h.b16 %v2217
    %v2948 = vunpack.c.l.b16 %v2218
    %v2949 = vunpack.c.h.b16 %v2218
    %v2950 = vunpack.c.l.b16 %v2219
    %v2951 = vunpack.c.h.b16 %v2219
    %v2952 = vunpack.c.l.b16 %v2220
    %v2953 = vunpack.c.h.b16 %v2220
    %v2954 = vunpack.c.l.b16 %v2221
    %v2955 = vunpack.c.h.b16 %v2221
    %v2956 = vunpack.c.l.b16 %v2222
    %v2957 = vunpack.c.h.b16 %v2222
    %v2958 = vunpack.c.l.b16 %v2223
    %v2959 = vunpack.c.h.b16 %v2223
    %v2960 = vunpack.c.l.b16 %v2224
    %v2961 = vunpack.c.h.b16 %v2224
    %v2962 = vunpack.c.l.b16 %v2225
    %v2963 = vunpack.c.h.b16 %v2225
    %v2964 = vunpack.c.l.b16 %v2226
    %v2965 = vunpack.c.h.b16 %v2226
    %v2966 = vunpack.c.l.b16 %v2227
    %v2967 = vunpack.c.h.b16 %v2227
    %v2968 = vunpack.c.l.b16 %v2228
    %v2969 = vunpack.c.h.b16 %v2228
    %v2970 = vunpack.c.l.b16 %v2229
    %v2971 = vunpack.c.h.b16 %v2229
    %v2972 = vunpack.c.l.b16 %v2230
    %v2973 = vunpack.c.h.b16 %v2230
    %v2974 = vunpack.c.l.b16 %v2231
    %v2975 = vunpack.c.h.b16 %v2231
    %v2976 = vunpack.c.l.b16 %v2232
    %v2977 = vunpack.c.h.b16 %v2232
    %v2978 = vunpack.c.l.b16 %v2233
    %v2979 = vunpack.c.h.b16 %v2233
    %v2980 = vunpack.c.l.b16 %v2234
    %v2981 = vunpack.c.h.b16 %v2234
    %v2982 = vunpack.c.l.b16 %v2235
    %v2983 = vunpack.c.h.b16 %v2235
    %v2984 = vunpack.c.l.b16 %v2236
    %v2985 = vunpack.c.h.b16 %v2236
    %v2986 = vunpack.c.l.b16 %v2237
    %v2987 = vunpack.c.h.b16 %v2237
    %v2988 = vunpack.c.l.b16 %v2238
    %v2989 = vunpack.c.h.b16 %v2238
    %v2990 = vunpack.c.l.b16 %v2239
    %v2991 = vunpack.c.h.b16 %v2239
    %v2992 = vunpack.c.l.b16 %v2240
    %v2993 = vunpack.c.h.b16 %v2240
    %v2994 = vunpack.c.l.b16 %v2241
    %v2995 = vunpack.c.h.b16 %v2241
    %v2996 = vunpack.c.l.b16 %v2242
    %v2997 = vunpack.c.h.b16 %v2242
    %v2998 = vunpack.c.l.b16 %v2243
    %v2999 = vunpack.c.h.b16 %v2243
    %v3000 = vunpack.c.l.b16 %v2244
    %v3001 = vunpack.c.h.b16 %v2244
    %v3002 = vunpack.c.l.b16 %v2245
    %v3003 = vunpack.c.h.b16 %v2245
    %v3004 = vunpack.c.l.b16 %v2246
    %v3005 = vunpack.c.h.b16 %v2246
    %v3006 = vunpack.c.l.b16 %v2247
    %v3007 = vunpack.c.h.b16 %v2247
    %v3008 = vunpack.c.l.b16 %v2248
    %v3009 = vunpack.c.h.b16 %v2248
    %v3010 = vunpack.c.l.b16 %v2249
    %v3011 = vunpack.c.h.b16 %v2249
    %v3012 = vunpack.c.l.b16 %v2250
    %v3013 = vunpack.c.h.b16 %v2250
    %v3014 = vunpack.c.l.b16 %v2251
    %v3015 = vunpack.c.h.b16 %v2251
    %v3016 = vunpack.c.l.b16 %v2252
    %v3017 = vunpack.c.h.b16 %v2252
    %v3018 = vunpack.c.l.b16 %v2253
    %v3019 = vunpack.c.h.b16 %v2253
    %v3020 = vunpack.c.l.b16 %v2254
    %v3021 = vunpack.c.h.b16 %v2254
    %v3022 = vunpack.c.l.b16 %v2255
    %v3023 = vunpack.c.h.b16 %v2255
    %v3024 = vunpack.c.l.b16 %v2256
    %v3025 = vunpack.c.h.b16 %v2256
    %v3026 = vunpack.c.l.b16 %v2257
    %v3027 = vunpack.c.h.b16 %v2257
    %v3028 = vunpack.c.l.b16 %v2258
    %v3029 = vunpack.c.h.b16 %v2258
    %v3030 = vunpack.c.l.b16 %v2259
    %v3031 = vunpack.c.h.b16 %v2259
    %v3032 = vunpack.c.l.b16 %v2260
    %v3033 = vunpack.c.h.b16 %v2260
    %v3034 = vunpack.c.l.b16 %v2261
    %v3035 = vunpack.c.h.b16 %v2261
    %v3036 = vunpack.c.l.b16 %v2262
    %v3037 = vunpack.c.h.b16 %v2262
    %v3038 = vunpack.c.l.b16 %v2263
    %v3039 = vunpack.c.h.b16 %v2263
    %v3040 = vunpack.c.l.b16 %v2264
    %v3041 = vunpack.c.h.b16 %v2264
    %v3042 = vunpack.c.l.b16 %v2265
    %v3043 = vunpack.c.h.b16 %v2265
    %v3044 = vunpack.c.l.b16 %v2266
    %v3045 = vunpack.c.h.b16 %v2266
    %v3046 = vunpack.c.l.b16 %v2267
    %v3047 = vunpack.c.h.b16 %v2267
    %v3048 = vunpack.c.l.b16 %v2268
    %v3049 = vunpack.c.h.b16 %v2268
    %v3050 = vunpack.c.l.b16 %v2269
    %v3051 = vunpack.c.h.b16 %v2269
    %v3052 = vunpack.c.l.b16 %v2270
    %v3053 = vunpack.c.h.b16 %v2270
    %v3054 = vunpack.c.l.b16 %v2271
    %v3055 = vunpack.c.h.b16 %v2271
    %v3056 = vunpack.c.l.b16 %v2272
    %v3057 = vunpack.c.h.b16 %v2272
    %v3058 = vunpack.c.l.b16 %v2273
    %v3059 = vunpack.c.h.b16 %v2273
    %v3060 = vunpack.c.l.b16 %v2274
    %v3061 = vunpack.c.h.b16 %v2274
    %v3062 = vunpack.c.l.b16 %v2275
    %v3063 = vunpack.c.h.b16 %v2275
    %v3064 = vunpack.c.l.b16 %v2276
    %v3065 = vunpack.c.h.b16 %v2276
    %v3066 = vunpack.c.l.b16 %v2277
    %v3067 = vunpack.c.h.b16 %v2277
    %v3068 = vunpack.c.l.b16 %v2278
    %v3069 = vunpack.c.h.b16 %v2278
    %v3070 = vunpack.c.l.b16 %v2279
    %v3071 = vunpack.c.h.b16 %v2279
    %v3072 = vunpack.c.l.b16 %v2280
    %v3073 = vunpack.c.h.b16 %v2280
    %v3074 = vunpack.c.l.b16 %v2281
    %v3075 = vunpack.c.h.b16 %v2281
    %v3076 = vunpack.c.l.b16 %v2282
    %v3077 = vunpack.c.h.b16 %v2282
    %v3078 = vunpack.c.l.b16 %v2283
    %v3079 = vunpack.c.h.b16 %v2283
    %v3080 = vunpack.c.l.b16 %v2284
    %v3081 = vunpack.c.h.b16 %v2284
    %v3082 = vunpack.c.l.b16 %v2285
    %v3083 = vunpack.c.h.b16 %v2285
    %v3084 = vunpack.c.l.b16 %v2286
    %v3085 = vunpack.c.h.b16 %v2286
    %v3086 = vunpack.c.l.b16 %v2287
    %v3087 = vunpack.c.h.b16 %v2287
    %v3088 = vunpack.c.l.b16 %v2288
    %v3089 = vunpack.c.h.b16 %v2288
    %v3090 = vunpack.c.l.b16 %v2289
    %v3091 = vunpack.c.h.b16 %v2289
    %v3092 = vunpack.c.l.b16 %v2290
    %v3093 = vunpack.c.h.b16 %v2290
    %v3094 = vunpack.c.l.b16 %v2291
    %v3095 = vunpack.c.h.b16 %v2291
    %v3096 = vunpack.c.l.b16 %v2292
    %v3097 = vunpack.c.h.b16 %v2292
    %v3098 = vunpack.c.l.b16 %v2293
    %v3099 = vunpack.c.h.b16 %v2293
    %v3100 = vunpack.c.l.b16 %v2294
    %v3101 = vunpack.c.h.b16 %v2294
    %v3102 = vunpack.c.l.b16 %v2295
    %v3103 = vunpack.c.h.b16 %v2295
    %v3104 = vunpack.c.l.b16 %v2296
    %v3105 = vunpack.c.h.b16 %v2296
    %v3106 = vunpack.c.l.b16 %v2297
    %v3107 = vunpack.c.h.b16 %v2297
    %v3108 = vpack.c.b16 %v2604, %v2596
    %v3109 = vpack.c.b16 %v2605, %v2597
    %v3110 = vpack.c.b16 %v2606, %v2598
    %v3111 = vpack.c.b16 %v2607, %v2599
    %v3112 = vpack.c.b16 %v2608, %v2600
    %v3113 = vpack.c.b16 %v2609, %v2601
    %v3114 = vpack.c.b16 %v2610, %v2602
    %v3115 = vpack.c.b16 %v2611, %v2603
    %v3116 = vpack.c.b16 %v2620, %v2612
    %v3117 = vpack.c.b16 %v2621, %v2613
    %v3118 = vpack.c.b16 %v2622, %v2614
    %v3119 = vpack.c.b16 %v2623, %v2615
    %v3120 = vpack.c.b16 %v2624, %v2616
    %v3121 = vpack.c.b16 %v2625, %v2617
    %v3122 = vpack.c.b16 %v2626, %v2618
    %v3123 = vpack.c.b16 %v2627, %v2619
    %v3124 = vpack.c.b16 %v2636, %v2628
    %v3125 = vpack.c.b16 %v2637, %v2629
    %v3126 = vpack.c.b16 %v2638, %v2630
    %v3127 = vpack.c.b16 %v2639, %v2631
    %v3128 = vpack.c.b16 %v2640, %v2632
    %v3129 = vpack.c.b16 %v2641, %v2633
    %v3130 = vpack.c.b16 %v2642, %v2634
    %v3131 = vpack.c.b16 %v2643, %v2635
    %v3132 = vpack.c.b16 %v2652, %v2644
    %v3133 = vpack.c.b16 %v2653, %v2645
    %v3134 = vpack.c.b16 %v2654, %v2646
    %v3135 = vpack.c.b16 %v2655, %v2647
    %v3136 = vpack.c.b16 %v2656, %v2648
    %v3137 = vpack.c.b16 %v2657, %v2649
    %v3138 = vpack.c.b16 %v2658, %v2650
    %v3139 = vpack.c.b16 %v2659, %v2651
    %v3140 = vpack.c.b16 %v2668, %v2660
    %v3141 = vpack.c.b16 %v2669, %v2661
    %v3142 = vpack.c.b16 %v2670, %v2662
    %v3143 = vpack.c.b16 %v2671, %v2663
    %v3144 = vpack.c.b16 %v2672, %v2664
    %v3145 = vpack.c.b16 %v2673, %v2665
    %v3146 = vpack.c.b16 %v2674, %v2666
    %v3147 = vpack.c.b16 %v2675, %v2667
    %v3148 = vpack.c.b16 %v2684, %v2676
    %v3149 = vpack.c.b16 %v2685, %v2677
    %v3150 = vpack.c.b16 %v2686, %v2678
    %v3151 = vpack.c.b16 %v2687, %v2679
    %v3152 = vpack.c.b16 %v2688, %v2680
    %v3153 = vpack.c.b16 %v2689, %v2681
    %v3154 = vpack.c.b16 %v2690, %v2682
    %v3155 = vpack.c.b16 %v2691, %v2683
    %v3156 = vpack.c.b16 %v2700, %v2692
    %v3157 = vpack.c.b16 %v2701, %v2693
    %v3158 = vpack.c.b16 %v2702, %v2694
    %v3159 = vpack.c.b16 %v2703, %v2695
    %v3160 = vpack.c.b16 %v2704, %v2696
    %v3161 = vpack.c.b16 %v2705, %v2697
    %v3162 = vpack.c.b16 %v2706, %v2698
    %v3163 = vpack.c.b16 %v2707, %v2699
    %v3164 = vpack.c.b16 %v2716, %v2708
    %v3165 = vpack.c.b16 %v2717, %v2709
    %v3166 = vpack.c.b16 %v2718, %v2710
    %v3167 = vpack.c.b16 %v2719, %v2711
    %v3168 = vpack.c.b16 %v2720, %v2712
    %v3169 = vpack.c.b16 %v2721, %v2713
    %v3170 = vpack.c.b16 %v2722, %v2714
    %v3171 = vpack.c.b16 %v2723, %v2715
    %v3172 = vpack.c.b16 %v2732, %v2724
    %v3173 = vpack.c.b16 %v2733, %v2725
    %v3174 = vpack.c.b16 %v2734, %v2726
    %v3175 = vpack.c.b16 %v2735, %v2727
    %v3176 = vpack.c.b16 %v2736, %v2728
    %v3177 = vpack.c.b16 %v2737, %v2729
    %v3178 = vpack.c.b16 %v2738, %v2730
    %v3179 = vpack.c.b16 %v2739, %v2731
    %v3180 = vpack.c.b16 %v2748, %v2740
    %v3181 = vpack.c.b16 %v2749, %v2741
    %v3182 = vpack.c.b16 %v2750, %v2742
    %v3183 = vpack.c.b16 %v2751, %v2743
    %v3184 = vpack.c.b16 %v2752, %v2744
    %v3185 = vpack.c.b16 %v2753, %v2745
    %v3186 = vpack.c.b16 %v2754, %v2746
    %v3187 = vpack.c.b16 %v2755, %v2747
    %v3188 = vpack.c.b16 %v2764, %v2756
    %v3189 = vpack.c.b16 %v2765, %v2757
    %v3190 = vpack.c.b16 %v2766, %v2758
    %v3191 = vpack.c.b16 %v2767, %v2759
    %v3192 = vpack.c.b16 %v2768, %v2760
    %v3193 = vpack.c.b16 %v2769, %v2761
    %v3194 = vpack.c.b16 %v2770, %v2762
    %v3195 = vpack.c.b16 %v2771, %v2763
    %v3196 = vpack.c.b16 %v2780, %v2772
    %v3197 = vpack.c.b16 %v2781, %v2773
    %v3198 = vpack.c.b16 %v2782, %v2774
    %v3199 = vpack.c.b16 %v2783, %v2775
    %v3200 = vpack.c.b16 %v2784, %v2776
    %v3201 = vpack.c.b16 %v2785, %v2777
    %v3202 = vpack.c.b16 %v2786, %v2778
    %v3203 = vpack.c.b16 %v2787, %v2779
    %v3204 = vpack.c.b16 %v2796, %v2788
    %v3205 = vpack.c.b16 %v2797, %v2789
    %v3206 = vpack.c.b16 %v2798, %v2790
    %v3207 = vpack.c.b16 %v2799, %v2791
    %v3208 = vpack.c.b16 %v2800, %v2792
    %v3209 = vpack.c.b16 %v2801, %v2793
    %v3210 = vpack.c.b16 %v2802, %v2794
    %v3211 = vpack.c.b16 %v2803, %v2795
    %v3212 = vpack.c.b16 %v2812, %v2804
    %v3213 = vpack.c.b16 %v2813, %v2805
    %v3214 = vpack.c.b16 %v2814, %v2806
    %v3215 = vpack.c.b16 %v2815, %v2807
    %v3216 = vpack.c.b16 %v2816, %v2808
    %v3217 = vpack.c.b16 %v2817, %v2809
    %v3218 = vpack.c.b16 %v2818, %v2810
    %v3219 = vpack.c.b16 %v2819, %v2811
    %v3220 = vpack.c.b16 %v2828, %v2820
    %v3221 = vpack.c.b16 %v2829, %v2821
    %v3222 = vpack.c.b16 %v2830, %v2822
    %v3223 = vpack.c.b16 %v2831, %v2823
    %v3224 = vpack.c.b16 %v2832, %v2824
    %v3225 = vpack.c.b16 %v2833, %v2825
    %v3226 = vpack.c.b16 %v2834, %v2826
    %v3227 = vpack.c.b16 %v2835, %v2827
    %v3228 = vpack.c.b16 %v2844, %v2836
    %v3229 = vpack.c.b16 %v2845, %v2837
    %v3230 = vpack.c.b16 %v2846, %v2838
    %v3231 = vpack.c.b16 %v2847, %v2839
    %v3232 = vpack.c.b16 %v2848, %v2840
    %v3233 = vpack.c.b16 %v2849, %v2841
    %v3234 = vpack.c.b16 %v2850, %v2842
    %v3235 = vpack.c.b16 %v2851, %v2843
    %v3236 = vpack.c.b16 %v2860, %v2852
    %v3237 = vpack.c.b16 %v2861, %v2853
    %v3238 = vpack.c.b16 %v2862, %v2854
    %v3239 = vpack.c.b16 %v2863, %v2855
    %v3240 = vpack.c.b16 %v2864, %v2856
    %v3241 = vpack.c.b16 %v2865, %v2857
    %v3242 = vpack.c.b16 %v2866, %v2858
    %v3243 = vpack.c.b16 %v2867, %v2859
    %v3244 = vpack.c.b16 %v2876, %v2868
    %v3245 = vpack.c.b16 %v2877, %v2869
    %v3246 = vpack.c.b16 %v2878, %v2870
    %v3247 = vpack.c.b16 %v2879, %v2871
    %v3248 = vpack.c.b16 %v2880, %v2872
    %v3249 = vpack.c.b16 %v2881, %v2873
    %v3250 = vpack.c.b16 %v2882, %v2874
    %v3251 = vpack.c.b16 %v2883, %v2875
    %v3252 = vpack.c.b16 %v2892, %v2884
    %v3253 = vpack.c.b16 %v2893, %v2885
    %v3254 = vpack.c.b16 %v2894, %v2886
    %v3255 = vpack.c.b16 %v2895, %v2887
    %v3256 = vpack.c.b16 %v2896, %v2888
    %v3257 = vpack.c.b16 %v2897, %v2889
    %v3258 = vpack.c.b16 %v2898, %v2890
    %v3259 = vpack.c.b16 %v2899, %v2891
    %v3260 = vpack.c.b16 %v2908, %v2900
    %v3261 = vpack.c.b16 %v2909, %v2901
    %v3262 = vpack.c.b16 %v2910, %v2902
    %v3263 = vpack.c.b16 %v2911, %v2903
    %v3264 = vpack.c.b16 %v2912, %v2904
    %v3265 = vpack.c.b16 %v2913, %v2905
    %v3266 = vpack.c.b16 %v2914, %v2906
    %v3267 = vpack.c.b16 %v2915, %v2907
    %v3268 = vpack.c.b16 %v2924, %v2916
    %v3269 = vpack.c.b16 %v2925, %v2917
    %v3270 = vpack.c.b16 %v2926, %v2918
    %v3271 = vpack.c.b16 %v2927, %v2919
    %v3272 = vpack.c.b16 %v2928, %v2920
    %v3273 = vpack.c.b16 %v2929, %v2921
    %v3274 = vpack.c.b16 %v2930, %v2922
    %v3275 = vpack.c.b16 %v2931, %v2923
    %v3276 = vpack.c.b16 %v2940, %v2932
    %v3277 = vpack.c.b16 %v2941, %v2933
    %v3278 = vpack.c.b16 %v2942, %v2934
    %v3279 = vpack.c.b16 %v2943, %v2935
    %v3280 = vpack.c.b16 %v2944, %v2936
    %v3281 = vpack.c.b16 %v2945, %v2937
    %v3282 = vpack.c.b16 %v2946, %v2938
    %v3283 = vpack.c.b16 %v2947, %v2939
    %v3284 = vpack.c.b16 %v2956, %v2948
    %v3285 = vpack.c.b16 %v2957, %v2949
    %v3286 = vpack.c.b16 %v2958, %v2950
    %v3287 = vpack.c.b16 %v2959, %v2951
    %v3288 = vpack.c.b16 %v2960, %v2952
    %v3289 = vpack.c.b16 %v2961, %v2953
    %v3290 = vpack.c.b16 %v2962, %v2954
    %v3291 = vpack.c.b16 %v2963, %v2955
    %v3292 = vpack.c.b16 %v2972, %v2964
    %v3293 = vpack.c.b16 %v2973, %v2965
    %v3294 = vpack.c.b16 %v2974, %v2966
    %v3295 = vpack.c.b16 %v2975, %v2967
    %v3296 = vpack.c.b16 %v2976, %v2968
    %v3297 = vpack.c.b16 %v2977, %v2969
    %v3298 = vpack.c.b16 %v2978, %v2970
    %v3299 = vpack.c.b16 %v2979, %v2971
    %v3300 = vpack.c.b16 %v2988, %v2980
    %v3301 = vpack.c.b16 %v2989, %v2981
    %v3302 = vpack.c.b16 %v2990, %v2982
    %v3303 = vpack.c.b16 %v2991, %v2983
    %v3304 = vpack.c.b16 %v2992, %v2984
    %v3305 = vpack.c.b16 %v2993, %v2985
    %v3306 = vpack.c.b16 %v2994, %v2986
    %v3307 = vpack.c.b16 %v2995, %v2987
    %v3308 = vpack.c.b16 %v3004, %v2996
    %v3309 = vpack.c.b16 %v3005, %v2997
    %v3310 = vpack.c.b16 %v3006, %v2998
    %v3311 = vpack.c.b16 %v3007, %v2999
    %v3312 = vpack.c.b16 %v3008, %v3000
    %v3313 = vpack.c.b16 %v3009, %v3001
    %v3314 = vpack.c.b16 %v3010, %v3002
    %v3315 = vpack.c.b16 %v3011, %v3003
    %v3316 = vpack.c.b16 %v3020, %v3012
    %v3317 = vpack.c.b16 %v3021, %v3013
    %v3318 = vpack.c.b16 %v3022, %v3014
    %v3319 = vpack.c.b16 %v3023, %v3015
    %v3320 = vpack.c.b16 %v3024, %v3016
    %v3321 = vpack.c.b16 %v3025, %v3017
    %v3322 = vpack.c.b16 %v3026, %v3018
    %v3323 = vpack.c.b16 %v3027, %v3019
    %v3324 = vpack.c.b16 %v3036, %v3028
    %v3325 = vpack.c.b16 %v3037, %v3029
    %v3326 = vpack.c.b16 %v3038, %v3030
    %v3327 = vpack.c.b16 %v3039, %v3031
    %v3328 = vpack.c.b16 %v3040, %v3032
    %v3329 = vpack.c.b16 %v3041, %v3033
    %v3330 = vpack.c.b16 %v3042, %v3034
    %v3331 = vpack.c.b16 %v3043, %v3035
    %v3332 = vpack.c.b16 %v3052, %v3044
    %v3333 = vpack.c.b16 %v3053, %v3045
    %v3334 = vpack.c.b16 %v3054, %v3046
    %v3335 = vpack.c.b16 %v3055, %v3047
    %v3336 = vpack.c.b16 %v3056, %v3048
    %v3337 = vpack.c.b16 %v3057, %v3049
    %v3338 = vpack.c.b16 %v3058, %v3050
    %v3339 = vpack.c.b16 %v3059, %v3051
    %v3340 = vpack.c.b16 %v3068, %v3060
    %v3341 = vpack.c.b16 %v3069, %v3061
    %v3342 = vpack.c.b16 %v3070, %v3062
    %v3343 = vpack.c.b16 %v3071, %v3063
    %v3344 = vpack.c.b16 %v3072, %v3064
    %v3345 = vpack.c.b16 %v3073, %v3065
    %v3346 = vpack.c.b16 %v3074, %v3066
    %v3347 = vpack.c.b16 %v3075, %v3067
    %v3348 = vpack.c.b16 %v3084, %v3076
    %v3349 = vpack.c.b16 %v3085, %v3077
    %v3350 = vpack.c.b16 %v3086, %v3078
    %v3351 = vpack.c.b16 %v3087, %v3079
    %v3352 = vpack.c.b16 %v3088, %v3080
    %v3353 = vpack.c.b16 %v3089, %v3081
    %v3354 = vpack.c.b16 %v3090, %v3082
    %v3355 = vpack.c.b16 %v3091, %v3083
    %v3356 = vpack.c.b16 %v3100, %v3092
    %v3357 = vpack.c.b16 %v3101, %v3093
    %v3358 = vpack.c.b16 %v3102, %v3094
    %v3359 = vpack.c.b16 %v3103, %v3095
    %v3360 = vpack.c.b16 %v3104, %v3096
    %v3361 = vpack.c.b16 %v3105, %v3097
    %v3362 = vpack.c.b16 %v3106, %v3098
    %v3363 = vpack.c.b16 %v3107, %v3099
    %3620 = vmatprep.subr.bf16.mxu0 %v3165
    %3621 = vmatpush1.bf16.msra.mxu0 %v3164
    %3622 = vmatprep.subr.bf16.mxu0 %v3157
    %3623 = vmatpush1.bf16.msra.mxu0 %v3156
    %3624 = vmatprep.subr.bf16.mxu0 %v3149
    %3625 = vmatpush1.bf16.msra.mxu0 %v3148
    %3626 = vmatprep.subr.bf16.mxu0 %v3141
    %3627 = vmatpush1.bf16.msra.mxu0 %v3140
    %3628 = vmatprep.subr.bf16.mxu0 %v3133
    %3629 = vmatpush1.bf16.msra.mxu0 %v3132
    %3630 = vmatprep.subr.bf16.mxu0 %v3125
    %3631 = vmatpush1.bf16.msra.mxu0 %v3124
    %3632 = vmatprep.subr.bf16.mxu0 %v3117
    %3633 = vmatpush1.bf16.msra.mxu0 %v3116
    %3634 = vmatprep.subr.bf16.mxu0 %v3109
    %3635 = vmatpush1.bf16.msra.mxu0 %v3108
    %3636 = vmatprep.subr.bf16.mxu0 %v3229
    %3637 = vmatpush2.bf16.msra.mxu0 %v3228
    %3638 = vmatprep.subr.bf16.mxu0 %v3221
    %3639 = vmatpush2.bf16.msra.mxu0 %v3220
    %3640 = vmatprep.subr.bf16.mxu0 %v3213
    %3641 = vmatpush2.bf16.msra.mxu0 %v3212
    %3642 = vmatprep.subr.bf16.mxu0 %v3205
    %3643 = vmatpush2.bf16.msra.mxu0 %v3204
    %3644 = vmatprep.subr.bf16.mxu0 %v3197
    %3645 = vmatpush2.bf16.msra.mxu0 %v3196
    %3646 = vmatprep.subr.bf16.mxu0 %v3189
    %3647 = vmatpush2.bf16.msra.mxu0 %v3188
    %3648 = vmatprep.subr.bf16.mxu0 %v3181
    %3649 = vmatpush2.bf16.msra.mxu0 %v3180
    %3650 = vmatprep.subr.bf16.mxu0 %v3173
    %3651 = vmatpush2.bf16.msra.mxu0 %v3172
    %3652 = vmatprep.mubr.bf16.mxu0 %v81
    %3653 = vmatmul.mubr.bf16.gmra.mxu0 %v80
    %v3654 = vpop.f32.mrf.mxu0
    %v3655 = vadd.f32 %v2303, %v3654
    %v3656 = vpop.f32.mrf.mxu0
    %v3657 = vadd.f32 %v2307, %v3656
    %v3658 = vpop.f32.mrf.mxu0
    %v3659 = vpop.f32.mrf.mxu0
    %3660 = vdwg.mxu0
    %3661 = vmatprep.subr.bf16.mxu0 %v3293
    %3662 = vmatpush1.bf16.msra.mxu0 %v3292
    %3663 = vmatprep.subr.bf16.mxu0 %v3285
    %3664 = vmatpush1.bf16.msra.mxu0 %v3284
    %3665 = vmatprep.subr.bf16.mxu0 %v3277
    %3666 = vmatpush1.bf16.msra.mxu0 %v3276
    %3667 = vmatprep.subr.bf16.mxu0 %v3269
    %3668 = vmatpush1.bf16.msra.mxu0 %v3268
    %3669 = vmatprep.subr.bf16.mxu0 %v3261
    %3670 = vmatpush1.bf16.msra.mxu0 %v3260
    %3671 = vmatprep.subr.bf16.mxu0 %v3253
    %3672 = vmatpush1.bf16.msra.mxu0 %v3252
    %3673 = vmatprep.subr.bf16.mxu0 %v3245
    %3674 = vmatpush1.bf16.msra.mxu0 %v3244
    %3675 = vmatprep.subr.bf16.mxu0 %v3237
    %3676 = vmatpush1.bf16.msra.mxu0 %v3236
    %3677 = vmatprep.subr.bf16.mxu0 %v3357
    %3678 = vmatpush2.bf16.msra.mxu0 %v3356
    %3679 = vmatprep.subr.bf16.mxu0 %v3349
    %3680 = vmatpush2.bf16.msra.mxu0 %v3348
    %3681 = vmatprep.subr.bf16.mxu0 %v3341
    %3682 = vmatpush2.bf16.msra.mxu0 %v3340
    %3683 = vmatprep.subr.bf16.mxu0 %v3333
    %3684 = vmatpush2.bf16.msra.mxu0 %v3332
    %3685 = vmatprep.subr.bf16.mxu0 %v3325
    %3686 = vmatpush2.bf16.msra.mxu0 %v3324
    %3687 = vmatprep.subr.bf16.mxu0 %v3317
    %3688 = vmatpush2.bf16.msra.mxu0 %v3316
    %3689 = vmatprep.subr.bf16.mxu0 %v3309
    %3690 = vmatpush2.bf16.msra.mxu0 %v3308
    %3691 = vmatprep.subr.bf16.mxu0 %v3301
    %3692 = vmatpush2.bf16.msra.mxu0 %v3300
    %3693 = vmatprep.mubr.bf16.mxu0 %v83
    %3694 = vmatmul.mubr.bf16.gmra.mxu0 %v82
    %v3695 = vpop.f32.mrf.mxu0
    %v3696 = vadd.f32 %v3655, %v3695
    %v3697 = vpop.f32.mrf.mxu0
    %v3698 = vadd.f32 %v3657, %v3697
    %v3699 = vpop.f32.mrf.mxu0
    %v3700 = vpop.f32.mrf.mxu0
    %3701 = vdwg.mxu0
    %3702 = vmatprep.subr.bf16.mxu0 %v3167
    %3703 = vmatpush1.bf16.msra.mxu0 %v3166
    %3704 = vmatprep.subr.bf16.mxu0 %v3159
    %3705 = vmatpush1.bf16.msra.mxu0 %v3158
    %3706 = vmatprep.subr.bf16.mxu0 %v3151
    %3707 = vmatpush1.bf16.msra.mxu0 %v3150
    %3708 = vmatprep.subr.bf16.mxu0 %v3143
    %3709 = vmatpush1.bf16.msra.mxu0 %v3142
    %3710 = vmatprep.subr.bf16.mxu0 %v3135
    %3711 = vmatpush1.bf16.msra.mxu0 %v3134
    %3712 = vmatprep.subr.bf16.mxu0 %v3127
    %3713 = vmatpush1.bf16.msra.mxu0 %v3126
    %3714 = vmatprep.subr.bf16.mxu0 %v3119
    %3715 = vmatpush1.bf16.msra.mxu0 %v3118
    %3716 = vmatprep.subr.bf16.mxu0 %v3111
    %3717 = vmatpush1.bf16.msra.mxu0 %v3110
    %3718 = vmatprep.subr.bf16.mxu0 %v3231
    %3719 = vmatpush2.bf16.msra.mxu0 %v3230
    %3720 = vmatprep.subr.bf16.mxu0 %v3223
    %3721 = vmatpush2.bf16.msra.mxu0 %v3222
    %3722 = vmatprep.subr.bf16.mxu0 %v3215
    %3723 = vmatpush2.bf16.msra.mxu0 %v3214
    %3724 = vmatprep.subr.bf16.mxu0 %v3207
    %3725 = vmatpush2.bf16.msra.mxu0 %v3206
    %3726 = vmatprep.subr.bf16.mxu0 %v3199
    %3727 = vmatpush2.bf16.msra.mxu0 %v3198
    %3728 = vmatprep.subr.bf16.mxu0 %v3191
    %3729 = vmatpush2.bf16.msra.mxu0 %v3190
    %3730 = vmatprep.subr.bf16.mxu0 %v3183
    %3731 = vmatpush2.bf16.msra.mxu0 %v3182
    %3732 = vmatprep.subr.bf16.mxu0 %v3175
    %3733 = vmatpush2.bf16.msra.mxu0 %v3174
    %3734 = vmatprep.mubr.bf16.mxu0 %v81
    %3735 = vmatmul.mubr.bf16.gmra.mxu0 %v80
    %v3736 = vpop.f32.mrf.mxu0
    %v3737 = vadd.f32 %v2311, %v3736
    %v3738 = vpop.f32.mrf.mxu0
    %v3739 = vadd.f32 %v2315, %v3738
    %v3740 = vpop.f32.mrf.mxu0
    %v3741 = vpop.f32.mrf.mxu0
    %3742 = vdwg.mxu0
    %3743 = vmatprep.subr.bf16.mxu0 %v3295
    %3744 = vmatpush1.bf16.msra.mxu0 %v3294
    %3745 = vmatprep.subr.bf16.mxu0 %v3287
    %3746 = vmatpush1.bf16.msra.mxu0 %v3286
    %3747 = vmatprep.subr.bf16.mxu0 %v3279
    %3748 = vmatpush1.bf16.msra.mxu0 %v3278
    %3749 = vmatprep.subr.bf16.mxu0 %v3271
    %3750 = vmatpush1.bf16.msra.mxu0 %v3270
    %3751 = vmatprep.subr.bf16.mxu0 %v3263
    %3752 = vmatpush1.bf16.msra.mxu0 %v3262
    %3753 = vmatprep.subr.bf16.mxu0 %v3255
    %3754 = vmatpush1.bf16.msra.mxu0 %v3254
    %3755 = vmatprep.subr.bf16.mxu0 %v3247
    %3756 = vmatpush1.bf16.msra.mxu0 %v3246
    %3757 = vmatprep.subr.bf16.mxu0 %v3239
    %3758 = vmatpush1.bf16.msra.mxu0 %v3238
    %3759 = vmatprep.subr.bf16.mxu0 %v3359
    %3760 = vmatpush2.bf16.msra.mxu0 %v3358
    %3761 = vmatprep.subr.bf16.mxu0 %v3351
    %3762 = vmatpush2.bf16.msra.mxu0 %v3350
    %3763 = vmatprep.subr.bf16.mxu0 %v3343
    %3764 = vmatpush2.bf16.msra.mxu0 %v3342
    %3765 = vmatprep.subr.bf16.mxu0 %v3335
    %3766 = vmatpush2.bf16.msra.mxu0 %v3334
    %3767 = vmatprep.subr.bf16.mxu0 %v3327
    %3768 = vmatpush2.bf16.msra.mxu0 %v3326
    %3769 = vmatprep.subr.bf16.mxu0 %v3319
    %3770 = vmatpush2.bf16.msra.mxu0 %v3318
    %3771 = vmatprep.subr.bf16.mxu0 %v3311
    %3772 = vmatpush2.bf16.msra.mxu0 %v3310
    %3773 = vmatprep.subr.bf16.mxu0 %v3303
    %3774 = vmatpush2.bf16.msra.mxu0 %v3302
    %3775 = vmatprep.mubr.bf16.mxu0 %v83
    %3776 = vmatmul.mubr.bf16.gmra.mxu0 %v82
    %v3777 = vpop.f32.mrf.mxu0
    %v3778 = vadd.f32 %v3737, %v3777
    %v3779 = vpop.f32.mrf.mxu0
    %v3780 = vadd.f32 %v3739, %v3779
    %v3781 = vpop.f32.mrf.mxu0
    %v3782 = vpop.f32.mrf.mxu0
    %3783 = vdwg.mxu0
    %3784 = vmatprep.subr.bf16.mxu0 %v3169
    %3785 = vmatpush1.bf16.msra.mxu0 %v3168
    %3786 = vmatprep.subr.bf16.mxu0 %v3161
    %3787 = vmatpush1.bf16.msra.mxu0 %v3160
    %3788 = vmatprep.subr.bf16.mxu0 %v3153
    %3789 = vmatpush1.bf16.msra.mxu0 %v3152
    %3790 = vmatprep.subr.bf16.mxu0 %v3145
    %3791 = vmatpush1.bf16.msra.mxu0 %v3144
    %3792 = vmatprep.subr.bf16.mxu0 %v3137
    %3793 = vmatpush1.bf16.msra.mxu0 %v3136
    %3794 = vmatprep.subr.bf16.mxu0 %v3129
    %3795 = vmatpush1.bf16.msra.mxu0 %v3128
    %3796 = vmatprep.subr.bf16.mxu0 %v3121
    %3797 = vmatpush1.bf16.msra.mxu0 %v3120
    %3798 = vmatprep.subr.bf16.mxu0 %v3113
    %3799 = vmatpush1.bf16.msra.mxu0 %v3112
    %3800 = vmatprep.subr.bf16.mxu0 %v3233
    %3801 = vmatpush2.bf16.msra.mxu0 %v3232
    %3802 = vmatprep.subr.bf16.mxu0 %v3225
    %3803 = vmatpush2.bf16.msra.mxu0 %v3224
    %3804 = vmatprep.subr.bf16.mxu0 %v3217
    %3805 = vmatpush2.bf16.msra.mxu0 %v3216
    %3806 = vmatprep.subr.bf16.mxu0 %v3209
    %3807 = vmatpush2.bf16.msra.mxu0 %v3208
    %3808 = vmatprep.subr.bf16.mxu0 %v3201
    %3809 = vmatpush2.bf16.msra.mxu0 %v3200
    %3810 = vmatprep.subr.bf16.mxu0 %v3193
    %3811 = vmatpush2.bf16.msra.mxu0 %v3192
    %3812 = vmatprep.subr.bf16.mxu0 %v3185
    %3813 = vmatpush2.bf16.msra.mxu0 %v3184
    %3814 = vmatprep.subr.bf16.mxu0 %v3177
    %3815 = vmatpush2.bf16.msra.mxu0 %v3176
    %3816 = vmatprep.mubr.bf16.mxu0 %v81
    %3817 = vmatmul.mubr.bf16.gmra.mxu0 %v80
    %v3818 = vpop.f32.mrf.mxu0
    %v3819 = vadd.f32 %v2319, %v3818
    %v3820 = vpop.f32.mrf.mxu0
    %v3821 = vadd.f32 %v2323, %v3820
    %v3822 = vpop.f32.mrf.mxu0
    %v3823 = vpop.f32.mrf.mxu0
    %3824 = vdwg.mxu0
    %3825 = vmatprep.subr.bf16.mxu0 %v3297
    %3826 = vmatpush1.bf16.msra.mxu0 %v3296
    %3827 = vmatprep.subr.bf16.mxu0 %v3289
    %3828 = vmatpush1.bf16.msra.mxu0 %v3288
    %3829 = vmatprep.subr.bf16.mxu0 %v3281
    %3830 = vmatpush1.bf16.msra.mxu0 %v3280
    %3831 = vmatprep.subr.bf16.mxu0 %v3273
    %3832 = vmatpush1.bf16.msra.mxu0 %v3272
    %3833 = vmatprep.subr.bf16.mxu0 %v3265
    %3834 = vmatpush1.bf16.msra.mxu0 %v3264
    %3835 = vmatprep.subr.bf16.mxu0 %v3257
    %3836 = vmatpush1.bf16.msra.mxu0 %v3256
    %3837 = vmatprep.subr.bf16.mxu0 %v3249
    %3838 = vmatpush1.bf16.msra.mxu0 %v3248
    %3839 = vmatprep.subr.bf16.mxu0 %v3241
    %3840 = vmatpush1.bf16.msra.mxu0 %v3240
    %3841 = vmatprep.subr.bf16.mxu0 %v3361
    %3842 = vmatpush2.bf16.msra.mxu0 %v3360
    %3843 = vmatprep.subr.bf16.mxu0 %v3353
    %3844 = vmatpush2.bf16.msra.mxu0 %v3352
    %3845 = vmatprep.subr.bf16.mxu0 %v3345
    %3846 = vmatpush2.bf16.msra.mxu0 %v3344
    %3847 = vmatprep.subr.bf16.mxu0 %v3337
    %3848 = vmatpush2.bf16.msra.mxu0 %v3336
    %3849 = vmatprep.subr.bf16.mxu0 %v3329
    %3850 = vmatpush2.bf16.msra.mxu0 %v3328
    %3851 = vmatprep.subr.bf16.mxu0 %v3321
    %3852 = vmatpush2.bf16.msra.mxu0 %v3320
    %3853 = vmatprep.subr.bf16.mxu0 %v3313
    %3854 = vmatpush2.bf16.msra.mxu0 %v3312
    %3855 = vmatprep.subr.bf16.mxu0 %v3305
    %3856 = vmatpush2.bf16.msra.mxu0 %v3304
    %3857 = vmatprep.mubr.bf16.mxu0 %v83
    %3858 = vmatmul.mubr.bf16.gmra.mxu0 %v82
    %v3859 = vpop.f32.mrf.mxu0
    %v3860 = vadd.f32 %v3819, %v3859
    %v3861 = vpop.f32.mrf.mxu0
    %v3862 = vadd.f32 %v3821, %v3861
    %v3863 = vpop.f32.mrf.mxu0
    %v3864 = vpop.f32.mrf.mxu0
    %3865 = vdwg.mxu0
    %3866 = vmatprep.subr.bf16.mxu0 %v3171
    %3867 = vmatpush1.bf16.msra.mxu0 %v3170
    %3868 = vmatprep.subr.bf16.mxu0 %v3163
    %3869 = vmatpush1.bf16.msra.mxu0 %v3162
    %3870 = vmatprep.subr.bf16.mxu0 %v3155
    %3871 = vmatpush1.bf16.msra.mxu0 %v3154
    %3872 = vmatprep.subr.bf16.mxu0 %v3147
    %3873 = vmatpush1.bf16.msra.mxu0 %v3146
    %3874 = vmatprep.subr.bf16.mxu0 %v3139
    %3875 = vmatpush1.bf16.msra.mxu0 %v3138
    %3876 = vmatprep.subr.bf16.mxu0 %v3131
    %3877 = vmatpush1.bf16.msra.mxu0 %v3130
    %3878 = vmatprep.subr.bf16.mxu0 %v3123
    %3879 = vmatpush1.bf16.msra.mxu0 %v3122
    %3880 = vmatprep.subr.bf16.mxu0 %v3115
    %3881 = vmatpush1.bf16.msra.mxu0 %v3114
    %3882 = vmatprep.subr.bf16.mxu0 %v3235
    %3883 = vmatpush2.bf16.msra.mxu0 %v3234
    %3884 = vmatprep.subr.bf16.mxu0 %v3227
    %3885 = vmatpush2.bf16.msra.mxu0 %v3226
    %3886 = vmatprep.subr.bf16.mxu0 %v3219
    %3887 = vmatpush2.bf16.msra.mxu0 %v3218
    %3888 = vmatprep.subr.bf16.mxu0 %v3211
    %3889 = vmatpush2.bf16.msra.mxu0 %v3210
    %3890 = vmatprep.subr.bf16.mxu0 %v3203
    %3891 = vmatpush2.bf16.msra.mxu0 %v3202
    %3892 = vmatprep.subr.bf16.mxu0 %v3195
    %3893 = vmatpush2.bf16.msra.mxu0 %v3194
    %3894 = vmatprep.subr.bf16.mxu0 %v3187
    %3895 = vmatpush2.bf16.msra.mxu0 %v3186
    %3896 = vmatprep.subr.bf16.mxu0 %v3179
    %3897 = vmatpush2.bf16.msra.mxu0 %v3178
    %3898 = vmatprep.mubr.bf16.mxu0 %v81
    %3899 = vmatmul.mubr.bf16.gmra.mxu0 %v80
    %v3900 = vpop.f32.mrf.mxu0
    %v3901 = vadd.f32 %v2327, %v3900
    %v3902 = vpop.f32.mrf.mxu0
    %v3903 = vadd.f32 %v2331, %v3902
    %v3904 = vpop.f32.mrf.mxu0
    %v3905 = vpop.f32.mrf.mxu0
    %3906 = vdwg.mxu0
    %3907 = vmatprep.subr.bf16.mxu0 %v3299
    %3908 = vmatpush1.bf16.msra.mxu0 %v3298
    %3909 = vmatprep.subr.bf16.mxu0 %v3291
    %3910 = vmatpush1.bf16.msra.mxu0 %v3290
    %3911 = vmatprep.subr.bf16.mxu0 %v3283
    %3912 = vmatpush1.bf16.msra.mxu0 %v3282
    %3913 = vmatprep.subr.bf16.mxu0 %v3275
    %3914 = vmatpush1.bf16.msra.mxu0 %v3274
    %3915 = vmatprep.subr.bf16.mxu0 %v3267
    %3916 = vmatpush1.bf16.msra.mxu0 %v3266
    %3917 = vmatprep.subr.bf16.mxu0 %v3259
    %3918 = vmatpush1.bf16.msra.mxu0 %v3258
    %3919 = vmatprep.subr.bf16.mxu0 %v3251
    %3920 = vmatpush1.bf16.msra.mxu0 %v3250
    %3921 = vmatprep.subr.bf16.mxu0 %v3243
    %3922 = vmatpush1.bf16.msra.mxu0 %v3242
    %3923 = vmatprep.subr.bf16.mxu0 %v3363
    %3924 = vmatpush2.bf16.msra.mxu0 %v3362
    %3925 = vmatprep.subr.bf16.mxu0 %v3355
    %3926 = vmatpush2.bf16.msra.mxu0 %v3354
    %3927 = vmatprep.subr.bf16.mxu0 %v3347
    %3928 = vmatpush2.bf16.msra.mxu0 %v3346
    %3929 = vmatprep.subr.bf16.mxu0 %v3339
    %3930 = vmatpush2.bf16.msra.mxu0 %v3338
    %3931 = vmatprep.subr.bf16.mxu0 %v3331
    %3932 = vmatpush2.bf16.msra.mxu0 %v3330
    %3933 = vmatprep.subr.bf16.mxu0 %v3323
    %3934 = vmatpush2.bf16.msra.mxu0 %v3322
    %3935 = vmatprep.subr.bf16.mxu0 %v3315
    %3936 = vmatpush2.bf16.msra.mxu0 %v3314
    %3937 = vmatprep.subr.bf16.mxu0 %v3307
    %3938 = vmatpush2.bf16.msra.mxu0 %v3306
    %3939 = vmatprep.mubr.bf16.mxu0 %v83
    %3940 = vmatmul.mubr.bf16.gmra.mxu0 %v82
    %v3941 = vpop.f32.mrf.mxu0
    %v3942 = vadd.f32 %v3901, %v3941
    %v3943 = vpop.f32.mrf.mxu0
    %v3944 = vadd.f32 %v3903, %v3943
    %v3945 = vpop.f32.mrf.mxu0
    %v3946 = vpop.f32.mrf.mxu0
    %3947 = vdwg.mxu0
    %v3956 = vcombine.low %v3696, %v3698
    %v3957 = vcombine.low %v3778, %v3780
    %v3959 = vunpack.c.l.s4 1983009808
    %v3960 = vunpack.c.0.s8 %v3959
    %v3961 = vlaneseq
    %v3962 = vshrl.u32 %v3961, 7
    %v3963 = vsub.s32 %v3960, %v3962
    %v3964 = vrot.slane %v3956, %v3963
    %v3966 = vunpack.c.l.s4 1983009808
    %v3967 = vunpack.c.0.s8 %v3966
    %v3968 = vlaneseq
    %v3969 = vshrl.u32 %v3968, 7
    %v3970 = vsub.s32 %v3967, %v3969
    %v3971 = vrot.slane %v3957, %v3970
    %v3972 = vcombine.low %v3964, %v3971
    %v3973 = vcombine.high %v3964, %v3971
    %v3974 = vcombine.low %v3860, %v3862
    %v3975 = vcombine.low %v3942, %v3944
    %v3977 = vunpack.c.l.s4 1983009808
    %v3978 = vunpack.c.0.s8 %v3977
    %v3979 = vlaneseq
    %v3980 = vshrl.u32 %v3979, 7
    %v3981 = vsub.s32 %v3978, %v3980
    %v3982 = vrot.slane %v3974, %v3981
    %v3984 = vunpack.c.l.s4 1983009808
    %v3985 = vunpack.c.0.s8 %v3984
    %v3986 = vlaneseq
    %v3987 = vshrl.u32 %v3986, 7
    %v3988 = vsub.s32 %v3985, %v3987
    %v3989 = vrot.slane %v3975, %v3988
    %v3990 = vcombine.low %v3982, %v3989
    %v3991 = vcombine.high %v3982, %v3989
    %3996 = vst [vmem:[#allocation3] sm:$0xff] %v3972
    %3997 = vst [vmem:[#allocation3 + $0x8] sm:$0xff] %v3990
    %3998 = vst [vmem:[#allocation3 + $0x10] sm:$0xff] %v3973
    %3999 = vst [vmem:[#allocation3 + $0x18] sm:$0xff] %v3991
    loop: start=0, step=1, limit=2
    $region38: #{_lambda_.6} parent=1 // loop_pre_header
      _
    $region39: #{_lambda_.6} parent=1 // loop_header
      %s4001 = sphi 0, %s4005
      %p4002 = scmp.ge.s32.totalorder %s4001, 2
      %v4006 = vphi 0.0, %v5035
      %v4007 = vphi 0.0, %v5033
      %v4008 = vphi 0.0, %v6062
      %v4009 = vphi 0.0, %v6060
    $region40: #{_lambda_.6} parent=1 // loop_header_branch
      %4004 = sbr.rel (%p4002) target = $region44
    $region41: #{_lambda_.6} parent=1 // loop_body
      %s4010 = smul.u32 %s4001, 8
      %s4011 = smul.addr %s4010, 2
      %s4012 = scalar_lea.vmem [#allocation2], %s4011
      %v4013 = vld [vmem:[%s4012] sm:$0xff]
      %v4014 = vld [vmem:[%s4012 + $0x8] sm:$0xff]
      %v4017 = vunpack.c.l.s4 1983009808
      %v4018 = vunpack.c.0.s8 %v4017
      %v4019 = vlaneseq
      %v4020 = vshrl.u32 %v4019, 7
      %v4021 = vsub.s32 %v4018, %v4020
      %v4022 = vrot.slane %v4006, %v4021
      %v4023 = vcombine.high %v4022, %v4022
      %v4026 = vpack.c.bf16 %v4022, %v4022
      %v4027 = vpack.c.bf16 %v4023, %v4023
      %v4028 = vld [vmem:[%s2] sm:$0xff]
      %v4029 = vld [vmem:[%s2 + $0x8] sm:$0xff]
      %v4030 = vld [vmem:[%s2 + $0x10] sm:$0xff]
      %v4031 = vld [vmem:[%s2 + $0x18] sm:$0xff]
      %v4032 = vld [vmem:[%s2 + $0x20] sm:$0xff]
      %v4033 = vld [vmem:[%s2 + $0x28] sm:$0xff]
      %v4034 = vld [vmem:[%s2 + $0x30] sm:$0xff]
      %v4035 = vld [vmem:[%s2 + $0x38] sm:$0xff]
      %v4036 = vld [vmem:[%s2 + $0x40] sm:$0xff]
      %v4037 = vld [vmem:[%s2 + $0x48] sm:$0xff]
      %v4038 = vld [vmem:[%s2 + $0x50] sm:$0xff]
      %v4039 = vld [vmem:[%s2 + $0x58] sm:$0xff]
      %v4040 = vld [vmem:[%s2 + $0x60] sm:$0xff]
      %v4041 = vld [vmem:[%s2 + $0x68] sm:$0xff]
      %v4042 = vld [vmem:[%s2 + $0x70] sm:$0xff]
      %v4043 = vld [vmem:[%s2 + $0x78] sm:$0xff]
      %v4044 = vld [vmem:[%s2 + $0x80] sm:$0xff]
      %v4045 = vld [vmem:[%s2 + $0x88] sm:$0xff]
      %v4046 = vld [vmem:[%s2 + $0x90] sm:$0xff]
      %v4047 = vld [vmem:[%s2 + $0x98] sm:$0xff]
      %v4048 = vld [vmem:[%s2 + $0xa0] sm:$0xff]
      %v4049 = vld [vmem:[%s2 + $0xa8] sm:$0xff]
      %v4050 = vld [vmem:[%s2 + $0xb0] sm:$0xff]
      %v4051 = vld [vmem:[%s2 + $0xb8] sm:$0xff]
      %v4052 = vld [vmem:[%s2 + $0xc0] sm:$0xff]
      %v4053 = vld [vmem:[%s2 + $0xc8] sm:$0xff]
      %v4054 = vld [vmem:[%s2 + $0xd0] sm:$0xff]
      %v4055 = vld [vmem:[%s2 + $0xd8] sm:$0xff]
      %v4056 = vld [vmem:[%s2 + $0xe0] sm:$0xff]
      %v4057 = vld [vmem:[%s2 + $0xe8] sm:$0xff]
      %v4058 = vld [vmem:[%s2 + $0xf0] sm:$0xff]
      %v4059 = vld [vmem:[%s2 + $0xf8] sm:$0xff]
      %v4060 = vld [vmem:[%s2 + $0x100] sm:$0xff]
      %v4061 = vld [vmem:[%s2 + $0x108] sm:$0xff]
      %v4062 = vld [vmem:[%s2 + $0x110] sm:$0xff]
      %v4063 = vld [vmem:[%s2 + $0x118] sm:$0xff]
      %v4064 = vld [vmem:[%s2 + $0x120] sm:$0xff]
      %v4065 = vld [vmem:[%s2 + $0x128] sm:$0xff]
      %v4066 = vld [vmem:[%s2 + $0x130] sm:$0xff]
      %v4067 = vld [vmem:[%s2 + $0x138] sm:$0xff]
      %v4068 = vld [vmem:[%s2 + $0x140] sm:$0xff]
      %v4069 = vld [vmem:[%s2 + $0x148] sm:$0xff]
      %v4070 = vld [vmem:[%s2 + $0x150] sm:$0xff]
      %v4071 = vld [vmem:[%s2 + $0x158] sm:$0xff]
      %v4072 = vld [vmem:[%s2 + $0x160] sm:$0xff]
      %v4073 = vld [vmem:[%s2 + $0x168] sm:$0xff]
      %v4074 = vld [vmem:[%s2 + $0x170] sm:$0xff]
      %v4075 = vld [vmem:[%s2 + $0x178] sm:$0xff]
      %v4076 = vld [vmem:[%s2 + $0x180] sm:$0xff]
      %v4077 = vld [vmem:[%s2 + $0x188] sm:$0xff]
      %v4078 = vld [vmem:[%s2 + $0x190] sm:$0xff]
      %v4079 = vld [vmem:[%s2 + $0x198] sm:$0xff]
      %v4080 = vld [vmem:[%s2 + $0x1a0] sm:$0xff]
      %v4081 = vld [vmem:[%s2 + $0x1a8] sm:$0xff]
      %v4082 = vld [vmem:[%s2 + $0x1b0] sm:$0xff]
      %v4083 = vld [vmem:[%s2 + $0x1b8] sm:$0xff]
      %v4084 = vld [vmem:[%s2 + $0x1c0] sm:$0xff]
      %v4085 = vld [vmem:[%s2 + $0x1c8] sm:$0xff]
      %v4086 = vld [vmem:[%s2 + $0x1d0] sm:$0xff]
      %v4087 = vld [vmem:[%s2 + $0x1d8] sm:$0xff]
      %v4088 = vld [vmem:[%s2 + $0x1e0] sm:$0xff]
      %v4089 = vld [vmem:[%s2 + $0x1e8] sm:$0xff]
      %v4090 = vld [vmem:[%s2 + $0x1f0] sm:$0xff]
      %v4091 = vld [vmem:[%s2 + $0x1f8] sm:$0xff]
      %v4092 = vld [vmem:[%s2 + $0x200] sm:$0xff]
      %v4093 = vld [vmem:[%s2 + $0x208] sm:$0xff]
      %v4094 = vld [vmem:[%s2 + $0x210] sm:$0xff]
      %v4095 = vld [vmem:[%s2 + $0x218] sm:$0xff]
      %v4096 = vld [vmem:[%s2 + $0x220] sm:$0xff]
      %v4097 = vld [vmem:[%s2 + $0x228] sm:$0xff]
      %v4098 = vld [vmem:[%s2 + $0x230] sm:$0xff]
      %v4099 = vld [vmem:[%s2 + $0x238] sm:$0xff]
      %v4100 = vld [vmem:[%s2 + $0x240] sm:$0xff]
      %v4101 = vld [vmem:[%s2 + $0x248] sm:$0xff]
      %v4102 = vld [vmem:[%s2 + $0x250] sm:$0xff]
      %v4103 = vld [vmem:[%s2 + $0x258] sm:$0xff]
      %v4104 = vld [vmem:[%s2 + $0x260] sm:$0xff]
      %v4105 = vld [vmem:[%s2 + $0x268] sm:$0xff]
      %v4106 = vld [vmem:[%s2 + $0x270] sm:$0xff]
      %v4107 = vld [vmem:[%s2 + $0x278] sm:$0xff]
      %v4108 = vld [vmem:[%s2 + $0x280] sm:$0xff]
      %v4109 = vld [vmem:[%s2 + $0x288] sm:$0xff]
      %v4110 = vld [vmem:[%s2 + $0x290] sm:$0xff]
      %v4111 = vld [vmem:[%s2 + $0x298] sm:$0xff]
      %v4112 = vld [vmem:[%s2 + $0x2a0] sm:$0xff]
      %v4113 = vld [vmem:[%s2 + $0x2a8] sm:$0xff]
      %v4114 = vld [vmem:[%s2 + $0x2b0] sm:$0xff]
      %v4115 = vld [vmem:[%s2 + $0x2b8] sm:$0xff]
      %v4116 = vld [vmem:[%s2 + $0x2c0] sm:$0xff]
      %v4117 = vld [vmem:[%s2 + $0x2c8] sm:$0xff]
      %v4118 = vld [vmem:[%s2 + $0x2d0] sm:$0xff]
      %v4119 = vld [vmem:[%s2 + $0x2d8] sm:$0xff]
      %v4120 = vld [vmem:[%s2 + $0x2e0] sm:$0xff]
      %v4121 = vld [vmem:[%s2 + $0x2e8] sm:$0xff]
      %v4122 = vld [vmem:[%s2 + $0x2f0] sm:$0xff]
      %v4123 = vld [vmem:[%s2 + $0x2f8] sm:$0xff]
      %v4124 = vld [vmem:[%s2 + $0x300] sm:$0xff]
      %v4125 = vld [vmem:[%s2 + $0x308] sm:$0xff]
      %v4126 = vld [vmem:[%s2 + $0x310] sm:$0xff]
      %v4127 = vld [vmem:[%s2 + $0x318] sm:$0xff]
      %v4128 = vld [vmem:[%s2 + $0x320] sm:$0xff]
      %v4129 = vld [vmem:[%s2 + $0x328] sm:$0xff]
      %v4130 = vld [vmem:[%s2 + $0x330] sm:$0xff]
      %v4131 = vld [vmem:[%s2 + $0x338] sm:$0xff]
      %v4132 = vld [vmem:[%s2 + $0x340] sm:$0xff]
      %v4133 = vld [vmem:[%s2 + $0x348] sm:$0xff]
      %v4134 = vld [vmem:[%s2 + $0x350] sm:$0xff]
      %v4135 = vld [vmem:[%s2 + $0x358] sm:$0xff]
      %v4136 = vld [vmem:[%s2 + $0x360] sm:$0xff]
      %v4137 = vld [vmem:[%s2 + $0x368] sm:$0xff]
      %v4138 = vld [vmem:[%s2 + $0x370] sm:$0xff]
      %v4139 = vld [vmem:[%s2 + $0x378] sm:$0xff]
      %v4140 = vld [vmem:[%s2 + $0x380] sm:$0xff]
      %v4141 = vld [vmem:[%s2 + $0x388] sm:$0xff]
      %v4142 = vld [vmem:[%s2 + $0x390] sm:$0xff]
      %v4143 = vld [vmem:[%s2 + $0x398] sm:$0xff]
      %v4144 = vld [vmem:[%s2 + $0x3a0] sm:$0xff]
      %v4145 = vld [vmem:[%s2 + $0x3a8] sm:$0xff]
      %v4146 = vld [vmem:[%s2 + $0x3b0] sm:$0xff]
      %v4147 = vld [vmem:[%s2 + $0x3b8] sm:$0xff]
      %v4148 = vld [vmem:[%s2 + $0x3c0] sm:$0xff]
      %v4149 = vld [vmem:[%s2 + $0x3c8] sm:$0xff]
      %v4150 = vld [vmem:[%s2 + $0x3d0] sm:$0xff]
      %v4151 = vld [vmem:[%s2 + $0x3d8] sm:$0xff]
      %v4152 = vld [vmem:[%s2 + $0x3e0] sm:$0xff]
      %v4153 = vld [vmem:[%s2 + $0x3e8] sm:$0xff]
      %v4154 = vld [vmem:[%s2 + $0x3f0] sm:$0xff]
      %v4155 = vld [vmem:[%s2 + $0x3f8] sm:$0xff]
      %v4284 = vunpack.c.l.b16 %v4028
      %v4285 = vunpack.c.h.b16 %v4028
      %v4286 = vunpack.c.l.b16 %v4029
      %v4287 = vunpack.c.h.b16 %v4029
      %v4288 = vunpack.c.l.b16 %v4030
      %v4289 = vunpack.c.h.b16 %v4030
      %v4290 = vunpack.c.l.b16 %v4031
      %v4291 = vunpack.c.h.b16 %v4031
      %v4292 = vunpack.c.l.b16 %v4032
      %v4293 = vunpack.c.h.b16 %v4032
      %v4294 = vunpack.c.l.b16 %v4033
      %v4295 = vunpack.c.h.b16 %v4033
      %v4296 = vunpack.c.l.b16 %v4034
      %v4297 = vunpack.c.h.b16 %v4034
      %v4298 = vunpack.c.l.b16 %v4035
      %v4299 = vunpack.c.h.b16 %v4035
      %v4300 = vunpack.c.l.b16 %v4036
      %v4301 = vunpack.c.h.b16 %v4036
      %v4302 = vunpack.c.l.b16 %v4037
      %v4303 = vunpack.c.h.b16 %v4037
      %v4304 = vunpack.c.l.b16 %v4038
      %v4305 = vunpack.c.h.b16 %v4038
      %v4306 = vunpack.c.l.b16 %v4039
      %v4307 = vunpack.c.h.b16 %v4039
      %v4308 = vunpack.c.l.b16 %v4040
      %v4309 = vunpack.c.h.b16 %v4040
      %v4310 = vunpack.c.l.b16 %v4041
      %v4311 = vunpack.c.h.b16 %v4041
      %v4312 = vunpack.c.l.b16 %v4042
      %v4313 = vunpack.c.h.b16 %v4042
      %v4314 = vunpack.c.l.b16 %v4043
      %v4315 = vunpack.c.h.b16 %v4043
      %v4316 = vunpack.c.l.b16 %v4044
      %v4317 = vunpack.c.h.b16 %v4044
      %v4318 = vunpack.c.l.b16 %v4045
      %v4319 = vunpack.c.h.b16 %v4045
      %v4320 = vunpack.c.l.b16 %v4046
      %v4321 = vunpack.c.h.b16 %v4046
      %v4322 = vunpack.c.l.b16 %v4047
      %v4323 = vunpack.c.h.b16 %v4047
      %v4324 = vunpack.c.l.b16 %v4048
      %v4325 = vunpack.c.h.b16 %v4048
      %v4326 = vunpack.c.l.b16 %v4049
      %v4327 = vunpack.c.h.b16 %v4049
      %v4328 = vunpack.c.l.b16 %v4050
      %v4329 = vunpack.c.h.b16 %v4050
      %v4330 = vunpack.c.l.b16 %v4051
      %v4331 = vunpack.c.h.b16 %v4051
      %v4332 = vunpack.c.l.b16 %v4052
      %v4333 = vunpack.c.h.b16 %v4052
      %v4334 = vunpack.c.l.b16 %v4053
      %v4335 = vunpack.c.h.b16 %v4053
      %v4336 = vunpack.c.l.b16 %v4054
      %v4337 = vunpack.c.h.b16 %v4054
      %v4338 = vunpack.c.l.b16 %v4055
      %v4339 = vunpack.c.h.b16 %v4055
      %v4340 = vunpack.c.l.b16 %v4056
      %v4341 = vunpack.c.h.b16 %v4056
      %v4342 = vunpack.c.l.b16 %v4057
      %v4343 = vunpack.c.h.b16 %v4057
      %v4344 = vunpack.c.l.b16 %v4058
      %v4345 = vunpack.c.h.b16 %v4058
      %v4346 = vunpack.c.l.b16 %v4059
      %v4347 = vunpack.c.h.b16 %v4059
      %v4348 = vunpack.c.l.b16 %v4060
      %v4349 = vunpack.c.h.b16 %v4060
      %v4350 = vunpack.c.l.b16 %v4061
      %v4351 = vunpack.c.h.b16 %v4061
      %v4352 = vunpack.c.l.b16 %v4062
      %v4353 = vunpack.c.h.b16 %v4062
      %v4354 = vunpack.c.l.b16 %v4063
      %v4355 = vunpack.c.h.b16 %v4063
      %v4356 = vunpack.c.l.b16 %v4064
      %v4357 = vunpack.c.h.b16 %v4064
      %v4358 = vunpack.c.l.b16 %v4065
      %v4359 = vunpack.c.h.b16 %v4065
      %v4360 = vunpack.c.l.b16 %v4066
      %v4361 = vunpack.c.h.b16 %v4066
      %v4362 = vunpack.c.l.b16 %v4067
      %v4363 = vunpack.c.h.b16 %v4067
      %v4364 = vunpack.c.l.b16 %v4068
      %v4365 = vunpack.c.h.b16 %v4068
      %v4366 = vunpack.c.l.b16 %v4069
      %v4367 = vunpack.c.h.b16 %v4069
      %v4368 = vunpack.c.l.b16 %v4070
      %v4369 = vunpack.c.h.b16 %v4070
      %v4370 = vunpack.c.l.b16 %v4071
      %v4371 = vunpack.c.h.b16 %v4071
      %v4372 = vunpack.c.l.b16 %v4072
      %v4373 = vunpack.c.h.b16 %v4072
      %v4374 = vunpack.c.l.b16 %v4073
      %v4375 = vunpack.c.h.b16 %v4073
      %v4376 = vunpack.c.l.b16 %v4074
      %v4377 = vunpack.c.h.b16 %v4074
      %v4378 = vunpack.c.l.b16 %v4075
      %v4379 = vunpack.c.h.b16 %v4075
      %v4380 = vunpack.c.l.b16 %v4076
      %v4381 = vunpack.c.h.b16 %v4076
      %v4382 = vunpack.c.l.b16 %v4077
      %v4383 = vunpack.c.h.b16 %v4077
      %v4384 = vunpack.c.l.b16 %v4078
      %v4385 = vunpack.c.h.b16 %v4078
      %v4386 = vunpack.c.l.b16 %v4079
      %v4387 = vunpack.c.h.b16 %v4079
      %v4388 = vunpack.c.l.b16 %v4080
      %v4389 = vunpack.c.h.b16 %v4080
      %v4390 = vunpack.c.l.b16 %v4081
      %v4391 = vunpack.c.h.b16 %v4081
      %v4392 = vunpack.c.l.b16 %v4082
      %v4393 = vunpack.c.h.b16 %v4082
      %v4394 = vunpack.c.l.b16 %v4083
      %v4395 = vunpack.c.h.b16 %v4083
      %v4396 = vunpack.c.l.b16 %v4084
      %v4397 = vunpack.c.h.b16 %v4084
      %v4398 = vunpack.c.l.b16 %v4085
      %v4399 = vunpack.c.h.b16 %v4085
      %v4400 = vunpack.c.l.b16 %v4086
      %v4401 = vunpack.c.h.b16 %v4086
      %v4402 = vunpack.c.l.b16 %v4087
      %v4403 = vunpack.c.h.b16 %v4087
      %v4404 = vunpack.c.l.b16 %v4088
      %v4405 = vunpack.c.h.b16 %v4088
      %v4406 = vunpack.c.l.b16 %v4089
      %v4407 = vunpack.c.h.b16 %v4089
      %v4408 = vunpack.c.l.b16 %v4090
      %v4409 = vunpack.c.h.b16 %v4090
      %v4410 = vunpack.c.l.b16 %v4091
      %v4411 = vunpack.c.h.b16 %v4091
      %v4412 = vunpack.c.l.b16 %v4092
      %v4413 = vunpack.c.h.b16 %v4092
      %v4414 = vunpack.c.l.b16 %v4093
      %v4415 = vunpack.c.h.b16 %v4093
      %v4416 = vunpack.c.l.b16 %v4094
      %v4417 = vunpack.c.h.b16 %v4094
      %v4418 = vunpack.c.l.b16 %v4095
      %v4419 = vunpack.c.h.b16 %v4095
      %v4420 = vunpack.c.l.b16 %v4096
      %v4421 = vunpack.c.h.b16 %v4096
      %v4422 = vunpack.c.l.b16 %v4097
      %v4423 = vunpack.c.h.b16 %v4097
      %v4424 = vunpack.c.l.b16 %v4098
      %v4425 = vunpack.c.h.b16 %v4098
      %v4426 = vunpack.c.l.b16 %v4099
      %v4427 = vunpack.c.h.b16 %v4099
      %v4428 = vunpack.c.l.b16 %v4100
      %v4429 = vunpack.c.h.b16 %v4100
      %v4430 = vunpack.c.l.b16 %v4101
      %v4431 = vunpack.c.h.b16 %v4101
      %v4432 = vunpack.c.l.b16 %v4102
      %v4433 = vunpack.c.h.b16 %v4102
      %v4434 = vunpack.c.l.b16 %v4103
      %v4435 = vunpack.c.h.b16 %v4103
      %v4436 = vunpack.c.l.b16 %v4104
      %v4437 = vunpack.c.h.b16 %v4104
      %v4438 = vunpack.c.l.b16 %v4105
      %v4439 = vunpack.c.h.b16 %v4105
      %v4440 = vunpack.c.l.b16 %v4106
      %v4441 = vunpack.c.h.b16 %v4106
      %v4442 = vunpack.c.l.b16 %v4107
      %v4443 = vunpack.c.h.b16 %v4107
      %v4444 = vunpack.c.l.b16 %v4108
      %v4445 = vunpack.c.h.b16 %v4108
      %v4446 = vunpack.c.l.b16 %v4109
      %v4447 = vunpack.c.h.b16 %v4109
      %v4448 = vunpack.c.l.b16 %v4110
      %v4449 = vunpack.c.h.b16 %v4110
      %v4450 = vunpack.c.l.b16 %v4111
      %v4451 = vunpack.c.h.b16 %v4111
      %v4452 = vunpack.c.l.b16 %v4112
      %v4453 = vunpack.c.h.b16 %v4112
      %v4454 = vunpack.c.l.b16 %v4113
      %v4455 = vunpack.c.h.b16 %v4113
      %v4456 = vunpack.c.l.b16 %v4114
      %v4457 = vunpack.c.h.b16 %v4114
      %v4458 = vunpack.c.l.b16 %v4115
      %v4459 = vunpack.c.h.b16 %v4115
      %v4460 = vunpack.c.l.b16 %v4116
      %v4461 = vunpack.c.h.b16 %v4116
      %v4462 = vunpack.c.l.b16 %v4117
      %v4463 = vunpack.c.h.b16 %v4117
      %v4464 = vunpack.c.l.b16 %v4118
      %v4465 = vunpack.c.h.b16 %v4118
      %v4466 = vunpack.c.l.b16 %v4119
      %v4467 = vunpack.c.h.b16 %v4119
      %v4468 = vunpack.c.l.b16 %v4120
      %v4469 = vunpack.c.h.b16 %v4120
      %v4470 = vunpack.c.l.b16 %v4121
      %v4471 = vunpack.c.h.b16 %v4121
      %v4472 = vunpack.c.l.b16 %v4122
      %v4473 = vunpack.c.h.b16 %v4122
      %v4474 = vunpack.c.l.b16 %v4123
      %v4475 = vunpack.c.h.b16 %v4123
      %v4476 = vunpack.c.l.b16 %v4124
      %v4477 = vunpack.c.h.b16 %v4124
      %v4478 = vunpack.c.l.b16 %v4125
      %v4479 = vunpack.c.h.b16 %v4125
      %v4480 = vunpack.c.l.b16 %v4126
      %v4481 = vunpack.c.h.b16 %v4126
      %v4482 = vunpack.c.l.b16 %v4127
      %v4483 = vunpack.c.h.b16 %v4127
      %v4484 = vunpack.c.l.b16 %v4128
      %v4485 = vunpack.c.h.b16 %v4128
      %v4486 = vunpack.c.l.b16 %v4129
      %v4487 = vunpack.c.h.b16 %v4129
      %v4488 = vunpack.c.l.b16 %v4130
      %v4489 = vunpack.c.h.b16 %v4130
      %v4490 = vunpack.c.l.b16 %v4131
      %v4491 = vunpack.c.h.b16 %v4131
      %v4492 = vunpack.c.l.b16 %v4132
      %v4493 = vunpack.c.h.b16 %v4132
      %v4494 = vunpack.c.l.b16 %v4133
      %v4495 = vunpack.c.h.b16 %v4133
      %v4496 = vunpack.c.l.b16 %v4134
      %v4497 = vunpack.c.h.b16 %v4134
      %v4498 = vunpack.c.l.b16 %v4135
      %v4499 = vunpack.c.h.b16 %v4135
      %v4500 = vunpack.c.l.b16 %v4136
      %v4501 = vunpack.c.h.b16 %v4136
      %v4502 = vunpack.c.l.b16 %v4137
      %v4503 = vunpack.c.h.b16 %v4137
      %v4504 = vunpack.c.l.b16 %v4138
      %v4505 = vunpack.c.h.b16 %v4138
      %v4506 = vunpack.c.l.b16 %v4139
      %v4507 = vunpack.c.h.b16 %v4139
      %v4508 = vunpack.c.l.b16 %v4140
      %v4509 = vunpack.c.h.b16 %v4140
      %v4510 = vunpack.c.l.b16 %v4141
      %v4511 = vunpack.c.h.b16 %v4141
      %v4512 = vunpack.c.l.b16 %v4142
      %v4513 = vunpack.c.h.b16 %v4142
      %v4514 = vunpack.c.l.b16 %v4143
      %v4515 = vunpack.c.h.b16 %v4143
      %v4516 = vunpack.c.l.b16 %v4144
      %v4517 = vunpack.c.h.b16 %v4144
      %v4518 = vunpack.c.l.b16 %v4145
      %v4519 = vunpack.c.h.b16 %v4145
      %v4520 = vunpack.c.l.b16 %v4146
      %v4521 = vunpack.c.h.b16 %v4146
      %v4522 = vunpack.c.l.b16 %v4147
      %v4523 = vunpack.c.h.b16 %v4147
      %v4524 = vunpack.c.l.b16 %v4148
      %v4525 = vunpack.c.h.b16 %v4148
      %v4526 = vunpack.c.l.b16 %v4149
      %v4527 = vunpack.c.h.b16 %v4149
      %v4528 = vunpack.c.l.b16 %v4150
      %v4529 = vunpack.c.h.b16 %v4150
      %v4530 = vunpack.c.l.b16 %v4151
      %v4531 = vunpack.c.h.b16 %v4151
      %v4532 = vunpack.c.l.b16 %v4152
      %v4533 = vunpack.c.h.b16 %v4152
      %v4534 = vunpack.c.l.b16 %v4153
      %v4535 = vunpack.c.h.b16 %v4153
      %v4536 = vunpack.c.l.b16 %v4154
      %v4537 = vunpack.c.h.b16 %v4154
      %v4538 = vunpack.c.l.b16 %v4155
      %v4539 = vunpack.c.h.b16 %v4155
      %v4540 = vpack.c.b16 %v4292, %v4284
      %v4541 = vpack.c.b16 %v4293, %v4285
      %v4542 = vpack.c.b16 %v4294, %v4286
      %v4543 = vpack.c.b16 %v4295, %v4287
      %v4544 = vpack.c.b16 %v4296, %v4288
      %v4545 = vpack.c.b16 %v4297, %v4289
      %v4546 = vpack.c.b16 %v4298, %v4290
      %v4547 = vpack.c.b16 %v4299, %v4291
      %v4548 = vpack.c.b16 %v4308, %v4300
      %v4549 = vpack.c.b16 %v4309, %v4301
      %v4550 = vpack.c.b16 %v4310, %v4302
      %v4551 = vpack.c.b16 %v4311, %v4303
      %v4552 = vpack.c.b16 %v4312, %v4304
      %v4553 = vpack.c.b16 %v4313, %v4305
      %v4554 = vpack.c.b16 %v4314, %v4306
      %v4555 = vpack.c.b16 %v4315, %v4307
      %v4556 = vpack.c.b16 %v4324, %v4316
      %v4557 = vpack.c.b16 %v4325, %v4317
      %v4558 = vpack.c.b16 %v4326, %v4318
      %v4559 = vpack.c.b16 %v4327, %v4319
      %v4560 = vpack.c.b16 %v4328, %v4320
      %v4561 = vpack.c.b16 %v4329, %v4321
      %v4562 = vpack.c.b16 %v4330, %v4322
      %v4563 = vpack.c.b16 %v4331, %v4323
      %v4564 = vpack.c.b16 %v4340, %v4332
      %v4565 = vpack.c.b16 %v4341, %v4333
      %v4566 = vpack.c.b16 %v4342, %v4334
      %v4567 = vpack.c.b16 %v4343, %v4335
      %v4568 = vpack.c.b16 %v4344, %v4336
      %v4569 = vpack.c.b16 %v4345, %v4337
      %v4570 = vpack.c.b16 %v4346, %v4338
      %v4571 = vpack.c.b16 %v4347, %v4339
      %v4572 = vpack.c.b16 %v4356, %v4348
      %v4573 = vpack.c.b16 %v4357, %v4349
      %v4574 = vpack.c.b16 %v4358, %v4350
      %v4575 = vpack.c.b16 %v4359, %v4351
      %v4576 = vpack.c.b16 %v4360, %v4352
      %v4577 = vpack.c.b16 %v4361, %v4353
      %v4578 = vpack.c.b16 %v4362, %v4354
      %v4579 = vpack.c.b16 %v4363, %v4355
      %v4580 = vpack.c.b16 %v4372, %v4364
      %v4581 = vpack.c.b16 %v4373, %v4365
      %v4582 = vpack.c.b16 %v4374, %v4366
      %v4583 = vpack.c.b16 %v4375, %v4367
      %v4584 = vpack.c.b16 %v4376, %v4368
      %v4585 = vpack.c.b16 %v4377, %v4369
      %v4586 = vpack.c.b16 %v4378, %v4370
      %v4587 = vpack.c.b16 %v4379, %v4371
      %v4588 = vpack.c.b16 %v4388, %v4380
      %v4589 = vpack.c.b16 %v4389, %v4381
      %v4590 = vpack.c.b16 %v4390, %v4382
      %v4591 = vpack.c.b16 %v4391, %v4383
      %v4592 = vpack.c.b16 %v4392, %v4384
      %v4593 = vpack.c.b16 %v4393, %v4385
      %v4594 = vpack.c.b16 %v4394, %v4386
      %v4595 = vpack.c.b16 %v4395, %v4387
      %v4596 = vpack.c.b16 %v4404, %v4396
      %v4597 = vpack.c.b16 %v4405, %v4397
      %v4598 = vpack.c.b16 %v4406, %v4398
      %v4599 = vpack.c.b16 %v4407, %v4399
      %v4600 = vpack.c.b16 %v4408, %v4400
      %v4601 = vpack.c.b16 %v4409, %v4401
      %v4602 = vpack.c.b16 %v4410, %v4402
      %v4603 = vpack.c.b16 %v4411, %v4403
      %v4604 = vpack.c.b16 %v4420, %v4412
      %v4605 = vpack.c.b16 %v4421, %v4413
      %v4606 = vpack.c.b16 %v4422, %v4414
      %v4607 = vpack.c.b16 %v4423, %v4415
      %v4608 = vpack.c.b16 %v4424, %v4416
      %v4609 = vpack.c.b16 %v4425, %v4417
      %v4610 = vpack.c.b16 %v4426, %v4418
      %v4611 = vpack.c.b16 %v4427, %v4419
      %v4612 = vpack.c.b16 %v4436, %v4428
      %v4613 = vpack.c.b16 %v4437, %v4429
      %v4614 = vpack.c.b16 %v4438, %v4430
      %v4615 = vpack.c.b16 %v4439, %v4431
      %v4616 = vpack.c.b16 %v4440, %v4432
      %v4617 = vpack.c.b16 %v4441, %v4433
      %v4618 = vpack.c.b16 %v4442, %v4434
      %v4619 = vpack.c.b16 %v4443, %v4435
      %v4620 = vpack.c.b16 %v4452, %v4444
      %v4621 = vpack.c.b16 %v4453, %v4445
      %v4622 = vpack.c.b16 %v4454, %v4446
      %v4623 = vpack.c.b16 %v4455, %v4447
      %v4624 = vpack.c.b16 %v4456, %v4448
      %v4625 = vpack.c.b16 %v4457, %v4449
      %v4626 = vpack.c.b16 %v4458, %v4450
      %v4627 = vpack.c.b16 %v4459, %v4451
      %v4628 = vpack.c.b16 %v4468, %v4460
      %v4629 = vpack.c.b16 %v4469, %v4461
      %v4630 = vpack.c.b16 %v4470, %v4462
      %v4631 = vpack.c.b16 %v4471, %v4463
      %v4632 = vpack.c.b16 %v4472, %v4464
      %v4633 = vpack.c.b16 %v4473, %v4465
      %v4634 = vpack.c.b16 %v4474, %v4466
      %v4635 = vpack.c.b16 %v4475, %v4467
      %v4636 = vpack.c.b16 %v4484, %v4476
      %v4637 = vpack.c.b16 %v4485, %v4477
      %v4638 = vpack.c.b16 %v4486, %v4478
      %v4639 = vpack.c.b16 %v4487, %v4479
      %v4640 = vpack.c.b16 %v4488, %v4480
      %v4641 = vpack.c.b16 %v4489, %v4481
      %v4642 = vpack.c.b16 %v4490, %v4482
      %v4643 = vpack.c.b16 %v4491, %v4483
      %v4644 = vpack.c.b16 %v4500, %v4492
      %v4645 = vpack.c.b16 %v4501, %v4493
      %v4646 = vpack.c.b16 %v4502, %v4494
      %v4647 = vpack.c.b16 %v4503, %v4495
      %v4648 = vpack.c.b16 %v4504, %v4496
      %v4649 = vpack.c.b16 %v4505, %v4497
      %v4650 = vpack.c.b16 %v4506, %v4498
      %v4651 = vpack.c.b16 %v4507, %v4499
      %v4652 = vpack.c.b16 %v4516, %v4508
      %v4653 = vpack.c.b16 %v4517, %v4509
      %v4654 = vpack.c.b16 %v4518, %v4510
      %v4655 = vpack.c.b16 %v4519, %v4511
      %v4656 = vpack.c.b16 %v4520, %v4512
      %v4657 = vpack.c.b16 %v4521, %v4513
      %v4658 = vpack.c.b16 %v4522, %v4514
      %v4659 = vpack.c.b16 %v4523, %v4515
      %v4660 = vpack.c.b16 %v4532, %v4524
      %v4661 = vpack.c.b16 %v4533, %v4525
      %v4662 = vpack.c.b16 %v4534, %v4526
      %v4663 = vpack.c.b16 %v4535, %v4527
      %v4664 = vpack.c.b16 %v4536, %v4528
      %v4665 = vpack.c.b16 %v4537, %v4529
      %v4666 = vpack.c.b16 %v4538, %v4530
      %v4667 = vpack.c.b16 %v4539, %v4531
      %4796 = vmatprep.subr.bf16.mxu0 %v4597
      %4797 = vmatpush1.bf16.msra.mxu0 %v4596
      %4798 = vmatprep.subr.bf16.mxu0 %v4589
      %4799 = vmatpush1.bf16.msra.mxu0 %v4588
      %4800 = vmatprep.subr.bf16.mxu0 %v4581
      %4801 = vmatpush1.bf16.msra.mxu0 %v4580
      %4802 = vmatprep.subr.bf16.mxu0 %v4573
      %4803 = vmatpush1.bf16.msra.mxu0 %v4572
      %4804 = vmatprep.subr.bf16.mxu0 %v4565
      %4805 = vmatpush1.bf16.msra.mxu0 %v4564
      %4806 = vmatprep.subr.bf16.mxu0 %v4557
      %4807 = vmatpush1.bf16.msra.mxu0 %v4556
      %4808 = vmatprep.subr.bf16.mxu0 %v4549
      %4809 = vmatpush1.bf16.msra.mxu0 %v4548
      %4810 = vmatprep.subr.bf16.mxu0 %v4541
      %4811 = vmatpush1.bf16.msra.mxu0 %v4540
      %4812 = vmatprep.subr.bf16.mxu0 %v4661
      %4813 = vmatpush2.bf16.msra.mxu0 %v4660
      %4814 = vmatprep.subr.bf16.mxu0 %v4653
      %4815 = vmatpush2.bf16.msra.mxu0 %v4652
      %4816 = vmatprep.subr.bf16.mxu0 %v4645
      %4817 = vmatpush2.bf16.msra.mxu0 %v4644
      %4818 = vmatprep.subr.bf16.mxu0 %v4637
      %4819 = vmatpush2.bf16.msra.mxu0 %v4636
      %4820 = vmatprep.subr.bf16.mxu0 %v4629
      %4821 = vmatpush2.bf16.msra.mxu0 %v4628
      %4822 = vmatprep.subr.bf16.mxu0 %v4621
      %4823 = vmatpush2.bf16.msra.mxu0 %v4620
      %4824 = vmatprep.subr.bf16.mxu0 %v4613
      %4825 = vmatpush2.bf16.msra.mxu0 %v4612
      %4826 = vmatprep.subr.bf16.mxu0 %v4605
      %4827 = vmatpush2.bf16.msra.mxu0 %v4604
      %4828 = vmatprep.mubr.bf16.mxu0 %v4027
      %4829 = vmatmul.mubr.bf16.gmra.mxu0 %v4026
      %v4830 = vpop.f32.mrf.mxu0
      %v4831 = vadd.f32 0.0, %v4830
      %v4832 = vpop.f32.mrf.mxu0
      %v4833 = vadd.f32 0.0, %v4832
      %v4834 = vpop.f32.mrf.mxu0
      %v4835 = vpop.f32.mrf.mxu0
      %4836 = vdwg.mxu0
      %4837 = vmatprep.subr.bf16.mxu0 %v4599
      %4838 = vmatpush1.bf16.msra.mxu0 %v4598
      %4839 = vmatprep.subr.bf16.mxu0 %v4591
      %4840 = vmatpush1.bf16.msra.mxu0 %v4590
      %4841 = vmatprep.subr.bf16.mxu0 %v4583
      %4842 = vmatpush1.bf16.msra.mxu0 %v4582
      %4843 = vmatprep.subr.bf16.mxu0 %v4575
      %4844 = vmatpush1.bf16.msra.mxu0 %v4574
      %4845 = vmatprep.subr.bf16.mxu0 %v4567
      %4846 = vmatpush1.bf16.msra.mxu0 %v4566
      %4847 = vmatprep.subr.bf16.mxu0 %v4559
      %4848 = vmatpush1.bf16.msra.mxu0 %v4558
      %4849 = vmatprep.subr.bf16.mxu0 %v4551
      %4850 = vmatpush1.bf16.msra.mxu0 %v4550
      %4851 = vmatprep.subr.bf16.mxu0 %v4543
      %4852 = vmatpush1.bf16.msra.mxu0 %v4542
      %4853 = vmatprep.subr.bf16.mxu0 %v4663
      %4854 = vmatpush2.bf16.msra.mxu0 %v4662
      %4855 = vmatprep.subr.bf16.mxu0 %v4655
      %4856 = vmatpush2.bf16.msra.mxu0 %v4654
      %4857 = vmatprep.subr.bf16.mxu0 %v4647
      %4858 = vmatpush2.bf16.msra.mxu0 %v4646
      %4859 = vmatprep.subr.bf16.mxu0 %v4639
      %4860 = vmatpush2.bf16.msra.mxu0 %v4638
      %4861 = vmatprep.subr.bf16.mxu0 %v4631
      %4862 = vmatpush2.bf16.msra.mxu0 %v4630
      %4863 = vmatprep.subr.bf16.mxu0 %v4623
      %4864 = vmatpush2.bf16.msra.mxu0 %v4622
      %4865 = vmatprep.subr.bf16.mxu0 %v4615
      %4866 = vmatpush2.bf16.msra.mxu0 %v4614
      %4867 = vmatprep.subr.bf16.mxu0 %v4607
      %4868 = vmatpush2.bf16.msra.mxu0 %v4606
      %4869 = vmatprep.mubr.bf16.mxu0 %v4027
      %4870 = vmatmul.mubr.bf16.gmra.mxu0 %v4026
      %v4871 = vpop.f32.mrf.mxu0
      %v4872 = vadd.f32 0.0, %v4871
      %v4873 = vpop.f32.mrf.mxu0
      %v4874 = vadd.f32 0.0, %v4873
      %v4875 = vpop.f32.mrf.mxu0
      %v4876 = vpop.f32.mrf.mxu0
      %4877 = vdwg.mxu0
      %4878 = vmatprep.subr.bf16.mxu0 %v4601
      %4879 = vmatpush1.bf16.msra.mxu0 %v4600
      %4880 = vmatprep.subr.bf16.mxu0 %v4593
      %4881 = vmatpush1.bf16.msra.mxu0 %v4592
      %4882 = vmatprep.subr.bf16.mxu0 %v4585
      %4883 = vmatpush1.bf16.msra.mxu0 %v4584
      %4884 = vmatprep.subr.bf16.mxu0 %v4577
      %4885 = vmatpush1.bf16.msra.mxu0 %v4576
      %4886 = vmatprep.subr.bf16.mxu0 %v4569
      %4887 = vmatpush1.bf16.msra.mxu0 %v4568
      %4888 = vmatprep.subr.bf16.mxu0 %v4561
      %4889 = vmatpush1.bf16.msra.mxu0 %v4560
      %4890 = vmatprep.subr.bf16.mxu0 %v4553
      %4891 = vmatpush1.bf16.msra.mxu0 %v4552
      %4892 = vmatprep.subr.bf16.mxu0 %v4545
      %4893 = vmatpush1.bf16.msra.mxu0 %v4544
      %4894 = vmatprep.subr.bf16.mxu0 %v4665
      %4895 = vmatpush2.bf16.msra.mxu0 %v4664
      %4896 = vmatprep.subr.bf16.mxu0 %v4657
      %4897 = vmatpush2.bf16.msra.mxu0 %v4656
      %4898 = vmatprep.subr.bf16.mxu0 %v4649
      %4899 = vmatpush2.bf16.msra.mxu0 %v4648
      %4900 = vmatprep.subr.bf16.mxu0 %v4641
      %4901 = vmatpush2.bf16.msra.mxu0 %v4640
      %4902 = vmatprep.subr.bf16.mxu0 %v4633
      %4903 = vmatpush2.bf16.msra.mxu0 %v4632
      %4904 = vmatprep.subr.bf16.mxu0 %v4625
      %4905 = vmatpush2.bf16.msra.mxu0 %v4624
      %4906 = vmatprep.subr.bf16.mxu0 %v4617
      %4907 = vmatpush2.bf16.msra.mxu0 %v4616
      %4908 = vmatprep.subr.bf16.mxu0 %v4609
      %4909 = vmatpush2.bf16.msra.mxu0 %v4608
      %4910 = vmatprep.mubr.bf16.mxu0 %v4027
      %4911 = vmatmul.mubr.bf16.gmra.mxu0 %v4026
      %v4912 = vpop.f32.mrf.mxu0
      %v4913 = vadd.f32 0.0, %v4912
      %v4914 = vpop.f32.mrf.mxu0
      %v4915 = vadd.f32 0.0, %v4914
      %v4916 = vpop.f32.mrf.mxu0
      %v4917 = vpop.f32.mrf.mxu0
      %4918 = vdwg.mxu0
      %4919 = vmatprep.subr.bf16.mxu0 %v4603
      %4920 = vmatpush1.bf16.msra.mxu0 %v4602
      %4921 = vmatprep.subr.bf16.mxu0 %v4595
      %4922 = vmatpush1.bf16.msra.mxu0 %v4594
      %4923 = vmatprep.subr.bf16.mxu0 %v4587
      %4924 = vmatpush1.bf16.msra.mxu0 %v4586
      %4925 = vmatprep.subr.bf16.mxu0 %v4579
      %4926 = vmatpush1.bf16.msra.mxu0 %v4578
      %4927 = vmatprep.subr.bf16.mxu0 %v4571
      %4928 = vmatpush1.bf16.msra.mxu0 %v4570
      %4929 = vmatprep.subr.bf16.mxu0 %v4563
      %4930 = vmatpush1.bf16.msra.mxu0 %v4562
      %4931 = vmatprep.subr.bf16.mxu0 %v4555
      %4932 = vmatpush1.bf16.msra.mxu0 %v4554
      %4933 = vmatprep.subr.bf16.mxu0 %v4547
      %4934 = vmatpush1.bf16.msra.mxu0 %v4546
      %4935 = vmatprep.subr.bf16.mxu0 %v4667
      %4936 = vmatpush2.bf16.msra.mxu0 %v4666
      %4937 = vmatprep.subr.bf16.mxu0 %v4659
      %4938 = vmatpush2.bf16.msra.mxu0 %v4658
      %4939 = vmatprep.subr.bf16.mxu0 %v4651
      %4940 = vmatpush2.bf16.msra.mxu0 %v4650
      %4941 = vmatprep.subr.bf16.mxu0 %v4643
      %4942 = vmatpush2.bf16.msra.mxu0 %v4642
      %4943 = vmatprep.subr.bf16.mxu0 %v4635
      %4944 = vmatpush2.bf16.msra.mxu0 %v4634
      %4945 = vmatprep.subr.bf16.mxu0 %v4627
      %4946 = vmatpush2.bf16.msra.mxu0 %v4626
      %4947 = vmatprep.subr.bf16.mxu0 %v4619
      %4948 = vmatpush2.bf16.msra.mxu0 %v4618
      %4949 = vmatprep.subr.bf16.mxu0 %v4611
      %4950 = vmatpush2.bf16.msra.mxu0 %v4610
      %4951 = vmatprep.mubr.bf16.mxu0 %v4027
      %4952 = vmatmul.mubr.bf16.gmra.mxu0 %v4026
      %v4953 = vpop.f32.mrf.mxu0
      %v4954 = vadd.f32 0.0, %v4953
      %v4955 = vpop.f32.mrf.mxu0
      %v4956 = vadd.f32 0.0, %v4955
      %v4957 = vpop.f32.mrf.mxu0
      %v4958 = vpop.f32.mrf.mxu0
      %4959 = vdwg.mxu0
      %v4968 = vcombine.low %v4831, %v4833
      %v4969 = vcombine.low %v4872, %v4874
      %v4971 = vunpack.c.l.s4 1983009808
      %v4972 = vunpack.c.0.s8 %v4971
      %v4973 = vlaneseq
      %v4974 = vshrl.u32 %v4973, 7
      %v4975 = vsub.s32 %v4972, %v4974
      %v4976 = vrot.slane %v4968, %v4975
      %v4978 = vunpack.c.l.s4 1983009808
      %v4979 = vunpack.c.0.s8 %v4978
      %v4980 = vlaneseq
      %v4981 = vshrl.u32 %v4980, 7
      %v4982 = vsub.s32 %v4979, %v4981
      %v4983 = vrot.slane %v4969, %v4982
      %v4984 = vcombine.low %v4976, %v4983
      %v4985 = vcombine.low %v4913, %v4915
      %v4986 = vcombine.low %v4954, %v4956
      %v4988 = vunpack.c.l.s4 1983009808
      %v4989 = vunpack.c.0.s8 %v4988
      %v4990 = vlaneseq
      %v4991 = vshrl.u32 %v4990, 7
      %v4992 = vsub.s32 %v4989, %v4991
      %v4993 = vrot.slane %v4985, %v4992
      %v4995 = vunpack.c.l.s4 1983009808
      %v4996 = vunpack.c.0.s8 %v4995
      %v4997 = vlaneseq
      %v4998 = vshrl.u32 %v4997, 7
      %v4999 = vsub.s32 %v4996, %v4998
      %v5000 = vrot.slane %v4986, %v4999
      %v5001 = vcombine.low %v4993, %v5000
      %v5004 = vadd.f32 %v4013, %v4984
      %v5005 = vadd.f32 %v4014, %v5001
      %v5006 = vxor.u32 %v5004, 2147483648
      %v5007 = vmul.f32 %v5006, 1.442695
      %v5008 = vpow.pop %v5007
      %v5009 = vadd.f32 %v5008, 1.0
      %v5010 = vrcp.pop %v5009
      %v5011 = vmul.f32 1.0, %v5010
      %v5013 = vrot.slane %v5004, 4
      %v5015 = vxor.u32 %v5013, 2147483648
      %v5016 = vmul.f32 %v5015, 1.442695
      %v5017 = vpow.pop %v5016
      %v5018 = vadd.f32 %v5017, 1.0
      %v5019 = vrcp.pop %v5018
      %v5020 = vmul.f32 1.0, %v5019
      %v5021 = vtanh.pop %v5005
      %v5023 = vrot.slane %v5005, 4
      %v5025 = vxor.u32 %v5023, 2147483648
      %v5026 = vmul.f32 %v5025, 1.442695
      %v5027 = vpow.pop %v5026
      %v5028 = vadd.f32 %v5027, 1.0
      %v5029 = vrcp.pop %v5028
      %v5030 = vmul.f32 1.0, %v5029
      %v5031 = vmul.f32 %v5020, %v4007
      %v5032 = vmul.f32 %v5011, %v5021
      %v5033 = vadd.f32 %v5031, %v5032
      %v5034 = vtanh.pop %v5033
      %v5035 = vmul.f32 %v5030, %v5034
      %s5036 = ssub.s32 1, %s4001
      %s5037 = smul.u32 %s5036, 8
      %s5038 = smul.addr %s5037, 2
      %s5039 = scalar_lea.vmem [#allocation3], %s5038
      %v5040 = vld [vmem:[%s5039] sm:$0xff]
      %v5041 = vld [vmem:[%s5039 + $0x8] sm:$0xff]
      %v5044 = vunpack.c.l.s4 1983009808
      %v5045 = vunpack.c.0.s8 %v5044
      %v5046 = vlaneseq
      %v5047 = vshrl.u32 %v5046, 7
      %v5048 = vsub.s32 %v5045, %v5047
      %v5049 = vrot.slane %v4008, %v5048
      %v5050 = vcombine.high %v5049, %v5049
      %v5053 = vpack.c.bf16 %v5049, %v5049
      %v5054 = vpack.c.bf16 %v5050, %v5050
      %v5055 = vld [vmem:[#allocation6] sm:$0xff]
      %v5056 = vld [vmem:[#allocation6 + $0x8] sm:$0xff]
      %v5057 = vld [vmem:[#allocation6 + $0x10] sm:$0xff]
      %v5058 = vld [vmem:[#allocation6 + $0x18] sm:$0xff]
      %v5059 = vld [vmem:[#allocation6 + $0x20] sm:$0xff]
      %v5060 = vld [vmem:[#allocation6 + $0x28] sm:$0xff]
      %v5061 = vld [vmem:[#allocation6 + $0x30] sm:$0xff]
      %v5062 = vld [vmem:[#allocation6 + $0x38] sm:$0xff]
      %v5063 = vld [vmem:[#allocation6 + $0x40] sm:$0xff]
      %v5064 = vld [vmem:[#allocation6 + $0x48] sm:$0xff]
      %v5065 = vld [vmem:[#allocation6 + $0x50] sm:$0xff]
      %v5066 = vld [vmem:[#allocation6 + $0x58] sm:$0xff]
      %v5067 = vld [vmem:[#allocation6 + $0x60] sm:$0xff]
      %v5068 = vld [vmem:[#allocation6 + $0x68] sm:$0xff]
      %v5069 = vld [vmem:[#allocation6 + $0x70] sm:$0xff]
      %v5070 = vld [vmem:[#allocation6 + $0x78] sm:$0xff]
      %v5071 = vld [vmem:[#allocation6 + $0x80] sm:$0xff]
      %v5072 = vld [vmem:[#allocation6 + $0x88] sm:$0xff]
      %v5073 = vld [vmem:[#allocation6 + $0x90] sm:$0xff]
      %v5074 = vld [vmem:[#allocation6 + $0x98] sm:$0xff]
      %v5075 = vld [vmem:[#allocation6 + $0xa0] sm:$0xff]
      %v5076 = vld [vmem:[#allocation6 + $0xa8] sm:$0xff]
      %v5077 = vld [vmem:[#allocation6 + $0xb0] sm:$0xff]
      %v5078 = vld [vmem:[#allocation6 + $0xb8] sm:$0xff]
      %v5079 = vld [vmem:[#allocation6 + $0xc0] sm:$0xff]
      %v5080 = vld [vmem:[#allocation6 + $0xc8] sm:$0xff]
      %v5081 = vld [vmem:[#allocation6 + $0xd0] sm:$0xff]
      %v5082 = vld [vmem:[#allocation6 + $0xd8] sm:$0xff]
      %v5083 = vld [vmem:[#allocation6 + $0xe0] sm:$0xff]
      %v5084 = vld [vmem:[#allocation6 + $0xe8] sm:$0xff]
      %v5085 = vld [vmem:[#allocation6 + $0xf0] sm:$0xff]
      %v5086 = vld [vmem:[#allocation6 + $0xf8] sm:$0xff]
      %v5087 = vld [vmem:[#allocation6 + $0x100] sm:$0xff]
      %v5088 = vld [vmem:[#allocation6 + $0x108] sm:$0xff]
      %v5089 = vld [vmem:[#allocation6 + $0x110] sm:$0xff]
      %v5090 = vld [vmem:[#allocation6 + $0x118] sm:$0xff]
      %v5091 = vld [vmem:[#allocation6 + $0x120] sm:$0xff]
      %v5092 = vld [vmem:[#allocation6 + $0x128] sm:$0xff]
      %v5093 = vld [vmem:[#allocation6 + $0x130] sm:$0xff]
      %v5094 = vld [vmem:[#allocation6 + $0x138] sm:$0xff]
      %v5095 = vld [vmem:[#allocation6 + $0x140] sm:$0xff]
      %v5096 = vld [vmem:[#allocation6 + $0x148] sm:$0xff]
      %v5097 = vld [vmem:[#allocation6 + $0x150] sm:$0xff]
      %v5098 = vld [vmem:[#allocation6 + $0x158] sm:$0xff]
      %v5099 = vld [vmem:[#allocation6 + $0x160] sm:$0xff]
      %v5100 = vld [vmem:[#allocation6 + $0x168] sm:$0xff]
      %v5101 = vld [vmem:[#allocation6 + $0x170] sm:$0xff]
      %v5102 = vld [vmem:[#allocation6 + $0x178] sm:$0xff]
      %v5103 = vld [vmem:[#allocation6 + $0x180] sm:$0xff]
      %v5104 = vld [vmem:[#allocation6 + $0x188] sm:$0xff]
      %v5105 = vld [vmem:[#allocation6 + $0x190] sm:$0xff]
      %v5106 = vld [vmem:[#allocation6 + $0x198] sm:$0xff]
      %v5107 = vld [vmem:[#allocation6 + $0x1a0] sm:$0xff]
      %v5108 = vld [vmem:[#allocation6 + $0x1a8] sm:$0xff]
      %v5109 = vld [vmem:[#allocation6 + $0x1b0] sm:$0xff]
      %v5110 = vld [vmem:[#allocation6 + $0x1b8] sm:$0xff]
      %v5111 = vld [vmem:[#allocation6 + $0x1c0] sm:$0xff]
      %v5112 = vld [vmem:[#allocation6 + $0x1c8] sm:$0xff]
      %v5113 = vld [vmem:[#allocation6 + $0x1d0] sm:$0xff]
      %v5114 = vld [vmem:[#allocation6 + $0x1d8] sm:$0xff]
      %v5115 = vld [vmem:[#allocation6 + $0x1e0] sm:$0xff]
      %v5116 = vld [vmem:[#allocation6 + $0x1e8] sm:$0xff]
      %v5117 = vld [vmem:[#allocation6 + $0x1f0] sm:$0xff]
      %v5118 = vld [vmem:[#allocation6 + $0x1f8] sm:$0xff]
      %v5119 = vld [vmem:[#allocation6 + $0x200] sm:$0xff]
      %v5120 = vld [vmem:[#allocation6 + $0x208] sm:$0xff]
      %v5121 = vld [vmem:[#allocation6 + $0x210] sm:$0xff]
      %v5122 = vld [vmem:[#allocation6 + $0x218] sm:$0xff]
      %v5123 = vld [vmem:[#allocation6 + $0x220] sm:$0xff]
      %v5124 = vld [vmem:[#allocation6 + $0x228] sm:$0xff]
      %v5125 = vld [vmem:[#allocation6 + $0x230] sm:$0xff]
      %v5126 = vld [vmem:[#allocation6 + $0x238] sm:$0xff]
      %v5127 = vld [vmem:[#allocation6 + $0x240] sm:$0xff]
      %v5128 = vld [vmem:[#allocation6 + $0x248] sm:$0xff]
      %v5129 = vld [vmem:[#allocation6 + $0x250] sm:$0xff]
      %v5130 = vld [vmem:[#allocation6 + $0x258] sm:$0xff]
      %v5131 = vld [vmem:[#allocation6 + $0x260] sm:$0xff]
      %v5132 = vld [vmem:[#allocation6 + $0x268] sm:$0xff]
      %v5133 = vld [vmem:[#allocation6 + $0x270] sm:$0xff]
      %v5134 = vld [vmem:[#allocation6 + $0x278] sm:$0xff]
      %v5135 = vld [vmem:[#allocation6 + $0x280] sm:$0xff]
      %v5136 = vld [vmem:[#allocation6 + $0x288] sm:$0xff]
      %v5137 = vld [vmem:[#allocation6 + $0x290] sm:$0xff]
      %v5138 = vld [vmem:[#allocation6 + $0x298] sm:$0xff]
      %v5139 = vld [vmem:[#allocation6 + $0x2a0] sm:$0xff]
      %v5140 = vld [vmem:[#allocation6 + $0x2a8] sm:$0xff]
      %v5141 = vld [vmem:[#allocation6 + $0x2b0] sm:$0xff]
      %v5142 = vld [vmem:[#allocation6 + $0x2b8] sm:$0xff]
      %v5143 = vld [vmem:[#allocation6 + $0x2c0] sm:$0xff]
      %v5144 = vld [vmem:[#allocation6 + $0x2c8] sm:$0xff]
      %v5145 = vld [vmem:[#allocation6 + $0x2d0] sm:$0xff]
      %v5146 = vld [vmem:[#allocation6 + $0x2d8] sm:$0xff]
      %v5147 = vld [vmem:[#allocation6 + $0x2e0] sm:$0xff]
      %v5148 = vld [vmem:[#allocation6 + $0x2e8] sm:$0xff]
      %v5149 = vld [vmem:[#allocation6 + $0x2f0] sm:$0xff]
      %v5150 = vld [vmem:[#allocation6 + $0x2f8] sm:$0xff]
      %v5151 = vld [vmem:[#allocation6 + $0x300] sm:$0xff]
      %v5152 = vld [vmem:[#allocation6 + $0x308] sm:$0xff]
      %v5153 = vld [vmem:[#allocation6 + $0x310] sm:$0xff]
      %v5154 = vld [vmem:[#allocation6 + $0x318] sm:$0xff]
      %v5155 = vld [vmem:[#allocation6 + $0x320] sm:$0xff]
      %v5156 = vld [vmem:[#allocation6 + $0x328] sm:$0xff]
      %v5157 = vld [vmem:[#allocation6 + $0x330] sm:$0xff]
      %v5158 = vld [vmem:[#allocation6 + $0x338] sm:$0xff]
      %v5159 = vld [vmem:[#allocation6 + $0x340] sm:$0xff]
      %v5160 = vld [vmem:[#allocation6 + $0x348] sm:$0xff]
      %v5161 = vld [vmem:[#allocation6 + $0x350] sm:$0xff]
      %v5162 = vld [vmem:[#allocation6 + $0x358] sm:$0xff]
      %v5163 = vld [vmem:[#allocation6 + $0x360] sm:$0xff]
      %v5164 = vld [vmem:[#allocation6 + $0x368] sm:$0xff]
      %v5165 = vld [vmem:[#allocation6 + $0x370] sm:$0xff]
      %v5166 = vld [vmem:[#allocation6 + $0x378] sm:$0xff]
      %v5167 = vld [vmem:[#allocation6 + $0x380] sm:$0xff]
      %v5168 = vld [vmem:[#allocation6 + $0x388] sm:$0xff]
      %v5169 = vld [vmem:[#allocation6 + $0x390] sm:$0xff]
      %v5170 = vld [vmem:[#allocation6 + $0x398] sm:$0xff]
      %v5171 = vld [vmem:[#allocation6 + $0x3a0] sm:$0xff]
      %v5172 = vld [vmem:[#allocation6 + $0x3a8] sm:$0xff]
      %v5173 = vld [vmem:[#allocation6 + $0x3b0] sm:$0xff]
      %v5174 = vld [vmem:[#allocation6 + $0x3b8] sm:$0xff]
      %v5175 = vld [vmem:[#allocation6 + $0x3c0] sm:$0xff]
      %v5176 = vld [vmem:[#allocation6 + $0x3c8] sm:$0xff]
      %v5177 = vld [vmem:[#allocation6 + $0x3d0] sm:$0xff]
      %v5178 = vld [vmem:[#allocation6 + $0x3d8] sm:$0xff]
      %v5179 = vld [vmem:[#allocation6 + $0x3e0] sm:$0xff]
      %v5180 = vld [vmem:[#allocation6 + $0x3e8] sm:$0xff]
      %v5181 = vld [vmem:[#allocation6 + $0x3f0] sm:$0xff]
      %v5182 = vld [vmem:[#allocation6 + $0x3f8] sm:$0xff]
      %v5311 = vunpack.c.l.b16 %v5055
      %v5312 = vunpack.c.h.b16 %v5055
      %v5313 = vunpack.c.l.b16 %v5056
      %v5314 = vunpack.c.h.b16 %v5056
      %v5315 = vunpack.c.l.b16 %v5057
      %v5316 = vunpack.c.h.b16 %v5057
      %v5317 = vunpack.c.l.b16 %v5058
      %v5318 = vunpack.c.h.b16 %v5058
      %v5319 = vunpack.c.l.b16 %v5059
      %v5320 = vunpack.c.h.b16 %v5059
      %v5321 = vunpack.c.l.b16 %v5060
      %v5322 = vunpack.c.h.b16 %v5060
      %v5323 = vunpack.c.l.b16 %v5061
      %v5324 = vunpack.c.h.b16 %v5061
      %v5325 = vunpack.c.l.b16 %v5062
      %v5326 = vunpack.c.h.b16 %v5062
      %v5327 = vunpack.c.l.b16 %v5063
      %v5328 = vunpack.c.h.b16 %v5063
      %v5329 = vunpack.c.l.b16 %v5064
      %v5330 = vunpack.c.h.b16 %v5064
      %v5331 = vunpack.c.l.b16 %v5065
      %v5332 = vunpack.c.h.b16 %v5065
      %v5333 = vunpack.c.l.b16 %v5066
      %v5334 = vunpack.c.h.b16 %v5066
      %v5335 = vunpack.c.l.b16 %v5067
      %v5336 = vunpack.c.h.b16 %v5067
      %v5337 = vunpack.c.l.b16 %v5068
      %v5338 = vunpack.c.h.b16 %v5068
      %v5339 = vunpack.c.l.b16 %v5069
      %v5340 = vunpack.c.h.b16 %v5069
      %v5341 = vunpack.c.l.b16 %v5070
      %v5342 = vunpack.c.h.b16 %v5070
      %v5343 = vunpack.c.l.b16 %v5071
      %v5344 = vunpack.c.h.b16 %v5071
      %v5345 = vunpack.c.l.b16 %v5072
      %v5346 = vunpack.c.h.b16 %v5072
      %v5347 = vunpack.c.l.b16 %v5073
      %v5348 = vunpack.c.h.b16 %v5073
      %v5349 = vunpack.c.l.b16 %v5074
      %v5350 = vunpack.c.h.b16 %v5074
      %v5351 = vunpack.c.l.b16 %v5075
      %v5352 = vunpack.c.h.b16 %v5075
      %v5353 = vunpack.c.l.b16 %v5076
      %v5354 = vunpack.c.h.b16 %v5076
      %v5355 = vunpack.c.l.b16 %v5077
      %v5356 = vunpack.c.h.b16 %v5077
      %v5357 = vunpack.c.l.b16 %v5078
      %v5358 = vunpack.c.h.b16 %v5078
      %v5359 = vunpack.c.l.b16 %v5079
      %v5360 = vunpack.c.h.b16 %v5079
      %v5361 = vunpack.c.l.b16 %v5080
      %v5362 = vunpack.c.h.b16 %v5080
      %v5363 = vunpack.c.l.b16 %v5081
      %v5364 = vunpack.c.h.b16 %v5081
      %v5365 = vunpack.c.l.b16 %v5082
      %v5366 = vunpack.c.h.b16 %v5082
      %v5367 = vunpack.c.l.b16 %v5083
      %v5368 = vunpack.c.h.b16 %v5083
      %v5369 = vunpack.c.l.b16 %v5084
      %v5370 = vunpack.c.h.b16 %v5084
      %v5371 = vunpack.c.l.b16 %v5085
      %v5372 = vunpack.c.h.b16 %v5085
      %v5373 = vunpack.c.l.b16 %v5086
      %v5374 = vunpack.c.h.b16 %v5086
      %v5375 = vunpack.c.l.b16 %v5087
      %v5376 = vunpack.c.h.b16 %v5087
      %v5377 = vunpack.c.l.b16 %v5088
      %v5378 = vunpack.c.h.b16 %v5088
      %v5379 = vunpack.c.l.b16 %v5089
      %v5380 = vunpack.c.h.b16 %v5089
      %v5381 = vunpack.c.l.b16 %v5090
      %v5382 = vunpack.c.h.b16 %v5090
      %v5383 = vunpack.c.l.b16 %v5091
      %v5384 = vunpack.c.h.b16 %v5091
      %v5385 = vunpack.c.l.b16 %v5092
      %v5386 = vunpack.c.h.b16 %v5092
      %v5387 = vunpack.c.l.b16 %v5093
      %v5388 = vunpack.c.h.b16 %v5093
      %v5389 = vunpack.c.l.b16 %v5094
      %v5390 = vunpack.c.h.b16 %v5094
      %v5391 = vunpack.c.l.b16 %v5095
      %v5392 = vunpack.c.h.b16 %v5095
      %v5393 = vunpack.c.l.b16 %v5096
      %v5394 = vunpack.c.h.b16 %v5096
      %v5395 = vunpack.c.l.b16 %v5097
      %v5396 = vunpack.c.h.b16 %v5097
      %v5397 = vunpack.c.l.b16 %v5098
      %v5398 = vunpack.c.h.b16 %v5098
      %v5399 = vunpack.c.l.b16 %v5099
      %v5400 = vunpack.c.h.b16 %v5099
      %v5401 = vunpack.c.l.b16 %v5100
      %v5402 = vunpack.c.h.b16 %v5100
      %v5403 = vunpack.c.l.b16 %v5101
      %v5404 = vunpack.c.h.b16 %v5101
      %v5405 = vunpack.c.l.b16 %v5102
      %v5406 = vunpack.c.h.b16 %v5102
      %v5407 = vunpack.c.l.b16 %v5103
      %v5408 = vunpack.c.h.b16 %v5103
      %v5409 = vunpack.c.l.b16 %v5104
      %v5410 = vunpack.c.h.b16 %v5104
      %v5411 = vunpack.c.l.b16 %v5105
      %v5412 = vunpack.c.h.b16 %v5105
      %v5413 = vunpack.c.l.b16 %v5106
      %v5414 = vunpack.c.h.b16 %v5106
      %v5415 = vunpack.c.l.b16 %v5107
      %v5416 = vunpack.c.h.b16 %v5107
      %v5417 = vunpack.c.l.b16 %v5108
      %v5418 = vunpack.c.h.b16 %v5108
      %v5419 = vunpack.c.l.b16 %v5109
      %v5420 = vunpack.c.h.b16 %v5109
      %v5421 = vunpack.c.l.b16 %v5110
      %v5422 = vunpack.c.h.b16 %v5110
      %v5423 = vunpack.c.l.b16 %v5111
      %v5424 = vunpack.c.h.b16 %v5111
      %v5425 = vunpack.c.l.b16 %v5112
      %v5426 = vunpack.c.h.b16 %v5112
      %v5427 = vunpack.c.l.b16 %v5113
      %v5428 = vunpack.c.h.b16 %v5113
      %v5429 = vunpack.c.l.b16 %v5114
      %v5430 = vunpack.c.h.b16 %v5114
      %v5431 = vunpack.c.l.b16 %v5115
      %v5432 = vunpack.c.h.b16 %v5115
      %v5433 = vunpack.c.l.b16 %v5116
      %v5434 = vunpack.c.h.b16 %v5116
      %v5435 = vunpack.c.l.b16 %v5117
      %v5436 = vunpack.c.h.b16 %v5117
      %v5437 = vunpack.c.l.b16 %v5118
      %v5438 = vunpack.c.h.b16 %v5118
      %v5439 = vunpack.c.l.b16 %v5119
      %v5440 = vunpack.c.h.b16 %v5119
      %v5441 = vunpack.c.l.b16 %v5120
      %v5442 = vunpack.c.h.b16 %v5120
      %v5443 = vunpack.c.l.b16 %v5121
      %v5444 = vunpack.c.h.b16 %v5121
      %v5445 = vunpack.c.l.b16 %v5122
      %v5446 = vunpack.c.h.b16 %v5122
      %v5447 = vunpack.c.l.b16 %v5123
      %v5448 = vunpack.c.h.b16 %v5123
      %v5449 = vunpack.c.l.b16 %v5124
      %v5450 = vunpack.c.h.b16 %v5124
      %v5451 = vunpack.c.l.b16 %v5125
      %v5452 = vunpack.c.h.b16 %v5125
      %v5453 = vunpack.c.l.b16 %v5126
      %v5454 = vunpack.c.h.b16 %v5126
      %v5455 = vunpack.c.l.b16 %v5127
      %v5456 = vunpack.c.h.b16 %v5127
      %v5457 = vunpack.c.l.b16 %v5128
      %v5458 = vunpack.c.h.b16 %v5128
      %v5459 = vunpack.c.l.b16 %v5129
      %v5460 = vunpack.c.h.b16 %v5129
      %v5461 = vunpack.c.l.b16 %v5130
      %v5462 = vunpack.c.h.b16 %v5130
      %v5463 = vunpack.c.l.b16 %v5131
      %v5464 = vunpack.c.h.b16 %v5131
      %v5465 = vunpack.c.l.b16 %v5132
      %v5466 = vunpack.c.h.b16 %v5132
      %v5467 = vunpack.c.l.b16 %v5133
      %v5468 = vunpack.c.h.b16 %v5133
      %v5469 = vunpack.c.l.b16 %v5134
      %v5470 = vunpack.c.h.b16 %v5134
      %v5471 = vunpack.c.l.b16 %v5135
      %v5472 = vunpack.c.h.b16 %v5135
      %v5473 = vunpack.c.l.b16 %v5136
      %v5474 = vunpack.c.h.b16 %v5136
      %v5475 = vunpack.c.l.b16 %v5137
      %v5476 = vunpack.c.h.b16 %v5137
      %v5477 = vunpack.c.l.b16 %v5138
      %v5478 = vunpack.c.h.b16 %v5138
      %v5479 = vunpack.c.l.b16 %v5139
      %v5480 = vunpack.c.h.b16 %v5139
      %v5481 = vunpack.c.l.b16 %v5140
      %v5482 = vunpack.c.h.b16 %v5140
      %v5483 = vunpack.c.l.b16 %v5141
      %v5484 = vunpack.c.h.b16 %v5141
      %v5485 = vunpack.c.l.b16 %v5142
      %v5486 = vunpack.c.h.b16 %v5142
      %v5487 = vunpack.c.l.b16 %v5143
      %v5488 = vunpack.c.h.b16 %v5143
      %v5489 = vunpack.c.l.b16 %v5144
      %v5490 = vunpack.c.h.b16 %v5144
      %v5491 = vunpack.c.l.b16 %v5145
      %v5492 = vunpack.c.h.b16 %v5145
      %v5493 = vunpack.c.l.b16 %v5146
      %v5494 = vunpack.c.h.b16 %v5146
      %v5495 = vunpack.c.l.b16 %v5147
      %v5496 = vunpack.c.h.b16 %v5147
      %v5497 = vunpack.c.l.b16 %v5148
      %v5498 = vunpack.c.h.b16 %v5148
      %v5499 = vunpack.c.l.b16 %v5149
      %v5500 = vunpack.c.h.b16 %v5149
      %v5501 = vunpack.c.l.b16 %v5150
      %v5502 = vunpack.c.h.b16 %v5150
      %v5503 = vunpack.c.l.b16 %v5151
      %v5504 = vunpack.c.h.b16 %v5151
      %v5505 = vunpack.c.l.b16 %v5152
      %v5506 = vunpack.c.h.b16 %v5152
      %v5507 = vunpack.c.l.b16 %v5153
      %v5508 = vunpack.c.h.b16 %v5153
      %v5509 = vunpack.c.l.b16 %v5154
      %v5510 = vunpack.c.h.b16 %v5154
      %v5511 = vunpack.c.l.b16 %v5155
      %v5512 = vunpack.c.h.b16 %v5155
      %v5513 = vunpack.c.l.b16 %v5156
      %v5514 = vunpack.c.h.b16 %v5156
      %v5515 = vunpack.c.l.b16 %v5157
      %v5516 = vunpack.c.h.b16 %v5157
      %v5517 = vunpack.c.l.b16 %v5158
      %v5518 = vunpack.c.h.b16 %v5158
      %v5519 = vunpack.c.l.b16 %v5159
      %v5520 = vunpack.c.h.b16 %v5159
      %v5521 = vunpack.c.l.b16 %v5160
      %v5522 = vunpack.c.h.b16 %v5160
      %v5523 = vunpack.c.l.b16 %v5161
      %v5524 = vunpack.c.h.b16 %v5161
      %v5525 = vunpack.c.l.b16 %v5162
      %v5526 = vunpack.c.h.b16 %v5162
      %v5527 = vunpack.c.l.b16 %v5163
      %v5528 = vunpack.c.h.b16 %v5163
      %v5529 = vunpack.c.l.b16 %v5164
      %v5530 = vunpack.c.h.b16 %v5164
      %v5531 = vunpack.c.l.b16 %v5165
      %v5532 = vunpack.c.h.b16 %v5165
      %v5533 = vunpack.c.l.b16 %v5166
      %v5534 = vunpack.c.h.b16 %v5166
      %v5535 = vunpack.c.l.b16 %v5167
      %v5536 = vunpack.c.h.b16 %v5167
      %v5537 = vunpack.c.l.b16 %v5168
      %v5538 = vunpack.c.h.b16 %v5168
      %v5539 = vunpack.c.l.b16 %v5169
      %v5540 = vunpack.c.h.b16 %v5169
      %v5541 = vunpack.c.l.b16 %v5170
      %v5542 = vunpack.c.h.b16 %v5170
      %v5543 = vunpack.c.l.b16 %v5171
      %v5544 = vunpack.c.h.b16 %v5171
      %v5545 = vunpack.c.l.b16 %v5172
      %v5546 = vunpack.c.h.b16 %v5172
      %v5547 = vunpack.c.l.b16 %v5173
      %v5548 = vunpack.c.h.b16 %v5173
      %v5549 = vunpack.c.l.b16 %v5174
      %v5550 = vunpack.c.h.b16 %v5174
      %v5551 = vunpack.c.l.b16 %v5175
      %v5552 = vunpack.c.h.b16 %v5175
      %v5553 = vunpack.c.l.b16 %v5176
      %v5554 = vunpack.c.h.b16 %v5176
      %v5555 = vunpack.c.l.b16 %v5177
      %v5556 = vunpack.c.h.b16 %v5177
      %v5557 = vunpack.c.l.b16 %v5178
      %v5558 = vunpack.c.h.b16 %v5178
      %v5559 = vunpack.c.l.b16 %v5179
      %v5560 = vunpack.c.h.b16 %v5179
      %v5561 = vunpack.c.l.b16 %v5180
      %v5562 = vunpack.c.h.b16 %v5180
      %v5563 = vunpack.c.l.b16 %v5181
      %v5564 = vunpack.c.h.b16 %v5181
      %v5565 = vunpack.c.l.b16 %v5182
      %v5566 = vunpack.c.h.b16 %v5182
      %v5567 = vpack.c.b16 %v5319, %v5311
      %v5568 = vpack.c.b16 %v5320, %v5312
      %v5569 = vpack.c.b16 %v5321, %v5313
      %v5570 = vpack.c.b16 %v5322, %v5314
      %v5571 = vpack.c.b16 %v5323, %v5315
      %v5572 = vpack.c.b16 %v5324, %v5316
      %v5573 = vpack.c.b16 %v5325, %v5317
      %v5574 = vpack.c.b16 %v5326, %v5318
      %v5575 = vpack.c.b16 %v5335, %v5327
      %v5576 = vpack.c.b16 %v5336, %v5328
      %v5577 = vpack.c.b16 %v5337, %v5329
      %v5578 = vpack.c.b16 %v5338, %v5330
      %v5579 = vpack.c.b16 %v5339, %v5331
      %v5580 = vpack.c.b16 %v5340, %v5332
      %v5581 = vpack.c.b16 %v5341, %v5333
      %v5582 = vpack.c.b16 %v5342, %v5334
      %v5583 = vpack.c.b16 %v5351, %v5343
      %v5584 = vpack.c.b16 %v5352, %v5344
      %v5585 = vpack.c.b16 %v5353, %v5345
      %v5586 = vpack.c.b16 %v5354, %v5346
      %v5587 = vpack.c.b16 %v5355, %v5347
      %v5588 = vpack.c.b16 %v5356, %v5348
      %v5589 = vpack.c.b16 %v5357, %v5349
      %v5590 = vpack.c.b16 %v5358, %v5350
      %v5591 = vpack.c.b16 %v5367, %v5359
      %v5592 = vpack.c.b16 %v5368, %v5360
      %v5593 = vpack.c.b16 %v5369, %v5361
      %v5594 = vpack.c.b16 %v5370, %v5362
      %v5595 = vpack.c.b16 %v5371, %v5363
      %v5596 = vpack.c.b16 %v5372, %v5364
      %v5597 = vpack.c.b16 %v5373, %v5365
      %v5598 = vpack.c.b16 %v5374, %v5366
      %v5599 = vpack.c.b16 %v5383, %v5375
      %v5600 = vpack.c.b16 %v5384, %v5376
      %v5601 = vpack.c.b16 %v5385, %v5377
      %v5602 = vpack.c.b16 %v5386, %v5378
      %v5603 = vpack.c.b16 %v5387, %v5379
      %v5604 = vpack.c.b16 %v5388, %v5380
      %v5605 = vpack.c.b16 %v5389, %v5381
      %v5606 = vpack.c.b16 %v5390, %v5382
      %v5607 = vpack.c.b16 %v5399, %v5391
      %v5608 = vpack.c.b16 %v5400, %v5392
      %v5609 = vpack.c.b16 %v5401, %v5393
      %v5610 = vpack.c.b16 %v5402, %v5394
      %v5611 = vpack.c.b16 %v5403, %v5395
      %v5612 = vpack.c.b16 %v5404, %v5396
      %v5613 = vpack.c.b16 %v5405, %v5397
      %v5614 = vpack.c.b16 %v5406, %v5398
      %v5615 = vpack.c.b16 %v5415, %v5407
      %v5616 = vpack.c.b16 %v5416, %v5408
      %v5617 = vpack.c.b16 %v5417, %v5409
      %v5618 = vpack.c.b16 %v5418, %v5410
      %v5619 = vpack.c.b16 %v5419, %v5411
      %v5620 = vpack.c.b16 %v5420, %v5412
      %v5621 = vpack.c.b16 %v5421, %v5413
      %v5622 = vpack.c.b16 %v5422, %v5414
      %v5623 = vpack.c.b16 %v5431, %v5423
      %v5624 = vpack.c.b16 %v5432, %v5424
      %v5625 = vpack.c.b16 %v5433, %v5425
      %v5626 = vpack.c.b16 %v5434, %v5426
      %v5627 = vpack.c.b16 %v5435, %v5427
      %v5628 = vpack.c.b16 %v5436, %v5428
      %v5629 = vpack.c.b16 %v5437, %v5429
      %v5630 = vpack.c.b16 %v5438, %v5430
      %v5631 = vpack.c.b16 %v5447, %v5439
      %v5632 = vpack.c.b16 %v5448, %v5440
      %v5633 = vpack.c.b16 %v5449, %v5441
      %v5634 = vpack.c.b16 %v5450, %v5442
      %v5635 = vpack.c.b16 %v5451, %v5443
      %v5636 = vpack.c.b16 %v5452, %v5444
      %v5637 = vpack.c.b16 %v5453, %v5445
      %v5638 = vpack.c.b16 %v5454, %v5446
      %v5639 = vpack.c.b16 %v5463, %v5455
      %v5640 = vpack.c.b16 %v5464, %v5456
      %v5641 = vpack.c.b16 %v5465, %v5457
      %v5642 = vpack.c.b16 %v5466, %v5458
      %v5643 = vpack.c.b16 %v5467, %v5459
      %v5644 = vpack.c.b16 %v5468, %v5460
      %v5645 = vpack.c.b16 %v5469, %v5461
      %v5646 = vpack.c.b16 %v5470, %v5462
      %v5647 = vpack.c.b16 %v5479, %v5471
      %v5648 = vpack.c.b16 %v5480, %v5472
      %v5649 = vpack.c.b16 %v5481, %v5473
      %v5650 = vpack.c.b16 %v5482, %v5474
      %v5651 = vpack.c.b16 %v5483, %v5475
      %v5652 = vpack.c.b16 %v5484, %v5476
      %v5653 = vpack.c.b16 %v5485, %v5477
      %v5654 = vpack.c.b16 %v5486, %v5478
      %v5655 = vpack.c.b16 %v5495, %v5487
      %v5656 = vpack.c.b16 %v5496, %v5488
      %v5657 = vpack.c.b16 %v5497, %v5489
      %v5658 = vpack.c.b16 %v5498, %v5490
      %v5659 = vpack.c.b16 %v5499, %v5491
      %v5660 = vpack.c.b16 %v5500, %v5492
      %v5661 = vpack.c.b16 %v5501, %v5493
      %v5662 = vpack.c.b16 %v5502, %v5494
      %v5663 = vpack.c.b16 %v5511, %v5503
      %v5664 = vpack.c.b16 %v5512, %v5504
      %v5665 = vpack.c.b16 %v5513, %v5505
      %v5666 = vpack.c.b16 %v5514, %v5506
      %v5667 = vpack.c.b16 %v5515, %v5507
      %v5668 = vpack.c.b16 %v5516, %v5508
      %v5669 = vpack.c.b16 %v5517, %v5509
      %v5670 = vpack.c.b16 %v5518, %v5510
      %v5671 = vpack.c.b16 %v5527, %v5519
      %v5672 = vpack.c.b16 %v5528, %v5520
      %v5673 = vpack.c.b16 %v5529, %v5521
      %v5674 = vpack.c.b16 %v5530, %v5522
      %v5675 = vpack.c.b16 %v5531, %v5523
      %v5676 = vpack.c.b16 %v5532, %v5524
      %v5677 = vpack.c.b16 %v5533, %v5525
      %v5678 = vpack.c.b16 %v5534, %v5526
      %v5679 = vpack.c.b16 %v5543, %v5535
      %v5680 = vpack.c.b16 %v5544, %v5536
      %v5681 = vpack.c.b16 %v5545, %v5537
      %v5682 = vpack.c.b16 %v5546, %v5538
      %v5683 = vpack.c.b16 %v5547, %v5539
      %v5684 = vpack.c.b16 %v5548, %v5540
      %v5685 = vpack.c.b16 %v5549, %v5541
      %v5686 = vpack.c.b16 %v5550, %v5542
      %v5687 = vpack.c.b16 %v5559, %v5551
      %v5688 = vpack.c.b16 %v5560, %v5552
      %v5689 = vpack.c.b16 %v5561, %v5553
      %v5690 = vpack.c.b16 %v5562, %v5554
      %v5691 = vpack.c.b16 %v5563, %v5555
      %v5692 = vpack.c.b16 %v5564, %v5556
      %v5693 = vpack.c.b16 %v5565, %v5557
      %v5694 = vpack.c.b16 %v5566, %v5558
      %5823 = vmatprep.subr.bf16.mxu0 %v5624
      %5824 = vmatpush1.bf16.msra.mxu0 %v5623
      %5825 = vmatprep.subr.bf16.mxu0 %v5616
      %5826 = vmatpush1.bf16.msra.mxu0 %v5615
      %5827 = vmatprep.subr.bf16.mxu0 %v5608
      %5828 = vmatpush1.bf16.msra.mxu0 %v5607
      %5829 = vmatprep.subr.bf16.mxu0 %v5600
      %5830 = vmatpush1.bf16.msra.mxu0 %v5599
      %5831 = vmatprep.subr.bf16.mxu0 %v5592
      %5832 = vmatpush1.bf16.msra.mxu0 %v5591
      %5833 = vmatprep.subr.bf16.mxu0 %v5584
      %5834 = vmatpush1.bf16.msra.mxu0 %v5583
      %5835 = vmatprep.subr.bf16.mxu0 %v5576
      %5836 = vmatpush1.bf16.msra.mxu0 %v5575
      %5837 = vmatprep.subr.bf16.mxu0 %v5568
      %5838 = vmatpush1.bf16.msra.mxu0 %v5567
      %5839 = vmatprep.subr.bf16.mxu0 %v5688
      %5840 = vmatpush2.bf16.msra.mxu0 %v5687
      %5841 = vmatprep.subr.bf16.mxu0 %v5680
      %5842 = vmatpush2.bf16.msra.mxu0 %v5679
      %5843 = vmatprep.subr.bf16.mxu0 %v5672
      %5844 = vmatpush2.bf16.msra.mxu0 %v5671
      %5845 = vmatprep.subr.bf16.mxu0 %v5664
      %5846 = vmatpush2.bf16.msra.mxu0 %v5663
      %5847 = vmatprep.subr.bf16.mxu0 %v5656
      %5848 = vmatpush2.bf16.msra.mxu0 %v5655
      %5849 = vmatprep.subr.bf16.mxu0 %v5648
      %5850 = vmatpush2.bf16.msra.mxu0 %v5647
      %5851 = vmatprep.subr.bf16.mxu0 %v5640
      %5852 = vmatpush2.bf16.msra.mxu0 %v5639
      %5853 = vmatprep.subr.bf16.mxu0 %v5632
      %5854 = vmatpush2.bf16.msra.mxu0 %v5631
      %5855 = vmatprep.mubr.bf16.mxu0 %v5054
      %5856 = vmatmul.mubr.bf16.gmra.mxu0 %v5053
      %v5857 = vpop.f32.mrf.mxu0
      %v5858 = vadd.f32 0.0, %v5857
      %v5859 = vpop.f32.mrf.mxu0
      %v5860 = vadd.f32 0.0, %v5859
      %v5861 = vpop.f32.mrf.mxu0
      %v5862 = vpop.f32.mrf.mxu0
      %5863 = vdwg.mxu0
      %5864 = vmatprep.subr.bf16.mxu0 %v5626
      %5865 = vmatpush1.bf16.msra.mxu0 %v5625
      %5866 = vmatprep.subr.bf16.mxu0 %v5618
      %5867 = vmatpush1.bf16.msra.mxu0 %v5617
      %5868 = vmatprep.subr.bf16.mxu0 %v5610
      %5869 = vmatpush1.bf16.msra.mxu0 %v5609
      %5870 = vmatprep.subr.bf16.mxu0 %v5602
      %5871 = vmatpush1.bf16.msra.mxu0 %v5601
      %5872 = vmatprep.subr.bf16.mxu0 %v5594
      %5873 = vmatpush1.bf16.msra.mxu0 %v5593
      %5874 = vmatprep.subr.bf16.mxu0 %v5586
      %5875 = vmatpush1.bf16.msra.mxu0 %v5585
      %5876 = vmatprep.subr.bf16.mxu0 %v5578
      %5877 = vmatpush1.bf16.msra.mxu0 %v5577
      %5878 = vmatprep.subr.bf16.mxu0 %v5570
      %5879 = vmatpush1.bf16.msra.mxu0 %v5569
      %5880 = vmatprep.subr.bf16.mxu0 %v5690
      %5881 = vmatpush2.bf16.msra.mxu0 %v5689
      %5882 = vmatprep.subr.bf16.mxu0 %v5682
      %5883 = vmatpush2.bf16.msra.mxu0 %v5681
      %5884 = vmatprep.subr.bf16.mxu0 %v5674
      %5885 = vmatpush2.bf16.msra.mxu0 %v5673
      %5886 = vmatprep.subr.bf16.mxu0 %v5666
      %5887 = vmatpush2.bf16.msra.mxu0 %v5665
      %5888 = vmatprep.subr.bf16.mxu0 %v5658
      %5889 = vmatpush2.bf16.msra.mxu0 %v5657
      %5890 = vmatprep.subr.bf16.mxu0 %v5650
      %5891 = vmatpush2.bf16.msra.mxu0 %v5649
      %5892 = vmatprep.subr.bf16.mxu0 %v5642
      %5893 = vmatpush2.bf16.msra.mxu0 %v5641
      %5894 = vmatprep.subr.bf16.mxu0 %v5634
      %5895 = vmatpush2.bf16.msra.mxu0 %v5633
      %5896 = vmatprep.mubr.bf16.mxu0 %v5054
      %5897 = vmatmul.mubr.bf16.gmra.mxu0 %v5053
      %v5898 = vpop.f32.mrf.mxu0
      %v5899 = vadd.f32 0.0, %v5898
      %v5900 = vpop.f32.mrf.mxu0
      %v5901 = vadd.f32 0.0, %v5900
      %v5902 = vpop.f32.mrf.mxu0
      %v5903 = vpop.f32.mrf.mxu0
      %5904 = vdwg.mxu0
      %5905 = vmatprep.subr.bf16.mxu0 %v5628
      %5906 = vmatpush1.bf16.msra.mxu0 %v5627
      %5907 = vmatprep.subr.bf16.mxu0 %v5620
      %5908 = vmatpush1.bf16.msra.mxu0 %v5619
      %5909 = vmatprep.subr.bf16.mxu0 %v5612
      %5910 = vmatpush1.bf16.msra.mxu0 %v5611
      %5911 = vmatprep.subr.bf16.mxu0 %v5604
      %5912 = vmatpush1.bf16.msra.mxu0 %v5603
      %5913 = vmatprep.subr.bf16.mxu0 %v5596
      %5914 = vmatpush1.bf16.msra.mxu0 %v5595
      %5915 = vmatprep.subr.bf16.mxu0 %v5588
      %5916 = vmatpush1.bf16.msra.mxu0 %v5587
      %5917 = vmatprep.subr.bf16.mxu0 %v5580
      %5918 = vmatpush1.bf16.msra.mxu0 %v5579
      %5919 = vmatprep.subr.bf16.mxu0 %v5572
      %5920 = vmatpush1.bf16.msra.mxu0 %v5571
      %5921 = vmatprep.subr.bf16.mxu0 %v5692
      %5922 = vmatpush2.bf16.msra.mxu0 %v5691
      %5923 = vmatprep.subr.bf16.mxu0 %v5684
      %5924 = vmatpush2.bf16.msra.mxu0 %v5683
      %5925 = vmatprep.subr.bf16.mxu0 %v5676
      %5926 = vmatpush2.bf16.msra.mxu0 %v5675
      %5927 = vmatprep.subr.bf16.mxu0 %v5668
      %5928 = vmatpush2.bf16.msra.mxu0 %v5667
      %5929 = vmatprep.subr.bf16.mxu0 %v5660
      %5930 = vmatpush2.bf16.msra.mxu0 %v5659
      %5931 = vmatprep.subr.bf16.mxu0 %v5652
      %5932 = vmatpush2.bf16.msra.mxu0 %v5651
      %5933 = vmatprep.subr.bf16.mxu0 %v5644
      %5934 = vmatpush2.bf16.msra.mxu0 %v5643
      %5935 = vmatprep.subr.bf16.mxu0 %v5636
      %5936 = vmatpush2.bf16.msra.mxu0 %v5635
      %5937 = vmatprep.mubr.bf16.mxu0 %v5054
      %5938 = vmatmul.mubr.bf16.gmra.mxu0 %v5053
      %v5939 = vpop.f32.mrf.mxu0
      %v5940 = vadd.f32 0.0, %v5939
      %v5941 = vpop.f32.mrf.mxu0
      %v5942 = vadd.f32 0.0, %v5941
      %v5943 = vpop.f32.mrf.mxu0
      %v5944 = vpop.f32.mrf.mxu0
      %5945 = vdwg.mxu0
      %5946 = vmatprep.subr.bf16.mxu0 %v5630
      %5947 = vmatpush1.bf16.msra.mxu0 %v5629
      %5948 = vmatprep.subr.bf16.mxu0 %v5622
      %5949 = vmatpush1.bf16.msra.mxu0 %v5621
      %5950 = vmatprep.subr.bf16.mxu0 %v5614
      %5951 = vmatpush1.bf16.msra.mxu0 %v5613
      %5952 = vmatprep.subr.bf16.mxu0 %v5606
      %5953 = vmatpush1.bf16.msra.mxu0 %v5605
      %5954 = vmatprep.subr.bf16.mxu0 %v5598
      %5955 = vmatpush1.bf16.msra.mxu0 %v5597
      %5956 = vmatprep.subr.bf16.mxu0 %v5590
      %5957 = vmatpush1.bf16.msra.mxu0 %v5589
      %5958 = vmatprep.subr.bf16.mxu0 %v5582
      %5959 = vmatpush1.bf16.msra.mxu0 %v5581
      %5960 = vmatprep.subr.bf16.mxu0 %v5574
      %5961 = vmatpush1.bf16.msra.mxu0 %v5573
      %5962 = vmatprep.subr.bf16.mxu0 %v5694
      %5963 = vmatpush2.bf16.msra.mxu0 %v5693
      %5964 = vmatprep.subr.bf16.mxu0 %v5686
      %5965 = vmatpush2.bf16.msra.mxu0 %v5685
      %5966 = vmatprep.subr.bf16.mxu0 %v5678
      %5967 = vmatpush2.bf16.msra.mxu0 %v5677
      %5968 = vmatprep.subr.bf16.mxu0 %v5670
      %5969 = vmatpush2.bf16.msra.mxu0 %v5669
      %5970 = vmatprep.subr.bf16.mxu0 %v5662
      %5971 = vmatpush2.bf16.msra.mxu0 %v5661
      %5972 = vmatprep.subr.bf16.mxu0 %v5654
      %5973 = vmatpush2.bf16.msra.mxu0 %v5653
      %5974 = vmatprep.subr.bf16.mxu0 %v5646
      %5975 = vmatpush2.bf16.msra.mxu0 %v5645
      %5976 = vmatprep.subr.bf16.mxu0 %v5638
      %5977 = vmatpush2.bf16.msra.mxu0 %v5637
      %5978 = vmatprep.mubr.bf16.mxu0 %v5054
      %5979 = vmatmul.mubr.bf16.gmra.mxu0 %v5053
      %v5980 = vpop.f32.mrf.mxu0
      %v5981 = vadd.f32 0.0, %v5980
      %v5982 = vpop.f32.mrf.mxu0
      %v5983 = vadd.f32 0.0, %v5982
      %v5984 = vpop.f32.mrf.mxu0
      %v5985 = vpop.f32.mrf.mxu0
      %5986 = vdwg.mxu0
      %v5995 = vcombine.low %v5858, %v5860
      %v5996 = vcombine.low %v5899, %v5901
      %v5998 = vunpack.c.l.s4 1983009808
      %v5999 = vunpack.c.0.s8 %v5998
      %v6000 = vlaneseq
      %v6001 = vshrl.u32 %v6000, 7
      %v6002 = vsub.s32 %v5999, %v6001
      %v6003 = vrot.slane %v5995, %v6002
      %v6005 = vunpack.c.l.s4 1983009808
      %v6006 = vunpack.c.0.s8 %v6005
      %v6007 = vlaneseq
      %v6008 = vshrl.u32 %v6007, 7
      %v6009 = vsub.s32 %v6006, %v6008
      %v6010 = vrot.slane %v5996, %v6009
      %v6011 = vcombine.low %v6003, %v6010
      %v6012 = vcombine.low %v5940, %v5942
      %v6013 = vcombine.low %v5981, %v5983
      %v6015 = vunpack.c.l.s4 1983009808
      %v6016 = vunpack.c.0.s8 %v6015
      %v6017 = vlaneseq
      %v6018 = vshrl.u32 %v6017, 7
      %v6019 = vsub.s32 %v6016, %v6018
      %v6020 = vrot.slane %v6012, %v6019
      %v6022 = vunpack.c.l.s4 1983009808
      %v6023 = vunpack.c.0.s8 %v6022
      %v6024 = vlaneseq
      %v6025 = vshrl.u32 %v6024, 7
      %v6026 = vsub.s32 %v6023, %v6025
      %v6027 = vrot.slane %v6013, %v6026
      %v6028 = vcombine.low %v6020, %v6027
      %v6031 = vadd.f32 %v5040, %v6011
      %v6032 = vadd.f32 %v5041, %v6028
      %v6033 = vxor.u32 %v6031, 2147483648
      %v6034 = vmul.f32 %v6033, 1.442695
      %v6035 = vpow.pop %v6034
      %v6036 = vadd.f32 %v6035, 1.0
      %v6037 = vrcp.pop %v6036
      %v6038 = vmul.f32 1.0, %v6037
      %v6040 = vrot.slane %v6031, 4
      %v6042 = vxor.u32 %v6040, 2147483648
      %v6043 = vmul.f32 %v6042, 1.442695
      %v6044 = vpow.pop %v6043
      %v6045 = vadd.f32 %v6044, 1.0
      %v6046 = vrcp.pop %v6045
      %v6047 = vmul.f32 1.0, %v6046
      %v6048 = vtanh.pop %v6032
      %v6050 = vrot.slane %v6032, 4
      %v6052 = vxor.u32 %v6050, 2147483648
      %v6053 = vmul.f32 %v6052, 1.442695
      %v6054 = vpow.pop %v6053
      %v6055 = vadd.f32 %v6054, 1.0
      %v6056 = vrcp.pop %v6055
      %v6057 = vmul.f32 1.0, %v6056
      %v6058 = vmul.f32 %v6047, %v4009
      %v6059 = vmul.f32 %v6038, %v6048
      %v6060 = vadd.f32 %v6058, %v6059
      %v6061 = vtanh.pop %v6060
      %v6062 = vmul.f32 %v6057, %v6061
      %s6063 = smul.u32 %s4001, 4
      %s6064 = smul.addr %s6063, 2
      %s6065 = scalar_lea.vmem %s7, %s6064
      %6066 = vst [vmem:[%s6065] sm:$0xf] %v5035
      %s6067 = smul.u32 %s5036, 4
      %s6068 = smul.addr %s6067, 2
      %s6069 = scalar_lea.vmem %s7, %s6068
      %6070 = vst [vmem:[%s6069 + $0x4] sm:$0xf] %v6062
    $region42: #{_lambda_.6} parent=1 // loop_footer
      %s4005 = sadd.s32 1, %s4001
    $region43: #{_lambda_.6} parent=1 // loop_footer_branch
      %4000 = sbr.rel target = $region39
    $region44: #{_lambda_.6} parent=1 // loop_exit
      _
    // Predicated region
    $region45: #{_lambda_.6} parent=1 // pred_check
      _
    $region46: #{_lambda_.6} parent=1 // pred_check_branch
      %6072 = sbr.rel (0) target = $region48
    $region47: #{_lambda_.6} parent=1 // pred_region
      _
    $region48: #{_lambda_.6} parent=1 // pred_fallthru
      _
    // Predicated region
    $region49: #{_lambda_.6} parent=1 // pred_check
      _
    $region50: #{_lambda_.6} parent=1 // pred_check_branch
      %6074 = sbr.rel (0) target = $region52
    $region51: #{_lambda_.6} parent=1 // pred_region
      _
    $region52: #{_lambda_.6} parent=1 // pred_fallthru
      _
    %6075 = vsyncpa [#allocation5], 1
    %6076 = vsyncpa [#allocation7], 1

</llo_original>
